<compile_context>
chip_gen: v6e
topology: v6e:2x2x1
jax: 0.10.0
libtpu: 0.0.40
codegen_flags: <defaults>
</compile_context>

<pallas_src>
import functools
import math

import numpy as np

import jax
import jax.numpy as jnp
from jax.experimental import pallas as pl
from jax.experimental.pallas import tpu as pltpu

BN_EPS = 1e-5


# ---------------------------------------------------------------------------
# In-kernel building blocks (traced inline into the single fused kernel)
# ---------------------------------------------------------------------------
def _conv_block(planes, wb_ref, red_ref, brd_ref, g_ref, beta_ref, pad, pool):
    """Conv(same, stride 1) + train-mode BN + ReLU + MaxPool(pool) for one layer.

    planes:   list of per-batch 2D slabs (H, W*Cin)   (rows = h, cols = (w, c))
    wb_ref:   (ks, Kal, W*Cout)  banded conv weights, Kal = align8((W+2*pad)*Cin)
    red_ref:  (W*Cout, Cout)     0/1 matrix: sums the w positions of each channel
    brd_ref:  (Cout, W*Cout)     0/1 matrix: broadcasts per-channel values over w
    g_ref, beta_ref: (1, Cout)   BN affine
    Returns   list of per-batch pooled slabs (H//pool, (W//pool)*Cout).
    """
    ks, k_rows, w_co = wb_ref.shape
    co = g_ref.shape[1]
    wd = w_co // co
    hd = planes[0].shape[0]
    cin = planes[0].shape[1] // wd
    right_cols = k_rows - (wd + pad) * cin          # pad*cin (+ K alignment extra)
    nb = len(planes)

    taps = [wb_ref[kh] for kh in range(ks)]         # hoisted VMEM reads

    # --- convolution: acc[n][h, w*co + c]  (lane-dense, W*Cout >= 128) ---------
    accs = []
    for xn in planes:
        zl = jnp.zeros((hd, pad * cin), jnp.float32)
        zr = jnp.zeros((hd, right_cols), jnp.float32)
        mid = jnp.concatenate([zl, xn, zr], axis=1)              # (hd, k_rows)
        zt = jnp.zeros((pad, k_rows), jnp.float32)
        xp = jnp.concatenate([zt, mid, zt], axis=0)              # (hd + 2*pad, k_rows)
        acc = jnp.dot(xp[0:hd, :], taps[0], preferred_element_type=jnp.float32)
        for kh in range(1, ks):
            acc = acc + jnp.dot(xp[kh:kh + hd, :], taps[kh],
                                preferred_element_type=jnp.float32)
        accs.append(acc)                                         # (hd, wd*co)

    # --- train-mode BatchNorm2d: single-pass stats, folded affine --------------
    # (conv bias cancels exactly under batch-stat normalization -> omitted)
    colsum = accs[0].sum(axis=0, keepdims=True)
    colsq = (accs[0] * accs[0]).sum(axis=0, keepdims=True)
    for a in accs[1:]:
        colsum = colsum + a.sum(axis=0, keepdims=True)
        colsq = colsq + (a * a).sum(axis=0, keepdims=True)
    inv_cnt = 1.0 / float(nb * hd * wd)
    mean_c = jnp.dot(colsum, red_ref[...], preferred_element_type=jnp.float32) * inv_cnt
    msq_c = jnp.dot(colsq, red_ref[...], preferred_element_type=jnp.float32) * inv_cnt
    var_c = jnp.maximum(msq_c - mean_c * mean_c, 0.0)            # biased batch var
    s_c = g_ref[...] * jax.lax.rsqrt(var_c + BN_EPS)
    t_c = beta_ref[...] - mean_c * s_c
    s_vec = jnp.dot(s_c, brd_ref[...], preferred_element_type=jnp.float32)   # (1, wd*co)
    t_vec = jnp.dot(t_c, brd_ref[...], preferred_element_type=jnp.float32)

    # --- ReLU + MaxPool(pool, pool): sliding max over shifted slices + subsample
    outs = []
    wo = wd // pool
    ho = hd // pool
    for a in accs:
        y = jnp.maximum(a * s_vec + t_vec, 0.0)                  # (hd, wd*co)
        # sliding max along W (column-shifted slices)
        mw = y[:, 0:(wd - pool + 1) * co]
        for j in range(1, pool):
            mw = jnp.maximum(mw, y[:, j * co:(j + wd - pool + 1) * co])
        # subsample every pool-th w position
        pw = jnp.concatenate([mw[:, k * pool * co:k * pool * co + co]
                              for k in range(wo)], axis=1)       # (hd, wo*co)
        # sliding max along H (row-shifted slices)
        mh = pw[0:hd - pool + 1, :]
        for i in range(1, pool):
            mh = jnp.maximum(mh, pw[i:i + hd - pool + 1, :])
        # subsample every pool-th h position
        o = jnp.concatenate([mh[k * pool:k * pool + 1, :]
                             for k in range(ho)], axis=0)        # (ho, wo*co)
        outs.append(o)
    return outs


def _fused_forward_kernel(*refs, pools, pad, prior_mu, prior_sigma):
    (x_ref,
     wb1, rd1, bc1, g1, be1,
     wb2, rd2, bc2, g2, be2,
     wb3, rd3, bc3, g3, be3,
     fc1w, fc1b, fc2w, fc2b,
     muw, rhow, mub, rhob, epsw, epsb,
     logits_ref, kl_ref) = refs

    nb = x_ref.shape[0]
    planes = [x_ref[n] for n in range(nb)]          # (H0, W0) slabs, Cin = 1

    layer_refs = ((wb1, rd1, bc1, g1, be1),
                  (wb2, rd2, bc2, g2, be2),
                  (wb3, rd3, bc3, g3, be3))
    for (wb, rd, bc, g, be), pool in zip(layer_refs, pools):
        planes = _conv_block(planes, wb, rd, bc, g, be, pad, pool)

    # AdaptiveAvgPool2d((1,1)): spatial is already 1x1 after the 2*4*4 pooling -> identity.
    feat = jnp.concatenate(planes, axis=0)          # (nb, Lv[2])

    # Encoder.fcpart: Linear -> ReLU -> Linear
    h1 = jnp.maximum(jnp.dot(feat, fc1w[...], preferred_element_type=jnp.float32)
                     + fc1b[...], 0.0)
    z = jnp.dot(h1, fc2w[...], preferred_element_type=jnp.float32) + fc2b[...]

    # Bayesian LinearReparameterization head: W = mu + softplus(rho) * eps
    rho_w = rhow[...]
    rho_b = rhob[...]
    sig_w = jnp.maximum(rho_w, 0.0) + jnp.log1p(jnp.exp(-jnp.abs(rho_w)))   # stable softplus
    sig_b = jnp.maximum(rho_b, 0.0) + jnp.log1p(jnp.exp(-jnp.abs(rho_b)))
    w_s = muw[...] + sig_w * epsw[...]              # (Lv[4], num_classes)
    b_s = mub[...] + sig_b * epsb[...]              # (1, num_classes)
    logits = jnp.dot(z, w_s, preferred_element_type=jnp.float32) + b_s
    logits_ref[...] = logits.astype(logits_ref.dtype)

    # KL(q || N(prior_mu, prior_sigma)) closed form (bayesian_torch style)
    def _kl(mu, sig):
        return jnp.sum(jnp.log(prior_sigma / sig)
                       + (sig * sig + (mu - prior_mu) ** 2) / (2.0 * prior_sigma ** 2)
                       - 0.5, keepdims=True)        # (1, 1)

    kl_ref[...] = _kl(muw[...], sig_w) + _kl(mub[...], sig_b)


# ---------------------------------------------------------------------------
# One-time parameter preparation (hoisted out of the forward pass)
# ---------------------------------------------------------------------------
def prepare_params(params, ks, h0=32, w0=32):
    """Build banded conv weights, BN reduce/broadcast matrices, transposed fc/Bayes
    weights.  Runs once; its outputs are reused by every forward call."""
    pad = math.ceil((ks - 1) / 2)
    pools = tuple(c[4] for c in params["convs"])
    arrs = []
    h, w, cin = h0, w0, 1
    for (wt, _b, g, beta, pool) in params["convs"]:   # conv bias cancels under train BN
        cout = wt.shape[0]
        k = (w + 2 * pad) * cin
        k_rows = ((k + 7) // 8) * 8                   # sublane-align K (e.g. 49->56-equiv: 38->40)
        wt_np = np.asarray(wt, np.float32)            # torch layout (Cout, Cin, kh, kw)
        band = np.zeros((ks, k_rows, w * cout), np.float32)
        for kh in range(ks):
            for kw in range(ks):
                tap = np.transpose(wt_np[:, :, kh, kw])          # (Cin, Cout)
                for wc in range(w):
                    r0 = (wc + kw) * cin
                    band[kh, r0:r0 + cin, wc * cout:(wc + 1) * cout] = tap
        red = np.tile(np.eye(cout, dtype=np.float32), (w, 1))    # (w*cout, cout)
        brd = np.tile(np.eye(cout, dtype=np.float32), (1, w))    # (cout, w*cout)
        arrs += [jnp.asarray(band), jnp.asarray(red), jnp.asarray(brd),
                 jnp.asarray(g).reshape(1, -1), jnp.asarray(beta).reshape(1, -1)]
        h //= pool
        w //= pool
        cin = cout

    fc1_w, fc1_b = params["fc1"]
    fc2_w, fc2_b = params["fc2"]
    arrs += [fc1_w.T, fc1_b.reshape(1, -1), fc2_w.T, fc2_b.reshape(1, -1)]

    mu_w, rho_w, mu_b, rho_b, eps_w, eps_b = params["bayes_fc"]
    arrs += [mu_w.T, rho_w.T, mu_b.reshape(1, -1), rho_b.reshape(1, -1),
             eps_w.T, eps_b.reshape(1, -1)]
    return tuple(arrs), pools, pad


def build_forward(pools, pad, num_classes, prior_mu=0.0, prior_sigma=1.0):
    kern = functools.partial(_fused_forward_kernel, pools=pools, pad=pad,
                             prior_mu=float(prior_mu), prior_sigma=float(prior_sigma))

    @jax.jit
    def forward(x_nchw, arrs):
        n, c, h, w = x_nchw.shape
        assert c == 1
        x = x_nchw.reshape(n, h, w)                  # NCHW, C=1  ->  per-batch (H, W) slab
        operands = (x,) + tuple(arrs)
        logits, kl = pl.pallas_call(
            kern,
            out_shape=(jax.ShapeDtypeStruct((n, num_classes), jnp.float32),
                       jax.ShapeDtypeStruct((1, 1), jnp.float32)),
            in_specs=[pl.BlockSpec(memory_space=pltpu.MemorySpace.VMEM)] * len(operands),
            out_specs=(pl.BlockSpec(memory_space=pltpu.MemorySpace.VMEM),
                       pl.BlockSpec(memory_space=pltpu.MemorySpace.VMEM)),
            compiler_params=pltpu.CompilerParams(vmem_limit_bytes=32 * 1024 * 1024),
        )(*operands)
        return logits, kl[0, 0]

    return forward


# ---------------------------------------------------------------------------
# Parameter construction (deterministic, synthetic — mirrors module __init__)
# ---------------------------------------------------------------------------
def init_params(key, Lv, ks, num_classes, prior_mu=0.0, prior_sigma=1.0):
    keys = jax.random.split(key, 16)
    cin_list = [1, Lv[0], Lv[1]]
    cout_list = [Lv[0], Lv[1], Lv[2]]
    pools = [2, 4, 4]
    convs = []
    k_i = 0
    for cin, cout, pool in zip(cin_list, cout_list, pools):
        w = 0.1 * jax.random.normal(keys[k_i], (cout, cin, ks, ks), jnp.float32)
        b = 0.1 * jax.random.normal(keys[k_i + 1], (cout,), jnp.float32)
        g = jnp.ones((cout,), jnp.float32)
        beta = jnp.zeros((cout,), jnp.float32)
        convs.append((w, b, g, beta, pool))
        k_i += 2
    fc1_w = 0.1 * jax.random.normal(keys[k_i], (Lv[3], Lv[2]), jnp.float32)
    fc1_b = 0.1 * jax.random.normal(keys[k_i + 1], (Lv[3],), jnp.float32)
    fc2_w = 0.1 * jax.random.normal(keys[k_i + 2], (Lv[4], Lv[3]), jnp.float32)
    fc2_b = 0.1 * jax.random.normal(keys[k_i + 3], (Lv[4],), jnp.float32)
    mu_w = 0.1 * jax.random.normal(keys[k_i + 4], (num_classes, Lv[4]), jnp.float32)
    rho_w = jnp.full((num_classes, Lv[4]), -3.0, jnp.float32)
    mu_b = 0.1 * jax.random.normal(keys[k_i + 5], (num_classes,), jnp.float32)
    rho_b = jnp.full((num_classes,), -3.0, jnp.float32)
    eps_w = jax.random.normal(keys[k_i + 6], (num_classes, Lv[4]), jnp.float32)
    eps_b = jax.random.normal(keys[k_i + 7], (num_classes,), jnp.float32)
    # TODO(synk): LinearReparameterization resamples eps per forward call; here eps is
    # a fixed pre-drawn sample passed into the kernel.
    return {
        "convs": convs,
        "fc1": (fc1_w, fc1_b),
        "fc2": (fc2_w, fc2_b),
        "bayes_fc": (mu_w, rho_w, mu_b, rho_b, eps_w, eps_b),
        "prior": (jnp.float32(prior_mu), jnp.float32(prior_sigma)),
    }


# ---------------------------------------------------------------------------
# Pure-JAX reference (mirrors the PyTorch module exactly, incl. conv bias)
# ---------------------------------------------------------------------------
def reference_forward(x_nchw, params, ks):
    pad = math.ceil((ks - 1) / 2)
    hp = jax.lax.Precision.HIGHEST
    x = x_nchw
    for (wt, b, g, beta, pool) in params["convs"]:
        x = jax.lax.conv_general_dilated(
            x, wt, window_strides=(1, 1), padding=[(pad, pad), (pad, pad)],
            dimension_numbers=("NCHW", "OIHW", "NCHW"), precision=hp)
        x = x + b.reshape(1, -1, 1, 1)
        mean = jnp.mean(x, axis=(0, 2, 3), keepdims=True)
        var = jnp.mean(jnp.square(x - mean), axis=(0, 2, 3), keepdims=True)
        x = (x - mean) * jax.lax.rsqrt(var + BN_EPS) * g.reshape(1, -1, 1, 1) \
            + beta.reshape(1, -1, 1, 1)
        x = jnp.maximum(x, 0.0)
        n_, c_, h_, w_ = x.shape
        x = x.reshape(n_, c_, h_ // pool, pool, w_ // pool, pool).max(axis=(3, 5))
    feat = jnp.mean(x, axis=(2, 3))
    fc1_w, fc1_b = params["fc1"]
    fc2_w, fc2_b = params["fc2"]
    h1 = jnp.maximum(jnp.dot(feat, fc1_w.T, precision=hp) + fc1_b, 0.0)
    z = jnp.dot(h1, fc2_w.T, precision=hp) + fc2_b
    mu_w, rho_w, mu_b, rho_b, eps_w, eps_b = params["bayes_fc"]
    sig_w = jnp.log1p(jnp.exp(rho_w))
    sig_b = jnp.log1p(jnp.exp(rho_b))
    w_s = mu_w + sig_w * eps_w
    b_s = mu_b + sig_b * eps_b
    logits = jnp.dot(z, w_s.T, precision=hp) + b_s
    pm, ps = params["prior"]

    def _kl(mu, sig):
        return jnp.sum(jnp.log(ps / sig) + (sig ** 2 + (mu - pm) ** 2) / (2.0 * ps ** 2) - 0.5)

    return logits, _kl(mu_w, sig_w) + _kl(mu_b, sig_b)


if __name__ == "__main__":
    Lv = [8, 16, 32, 16, 8]
    ks = 7
    num_classes = 5

    key = jax.random.PRNGKey(0)
    k_par, k_x = jax.random.split(key)
    params = init_params(k_par, Lv, ks, num_classes)

    # input spatial must survive pools 2*4*4 = 32 -> 32x32, single channel, batch 2
    x = jax.random.normal(k_x, (2, 1, 32, 32), jnp.float32)

    arrs, pools, pad = prepare_params(params, ks)                      # hoisted, one-time
    forward = build_forward(pools, pad, num_classes,
                            prior_mu=float(params["prior"][0]),
                            prior_sigma=float(params["prior"][1]))

    logits, kl = forward(x, arrs)
    logits = jax.block_until_ready(logits)
    kl = jax.block_until_ready(kl)

    ref_logits, ref_kl = reference_forward(x, params, ks)

    assert logits.shape == (2, num_classes)
    assert bool(jnp.all(jnp.isfinite(logits))) and bool(jnp.isfinite(kl))
    assert bool(jnp.allclose(logits, ref_logits, rtol=2e-3, atol=2e-3))
    assert bool(jnp.allclose(kl, ref_kl, rtol=1e-4, atol=1e-4))
    print("KERNEL_OK")
</pallas_src>

<mosaic_0001>
module attributes {stable_mosaic.version = 11 : i64} {
  func.func @_fused_forward_kernel(%arg0: memref<2x32x32xf32, #tpu.memory_space<vmem>>, %arg1: memref<7x40x256xf32, #tpu.memory_space<vmem>>, %arg2: memref<256x8xf32, #tpu.memory_space<vmem>>, %arg3: memref<8x256xf32, #tpu.memory_space<vmem>>, %arg4: memref<1x8xf32, #tpu.memory_space<vmem>>, %arg5: memref<1x8xf32, #tpu.memory_space<vmem>>, %arg6: memref<7x176x256xf32, #tpu.memory_space<vmem>>, %arg7: memref<256x16xf32, #tpu.memory_space<vmem>>, %arg8: memref<16x256xf32, #tpu.memory_space<vmem>>, %arg9: memref<1x16xf32, #tpu.memory_space<vmem>>, %arg10: memref<1x16xf32, #tpu.memory_space<vmem>>, %arg11: memref<7x160x128xf32, #tpu.memory_space<vmem>>, %arg12: memref<128x32xf32, #tpu.memory_space<vmem>>, %arg13: memref<32x128xf32, #tpu.memory_space<vmem>>, %arg14: memref<1x32xf32, #tpu.memory_space<vmem>>, %arg15: memref<1x32xf32, #tpu.memory_space<vmem>>, %arg16: memref<32x16xf32, #tpu.memory_space<vmem>>, %arg17: memref<1x16xf32, #tpu.memory_space<vmem>>, %arg18: memref<16x8xf32, #tpu.memory_space<vmem>>, %arg19: memref<1x8xf32, #tpu.memory_space<vmem>>, %arg20: memref<8x5xf32, #tpu.memory_space<vmem>>, %arg21: memref<8x5xf32, #tpu.memory_space<vmem>>, %arg22: memref<1x5xf32, #tpu.memory_space<vmem>>, %arg23: memref<1x5xf32, #tpu.memory_space<vmem>>, %arg24: memref<8x5xf32, #tpu.memory_space<vmem>>, %arg25: memref<1x5xf32, #tpu.memory_space<vmem>>, %arg26: memref<2x5xf32, #tpu.memory_space<vmem>>, %arg27: memref<1x1xf32, #tpu.memory_space<vmem>>) attributes {dimension_semantics = [], scalar_prefetch = 0 : i64, scratch_operands = 0 : i64, tpu.core_type = #tpu.core_type<tc>} {
    %c0 = arith.constant 0 : index
    %c0_0 = arith.constant 0 : index
    %c0_1 = arith.constant 0 : index
    %0 = vector.load %arg0[%c0, %c0_0, %c0_1] : memref<2x32x32xf32, #tpu.memory_space<vmem>>, vector<1x32x32xf32>
    %1 = vector.shape_cast %0 : vector<1x32x32xf32> to vector<32x32xf32>
    %c1 = arith.constant 1 : index
    %c0_2 = arith.constant 0 : index
    %c0_3 = arith.constant 0 : index
    %2 = vector.load %arg0[%c1, %c0_2, %c0_3] : memref<2x32x32xf32, #tpu.memory_space<vmem>>, vector<1x32x32xf32>
    %3 = vector.shape_cast %2 : vector<1x32x32xf32> to vector<32x32xf32>
    %c0_4 = arith.constant 0 : index
    %c0_5 = arith.constant 0 : index
    %c0_6 = arith.constant 0 : index
    %4 = vector.load %arg1[%c0_4, %c0_5, %c0_6] : memref<7x40x256xf32, #tpu.memory_space<vmem>>, vector<1x40x256xf32>
    %5 = vector.shape_cast %4 : vector<1x40x256xf32> to vector<40x256xf32>
    %c1_7 = arith.constant 1 : index
    %c0_8 = arith.constant 0 : index
    %c0_9 = arith.constant 0 : index
    %6 = vector.load %arg1[%c1_7, %c0_8, %c0_9] : memref<7x40x256xf32, #tpu.memory_space<vmem>>, vector<1x40x256xf32>
    %7 = vector.shape_cast %6 : vector<1x40x256xf32> to vector<40x256xf32>
    %c2 = arith.constant 2 : index
    %c0_10 = arith.constant 0 : index
    %c0_11 = arith.constant 0 : index
    %8 = vector.load %arg1[%c2, %c0_10, %c0_11] : memref<7x40x256xf32, #tpu.memory_space<vmem>>, vector<1x40x256xf32>
    %9 = vector.shape_cast %8 : vector<1x40x256xf32> to vector<40x256xf32>
    %c3 = arith.constant 3 : index
    %c0_12 = arith.constant 0 : index
    %c0_13 = arith.constant 0 : index
    %10 = vector.load %arg1[%c3, %c0_12, %c0_13] : memref<7x40x256xf32, #tpu.memory_space<vmem>>, vector<1x40x256xf32>
    %11 = vector.shape_cast %10 : vector<1x40x256xf32> to vector<40x256xf32>
    %c4 = arith.constant 4 : index
    %c0_14 = arith.constant 0 : index
    %c0_15 = arith.constant 0 : index
    %12 = vector.load %arg1[%c4, %c0_14, %c0_15] : memref<7x40x256xf32, #tpu.memory_space<vmem>>, vector<1x40x256xf32>
    %13 = vector.shape_cast %12 : vector<1x40x256xf32> to vector<40x256xf32>
    %c5 = arith.constant 5 : index
    %c0_16 = arith.constant 0 : index
    %c0_17 = arith.constant 0 : index
    %14 = vector.load %arg1[%c5, %c0_16, %c0_17] : memref<7x40x256xf32, #tpu.memory_space<vmem>>, vector<1x40x256xf32>
    %15 = vector.shape_cast %14 : vector<1x40x256xf32> to vector<40x256xf32>
    %c6 = arith.constant 6 : index
    %c0_18 = arith.constant 0 : index
    %c0_19 = arith.constant 0 : index
    %16 = vector.load %arg1[%c6, %c0_18, %c0_19] : memref<7x40x256xf32, #tpu.memory_space<vmem>>, vector<1x40x256xf32>
    %17 = vector.shape_cast %16 : vector<1x40x256xf32> to vector<40x256xf32>
    %cst = arith.constant 0.000000e+00 : f32
    %18 = vector.broadcast %cst : f32 to vector<32x3xf32>
    %cst_20 = arith.constant 0.000000e+00 : f32
    %19 = vector.broadcast %cst_20 : f32 to vector<32x5xf32>
    %20 = tpu.concatenate %18, %1, %19 in 1 : vector<32x3xf32>, vector<32x32xf32>, vector<32x5xf32> -> vector<32x40xf32>
    %cst_21 = arith.constant 0.000000e+00 : f32
    %21 = vector.broadcast %cst_21 : f32 to vector<3x40xf32>
    %22 = tpu.concatenate %21, %20, %21 in 0 : vector<3x40xf32>, vector<32x40xf32>, vector<3x40xf32> -> vector<38x40xf32>
    %23 = vector.extract_strided_slice %22 {offsets = [0, 0], sizes = [32, 40], strides = [1, 1]} : vector<38x40xf32> to vector<32x40xf32>
    %cst_22 = arith.constant dense<0.000000e+00> : vector<32x256xf32>
    %24 = tpu.matmul %23, %5, %cst_22 {dimension_numbers = #tpu.dot_dimension_numbers<[1], [0], [0], [1], [0, 0, 1, 1], [], []>} : vector<32x40xf32>, vector<40x256xf32>, vector<32x256xf32> -> vector<32x256xf32>
    %25 = vector.extract_strided_slice %22 {offsets = [1, 0], sizes = [32, 40], strides = [1, 1]} : vector<38x40xf32> to vector<32x40xf32>
    %cst_23 = arith.constant dense<0.000000e+00> : vector<32x256xf32>
    %26 = tpu.matmul %25, %7, %cst_23 {dimension_numbers = #tpu.dot_dimension_numbers<[1], [0], [0], [1], [0, 0, 1, 1], [], []>} : vector<32x40xf32>, vector<40x256xf32>, vector<32x256xf32> -> vector<32x256xf32>
    %27 = arith.addf %24, %26 : vector<32x256xf32>
    %28 = vector.extract_strided_slice %22 {offsets = [2, 0], sizes = [32, 40], strides = [1, 1]} : vector<38x40xf32> to vector<32x40xf32>
    %cst_24 = arith.constant dense<0.000000e+00> : vector<32x256xf32>
    %29 = tpu.matmul %28, %9, %cst_24 {dimension_numbers = #tpu.dot_dimension_numbers<[1], [0], [0], [1], [0, 0, 1, 1], [], []>} : vector<32x40xf32>, vector<40x256xf32>, vector<32x256xf32> -> vector<32x256xf32>
    %30 = arith.addf %27, %29 : vector<32x256xf32>
    %31 = vector.extract_strided_slice %22 {offsets = [3, 0], sizes = [32, 40], strides = [1, 1]} : vector<38x40xf32> to vector<32x40xf32>
    %cst_25 = arith.constant dense<0.000000e+00> : vector<32x256xf32>
    %32 = tpu.matmul %31, %11, %cst_25 {dimension_numbers = #tpu.dot_dimension_numbers<[1], [0], [0], [1], [0, 0, 1, 1], [], []>} : vector<32x40xf32>, vector<40x256xf32>, vector<32x256xf32> -> vector<32x256xf32>
    %33 = arith.addf %30, %32 : vector<32x256xf32>
    %34 = vector.extract_strided_slice %22 {offsets = [4, 0], sizes = [32, 40], strides = [1, 1]} : vector<38x40xf32> to vector<32x40xf32>
    %cst_26 = arith.constant dense<0.000000e+00> : vector<32x256xf32>
    %35 = tpu.matmul %34, %13, %cst_26 {dimension_numbers = #tpu.dot_dimension_numbers<[1], [0], [0], [1], [0, 0, 1, 1], [], []>} : vector<32x40xf32>, vector<40x256xf32>, vector<32x256xf32> -> vector<32x256xf32>
    %36 = arith.addf %33, %35 : vector<32x256xf32>
    %37 = vector.extract_strided_slice %22 {offsets = [5, 0], sizes = [32, 40], strides = [1, 1]} : vector<38x40xf32> to vector<32x40xf32>
    %cst_27 = arith.constant dense<0.000000e+00> : vector<32x256xf32>
    %38 = tpu.matmul %37, %15, %cst_27 {dimension_numbers = #tpu.dot_dimension_numbers<[1], [0], [0], [1], [0, 0, 1, 1], [], []>} : vector<32x40xf32>, vector<40x256xf32>, vector<32x256xf32> -> vector<32x256xf32>
    %39 = arith.addf %36, %38 : vector<32x256xf32>
    %40 = vector.extract_strided_slice %22 {offsets = [6, 0], sizes = [32, 40], strides = [1, 1]} : vector<38x40xf32> to vector<32x40xf32>
    %cst_28 = arith.constant dense<0.000000e+00> : vector<32x256xf32>
    %41 = tpu.matmul %40, %17, %cst_28 {dimension_numbers = #tpu.dot_dimension_numbers<[1], [0], [0], [1], [0, 0, 1, 1], [], []>} : vector<32x40xf32>, vector<40x256xf32>, vector<32x256xf32> -> vector<32x256xf32>
    %42 = arith.addf %39, %41 : vector<32x256xf32>
    %cst_29 = arith.constant 0.000000e+00 : f32
    %43 = vector.broadcast %cst_29 : f32 to vector<32x3xf32>
    %cst_30 = arith.constant 0.000000e+00 : f32
    %44 = vector.broadcast %cst_30 : f32 to vector<32x5xf32>
    %45 = tpu.concatenate %43, %3, %44 in 1 : vector<32x3xf32>, vector<32x32xf32>, vector<32x5xf32> -> vector<32x40xf32>
    %cst_31 = arith.constant 0.000000e+00 : f32
    %46 = vector.broadcast %cst_31 : f32 to vector<3x40xf32>
    %47 = tpu.concatenate %46, %45, %46 in 0 : vector<3x40xf32>, vector<32x40xf32>, vector<3x40xf32> -> vector<38x40xf32>
    %48 = vector.extract_strided_slice %47 {offsets = [0, 0], sizes = [32, 40], strides = [1, 1]} : vector<38x40xf32> to vector<32x40xf32>
    %cst_32 = arith.constant dense<0.000000e+00> : vector<32x256xf32>
    %49 = tpu.matmul %48, %5, %cst_32 {dimension_numbers = #tpu.dot_dimension_numbers<[1], [0], [0], [1], [0, 0, 1, 1], [], []>} : vector<32x40xf32>, vector<40x256xf32>, vector<32x256xf32> -> vector<32x256xf32>
    %50 = vector.extract_strided_slice %47 {offsets = [1, 0], sizes = [32, 40], strides = [1, 1]} : vector<38x40xf32> to vector<32x40xf32>
    %cst_33 = arith.constant dense<0.000000e+00> : vector<32x256xf32>
    %51 = tpu.matmul %50, %7, %cst_33 {dimension_numbers = #tpu.dot_dimension_numbers<[1], [0], [0], [1], [0, 0, 1, 1], [], []>} : vector<32x40xf32>, vector<40x256xf32>, vector<32x256xf32> -> vector<32x256xf32>
    %52 = arith.addf %49, %51 : vector<32x256xf32>
    %53 = vector.extract_strided_slice %47 {offsets = [2, 0], sizes = [32, 40], strides = [1, 1]} : vector<38x40xf32> to vector<32x40xf32>
    %cst_34 = arith.constant dense<0.000000e+00> : vector<32x256xf32>
    %54 = tpu.matmul %53, %9, %cst_34 {dimension_numbers = #tpu.dot_dimension_numbers<[1], [0], [0], [1], [0, 0, 1, 1], [], []>} : vector<32x40xf32>, vector<40x256xf32>, vector<32x256xf32> -> vector<32x256xf32>
    %55 = arith.addf %52, %54 : vector<32x256xf32>
    %56 = vector.extract_strided_slice %47 {offsets = [3, 0], sizes = [32, 40], strides = [1, 1]} : vector<38x40xf32> to vector<32x40xf32>
    %cst_35 = arith.constant dense<0.000000e+00> : vector<32x256xf32>
    %57 = tpu.matmul %56, %11, %cst_35 {dimension_numbers = #tpu.dot_dimension_numbers<[1], [0], [0], [1], [0, 0, 1, 1], [], []>} : vector<32x40xf32>, vector<40x256xf32>, vector<32x256xf32> -> vector<32x256xf32>
    %58 = arith.addf %55, %57 : vector<32x256xf32>
    %59 = vector.extract_strided_slice %47 {offsets = [4, 0], sizes = [32, 40], strides = [1, 1]} : vector<38x40xf32> to vector<32x40xf32>
    %cst_36 = arith.constant dense<0.000000e+00> : vector<32x256xf32>
    %60 = tpu.matmul %59, %13, %cst_36 {dimension_numbers = #tpu.dot_dimension_numbers<[1], [0], [0], [1], [0, 0, 1, 1], [], []>} : vector<32x40xf32>, vector<40x256xf32>, vector<32x256xf32> -> vector<32x256xf32>
    %61 = arith.addf %58, %60 : vector<32x256xf32>
    %62 = vector.extract_strided_slice %47 {offsets = [5, 0], sizes = [32, 40], strides = [1, 1]} : vector<38x40xf32> to vector<32x40xf32>
    %cst_37 = arith.constant dense<0.000000e+00> : vector<32x256xf32>
    %63 = tpu.matmul %62, %15, %cst_37 {dimension_numbers = #tpu.dot_dimension_numbers<[1], [0], [0], [1], [0, 0, 1, 1], [], []>} : vector<32x40xf32>, vector<40x256xf32>, vector<32x256xf32> -> vector<32x256xf32>
    %64 = arith.addf %61, %63 : vector<32x256xf32>
    %65 = vector.extract_strided_slice %47 {offsets = [6, 0], sizes = [32, 40], strides = [1, 1]} : vector<38x40xf32> to vector<32x40xf32>
    %cst_38 = arith.constant dense<0.000000e+00> : vector<32x256xf32>
    %66 = tpu.matmul %65, %17, %cst_38 {dimension_numbers = #tpu.dot_dimension_numbers<[1], [0], [0], [1], [0, 0, 1, 1], [], []>} : vector<32x40xf32>, vector<40x256xf32>, vector<32x256xf32> -> vector<32x256xf32>
    %67 = arith.addf %64, %66 : vector<32x256xf32>
    %cst_39 = arith.constant dense<0.000000e+00> : vector<256xf32>
    %68 = vector.multi_reduction <add>, %42, %cst_39 [0] : vector<32x256xf32> to vector<256xf32>
    %69 = vector.shape_cast %68 : vector<256xf32> to vector<1x256xf32>
    %70 = arith.mulf %42, %42 : vector<32x256xf32>
    %cst_40 = arith.constant dense<0.000000e+00> : vector<256xf32>
    %71 = vector.multi_reduction <add>, %70, %cst_40 [0] : vector<32x256xf32> to vector<256xf32>
    %72 = vector.shape_cast %71 : vector<256xf32> to vector<1x256xf32>
    %cst_41 = arith.constant dense<0.000000e+00> : vector<256xf32>
    %73 = vector.multi_reduction <add>, %67, %cst_41 [0] : vector<32x256xf32> to vector<256xf32>
    %74 = vector.shape_cast %73 : vector<256xf32> to vector<1x256xf32>
    %75 = arith.addf %69, %74 : vector<1x256xf32>
    %76 = arith.mulf %67, %67 : vector<32x256xf32>
    %cst_42 = arith.constant dense<0.000000e+00> : vector<256xf32>
    %77 = vector.multi_reduction <add>, %76, %cst_42 [0] : vector<32x256xf32> to vector<256xf32>
    %78 = vector.shape_cast %77 : vector<256xf32> to vector<1x256xf32>
    %79 = arith.addf %72, %78 : vector<1x256xf32>
    %c0_43 = arith.constant 0 : index
    %c0_44 = arith.constant 0 : index
    %80 = vector.load %arg2[%c0_43, %c0_44] : memref<256x8xf32, #tpu.memory_space<vmem>>, vector<256x8xf32>
    %cst_45 = arith.constant dense<0.000000e+00> : vector<1x8xf32>
    %81 = tpu.matmul %75, %80, %cst_45 {dimension_numbers = #tpu.dot_dimension_numbers<[1], [0], [0], [1], [0, 0, 1, 1], [], []>} : vector<1x256xf32>, vector<256x8xf32>, vector<1x8xf32> -> vector<1x8xf32>
    %cst_46 = arith.constant 4.8828125E-4 : f32
    %82 = vector.broadcast %cst_46 : f32 to vector<1x8xf32>
    %83 = arith.mulf %81, %82 : vector<1x8xf32>
    %c0_47 = arith.constant 0 : index
    %c0_48 = arith.constant 0 : index
    %84 = vector.load %arg2[%c0_47, %c0_48] : memref<256x8xf32, #tpu.memory_space<vmem>>, vector<256x8xf32>
    %cst_49 = arith.constant dense<0.000000e+00> : vector<1x8xf32>
    %85 = tpu.matmul %79, %84, %cst_49 {dimension_numbers = #tpu.dot_dimension_numbers<[1], [0], [0], [1], [0, 0, 1, 1], [], []>} : vector<1x256xf32>, vector<256x8xf32>, vector<1x8xf32> -> vector<1x8xf32>
    %cst_50 = arith.constant 4.8828125E-4 : f32
    %86 = vector.broadcast %cst_50 : f32 to vector<1x8xf32>
    %87 = arith.mulf %85, %86 : vector<1x8xf32>
    %88 = arith.mulf %83, %83 : vector<1x8xf32>
    %89 = arith.subf %87, %88 : vector<1x8xf32>
    %cst_51 = arith.constant 0.000000e+00 : f32
    %90 = vector.broadcast %cst_51 : f32 to vector<1x8xf32>
    %91 = arith.maximumf %89, %90 : vector<1x8xf32>
    %c0_52 = arith.constant 0 : index
    %c0_53 = arith.constant 0 : index
    %92 = vector.load %arg4[%c0_52, %c0_53] : memref<1x8xf32, #tpu.memory_space<vmem>>, vector<1x8xf32>
    %cst_54 = arith.constant 9.99999974E-6 : f32
    %93 = vector.broadcast %cst_54 : f32 to vector<1x8xf32>
    %94 = arith.addf %91, %93 : vector<1x8xf32>
    %95 = math.rsqrt %94 : vector<1x8xf32>
    %96 = arith.mulf %92, %95 : vector<1x8xf32>
    %c0_55 = arith.constant 0 : index
    %c0_56 = arith.constant 0 : index
    %97 = vector.load %arg5[%c0_55, %c0_56] : memref<1x8xf32, #tpu.memory_space<vmem>>, vector<1x8xf32>
    %98 = arith.mulf %83, %96 : vector<1x8xf32>
    %99 = arith.subf %97, %98 : vector<1x8xf32>
    %c0_57 = arith.constant 0 : index
    %c0_58 = arith.constant 0 : index
    %100 = vector.load %arg3[%c0_57, %c0_58] : memref<8x256xf32, #tpu.memory_space<vmem>>, vector<8x256xf32>
    %cst_59 = arith.constant dense<0.000000e+00> : vector<1x256xf32>
    %101 = tpu.matmul %96, %100, %cst_59 {dimension_numbers = #tpu.dot_dimension_numbers<[1], [0], [0], [1], [0, 0, 1, 1], [], []>} : vector<1x8xf32>, vector<8x256xf32>, vector<1x256xf32> -> vector<1x256xf32>
    %c0_60 = arith.constant 0 : index
    %c0_61 = arith.constant 0 : index
    %102 = vector.load %arg3[%c0_60, %c0_61] : memref<8x256xf32, #tpu.memory_space<vmem>>, vector<8x256xf32>
    %cst_62 = arith.constant dense<0.000000e+00> : vector<1x256xf32>
    %103 = tpu.matmul %99, %102, %cst_62 {dimension_numbers = #tpu.dot_dimension_numbers<[1], [0], [0], [1], [0, 0, 1, 1], [], []>} : vector<1x8xf32>, vector<8x256xf32>, vector<1x256xf32> -> vector<1x256xf32>
    %104 = vector.broadcast %101 : vector<1x256xf32> to vector<32x256xf32>
    %105 = arith.mulf %42, %104 : vector<32x256xf32>
    %106 = vector.broadcast %103 : vector<1x256xf32> to vector<32x256xf32>
    %107 = arith.addf %105, %106 : vector<32x256xf32>
    %cst_63 = arith.constant 0.000000e+00 : f32
    %108 = vector.broadcast %cst_63 : f32 to vector<32x256xf32>
    %109 = arith.maximumf %107, %108 : vector<32x256xf32>
    %110 = vector.extract_strided_slice %109 {offsets = [0, 0], sizes = [32, 248], strides = [1, 1]} : vector<32x256xf32> to vector<32x248xf32>
    %111 = vector.extract_strided_slice %109 {offsets = [0, 8], sizes = [32, 248], strides = [1, 1]} : vector<32x256xf32> to vector<32x248xf32>
    %112 = arith.maximumf %110, %111 : vector<32x248xf32>
    %113 = vector.extract_strided_slice %112 {offsets = [0, 0], sizes = [32, 8], strides = [1, 1]} : vector<32x248xf32> to vector<32x8xf32>
    %114 = vector.extract_strided_slice %112 {offsets = [0, 16], sizes = [32, 8], strides = [1, 1]} : vector<32x248xf32> to vector<32x8xf32>
    %115 = vector.extract_strided_slice %112 {offsets = [0, 32], sizes = [32, 8], strides = [1, 1]} : vector<32x248xf32> to vector<32x8xf32>
    %116 = vector.extract_strided_slice %112 {offsets = [0, 48], sizes = [32, 8], strides = [1, 1]} : vector<32x248xf32> to vector<32x8xf32>
    %117 = vector.extract_strided_slice %112 {offsets = [0, 64], sizes = [32, 8], strides = [1, 1]} : vector<32x248xf32> to vector<32x8xf32>
    %118 = vector.extract_strided_slice %112 {offsets = [0, 80], sizes = [32, 8], strides = [1, 1]} : vector<32x248xf32> to vector<32x8xf32>
    %119 = vector.extract_strided_slice %112 {offsets = [0, 96], sizes = [32, 8], strides = [1, 1]} : vector<32x248xf32> to vector<32x8xf32>
    %120 = vector.extract_strided_slice %112 {offsets = [0, 112], sizes = [32, 8], strides = [1, 1]} : vector<32x248xf32> to vector<32x8xf32>
    %121 = vector.extract_strided_slice %112 {offsets = [0, 128], sizes = [32, 8], strides = [1, 1]} : vector<32x248xf32> to vector<32x8xf32>
    %122 = vector.extract_strided_slice %112 {offsets = [0, 144], sizes = [32, 8], strides = [1, 1]} : vector<32x248xf32> to vector<32x8xf32>
    %123 = vector.extract_strided_slice %112 {offsets = [0, 160], sizes = [32, 8], strides = [1, 1]} : vector<32x248xf32> to vector<32x8xf32>
    %124 = vector.extract_strided_slice %112 {offsets = [0, 176], sizes = [32, 8], strides = [1, 1]} : vector<32x248xf32> to vector<32x8xf32>
    %125 = vector.extract_strided_slice %112 {offsets = [0, 192], sizes = [32, 8], strides = [1, 1]} : vector<32x248xf32> to vector<32x8xf32>
    %126 = vector.extract_strided_slice %112 {offsets = [0, 208], sizes = [32, 8], strides = [1, 1]} : vector<32x248xf32> to vector<32x8xf32>
    %127 = vector.extract_strided_slice %112 {offsets = [0, 224], sizes = [32, 8], strides = [1, 1]} : vector<32x248xf32> to vector<32x8xf32>
    %128 = vector.extract_strided_slice %112 {offsets = [0, 240], sizes = [32, 8], strides = [1, 1]} : vector<32x248xf32> to vector<32x8xf32>
    %129 = tpu.concatenate %113, %114, %115, %116, %117, %118, %119, %120, %121, %122, %123, %124, %125, %126, %127, %128 in 1 : vector<32x8xf32>, vector<32x8xf32>, vector<32x8xf32>, vector<32x8xf32>, vector<32x8xf32>, vector<32x8xf32>, vector<32x8xf32>, vector<32x8xf32>, vector<32x8xf32>, vector<32x8xf32>, vector<32x8xf32>, vector<32x8xf32>, vector<32x8xf32>, vector<32x8xf32>, vector<32x8xf32>, vector<32x8xf32> -> vector<32x128xf32>
    %130 = vector.extract_strided_slice %129 {offsets = [0, 0], sizes = [31, 128], strides = [1, 1]} : vector<32x128xf32> to vector<31x128xf32>
    %131 = vector.extract_strided_slice %129 {offsets = [1, 0], sizes = [31, 128], strides = [1, 1]} : vector<32x128xf32> to vector<31x128xf32>
    %132 = arith.maximumf %130, %131 : vector<31x128xf32>
    %133 = vector.extract_strided_slice %132 {offsets = [0, 0], sizes = [1, 128], strides = [1, 1]} : vector<31x128xf32> to vector<1x128xf32>
    %134 = vector.extract_strided_slice %132 {offsets = [2, 0], sizes = [1, 128], strides = [1, 1]} : vector<31x128xf32> to vector<1x128xf32>
    %135 = vector.extract_strided_slice %132 {offsets = [4, 0], sizes = [1, 128], strides = [1, 1]} : vector<31x128xf32> to vector<1x128xf32>
    %136 = vector.extract_strided_slice %132 {offsets = [6, 0], sizes = [1, 128], strides = [1, 1]} : vector<31x128xf32> to vector<1x128xf32>
    %137 = vector.extract_strided_slice %132 {offsets = [8, 0], sizes = [1, 128], strides = [1, 1]} : vector<31x128xf32> to vector<1x128xf32>
    %138 = vector.extract_strided_slice %132 {offsets = [10, 0], sizes = [1, 128], strides = [1, 1]} : vector<31x128xf32> to vector<1x128xf32>
    %139 = vector.extract_strided_slice %132 {offsets = [12, 0], sizes = [1, 128], strides = [1, 1]} : vector<31x128xf32> to vector<1x128xf32>
    %140 = vector.extract_strided_slice %132 {offsets = [14, 0], sizes = [1, 128], strides = [1, 1]} : vector<31x128xf32> to vector<1x128xf32>
    %141 = vector.extract_strided_slice %132 {offsets = [16, 0], sizes = [1, 128], strides = [1, 1]} : vector<31x128xf32> to vector<1x128xf32>
    %142 = vector.extract_strided_slice %132 {offsets = [18, 0], sizes = [1, 128], strides = [1, 1]} : vector<31x128xf32> to vector<1x128xf32>
    %143 = vector.extract_strided_slice %132 {offsets = [20, 0], sizes = [1, 128], strides = [1, 1]} : vector<31x128xf32> to vector<1x128xf32>
    %144 = vector.extract_strided_slice %132 {offsets = [22, 0], sizes = [1, 128], strides = [1, 1]} : vector<31x128xf32> to vector<1x128xf32>
    %145 = vector.extract_strided_slice %132 {offsets = [24, 0], sizes = [1, 128], strides = [1, 1]} : vector<31x128xf32> to vector<1x128xf32>
    %146 = vector.extract_strided_slice %132 {offsets = [26, 0], sizes = [1, 128], strides = [1, 1]} : vector<31x128xf32> to vector<1x128xf32>
    %147 = vector.extract_strided_slice %132 {offsets = [28, 0], sizes = [1, 128], strides = [1, 1]} : vector<31x128xf32> to vector<1x128xf32>
    %148 = vector.extract_strided_slice %132 {offsets = [30, 0], sizes = [1, 128], strides = [1, 1]} : vector<31x128xf32> to vector<1x128xf32>
    %149 = tpu.concatenate %133, %134, %135, %136, %137, %138, %139, %140, %141, %142, %143, %144, %145, %146, %147, %148 in 0 : vector<1x128xf32>, vector<1x128xf32>, vector<1x128xf32>, vector<1x128xf32>, vector<1x128xf32>, vector<1x128xf32>, vector<1x128xf32>, vector<1x128xf32>, vector<1x128xf32>, vector<1x128xf32>, vector<1x128xf32>, vector<1x128xf32>, vector<1x128xf32>, vector<1x128xf32>, vector<1x128xf32>, vector<1x128xf32> -> vector<16x128xf32>
    %150 = vector.broadcast %101 : vector<1x256xf32> to vector<32x256xf32>
    %151 = arith.mulf %67, %150 : vector<32x256xf32>
    %152 = vector.broadcast %103 : vector<1x256xf32> to vector<32x256xf32>
    %153 = arith.addf %151, %152 : vector<32x256xf32>
    %cst_64 = arith.constant 0.000000e+00 : f32
    %154 = vector.broadcast %cst_64 : f32 to vector<32x256xf32>
    %155 = arith.maximumf %153, %154 : vector<32x256xf32>
    %156 = vector.extract_strided_slice %155 {offsets = [0, 0], sizes = [32, 248], strides = [1, 1]} : vector<32x256xf32> to vector<32x248xf32>
    %157 = vector.extract_strided_slice %155 {offsets = [0, 8], sizes = [32, 248], strides = [1, 1]} : vector<32x256xf32> to vector<32x248xf32>
    %158 = arith.maximumf %156, %157 : vector<32x248xf32>
    %159 = vector.extract_strided_slice %158 {offsets = [0, 0], sizes = [32, 8], strides = [1, 1]} : vector<32x248xf32> to vector<32x8xf32>
    %160 = vector.extract_strided_slice %158 {offsets = [0, 16], sizes = [32, 8], strides = [1, 1]} : vector<32x248xf32> to vector<32x8xf32>
    %161 = vector.extract_strided_slice %158 {offsets = [0, 32], sizes = [32, 8], strides = [1, 1]} : vector<32x248xf32> to vector<32x8xf32>
    %162 = vector.extract_strided_slice %158 {offsets = [0, 48], sizes = [32, 8], strides = [1, 1]} : vector<32x248xf32> to vector<32x8xf32>
    %163 = vector.extract_strided_slice %158 {offsets = [0, 64], sizes = [32, 8], strides = [1, 1]} : vector<32x248xf32> to vector<32x8xf32>
    %164 = vector.extract_strided_slice %158 {offsets = [0, 80], sizes = [32, 8], strides = [1, 1]} : vector<32x248xf32> to vector<32x8xf32>
    %165 = vector.extract_strided_slice %158 {offsets = [0, 96], sizes = [32, 8], strides = [1, 1]} : vector<32x248xf32> to vector<32x8xf32>
    %166 = vector.extract_strided_slice %158 {offsets = [0, 112], sizes = [32, 8], strides = [1, 1]} : vector<32x248xf32> to vector<32x8xf32>
    %167 = vector.extract_strided_slice %158 {offsets = [0, 128], sizes = [32, 8], strides = [1, 1]} : vector<32x248xf32> to vector<32x8xf32>
    %168 = vector.extract_strided_slice %158 {offsets = [0, 144], sizes = [32, 8], strides = [1, 1]} : vector<32x248xf32> to vector<32x8xf32>
    %169 = vector.extract_strided_slice %158 {offsets = [0, 160], sizes = [32, 8], strides = [1, 1]} : vector<32x248xf32> to vector<32x8xf32>
    %170 = vector.extract_strided_slice %158 {offsets = [0, 176], sizes = [32, 8], strides = [1, 1]} : vector<32x248xf32> to vector<32x8xf32>
    %171 = vector.extract_strided_slice %158 {offsets = [0, 192], sizes = [32, 8], strides = [1, 1]} : vector<32x248xf32> to vector<32x8xf32>
    %172 = vector.extract_strided_slice %158 {offsets = [0, 208], sizes = [32, 8], strides = [1, 1]} : vector<32x248xf32> to vector<32x8xf32>
    %173 = vector.extract_strided_slice %158 {offsets = [0, 224], sizes = [32, 8], strides = [1, 1]} : vector<32x248xf32> to vector<32x8xf32>
    %174 = vector.extract_strided_slice %158 {offsets = [0, 240], sizes = [32, 8], strides = [1, 1]} : vector<32x248xf32> to vector<32x8xf32>
    %175 = tpu.concatenate %159, %160, %161, %162, %163, %164, %165, %166, %167, %168, %169, %170, %171, %172, %173, %174 in 1 : vector<32x8xf32>, vector<32x8xf32>, vector<32x8xf32>, vector<32x8xf32>, vector<32x8xf32>, vector<32x8xf32>, vector<32x8xf32>, vector<32x8xf32>, vector<32x8xf32>, vector<32x8xf32>, vector<32x8xf32>, vector<32x8xf32>, vector<32x8xf32>, vector<32x8xf32>, vector<32x8xf32>, vector<32x8xf32> -> vector<32x128xf32>
    %176 = vector.extract_strided_slice %175 {offsets = [0, 0], sizes = [31, 128], strides = [1, 1]} : vector<32x128xf32> to vector<31x128xf32>
    %177 = vector.extract_strided_slice %175 {offsets = [1, 0], sizes = [31, 128], strides = [1, 1]} : vector<32x128xf32> to vector<31x128xf32>
    %178 = arith.maximumf %176, %177 : vector<31x128xf32>
    %179 = vector.extract_strided_slice %178 {offsets = [0, 0], sizes = [1, 128], strides = [1, 1]} : vector<31x128xf32> to vector<1x128xf32>
    %180 = vector.extract_strided_slice %178 {offsets = [2, 0], sizes = [1, 128], strides = [1, 1]} : vector<31x128xf32> to vector<1x128xf32>
    %181 = vector.extract_strided_slice %178 {offsets = [4, 0], sizes = [1, 128], strides = [1, 1]} : vector<31x128xf32> to vector<1x128xf32>
    %182 = vector.extract_strided_slice %178 {offsets = [6, 0], sizes = [1, 128], strides = [1, 1]} : vector<31x128xf32> to vector<1x128xf32>
    %183 = vector.extract_strided_slice %178 {offsets = [8, 0], sizes = [1, 128], strides = [1, 1]} : vector<31x128xf32> to vector<1x128xf32>
    %184 = vector.extract_strided_slice %178 {offsets = [10, 0], sizes = [1, 128], strides = [1, 1]} : vector<31x128xf32> to vector<1x128xf32>
    %185 = vector.extract_strided_slice %178 {offsets = [12, 0], sizes = [1, 128], strides = [1, 1]} : vector<31x128xf32> to vector<1x128xf32>
    %186 = vector.extract_strided_slice %178 {offsets = [14, 0], sizes = [1, 128], strides = [1, 1]} : vector<31x128xf32> to vector<1x128xf32>
    %187 = vector.extract_strided_slice %178 {offsets = [16, 0], sizes = [1, 128], strides = [1, 1]} : vector<31x128xf32> to vector<1x128xf32>
    %188 = vector.extract_strided_slice %178 {offsets = [18, 0], sizes = [1, 128], strides = [1, 1]} : vector<31x128xf32> to vector<1x128xf32>
    %189 = vector.extract_strided_slice %178 {offsets = [20, 0], sizes = [1, 128], strides = [1, 1]} : vector<31x128xf32> to vector<1x128xf32>
    %190 = vector.extract_strided_slice %178 {offsets = [22, 0], sizes = [1, 128], strides = [1, 1]} : vector<31x128xf32> to vector<1x128xf32>
    %191 = vector.extract_strided_slice %178 {offsets = [24, 0], sizes = [1, 128], strides = [1, 1]} : vector<31x128xf32> to vector<1x128xf32>
    %192 = vector.extract_strided_slice %178 {offsets = [26, 0], sizes = [1, 128], strides = [1, 1]} : vector<31x128xf32> to vector<1x128xf32>
    %193 = vector.extract_strided_slice %178 {offsets = [28, 0], sizes = [1, 128], strides = [1, 1]} : vector<31x128xf32> to vector<1x128xf32>
    %194 = vector.extract_strided_slice %178 {offsets = [30, 0], sizes = [1, 128], strides = [1, 1]} : vector<31x128xf32> to vector<1x128xf32>
    %195 = tpu.concatenate %179, %180, %181, %182, %183, %184, %185, %186, %187, %188, %189, %190, %191, %192, %193, %194 in 0 : vector<1x128xf32>, vector<1x128xf32>, vector<1x128xf32>, vector<1x128xf32>, vector<1x128xf32>, vector<1x128xf32>, vector<1x128xf32>, vector<1x128xf32>, vector<1x128xf32>, vector<1x128xf32>, vector<1x128xf32>, vector<1x128xf32>, vector<1x128xf32>, vector<1x128xf32>, vector<1x128xf32>, vector<1x128xf32> -> vector<16x128xf32>
    %c0_65 = arith.constant 0 : index
    %c0_66 = arith.constant 0 : index
    %c0_67 = arith.constant 0 : index
    %196 = vector.load %arg6[%c0_65, %c0_66, %c0_67] : memref<7x176x256xf32, #tpu.memory_space<vmem>>, vector<1x176x256xf32>
    %197 = vector.shape_cast %196 : vector<1x176x256xf32> to vector<176x256xf32>
    %c1_68 = arith.constant 1 : index
    %c0_69 = arith.constant 0 : index
    %c0_70 = arith.constant 0 : index
    %198 = vector.load %arg6[%c1_68, %c0_69, %c0_70] : memref<7x176x256xf32, #tpu.memory_space<vmem>>, vector<1x176x256xf32>
    %199 = vector.shape_cast %198 : vector<1x176x256xf32> to vector<176x256xf32>
    %c2_71 = arith.constant 2 : index
    %c0_72 = arith.constant 0 : index
    %c0_73 = arith.constant 0 : index
    %200 = vector.load %arg6[%c2_71, %c0_72, %c0_73] : memref<7x176x256xf32, #tpu.memory_space<vmem>>, vector<1x176x256xf32>
    %201 = vector.shape_cast %200 : vector<1x176x256xf32> to vector<176x256xf32>
    %c3_74 = arith.constant 3 : index
    %c0_75 = arith.constant 0 : index
    %c0_76 = arith.constant 0 : index
    %202 = vector.load %arg6[%c3_74, %c0_75, %c0_76] : memref<7x176x256xf32, #tpu.memory_space<vmem>>, vector<1x176x256xf32>
    %203 = vector.shape_cast %202 : vector<1x176x256xf32> to vector<176x256xf32>
    %c4_77 = arith.constant 4 : index
    %c0_78 = arith.constant 0 : index
    %c0_79 = arith.constant 0 : index
    %204 = vector.load %arg6[%c4_77, %c0_78, %c0_79] : memref<7x176x256xf32, #tpu.memory_space<vmem>>, vector<1x176x256xf32>
    %205 = vector.shape_cast %204 : vector<1x176x256xf32> to vector<176x256xf32>
    %c5_80 = arith.constant 5 : index
    %c0_81 = arith.constant 0 : index
    %c0_82 = arith.constant 0 : index
    %206 = vector.load %arg6[%c5_80, %c0_81, %c0_82] : memref<7x176x256xf32, #tpu.memory_space<vmem>>, vector<1x176x256xf32>
    %207 = vector.shape_cast %206 : vector<1x176x256xf32> to vector<176x256xf32>
    %c6_83 = arith.constant 6 : index
    %c0_84 = arith.constant 0 : index
    %c0_85 = arith.constant 0 : index
    %208 = vector.load %arg6[%c6_83, %c0_84, %c0_85] : memref<7x176x256xf32, #tpu.memory_space<vmem>>, vector<1x176x256xf32>
    %209 = vector.shape_cast %208 : vector<1x176x256xf32> to vector<176x256xf32>
    %cst_86 = arith.constant 0.000000e+00 : f32
    %210 = vector.broadcast %cst_86 : f32 to vector<16x24xf32>
    %cst_87 = arith.constant 0.000000e+00 : f32
    %211 = vector.broadcast %cst_87 : f32 to vector<16x24xf32>
    %212 = tpu.concatenate %210, %149, %211 in 1 : vector<16x24xf32>, vector<16x128xf32>, vector<16x24xf32> -> vector<16x176xf32>
    %cst_88 = arith.constant 0.000000e+00 : f32
    %213 = vector.broadcast %cst_88 : f32 to vector<3x176xf32>
    %214 = tpu.concatenate %213, %212, %213 in 0 : vector<3x176xf32>, vector<16x176xf32>, vector<3x176xf32> -> vector<22x176xf32>
    %215 = vector.extract_strided_slice %214 {offsets = [0, 0], sizes = [16, 176], strides = [1, 1]} : vector<22x176xf32> to vector<16x176xf32>
    %cst_89 = arith.constant dense<0.000000e+00> : vector<16x256xf32>
    %216 = tpu.matmul %215, %197, %cst_89 {dimension_numbers = #tpu.dot_dimension_numbers<[1], [0], [0], [1], [0, 0, 1, 1], [], []>} : vector<16x176xf32>, vector<176x256xf32>, vector<16x256xf32> -> vector<16x256xf32>
    %217 = vector.extract_strided_slice %214 {offsets = [1, 0], sizes = [16, 176], strides = [1, 1]} : vector<22x176xf32> to vector<16x176xf32>
    %cst_90 = arith.constant dense<0.000000e+00> : vector<16x256xf32>
    %218 = tpu.matmul %217, %199, %cst_90 {dimension_numbers = #tpu.dot_dimension_numbers<[1], [0], [0], [1], [0, 0, 1, 1], [], []>} : vector<16x176xf32>, vector<176x256xf32>, vector<16x256xf32> -> vector<16x256xf32>
    %219 = arith.addf %216, %218 : vector<16x256xf32>
    %220 = vector.extract_strided_slice %214 {offsets = [2, 0], sizes = [16, 176], strides = [1, 1]} : vector<22x176xf32> to vector<16x176xf32>
    %cst_91 = arith.constant dense<0.000000e+00> : vector<16x256xf32>
    %221 = tpu.matmul %220, %201, %cst_91 {dimension_numbers = #tpu.dot_dimension_numbers<[1], [0], [0], [1], [0, 0, 1, 1], [], []>} : vector<16x176xf32>, vector<176x256xf32>, vector<16x256xf32> -> vector<16x256xf32>
    %222 = arith.addf %219, %221 : vector<16x256xf32>
    %223 = vector.extract_strided_slice %214 {offsets = [3, 0], sizes = [16, 176], strides = [1, 1]} : vector<22x176xf32> to vector<16x176xf32>
    %cst_92 = arith.constant dense<0.000000e+00> : vector<16x256xf32>
    %224 = tpu.matmul %223, %203, %cst_92 {dimension_numbers = #tpu.dot_dimension_numbers<[1], [0], [0], [1], [0, 0, 1, 1], [], []>} : vector<16x176xf32>, vector<176x256xf32>, vector<16x256xf32> -> vector<16x256xf32>
    %225 = arith.addf %222, %224 : vector<16x256xf32>
    %226 = vector.extract_strided_slice %214 {offsets = [4, 0], sizes = [16, 176], strides = [1, 1]} : vector<22x176xf32> to vector<16x176xf32>
    %cst_93 = arith.constant dense<0.000000e+00> : vector<16x256xf32>
    %227 = tpu.matmul %226, %205, %cst_93 {dimension_numbers = #tpu.dot_dimension_numbers<[1], [0], [0], [1], [0, 0, 1, 1], [], []>} : vector<16x176xf32>, vector<176x256xf32>, vector<16x256xf32> -> vector<16x256xf32>
    %228 = arith.addf %225, %227 : vector<16x256xf32>
    %229 = vector.extract_strided_slice %214 {offsets = [5, 0], sizes = [16, 176], strides = [1, 1]} : vector<22x176xf32> to vector<16x176xf32>
    %cst_94 = arith.constant dense<0.000000e+00> : vector<16x256xf32>
    %230 = tpu.matmul %229, %207, %cst_94 {dimension_numbers = #tpu.dot_dimension_numbers<[1], [0], [0], [1], [0, 0, 1, 1], [], []>} : vector<16x176xf32>, vector<176x256xf32>, vector<16x256xf32> -> vector<16x256xf32>
    %231 = arith.addf %228, %230 : vector<16x256xf32>
    %232 = vector.extract_strided_slice %214 {offsets = [6, 0], sizes = [16, 176], strides = [1, 1]} : vector<22x176xf32> to vector<16x176xf32>
    %cst_95 = arith.constant dense<0.000000e+00> : vector<16x256xf32>
    %233 = tpu.matmul %232, %209, %cst_95 {dimension_numbers = #tpu.dot_dimension_numbers<[1], [0], [0], [1], [0, 0, 1, 1], [], []>} : vector<16x176xf32>, vector<176x256xf32>, vector<16x256xf32> -> vector<16x256xf32>
    %234 = arith.addf %231, %233 : vector<16x256xf32>
    %cst_96 = arith.constant 0.000000e+00 : f32
    %235 = vector.broadcast %cst_96 : f32 to vector<16x24xf32>
    %cst_97 = arith.constant 0.000000e+00 : f32
    %236 = vector.broadcast %cst_97 : f32 to vector<16x24xf32>
    %237 = tpu.concatenate %235, %195, %236 in 1 : vector<16x24xf32>, vector<16x128xf32>, vector<16x24xf32> -> vector<16x176xf32>
    %cst_98 = arith.constant 0.000000e+00 : f32
    %238 = vector.broadcast %cst_98 : f32 to vector<3x176xf32>
    %239 = tpu.concatenate %238, %237, %238 in 0 : vector<3x176xf32>, vector<16x176xf32>, vector<3x176xf32> -> vector<22x176xf32>
    %240 = vector.extract_strided_slice %239 {offsets = [0, 0], sizes = [16, 176], strides = [1, 1]} : vector<22x176xf32> to vector<16x176xf32>
    %cst_99 = arith.constant dense<0.000000e+00> : vector<16x256xf32>
    %241 = tpu.matmul %240, %197, %cst_99 {dimension_numbers = #tpu.dot_dimension_numbers<[1], [0], [0], [1], [0, 0, 1, 1], [], []>} : vector<16x176xf32>, vector<176x256xf32>, vector<16x256xf32> -> vector<16x256xf32>
    %242 = vector.extract_strided_slice %239 {offsets = [1, 0], sizes = [16, 176], strides = [1, 1]} : vector<22x176xf32> to vector<16x176xf32>
    %cst_100 = arith.constant dense<0.000000e+00> : vector<16x256xf32>
    %243 = tpu.matmul %242, %199, %cst_100 {dimension_numbers = #tpu.dot_dimension_numbers<[1], [0], [0], [1], [0, 0, 1, 1], [], []>} : vector<16x176xf32>, vector<176x256xf32>, vector<16x256xf32> -> vector<16x256xf32>
    %244 = arith.addf %241, %243 : vector<16x256xf32>
    %245 = vector.extract_strided_slice %239 {offsets = [2, 0], sizes = [16, 176], strides = [1, 1]} : vector<22x176xf32> to vector<16x176xf32>
    %cst_101 = arith.constant dense<0.000000e+00> : vector<16x256xf32>
    %246 = tpu.matmul %245, %201, %cst_101 {dimension_numbers = #tpu.dot_dimension_numbers<[1], [0], [0], [1], [0, 0, 1, 1], [], []>} : vector<16x176xf32>, vector<176x256xf32>, vector<16x256xf32> -> vector<16x256xf32>
    %247 = arith.addf %244, %246 : vector<16x256xf32>
    %248 = vector.extract_strided_slice %239 {offsets = [3, 0], sizes = [16, 176], strides = [1, 1]} : vector<22x176xf32> to vector<16x176xf32>
    %cst_102 = arith.constant dense<0.000000e+00> : vector<16x256xf32>
    %249 = tpu.matmul %248, %203, %cst_102 {dimension_numbers = #tpu.dot_dimension_numbers<[1], [0], [0], [1], [0, 0, 1, 1], [], []>} : vector<16x176xf32>, vector<176x256xf32>, vector<16x256xf32> -> vector<16x256xf32>
    %250 = arith.addf %247, %249 : vector<16x256xf32>
    %251 = vector.extract_strided_slice %239 {offsets = [4, 0], sizes = [16, 176], strides = [1, 1]} : vector<22x176xf32> to vector<16x176xf32>
    %cst_103 = arith.constant dense<0.000000e+00> : vector<16x256xf32>
    %252 = tpu.matmul %251, %205, %cst_103 {dimension_numbers = #tpu.dot_dimension_numbers<[1], [0], [0], [1], [0, 0, 1, 1], [], []>} : vector<16x176xf32>, vector<176x256xf32>, vector<16x256xf32> -> vector<16x256xf32>
    %253 = arith.addf %250, %252 : vector<16x256xf32>
    %254 = vector.extract_strided_slice %239 {offsets = [5, 0], sizes = [16, 176], strides = [1, 1]} : vector<22x176xf32> to vector<16x176xf32>
    %cst_104 = arith.constant dense<0.000000e+00> : vector<16x256xf32>
    %255 = tpu.matmul %254, %207, %cst_104 {dimension_numbers = #tpu.dot_dimension_numbers<[1], [0], [0], [1], [0, 0, 1, 1], [], []>} : vector<16x176xf32>, vector<176x256xf32>, vector<16x256xf32> -> vector<16x256xf32>
    %256 = arith.addf %253, %255 : vector<16x256xf32>
    %257 = vector.extract_strided_slice %239 {offsets = [6, 0], sizes = [16, 176], strides = [1, 1]} : vector<22x176xf32> to vector<16x176xf32>
    %cst_105 = arith.constant dense<0.000000e+00> : vector<16x256xf32>
    %258 = tpu.matmul %257, %209, %cst_105 {dimension_numbers = #tpu.dot_dimension_numbers<[1], [0], [0], [1], [0, 0, 1, 1], [], []>} : vector<16x176xf32>, vector<176x256xf32>, vector<16x256xf32> -> vector<16x256xf32>
    %259 = arith.addf %256, %258 : vector<16x256xf32>
    %cst_106 = arith.constant dense<0.000000e+00> : vector<256xf32>
    %260 = vector.multi_reduction <add>, %234, %cst_106 [0] : vector<16x256xf32> to vector<256xf32>
    %261 = vector.shape_cast %260 : vector<256xf32> to vector<1x256xf32>
    %262 = arith.mulf %234, %234 : vector<16x256xf32>
    %cst_107 = arith.constant dense<0.000000e+00> : vector<256xf32>
    %263 = vector.multi_reduction <add>, %262, %cst_107 [0] : vector<16x256xf32> to vector<256xf32>
    %264 = vector.shape_cast %263 : vector<256xf32> to vector<1x256xf32>
    %cst_108 = arith.constant dense<0.000000e+00> : vector<256xf32>
    %265 = vector.multi_reduction <add>, %259, %cst_108 [0] : vector<16x256xf32> to vector<256xf32>
    %266 = vector.shape_cast %265 : vector<256xf32> to vector<1x256xf32>
    %267 = arith.addf %261, %266 : vector<1x256xf32>
    %268 = arith.mulf %259, %259 : vector<16x256xf32>
    %cst_109 = arith.constant dense<0.000000e+00> : vector<256xf32>
    %269 = vector.multi_reduction <add>, %268, %cst_109 [0] : vector<16x256xf32> to vector<256xf32>
    %270 = vector.shape_cast %269 : vector<256xf32> to vector<1x256xf32>
    %271 = arith.addf %264, %270 : vector<1x256xf32>
    %c0_110 = arith.constant 0 : index
    %c0_111 = arith.constant 0 : index
    %272 = vector.load %arg7[%c0_110, %c0_111] : memref<256x16xf32, #tpu.memory_space<vmem>>, vector<256x16xf32>
    %cst_112 = arith.constant dense<0.000000e+00> : vector<1x16xf32>
    %273 = tpu.matmul %267, %272, %cst_112 {dimension_numbers = #tpu.dot_dimension_numbers<[1], [0], [0], [1], [0, 0, 1, 1], [], []>} : vector<1x256xf32>, vector<256x16xf32>, vector<1x16xf32> -> vector<1x16xf32>
    %cst_113 = arith.constant 0.001953125 : f32
    %274 = vector.broadcast %cst_113 : f32 to vector<1x16xf32>
    %275 = arith.mulf %273, %274 : vector<1x16xf32>
    %c0_114 = arith.constant 0 : index
    %c0_115 = arith.constant 0 : index
    %276 = vector.load %arg7[%c0_114, %c0_115] : memref<256x16xf32, #tpu.memory_space<vmem>>, vector<256x16xf32>
    %cst_116 = arith.constant dense<0.000000e+00> : vector<1x16xf32>
    %277 = tpu.matmul %271, %276, %cst_116 {dimension_numbers = #tpu.dot_dimension_numbers<[1], [0], [0], [1], [0, 0, 1, 1], [], []>} : vector<1x256xf32>, vector<256x16xf32>, vector<1x16xf32> -> vector<1x16xf32>
    %cst_117 = arith.constant 0.001953125 : f32
    %278 = vector.broadcast %cst_117 : f32 to vector<1x16xf32>
    %279 = arith.mulf %277, %278 : vector<1x16xf32>
    %280 = arith.mulf %275, %275 : vector<1x16xf32>
    %281 = arith.subf %279, %280 : vector<1x16xf32>
    %cst_118 = arith.constant 0.000000e+00 : f32
    %282 = vector.broadcast %cst_118 : f32 to vector<1x16xf32>
    %283 = arith.maximumf %281, %282 : vector<1x16xf32>
    %c0_119 = arith.constant 0 : index
    %c0_120 = arith.constant 0 : index
    %284 = vector.load %arg9[%c0_119, %c0_120] : memref<1x16xf32, #tpu.memory_space<vmem>>, vector<1x16xf32>
    %cst_121 = arith.constant 9.99999974E-6 : f32
    %285 = vector.broadcast %cst_121 : f32 to vector<1x16xf32>
    %286 = arith.addf %283, %285 : vector<1x16xf32>
    %287 = math.rsqrt %286 : vector<1x16xf32>
    %288 = arith.mulf %284, %287 : vector<1x16xf32>
    %c0_122 = arith.constant 0 : index
    %c0_123 = arith.constant 0 : index
    %289 = vector.load %arg10[%c0_122, %c0_123] : memref<1x16xf32, #tpu.memory_space<vmem>>, vector<1x16xf32>
    %290 = arith.mulf %275, %288 : vector<1x16xf32>
    %291 = arith.subf %289, %290 : vector<1x16xf32>
    %c0_124 = arith.constant 0 : index
    %c0_125 = arith.constant 0 : index
    %292 = vector.load %arg8[%c0_124, %c0_125] : memref<16x256xf32, #tpu.memory_space<vmem>>, vector<16x256xf32>
    %cst_126 = arith.constant dense<0.000000e+00> : vector<1x256xf32>
    %293 = tpu.matmul %288, %292, %cst_126 {dimension_numbers = #tpu.dot_dimension_numbers<[1], [0], [0], [1], [0, 0, 1, 1], [], []>} : vector<1x16xf32>, vector<16x256xf32>, vector<1x256xf32> -> vector<1x256xf32>
    %c0_127 = arith.constant 0 : index
    %c0_128 = arith.constant 0 : index
    %294 = vector.load %arg8[%c0_127, %c0_128] : memref<16x256xf32, #tpu.memory_space<vmem>>, vector<16x256xf32>
    %cst_129 = arith.constant dense<0.000000e+00> : vector<1x256xf32>
    %295 = tpu.matmul %291, %294, %cst_129 {dimension_numbers = #tpu.dot_dimension_numbers<[1], [0], [0], [1], [0, 0, 1, 1], [], []>} : vector<1x16xf32>, vector<16x256xf32>, vector<1x256xf32> -> vector<1x256xf32>
    %296 = vector.broadcast %293 : vector<1x256xf32> to vector<16x256xf32>
    %297 = arith.mulf %234, %296 : vector<16x256xf32>
    %298 = vector.broadcast %295 : vector<1x256xf32> to vector<16x256xf32>
    %299 = arith.addf %297, %298 : vector<16x256xf32>
    %cst_130 = arith.constant 0.000000e+00 : f32
    %300 = vector.broadcast %cst_130 : f32 to vector<16x256xf32>
    %301 = arith.maximumf %299, %300 : vector<16x256xf32>
    %302 = vector.extract_strided_slice %301 {offsets = [0, 0], sizes = [16, 208], strides = [1, 1]} : vector<16x256xf32> to vector<16x208xf32>
    %303 = vector.extract_strided_slice %301 {offsets = [0, 16], sizes = [16, 208], strides = [1, 1]} : vector<16x256xf32> to vector<16x208xf32>
    %304 = arith.maximumf %302, %303 : vector<16x208xf32>
    %305 = vector.extract_strided_slice %301 {offsets = [0, 32], sizes = [16, 208], strides = [1, 1]} : vector<16x256xf32> to vector<16x208xf32>
    %306 = arith.maximumf %304, %305 : vector<16x208xf32>
    %307 = vector.extract_strided_slice %301 {offsets = [0, 48], sizes = [16, 208], strides = [1, 1]} : vector<16x256xf32> to vector<16x208xf32>
    %308 = arith.maximumf %306, %307 : vector<16x208xf32>
    %309 = vector.extract_strided_slice %308 {offsets = [0, 0], sizes = [16, 16], strides = [1, 1]} : vector<16x208xf32> to vector<16x16xf32>
    %310 = vector.extract_strided_slice %308 {offsets = [0, 64], sizes = [16, 16], strides = [1, 1]} : vector<16x208xf32> to vector<16x16xf32>
    %311 = vector.extract_strided_slice %308 {offsets = [0, 128], sizes = [16, 16], strides = [1, 1]} : vector<16x208xf32> to vector<16x16xf32>
    %312 = vector.extract_strided_slice %308 {offsets = [0, 192], sizes = [16, 16], strides = [1, 1]} : vector<16x208xf32> to vector<16x16xf32>
    %313 = tpu.concatenate %309, %310, %311, %312 in 1 : vector<16x16xf32>, vector<16x16xf32>, vector<16x16xf32>, vector<16x16xf32> -> vector<16x64xf32>
    %314 = vector.extract_strided_slice %313 {offsets = [0, 0], sizes = [13, 64], strides = [1, 1]} : vector<16x64xf32> to vector<13x64xf32>
    %315 = vector.extract_strided_slice %313 {offsets = [1, 0], sizes = [13, 64], strides = [1, 1]} : vector<16x64xf32> to vector<13x64xf32>
    %316 = arith.maximumf %314, %315 : vector<13x64xf32>
    %317 = vector.extract_strided_slice %313 {offsets = [2, 0], sizes = [13, 64], strides = [1, 1]} : vector<16x64xf32> to vector<13x64xf32>
    %318 = arith.maximumf %316, %317 : vector<13x64xf32>
    %319 = vector.extract_strided_slice %313 {offsets = [3, 0], sizes = [13, 64], strides = [1, 1]} : vector<16x64xf32> to vector<13x64xf32>
    %320 = arith.maximumf %318, %319 : vector<13x64xf32>
    %321 = vector.extract_strided_slice %320 {offsets = [0, 0], sizes = [1, 64], strides = [1, 1]} : vector<13x64xf32> to vector<1x64xf32>
    %322 = vector.extract_strided_slice %320 {offsets = [4, 0], sizes = [1, 64], strides = [1, 1]} : vector<13x64xf32> to vector<1x64xf32>
    %323 = vector.extract_strided_slice %320 {offsets = [8, 0], sizes = [1, 64], strides = [1, 1]} : vector<13x64xf32> to vector<1x64xf32>
    %324 = vector.extract_strided_slice %320 {offsets = [12, 0], sizes = [1, 64], strides = [1, 1]} : vector<13x64xf32> to vector<1x64xf32>
    %325 = tpu.concatenate %321, %322, %323, %324 in 0 : vector<1x64xf32>, vector<1x64xf32>, vector<1x64xf32>, vector<1x64xf32> -> vector<4x64xf32>
    %326 = vector.broadcast %293 : vector<1x256xf32> to vector<16x256xf32>
    %327 = arith.mulf %259, %326 : vector<16x256xf32>
    %328 = vector.broadcast %295 : vector<1x256xf32> to vector<16x256xf32>
    %329 = arith.addf %327, %328 : vector<16x256xf32>
    %cst_131 = arith.constant 0.000000e+00 : f32
    %330 = vector.broadcast %cst_131 : f32 to vector<16x256xf32>
    %331 = arith.maximumf %329, %330 : vector<16x256xf32>
    %332 = vector.extract_strided_slice %331 {offsets = [0, 0], sizes = [16, 208], strides = [1, 1]} : vector<16x256xf32> to vector<16x208xf32>
    %333 = vector.extract_strided_slice %331 {offsets = [0, 16], sizes = [16, 208], strides = [1, 1]} : vector<16x256xf32> to vector<16x208xf32>
    %334 = arith.maximumf %332, %333 : vector<16x208xf32>
    %335 = vector.extract_strided_slice %331 {offsets = [0, 32], sizes = [16, 208], strides = [1, 1]} : vector<16x256xf32> to vector<16x208xf32>
    %336 = arith.maximumf %334, %335 : vector<16x208xf32>
    %337 = vector.extract_strided_slice %331 {offsets = [0, 48], sizes = [16, 208], strides = [1, 1]} : vector<16x256xf32> to vector<16x208xf32>
    %338 = arith.maximumf %336, %337 : vector<16x208xf32>
    %339 = vector.extract_strided_slice %338 {offsets = [0, 0], sizes = [16, 16], strides = [1, 1]} : vector<16x208xf32> to vector<16x16xf32>
    %340 = vector.extract_strided_slice %338 {offsets = [0, 64], sizes = [16, 16], strides = [1, 1]} : vector<16x208xf32> to vector<16x16xf32>
    %341 = vector.extract_strided_slice %338 {offsets = [0, 128], sizes = [16, 16], strides = [1, 1]} : vector<16x208xf32> to vector<16x16xf32>
    %342 = vector.extract_strided_slice %338 {offsets = [0, 192], sizes = [16, 16], strides = [1, 1]} : vector<16x208xf32> to vector<16x16xf32>
    %343 = tpu.concatenate %339, %340, %341, %342 in 1 : vector<16x16xf32>, vector<16x16xf32>, vector<16x16xf32>, vector<16x16xf32> -> vector<16x64xf32>
    %344 = vector.extract_strided_slice %343 {offsets = [0, 0], sizes = [13, 64], strides = [1, 1]} : vector<16x64xf32> to vector<13x64xf32>
    %345 = vector.extract_strided_slice %343 {offsets = [1, 0], sizes = [13, 64], strides = [1, 1]} : vector<16x64xf32> to vector<13x64xf32>
    %346 = arith.maximumf %344, %345 : vector<13x64xf32>
    %347 = vector.extract_strided_slice %343 {offsets = [2, 0], sizes = [13, 64], strides = [1, 1]} : vector<16x64xf32> to vector<13x64xf32>
    %348 = arith.maximumf %346, %347 : vector<13x64xf32>
    %349 = vector.extract_strided_slice %343 {offsets = [3, 0], sizes = [13, 64], strides = [1, 1]} : vector<16x64xf32> to vector<13x64xf32>
    %350 = arith.maximumf %348, %349 : vector<13x64xf32>
    %351 = vector.extract_strided_slice %350 {offsets = [0, 0], sizes = [1, 64], strides = [1, 1]} : vector<13x64xf32> to vector<1x64xf32>
    %352 = vector.extract_strided_slice %350 {offsets = [4, 0], sizes = [1, 64], strides = [1, 1]} : vector<13x64xf32> to vector<1x64xf32>
    %353 = vector.extract_strided_slice %350 {offsets = [8, 0], sizes = [1, 64], strides = [1, 1]} : vector<13x64xf32> to vector<1x64xf32>
    %354 = vector.extract_strided_slice %350 {offsets = [12, 0], sizes = [1, 64], strides = [1, 1]} : vector<13x64xf32> to vector<1x64xf32>
    %355 = tpu.concatenate %351, %352, %353, %354 in 0 : vector<1x64xf32>, vector<1x64xf32>, vector<1x64xf32>, vector<1x64xf32> -> vector<4x64xf32>
    %c0_132 = arith.constant 0 : index
    %c0_133 = arith.constant 0 : index
    %c0_134 = arith.constant 0 : index
    %356 = vector.load %arg11[%c0_132, %c0_133, %c0_134] : memref<7x160x128xf32, #tpu.memory_space<vmem>>, vector<1x160x128xf32>
    %357 = vector.shape_cast %356 : vector<1x160x128xf32> to vector<160x128xf32>
    %c1_135 = arith.constant 1 : index
    %c0_136 = arith.constant 0 : index
    %c0_137 = arith.constant 0 : index
    %358 = vector.load %arg11[%c1_135, %c0_136, %c0_137] : memref<7x160x128xf32, #tpu.memory_space<vmem>>, vector<1x160x128xf32>
    %359 = vector.shape_cast %358 : vector<1x160x128xf32> to vector<160x128xf32>
    %c2_138 = arith.constant 2 : index
    %c0_139 = arith.constant 0 : index
    %c0_140 = arith.constant 0 : index
    %360 = vector.load %arg11[%c2_138, %c0_139, %c0_140] : memref<7x160x128xf32, #tpu.memory_space<vmem>>, vector<1x160x128xf32>
    %361 = vector.shape_cast %360 : vector<1x160x128xf32> to vector<160x128xf32>
    %c3_141 = arith.constant 3 : index
    %c0_142 = arith.constant 0 : index
    %c0_143 = arith.constant 0 : index
    %362 = vector.load %arg11[%c3_141, %c0_142, %c0_143] : memref<7x160x128xf32, #tpu.memory_space<vmem>>, vector<1x160x128xf32>
    %363 = vector.shape_cast %362 : vector<1x160x128xf32> to vector<160x128xf32>
    %c4_144 = arith.constant 4 : index
    %c0_145 = arith.constant 0 : index
    %c0_146 = arith.constant 0 : index
    %364 = vector.load %arg11[%c4_144, %c0_145, %c0_146] : memref<7x160x128xf32, #tpu.memory_space<vmem>>, vector<1x160x128xf32>
    %365 = vector.shape_cast %364 : vector<1x160x128xf32> to vector<160x128xf32>
    %c5_147 = arith.constant 5 : index
    %c0_148 = arith.constant 0 : index
    %c0_149 = arith.constant 0 : index
    %366 = vector.load %arg11[%c5_147, %c0_148, %c0_149] : memref<7x160x128xf32, #tpu.memory_space<vmem>>, vector<1x160x128xf32>
    %367 = vector.shape_cast %366 : vector<1x160x128xf32> to vector<160x128xf32>
    %c6_150 = arith.constant 6 : index
    %c0_151 = arith.constant 0 : index
    %c0_152 = arith.constant 0 : index
    %368 = vector.load %arg11[%c6_150, %c0_151, %c0_152] : memref<7x160x128xf32, #tpu.memory_space<vmem>>, vector<1x160x128xf32>
    %369 = vector.shape_cast %368 : vector<1x160x128xf32> to vector<160x128xf32>
    %cst_153 = arith.constant 0.000000e+00 : f32
    %370 = vector.broadcast %cst_153 : f32 to vector<4x48xf32>
    %cst_154 = arith.constant 0.000000e+00 : f32
    %371 = vector.broadcast %cst_154 : f32 to vector<4x48xf32>
    %372 = tpu.concatenate %370, %325, %371 in 1 : vector<4x48xf32>, vector<4x64xf32>, vector<4x48xf32> -> vector<4x160xf32>
    %cst_155 = arith.constant 0.000000e+00 : f32
    %373 = vector.broadcast %cst_155 : f32 to vector<3x160xf32>
    %374 = tpu.concatenate %373, %372, %373 in 0 : vector<3x160xf32>, vector<4x160xf32>, vector<3x160xf32> -> vector<10x160xf32>
    %375 = vector.extract_strided_slice %374 {offsets = [0, 0], sizes = [4, 160], strides = [1, 1]} : vector<10x160xf32> to vector<4x160xf32>
    %cst_156 = arith.constant dense<0.000000e+00> : vector<4x128xf32>
    %376 = tpu.matmul %375, %357, %cst_156 {dimension_numbers = #tpu.dot_dimension_numbers<[1], [0], [0], [1], [0, 0, 1, 1], [], []>} : vector<4x160xf32>, vector<160x128xf32>, vector<4x128xf32> -> vector<4x128xf32>
    %377 = vector.extract_strided_slice %374 {offsets = [1, 0], sizes = [4, 160], strides = [1, 1]} : vector<10x160xf32> to vector<4x160xf32>
    %cst_157 = arith.constant dense<0.000000e+00> : vector<4x128xf32>
    %378 = tpu.matmul %377, %359, %cst_157 {dimension_numbers = #tpu.dot_dimension_numbers<[1], [0], [0], [1], [0, 0, 1, 1], [], []>} : vector<4x160xf32>, vector<160x128xf32>, vector<4x128xf32> -> vector<4x128xf32>
    %379 = arith.addf %376, %378 : vector<4x128xf32>
    %380 = vector.extract_strided_slice %374 {offsets = [2, 0], sizes = [4, 160], strides = [1, 1]} : vector<10x160xf32> to vector<4x160xf32>
    %cst_158 = arith.constant dense<0.000000e+00> : vector<4x128xf32>
    %381 = tpu.matmul %380, %361, %cst_158 {dimension_numbers = #tpu.dot_dimension_numbers<[1], [0], [0], [1], [0, 0, 1, 1], [], []>} : vector<4x160xf32>, vector<160x128xf32>, vector<4x128xf32> -> vector<4x128xf32>
    %382 = arith.addf %379, %381 : vector<4x128xf32>
    %383 = vector.extract_strided_slice %374 {offsets = [3, 0], sizes = [4, 160], strides = [1, 1]} : vector<10x160xf32> to vector<4x160xf32>
    %cst_159 = arith.constant dense<0.000000e+00> : vector<4x128xf32>
    %384 = tpu.matmul %383, %363, %cst_159 {dimension_numbers = #tpu.dot_dimension_numbers<[1], [0], [0], [1], [0, 0, 1, 1], [], []>} : vector<4x160xf32>, vector<160x128xf32>, vector<4x128xf32> -> vector<4x128xf32>
    %385 = arith.addf %382, %384 : vector<4x128xf32>
    %386 = vector.extract_strided_slice %374 {offsets = [4, 0], sizes = [4, 160], strides = [1, 1]} : vector<10x160xf32> to vector<4x160xf32>
    %cst_160 = arith.constant dense<0.000000e+00> : vector<4x128xf32>
    %387 = tpu.matmul %386, %365, %cst_160 {dimension_numbers = #tpu.dot_dimension_numbers<[1], [0], [0], [1], [0, 0, 1, 1], [], []>} : vector<4x160xf32>, vector<160x128xf32>, vector<4x128xf32> -> vector<4x128xf32>
    %388 = arith.addf %385, %387 : vector<4x128xf32>
    %389 = vector.extract_strided_slice %374 {offsets = [5, 0], sizes = [4, 160], strides = [1, 1]} : vector<10x160xf32> to vector<4x160xf32>
    %cst_161 = arith.constant dense<0.000000e+00> : vector<4x128xf32>
    %390 = tpu.matmul %389, %367, %cst_161 {dimension_numbers = #tpu.dot_dimension_numbers<[1], [0], [0], [1], [0, 0, 1, 1], [], []>} : vector<4x160xf32>, vector<160x128xf32>, vector<4x128xf32> -> vector<4x128xf32>
    %391 = arith.addf %388, %390 : vector<4x128xf32>
    %392 = vector.extract_strided_slice %374 {offsets = [6, 0], sizes = [4, 160], strides = [1, 1]} : vector<10x160xf32> to vector<4x160xf32>
    %cst_162 = arith.constant dense<0.000000e+00> : vector<4x128xf32>
    %393 = tpu.matmul %392, %369, %cst_162 {dimension_numbers = #tpu.dot_dimension_numbers<[1], [0], [0], [1], [0, 0, 1, 1], [], []>} : vector<4x160xf32>, vector<160x128xf32>, vector<4x128xf32> -> vector<4x128xf32>
    %394 = arith.addf %391, %393 : vector<4x128xf32>
    %cst_163 = arith.constant 0.000000e+00 : f32
    %395 = vector.broadcast %cst_163 : f32 to vector<4x48xf32>
    %cst_164 = arith.constant 0.000000e+00 : f32
    %396 = vector.broadcast %cst_164 : f32 to vector<4x48xf32>
    %397 = tpu.concatenate %395, %355, %396 in 1 : vector<4x48xf32>, vector<4x64xf32>, vector<4x48xf32> -> vector<4x160xf32>
    %cst_165 = arith.constant 0.000000e+00 : f32
    %398 = vector.broadcast %cst_165 : f32 to vector<3x160xf32>
    %399 = tpu.concatenate %398, %397, %398 in 0 : vector<3x160xf32>, vector<4x160xf32>, vector<3x160xf32> -> vector<10x160xf32>
    %400 = vector.extract_strided_slice %399 {offsets = [0, 0], sizes = [4, 160], strides = [1, 1]} : vector<10x160xf32> to vector<4x160xf32>
    %cst_166 = arith.constant dense<0.000000e+00> : vector<4x128xf32>
    %401 = tpu.matmul %400, %357, %cst_166 {dimension_numbers = #tpu.dot_dimension_numbers<[1], [0], [0], [1], [0, 0, 1, 1], [], []>} : vector<4x160xf32>, vector<160x128xf32>, vector<4x128xf32> -> vector<4x128xf32>
    %402 = vector.extract_strided_slice %399 {offsets = [1, 0], sizes = [4, 160], strides = [1, 1]} : vector<10x160xf32> to vector<4x160xf32>
    %cst_167 = arith.constant dense<0.000000e+00> : vector<4x128xf32>
    %403 = tpu.matmul %402, %359, %cst_167 {dimension_numbers = #tpu.dot_dimension_numbers<[1], [0], [0], [1], [0, 0, 1, 1], [], []>} : vector<4x160xf32>, vector<160x128xf32>, vector<4x128xf32> -> vector<4x128xf32>
    %404 = arith.addf %401, %403 : vector<4x128xf32>
    %405 = vector.extract_strided_slice %399 {offsets = [2, 0], sizes = [4, 160], strides = [1, 1]} : vector<10x160xf32> to vector<4x160xf32>
    %cst_168 = arith.constant dense<0.000000e+00> : vector<4x128xf32>
    %406 = tpu.matmul %405, %361, %cst_168 {dimension_numbers = #tpu.dot_dimension_numbers<[1], [0], [0], [1], [0, 0, 1, 1], [], []>} : vector<4x160xf32>, vector<160x128xf32>, vector<4x128xf32> -> vector<4x128xf32>
    %407 = arith.addf %404, %406 : vector<4x128xf32>
    %408 = vector.extract_strided_slice %399 {offsets = [3, 0], sizes = [4, 160], strides = [1, 1]} : vector<10x160xf32> to vector<4x160xf32>
    %cst_169 = arith.constant dense<0.000000e+00> : vector<4x128xf32>
    %409 = tpu.matmul %408, %363, %cst_169 {dimension_numbers = #tpu.dot_dimension_numbers<[1], [0], [0], [1], [0, 0, 1, 1], [], []>} : vector<4x160xf32>, vector<160x128xf32>, vector<4x128xf32> -> vector<4x128xf32>
    %410 = arith.addf %407, %409 : vector<4x128xf32>
    %411 = vector.extract_strided_slice %399 {offsets = [4, 0], sizes = [4, 160], strides = [1, 1]} : vector<10x160xf32> to vector<4x160xf32>
    %cst_170 = arith.constant dense<0.000000e+00> : vector<4x128xf32>
    %412 = tpu.matmul %411, %365, %cst_170 {dimension_numbers = #tpu.dot_dimension_numbers<[1], [0], [0], [1], [0, 0, 1, 1], [], []>} : vector<4x160xf32>, vector<160x128xf32>, vector<4x128xf32> -> vector<4x128xf32>
    %413 = arith.addf %410, %412 : vector<4x128xf32>
    %414 = vector.extract_strided_slice %399 {offsets = [5, 0], sizes = [4, 160], strides = [1, 1]} : vector<10x160xf32> to vector<4x160xf32>
    %cst_171 = arith.constant dense<0.000000e+00> : vector<4x128xf32>
    %415 = tpu.matmul %414, %367, %cst_171 {dimension_numbers = #tpu.dot_dimension_numbers<[1], [0], [0], [1], [0, 0, 1, 1], [], []>} : vector<4x160xf32>, vector<160x128xf32>, vector<4x128xf32> -> vector<4x128xf32>
    %416 = arith.addf %413, %415 : vector<4x128xf32>
    %417 = vector.extract_strided_slice %399 {offsets = [6, 0], sizes = [4, 160], strides = [1, 1]} : vector<10x160xf32> to vector<4x160xf32>
    %cst_172 = arith.constant dense<0.000000e+00> : vector<4x128xf32>
    %418 = tpu.matmul %417, %369, %cst_172 {dimension_numbers = #tpu.dot_dimension_numbers<[1], [0], [0], [1], [0, 0, 1, 1], [], []>} : vector<4x160xf32>, vector<160x128xf32>, vector<4x128xf32> -> vector<4x128xf32>
    %419 = arith.addf %416, %418 : vector<4x128xf32>
    %cst_173 = arith.constant dense<0.000000e+00> : vector<128xf32>
    %420 = vector.multi_reduction <add>, %394, %cst_173 [0] : vector<4x128xf32> to vector<128xf32>
    %421 = vector.shape_cast %420 : vector<128xf32> to vector<1x128xf32>
    %422 = arith.mulf %394, %394 : vector<4x128xf32>
    %cst_174 = arith.constant dense<0.000000e+00> : vector<128xf32>
    %423 = vector.multi_reduction <add>, %422, %cst_174 [0] : vector<4x128xf32> to vector<128xf32>
    %424 = vector.shape_cast %423 : vector<128xf32> to vector<1x128xf32>
    %cst_175 = arith.constant dense<0.000000e+00> : vector<128xf32>
    %425 = vector.multi_reduction <add>, %419, %cst_175 [0] : vector<4x128xf32> to vector<128xf32>
    %426 = vector.shape_cast %425 : vector<128xf32> to vector<1x128xf32>
    %427 = arith.addf %421, %426 : vector<1x128xf32>
    %428 = arith.mulf %419, %419 : vector<4x128xf32>
    %cst_176 = arith.constant dense<0.000000e+00> : vector<128xf32>
    %429 = vector.multi_reduction <add>, %428, %cst_176 [0] : vector<4x128xf32> to vector<128xf32>
    %430 = vector.shape_cast %429 : vector<128xf32> to vector<1x128xf32>
    %431 = arith.addf %424, %430 : vector<1x128xf32>
    %c0_177 = arith.constant 0 : index
    %c0_178 = arith.constant 0 : index
    %432 = vector.load %arg12[%c0_177, %c0_178] : memref<128x32xf32, #tpu.memory_space<vmem>>, vector<128x32xf32>
    %cst_179 = arith.constant dense<0.000000e+00> : vector<1x32xf32>
    %433 = tpu.matmul %427, %432, %cst_179 {dimension_numbers = #tpu.dot_dimension_numbers<[1], [0], [0], [1], [0, 0, 1, 1], [], []>} : vector<1x128xf32>, vector<128x32xf32>, vector<1x32xf32> -> vector<1x32xf32>
    %cst_180 = arith.constant 3.125000e-02 : f32
    %434 = vector.broadcast %cst_180 : f32 to vector<1x32xf32>
    %435 = arith.mulf %433, %434 : vector<1x32xf32>
    %c0_181 = arith.constant 0 : index
    %c0_182 = arith.constant 0 : index
    %436 = vector.load %arg12[%c0_181, %c0_182] : memref<128x32xf32, #tpu.memory_space<vmem>>, vector<128x32xf32>
    %cst_183 = arith.constant dense<0.000000e+00> : vector<1x32xf32>
    %437 = tpu.matmul %431, %436, %cst_183 {dimension_numbers = #tpu.dot_dimension_numbers<[1], [0], [0], [1], [0, 0, 1, 1], [], []>} : vector<1x128xf32>, vector<128x32xf32>, vector<1x32xf32> -> vector<1x32xf32>
    %cst_184 = arith.constant 3.125000e-02 : f32
    %438 = vector.broadcast %cst_184 : f32 to vector<1x32xf32>
    %439 = arith.mulf %437, %438 : vector<1x32xf32>
    %440 = arith.mulf %435, %435 : vector<1x32xf32>
    %441 = arith.subf %439, %440 : vector<1x32xf32>
    %cst_185 = arith.constant 0.000000e+00 : f32
    %442 = vector.broadcast %cst_185 : f32 to vector<1x32xf32>
    %443 = arith.maximumf %441, %442 : vector<1x32xf32>
    %c0_186 = arith.constant 0 : index
    %c0_187 = arith.constant 0 : index
    %444 = vector.load %arg14[%c0_186, %c0_187] : memref<1x32xf32, #tpu.memory_space<vmem>>, vector<1x32xf32>
    %cst_188 = arith.constant 9.99999974E-6 : f32
    %445 = vector.broadcast %cst_188 : f32 to vector<1x32xf32>
    %446 = arith.addf %443, %445 : vector<1x32xf32>
    %447 = math.rsqrt %446 : vector<1x32xf32>
    %448 = arith.mulf %444, %447 : vector<1x32xf32>
    %c0_189 = arith.constant 0 : index
    %c0_190 = arith.constant 0 : index
    %449 = vector.load %arg15[%c0_189, %c0_190] : memref<1x32xf32, #tpu.memory_space<vmem>>, vector<1x32xf32>
    %450 = arith.mulf %435, %448 : vector<1x32xf32>
    %451 = arith.subf %449, %450 : vector<1x32xf32>
    %c0_191 = arith.constant 0 : index
    %c0_192 = arith.constant 0 : index
    %452 = vector.load %arg13[%c0_191, %c0_192] : memref<32x128xf32, #tpu.memory_space<vmem>>, vector<32x128xf32>
    %cst_193 = arith.constant dense<0.000000e+00> : vector<1x128xf32>
    %453 = tpu.matmul %448, %452, %cst_193 {dimension_numbers = #tpu.dot_dimension_numbers<[1], [0], [0], [1], [0, 0, 1, 1], [], []>} : vector<1x32xf32>, vector<32x128xf32>, vector<1x128xf32> -> vector<1x128xf32>
    %c0_194 = arith.constant 0 : index
    %c0_195 = arith.constant 0 : index
    %454 = vector.load %arg13[%c0_194, %c0_195] : memref<32x128xf32, #tpu.memory_space<vmem>>, vector<32x128xf32>
    %cst_196 = arith.constant dense<0.000000e+00> : vector<1x128xf32>
    %455 = tpu.matmul %451, %454, %cst_196 {dimension_numbers = #tpu.dot_dimension_numbers<[1], [0], [0], [1], [0, 0, 1, 1], [], []>} : vector<1x32xf32>, vector<32x128xf32>, vector<1x128xf32> -> vector<1x128xf32>
    %456 = vector.broadcast %453 : vector<1x128xf32> to vector<4x128xf32>
    %457 = arith.mulf %394, %456 : vector<4x128xf32>
    %458 = vector.broadcast %455 : vector<1x128xf32> to vector<4x128xf32>
    %459 = arith.addf %457, %458 : vector<4x128xf32>
    %cst_197 = arith.constant 0.000000e+00 : f32
    %460 = vector.broadcast %cst_197 : f32 to vector<4x128xf32>
    %461 = arith.maximumf %459, %460 : vector<4x128xf32>
    %462 = vector.extract_strided_slice %461 {offsets = [0, 0], sizes = [4, 32], strides = [1, 1]} : vector<4x128xf32> to vector<4x32xf32>
    %463 = vector.extract_strided_slice %461 {offsets = [0, 32], sizes = [4, 32], strides = [1, 1]} : vector<4x128xf32> to vector<4x32xf32>
    %464 = arith.maximumf %462, %463 : vector<4x32xf32>
    %465 = vector.extract_strided_slice %461 {offsets = [0, 64], sizes = [4, 32], strides = [1, 1]} : vector<4x128xf32> to vector<4x32xf32>
    %466 = arith.maximumf %464, %465 : vector<4x32xf32>
    %467 = vector.extract_strided_slice %461 {offsets = [0, 96], sizes = [4, 32], strides = [1, 1]} : vector<4x128xf32> to vector<4x32xf32>
    %468 = arith.maximumf %466, %467 : vector<4x32xf32>
    %469 = vector.extract_strided_slice %468 {offsets = [0, 0], sizes = [1, 32], strides = [1, 1]} : vector<4x32xf32> to vector<1x32xf32>
    %470 = vector.extract_strided_slice %468 {offsets = [1, 0], sizes = [1, 32], strides = [1, 1]} : vector<4x32xf32> to vector<1x32xf32>
    %471 = arith.maximumf %469, %470 : vector<1x32xf32>
    %472 = vector.extract_strided_slice %468 {offsets = [2, 0], sizes = [1, 32], strides = [1, 1]} : vector<4x32xf32> to vector<1x32xf32>
    %473 = arith.maximumf %471, %472 : vector<1x32xf32>
    %474 = vector.extract_strided_slice %468 {offsets = [3, 0], sizes = [1, 32], strides = [1, 1]} : vector<4x32xf32> to vector<1x32xf32>
    %475 = arith.maximumf %473, %474 : vector<1x32xf32>
    %476 = vector.broadcast %453 : vector<1x128xf32> to vector<4x128xf32>
    %477 = arith.mulf %419, %476 : vector<4x128xf32>
    %478 = vector.broadcast %455 : vector<1x128xf32> to vector<4x128xf32>
    %479 = arith.addf %477, %478 : vector<4x128xf32>
    %cst_198 = arith.constant 0.000000e+00 : f32
    %480 = vector.broadcast %cst_198 : f32 to vector<4x128xf32>
    %481 = arith.maximumf %479, %480 : vector<4x128xf32>
    %482 = vector.extract_strided_slice %481 {offsets = [0, 0], sizes = [4, 32], strides = [1, 1]} : vector<4x128xf32> to vector<4x32xf32>
    %483 = vector.extract_strided_slice %481 {offsets = [0, 32], sizes = [4, 32], strides = [1, 1]} : vector<4x128xf32> to vector<4x32xf32>
    %484 = arith.maximumf %482, %483 : vector<4x32xf32>
    %485 = vector.extract_strided_slice %481 {offsets = [0, 64], sizes = [4, 32], strides = [1, 1]} : vector<4x128xf32> to vector<4x32xf32>
    %486 = arith.maximumf %484, %485 : vector<4x32xf32>
    %487 = vector.extract_strided_slice %481 {offsets = [0, 96], sizes = [4, 32], strides = [1, 1]} : vector<4x128xf32> to vector<4x32xf32>
    %488 = arith.maximumf %486, %487 : vector<4x32xf32>
    %489 = vector.extract_strided_slice %488 {offsets = [0, 0], sizes = [1, 32], strides = [1, 1]} : vector<4x32xf32> to vector<1x32xf32>
    %490 = vector.extract_strided_slice %488 {offsets = [1, 0], sizes = [1, 32], strides = [1, 1]} : vector<4x32xf32> to vector<1x32xf32>
    %491 = arith.maximumf %489, %490 : vector<1x32xf32>
    %492 = vector.extract_strided_slice %488 {offsets = [2, 0], sizes = [1, 32], strides = [1, 1]} : vector<4x32xf32> to vector<1x32xf32>
    %493 = arith.maximumf %491, %492 : vector<1x32xf32>
    %494 = vector.extract_strided_slice %488 {offsets = [3, 0], sizes = [1, 32], strides = [1, 1]} : vector<4x32xf32> to vector<1x32xf32>
    %495 = arith.maximumf %493, %494 : vector<1x32xf32>
    %496 = tpu.concatenate %475, %495 in 0 : vector<1x32xf32>, vector<1x32xf32> -> vector<2x32xf32>
    %c0_199 = arith.constant 0 : index
    %c0_200 = arith.constant 0 : index
    %497 = vector.load %arg16[%c0_199, %c0_200] : memref<32x16xf32, #tpu.memory_space<vmem>>, vector<32x16xf32>
    %cst_201 = arith.constant dense<0.000000e+00> : vector<2x16xf32>
    %498 = tpu.matmul %496, %497, %cst_201 {dimension_numbers = #tpu.dot_dimension_numbers<[1], [0], [0], [1], [0, 0, 1, 1], [], []>} : vector<2x32xf32>, vector<32x16xf32>, vector<2x16xf32> -> vector<2x16xf32>
    %c0_202 = arith.constant 0 : index
    %c0_203 = arith.constant 0 : index
    %499 = vector.load %arg17[%c0_202, %c0_203] : memref<1x16xf32, #tpu.memory_space<vmem>>, vector<1x16xf32>
    %500 = vector.broadcast %499 : vector<1x16xf32> to vector<2x16xf32>
    %501 = arith.addf %498, %500 : vector<2x16xf32>
    %cst_204 = arith.constant 0.000000e+00 : f32
    %502 = vector.broadcast %cst_204 : f32 to vector<2x16xf32>
    %503 = arith.maximumf %501, %502 : vector<2x16xf32>
    %c0_205 = arith.constant 0 : index
    %c0_206 = arith.constant 0 : index
    %504 = vector.load %arg18[%c0_205, %c0_206] : memref<16x8xf32, #tpu.memory_space<vmem>>, vector<16x8xf32>
    %cst_207 = arith.constant dense<0.000000e+00> : vector<2x8xf32>
    %505 = tpu.matmul %503, %504, %cst_207 {dimension_numbers = #tpu.dot_dimension_numbers<[1], [0], [0], [1], [0, 0, 1, 1], [], []>} : vector<2x16xf32>, vector<16x8xf32>, vector<2x8xf32> -> vector<2x8xf32>
    %c0_208 = arith.constant 0 : index
    %c0_209 = arith.constant 0 : index
    %506 = vector.load %arg19[%c0_208, %c0_209] : memref<1x8xf32, #tpu.memory_space<vmem>>, vector<1x8xf32>
    %507 = vector.broadcast %506 : vector<1x8xf32> to vector<2x8xf32>
    %508 = arith.addf %505, %507 : vector<2x8xf32>
    %c0_210 = arith.constant 0 : index
    %c0_211 = arith.constant 0 : index
    %509 = vector.load %arg21[%c0_210, %c0_211] : memref<8x5xf32, #tpu.memory_space<vmem>>, vector<8x5xf32>
    %c0_212 = arith.constant 0 : index
    %c0_213 = arith.constant 0 : index
    %510 = vector.load %arg23[%c0_212, %c0_213] : memref<1x5xf32, #tpu.memory_space<vmem>>, vector<1x5xf32>
    %cst_214 = arith.constant 0.000000e+00 : f32
    %511 = vector.broadcast %cst_214 : f32 to vector<8x5xf32>
    %512 = arith.maximumf %509, %511 : vector<8x5xf32>
    %513 = math.absf %509 : vector<8x5xf32>
    %cst_215 = arith.constant 0.000000e+00 : f32
    %514 = vector.broadcast %cst_215 : f32 to vector<8x5xf32>
    %515 = arith.subf %514, %513 : vector<8x5xf32>
    %516 = math.exp %515 : vector<8x5xf32>
    %517 = math.log1p %516 : vector<8x5xf32>
    %518 = arith.addf %512, %517 : vector<8x5xf32>
    %cst_216 = arith.constant 0.000000e+00 : f32
    %519 = vector.broadcast %cst_216 : f32 to vector<1x5xf32>
    %520 = arith.maximumf %510, %519 : vector<1x5xf32>
    %521 = math.absf %510 : vector<1x5xf32>
    %cst_217 = arith.constant 0.000000e+00 : f32
    %522 = vector.broadcast %cst_217 : f32 to vector<1x5xf32>
    %523 = arith.subf %522, %521 : vector<1x5xf32>
    %524 = math.exp %523 : vector<1x5xf32>
    %525 = math.log1p %524 : vector<1x5xf32>
    %526 = arith.addf %520, %525 : vector<1x5xf32>
    %c0_218 = arith.constant 0 : index
    %c0_219 = arith.constant 0 : index
    %527 = vector.load %arg20[%c0_218, %c0_219] : memref<8x5xf32, #tpu.memory_space<vmem>>, vector<8x5xf32>
    %c0_220 = arith.constant 0 : index
    %c0_221 = arith.constant 0 : index
    %528 = vector.load %arg24[%c0_220, %c0_221] : memref<8x5xf32, #tpu.memory_space<vmem>>, vector<8x5xf32>
    %529 = arith.mulf %518, %528 : vector<8x5xf32>
    %530 = arith.addf %527, %529 : vector<8x5xf32>
    %c0_222 = arith.constant 0 : index
    %c0_223 = arith.constant 0 : index
    %531 = vector.load %arg22[%c0_222, %c0_223] : memref<1x5xf32, #tpu.memory_space<vmem>>, vector<1x5xf32>
    %c0_224 = arith.constant 0 : index
    %c0_225 = arith.constant 0 : index
    %532 = vector.load %arg25[%c0_224, %c0_225] : memref<1x5xf32, #tpu.memory_space<vmem>>, vector<1x5xf32>
    %533 = arith.mulf %526, %532 : vector<1x5xf32>
    %534 = arith.addf %531, %533 : vector<1x5xf32>
    %cst_226 = arith.constant dense<0.000000e+00> : vector<2x5xf32>
    %535 = tpu.matmul %508, %530, %cst_226 {dimension_numbers = #tpu.dot_dimension_numbers<[1], [0], [0], [1], [0, 0, 1, 1], [], []>} : vector<2x8xf32>, vector<8x5xf32>, vector<2x5xf32> -> vector<2x5xf32>
    %536 = vector.broadcast %534 : vector<1x5xf32> to vector<2x5xf32>
    %537 = arith.addf %535, %536 : vector<2x5xf32>
    %c0_227 = arith.constant 0 : index
    %c0_228 = arith.constant 0 : index
    %538 = vector.load %arg26[%c0_227, %c0_228] : memref<2x5xf32, #tpu.memory_space<vmem>>, vector<2x5xf32>
    tpu.vector_store %arg26[%c0_227, %c0_228], %537 {strides = array<i32>} : memref<2x5xf32, #tpu.memory_space<vmem>>, vector<2x5xf32>,
    %c0_229 = arith.constant 0 : index
    %c0_230 = arith.constant 0 : index
    %539 = vector.load %arg20[%c0_229, %c0_230] : memref<8x5xf32, #tpu.memory_space<vmem>>, vector<8x5xf32>
    %cst_231 = arith.constant 1.000000e+00 : f32
    %540 = vector.broadcast %cst_231 : f32 to vector<8x5xf32>
    %541 = arith.divf %540, %518 : vector<8x5xf32>
    %542 = math.log %541 : vector<8x5xf32>
    %543 = arith.mulf %518, %518 : vector<8x5xf32>
    %cst_232 = arith.constant 0.000000e+00 : f32
    %544 = vector.broadcast %cst_232 : f32 to vector<8x5xf32>
    %545 = arith.subf %539, %544 : vector<8x5xf32>
    %546 = arith.mulf %545, %545 : vector<8x5xf32>
    %547 = arith.addf %543, %546 : vector<8x5xf32>
    %cst_233 = arith.constant 2.000000e+00 : f32
    %548 = vector.broadcast %cst_233 : f32 to vector<8x5xf32>
    %549 = arith.divf %547, %548 : vector<8x5xf32>
    %550 = arith.addf %542, %549 : vector<8x5xf32>
    %cst_234 = arith.constant 5.000000e-01 : f32
    %551 = vector.broadcast %cst_234 : f32 to vector<8x5xf32>
    %552 = arith.subf %550, %551 : vector<8x5xf32>
    %553 = vector.shape_cast %552 : vector<8x5xf32> to vector<1x8x5xf32>
    %cst_235 = arith.constant dense<0.000000e+00> : vector<1xf32>
    %554 = vector.multi_reduction <add>, %553, %cst_235 [1, 2] : vector<1x8x5xf32> to vector<1xf32>
    %555 = vector.shape_cast %554 : vector<1xf32> to vector<1x1x1xf32>
    %556 = vector.extract %555[0, 0, 0] : f32 from vector<1x1x1xf32>
    %557 = vector.broadcast %556 : f32 to vector<1x1xf32>
    %c0_236 = arith.constant 0 : index
    %c0_237 = arith.constant 0 : index
    %558 = vector.load %arg22[%c0_236, %c0_237] : memref<1x5xf32, #tpu.memory_space<vmem>>, vector<1x5xf32>
    %cst_238 = arith.constant 1.000000e+00 : f32
    %559 = vector.broadcast %cst_238 : f32 to vector<1x5xf32>
    %560 = arith.divf %559, %526 : vector<1x5xf32>
    %561 = math.log %560 : vector<1x5xf32>
    %562 = arith.mulf %526, %526 : vector<1x5xf32>
    %cst_239 = arith.constant 0.000000e+00 : f32
    %563 = vector.broadcast %cst_239 : f32 to vector<1x5xf32>
    %564 = arith.subf %558, %563 : vector<1x5xf32>
    %565 = arith.mulf %564, %564 : vector<1x5xf32>
    %566 = arith.addf %562, %565 : vector<1x5xf32>
    %cst_240 = arith.constant 2.000000e+00 : f32
    %567 = vector.broadcast %cst_240 : f32 to vector<1x5xf32>
    %568 = arith.divf %566, %567 : vector<1x5xf32>
    %569 = arith.addf %561, %568 : vector<1x5xf32>
    %cst_241 = arith.constant 5.000000e-01 : f32
    %570 = vector.broadcast %cst_241 : f32 to vector<1x5xf32>
    %571 = arith.subf %569, %570 : vector<1x5xf32>
    %572 = vector.shape_cast %571 : vector<1x5xf32> to vector<1x1x5xf32>
    %cst_242 = arith.constant dense<0.000000e+00> : vector<1xf32>
    %573 = vector.multi_reduction <add>, %572, %cst_242 [1, 2] : vector<1x1x5xf32> to vector<1xf32>
    %574 = vector.shape_cast %573 : vector<1xf32> to vector<1x1x1xf32>
    %575 = vector.extract %574[0, 0, 0] : f32 from vector<1x1x1xf32>
    %576 = vector.broadcast %575 : f32 to vector<1x1xf32>
    %577 = arith.addf %557, %576 : vector<1x1xf32>
    %c0_243 = arith.constant 0 : index
    %c0_244 = arith.constant 0 : index
    %578 = vector.load %arg27[%c0_243, %c0_244] : memref<1x1xf32, #tpu.memory_space<vmem>>, vector<1x1xf32>
    tpu.vector_store %arg27[%c0_243, %c0_244], %577 {strides = array<i32>} : memref<1x1xf32, #tpu.memory_space<vmem>>, vector<1x1xf32>,
    return
  }
}

</mosaic_0001>

<llo_original>
// kernel: forward.1
$region0: #{forward.1}
  #allocation0 [shape = 'u32[]', space=smem, size = 0x4, offset = 0x4, fixed_abs, tag = 'smem constant byte address 0x4 - core index']
  #allocation1 [shape = 'u32[144,128]{1,0:T(1,128)}', space=vmem, size = 0x12000, scoped, tag = 'internal scratch']
  %s0 = inlined_call_operand.hbm [shape: f32[2,32,32], index: 0, kind: input, shape index: {}]
  %s1 = inlined_call_operand.hbm [shape: f32[7,40,256], index: 1, kind: input, shape index: {}]
  %s2 = inlined_call_operand.vmem [shape: f32[256,8], index: 2, kind: input, shape index: {}]
  %s3 = inlined_call_operand.hbm [shape: f32[8,256], index: 3, kind: input, shape index: {}]
  %s4 = inlined_call_operand.hbm [shape: f32[1,8], index: 4, kind: input, shape index: {}]
  %s5 = inlined_call_operand.hbm [shape: f32[1,8], index: 5, kind: input, shape index: {}]
  %s6 = inlined_call_operand.hbm [shape: f32[7,176,256], index: 6, kind: input, shape index: {}]
  %s7 = inlined_call_operand.vmem [shape: f32[256,16], index: 7, kind: input, shape index: {}]
  %s8 = inlined_call_operand.hbm [shape: f32[16,256], index: 8, kind: input, shape index: {}]
  %s9 = inlined_call_operand.hbm [shape: f32[1,16], index: 9, kind: input, shape index: {}]
  %s10 = inlined_call_operand.hbm [shape: f32[1,16], index: 10, kind: input, shape index: {}]
  %s11 = inlined_call_operand.hbm [shape: f32[7,160,128], index: 11, kind: input, shape index: {}]
  %s12 = inlined_call_operand.vmem [shape: f32[128,32], index: 12, kind: input, shape index: {}]
  %s13 = inlined_call_operand.hbm [shape: f32[32,128], index: 13, kind: input, shape index: {}]
  %s14 = inlined_call_operand.hbm [shape: f32[1,32], index: 14, kind: input, shape index: {}]
  %s15 = inlined_call_operand.hbm [shape: f32[1,32], index: 15, kind: input, shape index: {}]
  %s16 = inlined_call_operand.vmem [shape: f32[32,16], index: 16, kind: input, shape index: {}]
  %s17 = inlined_call_operand.hbm [shape: f32[1,16], index: 17, kind: input, shape index: {}]
  %s18 = inlined_call_operand.vmem [shape: f32[16,8], index: 18, kind: input, shape index: {}]
  %s19 = inlined_call_operand.hbm [shape: f32[1,8], index: 19, kind: input, shape index: {}]
  %s20 = inlined_call_operand.hbm [shape: f32[8,5], index: 20, kind: input, shape index: {}]
  %s21 = inlined_call_operand.hbm [shape: f32[8,5], index: 21, kind: input, shape index: {}]
  %s22 = inlined_call_operand.hbm [shape: f32[1,5], index: 22, kind: input, shape index: {}]
  %s23 = inlined_call_operand.hbm [shape: f32[1,5], index: 23, kind: input, shape index: {}]
  %s24 = inlined_call_operand.hbm [shape: f32[8,5], index: 24, kind: input, shape index: {}]
  %s25 = inlined_call_operand.hbm [shape: f32[1,5], index: 25, kind: input, shape index: {}]
  %s26 = inlined_call_operand.hbm [shape: f32[2,5], index: 26, kind: output, shape index: {0}]
  %s27 = inlined_call_operand.hbm [shape: f32[1,1], index: 27, kind: output, shape index: {1}]
  %28 = xla_tuple %s26, %s27
  %s29 = sld [smem:[#allocation0]]
  $region206: #{forward.1} parent=0
    _
  %s31 = ssub.s32 1, %s29
  %s32 = scalar_select 0, %s31, %s29
  $region1: #{forward.1} parent=0
    #allocation2 [shape = 'u8[32768]{0}', space=vmem, size = 0x8000, scoped, tag = 'input window, operand 0, single buffered']
    #allocation3 [shape = 's32[1]{0}', space=sflag, size = 0x4, scoped, tag = 'scoped memory for forward.1']
    #allocation4 [shape = 's32[1]{0}', space=sflag, size = 0x4, scoped, tag = 'scoped memory for forward.1']
    #allocation5 [shape = 'u8[286720]{0}', space=vmem, size = 0x46000, scoped, tag = 'input window, operand 1, single buffered']
    #allocation6 [shape = 's32[1]{0}', space=sflag, size = 0x4, scoped, tag = 'scoped memory for forward.1']
    #allocation7 [shape = 'u8[8192]{0}', space=vmem, size = 0x2000, scoped, tag = 'input window, operand 3, single buffered']
    #allocation8 [shape = 'u8[512]{0}', space=vmem, size = 0x400, scoped, tag = 'input window, operand 4, single buffered']
    #allocation9 [shape = 's32[1]{0}', space=sflag, size = 0x4, scoped, tag = 'scoped memory for forward.1']
    #allocation10 [shape = 'u8[512]{0}', space=vmem, size = 0x400, scoped, tag = 'input window, operand 5, single buffered']
    #allocation11 [shape = 'u8[1261568]{0}', space=vmem, size = 0x134000, scoped, tag = 'input window, operand 6, single buffered']
    #allocation12 [shape = 's32[1]{0}', space=sflag, size = 0x4, scoped, tag = 'scoped memory for forward.1']
    #allocation13 [shape = 'u8[16384]{0}', space=vmem, size = 0x4000, scoped, tag = 'input window, operand 8, single buffered']
    #allocation14 [shape = 'u8[512]{0}', space=vmem, size = 0x400, scoped, tag = 'input window, operand 9, single buffered']
    #allocation15 [shape = 's32[1]{0}', space=sflag, size = 0x4, scoped, tag = 'scoped memory for forward.1']
    #allocation16 [shape = 'u8[512]{0}', space=vmem, size = 0x400, scoped, tag = 'input window, operand 10, single buffered']
    #allocation17 [shape = 'u8[573440]{0}', space=vmem, size = 0x8c000, scoped, tag = 'input window, operand 11, single buffered']
    #allocation18 [shape = 's32[1]{0}', space=sflag, size = 0x4, scoped, tag = 'scoped memory for forward.1']
    #allocation19 [shape = 'u8[16384]{0}', space=vmem, size = 0x4000, scoped, tag = 'input window, operand 13, single buffered']
    #allocation20 [shape = 'u8[512]{0}', space=vmem, size = 0x400, scoped, tag = 'input window, operand 14, single buffered']
    #allocation21 [shape = 's32[1]{0}', space=sflag, size = 0x4, scoped, tag = 'scoped memory for forward.1']
    #allocation22 [shape = 'u8[512]{0}', space=vmem, size = 0x400, scoped, tag = 'input window, operand 15, single buffered']
    #allocation23 [shape = 'u8[512]{0}', space=vmem, size = 0x400, scoped, tag = 'input window, operand 17, single buffered']
    #allocation24 [shape = 's32[1]{0}', space=sflag, size = 0x4, scoped, tag = 'scoped memory for forward.1']
    #allocation25 [shape = 'u8[512]{0}', space=vmem, size = 0x400, scoped, tag = 'input window, operand 19, single buffered']
    #allocation26 [shape = 'u8[4096]{0}', space=vmem, size = 0x1000, scoped, tag = 'input window, operand 20, single buffered']
    #allocation27 [shape = 's32[1]{0}', space=sflag, size = 0x4, scoped, tag = 'scoped memory for forward.1']
    #allocation28 [shape = 'u8[4096]{0}', space=vmem, size = 0x1000, scoped, tag = 'input window, operand 21, single buffered']
    #allocation29 [shape = 'u8[512]{0}', space=vmem, size = 0x400, scoped, tag = 'input window, operand 22, single buffered']
    #allocation30 [shape = 's32[1]{0}', space=sflag, size = 0x4, scoped, tag = 'scoped memory for forward.1']
    #allocation31 [shape = 'u8[512]{0}', space=vmem, size = 0x400, scoped, tag = 'input window, operand 23, single buffered']
    #allocation32 [shape = 'u8[4096]{0}', space=vmem, size = 0x1000, scoped, tag = 'input window, operand 24, single buffered']
    #allocation33 [shape = 's32[1]{0}', space=sflag, size = 0x4, scoped, tag = 'scoped memory for forward.1']
    #allocation34 [shape = 'u8[512]{0}', space=vmem, size = 0x400, scoped, tag = 'input window, operand 25, single buffered']
    #allocation35 [shape = 'u8[1024]{0}', space=vmem, size = 0x400, scoped, tag = 'output window, operand 0, single buffered']
    #allocation36 [shape = 'u8[512]{0}', space=vmem, size = 0x400, scoped, tag = 'output window, operand 1, single buffered']
    #allocation37 [shape = 's32[1]{0}', space=sflag, size = 0x4, scoped, tag = 'scoped memory for forward.1']
    %33 = vsyncpa [#allocation3], 0
    %34 = vsyncpa [#allocation6], 0
    %35 = vsyncpa [#allocation9], 0
    %36 = vsyncpa [#allocation12], 0
    %37 = vsyncpa [#allocation15], 0
    %38 = vsyncpa [#allocation18], 0
    %39 = vsyncpa [#allocation21], 0
    %40 = vsyncpa [#allocation24], 0
    %41 = vsyncpa [#allocation27], 0
    %42 = vsyncpa [#allocation30], 0
    %43 = vsyncpa [#allocation33], 0
    %44 = vsyncpa [#allocation4], 0
    %45 = vsyncpa [#allocation37], 0
    // Predicated region
    $region2: #{forward.1} parent=1 // pred_check
      _
    $region3: #{forward.1} parent=1 // pred_check_branch
      %47 = sbr.rel (0) target = $region5
    $region4: #{forward.1} parent=1 // pred_region
      %s49 = ssub.s32 1024, 1024
      %50 = vsyncadd [#allocation3], %s49
      %s51 = sshll.u32 [#allocation2], 4
      %s52 = int_to_ptr.vmem [resolvable:$true] %s51
      %57 = dma.hbm_to_vmem [thread:$0]  %s0, 1024, %s52, [#allocation3], 128, 128, 8
    $region5: #{forward.1} parent=1 // pred_fallthru
      _
    // Predicated region
    $region6: #{forward.1} parent=1 // pred_check
      _
    $region7: #{forward.1} parent=1 // pred_check_branch
      %59 = sbr.rel (0) target = $region9
    $region8: #{forward.1} parent=1 // pred_region
      %s61 = ssub.s32 8960, 8960
      %62 = vsyncadd [#allocation6], %s61
      %s63 = sshll.u32 [#allocation5], 4
      %s64 = int_to_ptr.vmem [resolvable:$true] %s63
      %69 = dma.hbm_to_vmem [thread:$0]  %s1, 8960, %s64, [#allocation6], 256, 256, 16
    $region9: #{forward.1} parent=1 // pred_fallthru
      _
    // Predicated region
    $region10: #{forward.1} parent=1 // pred_check
      _
    $region11: #{forward.1} parent=1 // pred_check_branch
      %71 = sbr.rel (0) target = $region13
    $region12: #{forward.1} parent=1 // pred_region
      _
    $region13: #{forward.1} parent=1 // pred_fallthru
      _
    // Predicated region
    $region14: #{forward.1} parent=1 // pred_check
      _
    $region15: #{forward.1} parent=1 // pred_check_branch
      %73 = sbr.rel (0) target = $region17
    $region16: #{forward.1} parent=1 // pred_region
      %s75 = ssub.s32 256, 256
      %76 = vsyncadd [#allocation6], %s75
      %s78 = sshll.u32 [#allocation7], 4
      %s79 = int_to_ptr.vmem [resolvable:$true] %s78
      %81 = dma.hbm_to_vmem [thread:$0]  %s3, 256, %s79, [#allocation6]
    $region17: #{forward.1} parent=1 // pred_fallthru
      _
    // Predicated region
    $region18: #{forward.1} parent=1 // pred_check
      _
    $region19: #{forward.1} parent=1 // pred_check_branch
      %83 = sbr.rel (0) target = $region21
    $region20: #{forward.1} parent=1 // pred_region
      %s85 = ssub.s32 16, 16
      %86 = vsyncadd [#allocation9], %s85
      %s88 = sshll.u32 [#allocation8], 4
      %s89 = int_to_ptr.vmem [resolvable:$true] %s88
      %91 = dma.hbm_to_vmem [thread:$0]  %s4, 16, %s89, [#allocation9]
    $region21: #{forward.1} parent=1 // pred_fallthru
      _
    // Predicated region
    $region22: #{forward.1} parent=1 // pred_check
      _
    $region23: #{forward.1} parent=1 // pred_check_branch
      %93 = sbr.rel (0) target = $region25
    $region24: #{forward.1} parent=1 // pred_region
      %s95 = ssub.s32 16, 16
      %96 = vsyncadd [#allocation9], %s95
      %s98 = sshll.u32 [#allocation10], 4
      %s99 = int_to_ptr.vmem [resolvable:$true] %s98
      %101 = dma.hbm_to_vmem [thread:$0]  %s5, 16, %s99, [#allocation9]
    $region25: #{forward.1} parent=1 // pred_fallthru
      _
    // Predicated region
    $region26: #{forward.1} parent=1 // pred_check
      _
    $region27: #{forward.1} parent=1 // pred_check_branch
      %103 = sbr.rel (0) target = $region29
    $region28: #{forward.1} parent=1 // pred_region
      %s105 = ssub.s32 39424, 39424
      %106 = vsyncadd [#allocation12], %s105
      %s107 = sshll.u32 [#allocation11], 4
      %s108 = int_to_ptr.vmem [resolvable:$true] %s107
      %113 = dma.hbm_to_vmem [thread:$0]  %s6, 39424, %s108, [#allocation12], 256, 256, 16
    $region29: #{forward.1} parent=1 // pred_fallthru
      _
    // Predicated region
    $region30: #{forward.1} parent=1 // pred_check
      _
    $region31: #{forward.1} parent=1 // pred_check_branch
      %115 = sbr.rel (0) target = $region33
    $region32: #{forward.1} parent=1 // pred_region
      _
    $region33: #{forward.1} parent=1 // pred_fallthru
      _
    // Predicated region
    $region34: #{forward.1} parent=1 // pred_check
      _
    $region35: #{forward.1} parent=1 // pred_check_branch
      %117 = sbr.rel (0) target = $region37
    $region36: #{forward.1} parent=1 // pred_region
      %s119 = ssub.s32 512, 512
      %120 = vsyncadd [#allocation12], %s119
      %s121 = sshll.u32 [#allocation13], 4
      %s122 = int_to_ptr.vmem [resolvable:$true] %s121
      %127 = dma.hbm_to_vmem [thread:$0]  %s8, 512, %s122, [#allocation12], 256, 256, 16
    $region37: #{forward.1} parent=1 // pred_fallthru
      _
    // Predicated region
    $region38: #{forward.1} parent=1 // pred_check
      _
    $region39: #{forward.1} parent=1 // pred_check_branch
      %129 = sbr.rel (0) target = $region41
    $region40: #{forward.1} parent=1 // pred_region
      %s131 = ssub.s32 16, 16
      %132 = vsyncadd [#allocation15], %s131
      %s134 = sshll.u32 [#allocation14], 4
      %s135 = int_to_ptr.vmem [resolvable:$true] %s134
      %137 = dma.hbm_to_vmem [thread:$0]  %s9, 16, %s135, [#allocation15]
    $region41: #{forward.1} parent=1 // pred_fallthru
      _
    // Predicated region
    $region42: #{forward.1} parent=1 // pred_check
      _
    $region43: #{forward.1} parent=1 // pred_check_branch
      %139 = sbr.rel (0) target = $region45
    $region44: #{forward.1} parent=1 // pred_region
      %s141 = ssub.s32 16, 16
      %142 = vsyncadd [#allocation15], %s141
      %s144 = sshll.u32 [#allocation16], 4
      %s145 = int_to_ptr.vmem [resolvable:$true] %s144
      %147 = dma.hbm_to_vmem [thread:$0]  %s10, 16, %s145, [#allocation15]
    $region45: #{forward.1} parent=1 // pred_fallthru
      _
    // Predicated region
    $region46: #{forward.1} parent=1 // pred_check
      _
    $region47: #{forward.1} parent=1 // pred_check_branch
      %149 = sbr.rel (0) target = $region49
    $region48: #{forward.1} parent=1 // pred_region
      %s151 = ssub.s32 17920, 17920
      %152 = vsyncadd [#allocation18], %s151
      %s153 = sshll.u32 [#allocation17], 4
      %s154 = int_to_ptr.vmem [resolvable:$true] %s153
      %159 = dma.hbm_to_vmem [thread:$0]  %s11, 17920, %s154, [#allocation18], 128, 128, 8
    $region49: #{forward.1} parent=1 // pred_fallthru
      _
    // Predicated region
    $region50: #{forward.1} parent=1 // pred_check
      _
    $region51: #{forward.1} parent=1 // pred_check_branch
      %161 = sbr.rel (0) target = $region53
    $region52: #{forward.1} parent=1 // pred_region
      _
    $region53: #{forward.1} parent=1 // pred_fallthru
      _
    // Predicated region
    $region54: #{forward.1} parent=1 // pred_check
      _
    $region55: #{forward.1} parent=1 // pred_check_branch
      %163 = sbr.rel (0) target = $region57
    $region56: #{forward.1} parent=1 // pred_region
      %s165 = ssub.s32 512, 512
      %166 = vsyncadd [#allocation18], %s165
      %s167 = sshll.u32 [#allocation19], 4
      %s168 = int_to_ptr.vmem [resolvable:$true] %s167
      %173 = dma.hbm_to_vmem [thread:$0]  %s13, 512, %s168, [#allocation18], 128, 128, 8
    $region57: #{forward.1} parent=1 // pred_fallthru
      _
    // Predicated region
    $region58: #{forward.1} parent=1 // pred_check
      _
    $region59: #{forward.1} parent=1 // pred_check_branch
      %175 = sbr.rel (0) target = $region61
    $region60: #{forward.1} parent=1 // pred_region
      %s177 = ssub.s32 16, 16
      %178 = vsyncadd [#allocation21], %s177
      %s180 = sshll.u32 [#allocation20], 4
      %s181 = int_to_ptr.vmem [resolvable:$true] %s180
      %183 = dma.hbm_to_vmem [thread:$0]  %s14, 16, %s181, [#allocation21]
    $region61: #{forward.1} parent=1 // pred_fallthru
      _
    // Predicated region
    $region62: #{forward.1} parent=1 // pred_check
      _
    $region63: #{forward.1} parent=1 // pred_check_branch
      %185 = sbr.rel (0) target = $region65
    $region64: #{forward.1} parent=1 // pred_region
      %s187 = ssub.s32 16, 16
      %188 = vsyncadd [#allocation21], %s187
      %s190 = sshll.u32 [#allocation22], 4
      %s191 = int_to_ptr.vmem [resolvable:$true] %s190
      %193 = dma.hbm_to_vmem [thread:$0]  %s15, 16, %s191, [#allocation21]
    $region65: #{forward.1} parent=1 // pred_fallthru
      _
    // Predicated region
    $region66: #{forward.1} parent=1 // pred_check
      _
    $region67: #{forward.1} parent=1 // pred_check_branch
      %195 = sbr.rel (0) target = $region69
    $region68: #{forward.1} parent=1 // pred_region
      _
    $region69: #{forward.1} parent=1 // pred_fallthru
      _
    // Predicated region
    $region70: #{forward.1} parent=1 // pred_check
      _
    $region71: #{forward.1} parent=1 // pred_check_branch
      %197 = sbr.rel (0) target = $region73
    $region72: #{forward.1} parent=1 // pred_region
      %s199 = ssub.s32 16, 16
      %200 = vsyncadd [#allocation24], %s199
      %s202 = sshll.u32 [#allocation23], 4
      %s203 = int_to_ptr.vmem [resolvable:$true] %s202
      %205 = dma.hbm_to_vmem [thread:$0]  %s17, 16, %s203, [#allocation24]
    $region73: #{forward.1} parent=1 // pred_fallthru
      _
    // Predicated region
    $region74: #{forward.1} parent=1 // pred_check
      _
    $region75: #{forward.1} parent=1 // pred_check_branch
      %207 = sbr.rel (0) target = $region77
    $region76: #{forward.1} parent=1 // pred_region
      _
    $region77: #{forward.1} parent=1 // pred_fallthru
      _
    // Predicated region
    $region78: #{forward.1} parent=1 // pred_check
      _
    $region79: #{forward.1} parent=1 // pred_check_branch
      %209 = sbr.rel (0) target = $region81
    $region80: #{forward.1} parent=1 // pred_region
      %s211 = ssub.s32 16, 16
      %212 = vsyncadd [#allocation24], %s211
      %s214 = sshll.u32 [#allocation25], 4
      %s215 = int_to_ptr.vmem [resolvable:$true] %s214
      %217 = dma.hbm_to_vmem [thread:$0]  %s19, 16, %s215, [#allocation24]
    $region81: #{forward.1} parent=1 // pred_fallthru
      _
    // Predicated region
    $region82: #{forward.1} parent=1 // pred_check
      _
    $region83: #{forward.1} parent=1 // pred_check_branch
      %219 = sbr.rel (0) target = $region85
    $region84: #{forward.1} parent=1 // pred_region
      %s221 = ssub.s32 128, 128
      %222 = vsyncadd [#allocation27], %s221
      %s224 = sshll.u32 [#allocation26], 4
      %s225 = int_to_ptr.vmem [resolvable:$true] %s224
      %227 = dma.hbm_to_vmem [thread:$0]  %s20, 128, %s225, [#allocation27]
    $region85: #{forward.1} parent=1 // pred_fallthru
      _
    // Predicated region
    $region86: #{forward.1} parent=1 // pred_check
      _
    $region87: #{forward.1} parent=1 // pred_check_branch
      %229 = sbr.rel (0) target = $region89
    $region88: #{forward.1} parent=1 // pred_region
      %s231 = ssub.s32 128, 128
      %232 = vsyncadd [#allocation27], %s231
      %s234 = sshll.u32 [#allocation28], 4
      %s235 = int_to_ptr.vmem [resolvable:$true] %s234
      %237 = dma.hbm_to_vmem [thread:$0]  %s21, 128, %s235, [#allocation27]
    $region89: #{forward.1} parent=1 // pred_fallthru
      _
    // Predicated region
    $region90: #{forward.1} parent=1 // pred_check
      _
    $region91: #{forward.1} parent=1 // pred_check_branch
      %239 = sbr.rel (0) target = $region93
    $region92: #{forward.1} parent=1 // pred_region
      %s241 = ssub.s32 16, 16
      %242 = vsyncadd [#allocation30], %s241
      %s244 = sshll.u32 [#allocation29], 4
      %s245 = int_to_ptr.vmem [resolvable:$true] %s244
      %247 = dma.hbm_to_vmem [thread:$0]  %s22, 16, %s245, [#allocation30]
    $region93: #{forward.1} parent=1 // pred_fallthru
      _
    // Predicated region
    $region94: #{forward.1} parent=1 // pred_check
      _
    $region95: #{forward.1} parent=1 // pred_check_branch
      %249 = sbr.rel (0) target = $region97
    $region96: #{forward.1} parent=1 // pred_region
      %s251 = ssub.s32 16, 16
      %252 = vsyncadd [#allocation30], %s251
      %s254 = sshll.u32 [#allocation31], 4
      %s255 = int_to_ptr.vmem [resolvable:$true] %s254
      %257 = dma.hbm_to_vmem [thread:$0]  %s23, 16, %s255, [#allocation30]
    $region97: #{forward.1} parent=1 // pred_fallthru
      _
    // Predicated region
    $region98: #{forward.1} parent=1 // pred_check
      _
    $region99: #{forward.1} parent=1 // pred_check_branch
      %259 = sbr.rel (0) target = $region101
    $region100: #{forward.1} parent=1 // pred_region
      %s261 = ssub.s32 128, 128
      %262 = vsyncadd [#allocation33], %s261
      %s264 = sshll.u32 [#allocation32], 4
      %s265 = int_to_ptr.vmem [resolvable:$true] %s264
      %267 = dma.hbm_to_vmem [thread:$0]  %s24, 128, %s265, [#allocation33]
    $region101: #{forward.1} parent=1 // pred_fallthru
      _
    // Predicated region
    $region102: #{forward.1} parent=1 // pred_check
      _
    $region103: #{forward.1} parent=1 // pred_check_branch
      %269 = sbr.rel (0) target = $region105
    $region104: #{forward.1} parent=1 // pred_region
      %s271 = ssub.s32 16, 16
      %272 = vsyncadd [#allocation33], %s271
      %s274 = sshll.u32 [#allocation34], 4
      %s275 = int_to_ptr.vmem [resolvable:$true] %s274
      %277 = dma.hbm_to_vmem [thread:$0]  %s25, 16, %s275, [#allocation33]
    $region105: #{forward.1} parent=1 // pred_fallthru
      _
    // Predicated region
    $region106: #{forward.1} parent=1 // pred_check
      _
    $region107: #{forward.1} parent=1 // pred_check_branch
      %279 = sbr.rel (0) target = $region109
    $region108: #{forward.1} parent=1 // pred_region
      %280 = dma.done [#allocation3], 1024
    $region109: #{forward.1} parent=1 // pred_fallthru
      _
    // Predicated region
    $region110: #{forward.1} parent=1 // pred_check
      _
    $region111: #{forward.1} parent=1 // pred_check_branch
      %282 = sbr.rel (0) target = $region113
    $region112: #{forward.1} parent=1 // pred_region
      %283 = dma.done [#allocation6], 8960
    $region113: #{forward.1} parent=1 // pred_fallthru
      _
    // Predicated region
    $region114: #{forward.1} parent=1 // pred_check
      _
    $region115: #{forward.1} parent=1 // pred_check_branch
      %285 = sbr.rel (0) target = $region117
    $region116: #{forward.1} parent=1 // pred_region
      %286 = dma.done [#allocation6], 256
    $region117: #{forward.1} parent=1 // pred_fallthru
      _
    // Predicated region
    $region118: #{forward.1} parent=1 // pred_check
      _
    $region119: #{forward.1} parent=1 // pred_check_branch
      %288 = sbr.rel (0) target = $region121
    $region120: #{forward.1} parent=1 // pred_region
      %289 = dma.done [#allocation9], 16
    $region121: #{forward.1} parent=1 // pred_fallthru
      _
    // Predicated region
    $region122: #{forward.1} parent=1 // pred_check
      _
    $region123: #{forward.1} parent=1 // pred_check_branch
      %291 = sbr.rel (0) target = $region125
    $region124: #{forward.1} parent=1 // pred_region
      %292 = dma.done [#allocation9], 16
    $region125: #{forward.1} parent=1 // pred_fallthru
      _
    // Predicated region
    $region126: #{forward.1} parent=1 // pred_check
      _
    $region127: #{forward.1} parent=1 // pred_check_branch
      %294 = sbr.rel (0) target = $region129
    $region128: #{forward.1} parent=1 // pred_region
      %295 = dma.done [#allocation12], 39424
    $region129: #{forward.1} parent=1 // pred_fallthru
      _
    // Predicated region
    $region130: #{forward.1} parent=1 // pred_check
      _
    $region131: #{forward.1} parent=1 // pred_check_branch
      %297 = sbr.rel (0) target = $region133
    $region132: #{forward.1} parent=1 // pred_region
      %298 = dma.done [#allocation12], 512
    $region133: #{forward.1} parent=1 // pred_fallthru
      _
    // Predicated region
    $region134: #{forward.1} parent=1 // pred_check
      _
    $region135: #{forward.1} parent=1 // pred_check_branch
      %300 = sbr.rel (0) target = $region137
    $region136: #{forward.1} parent=1 // pred_region
      %301 = dma.done [#allocation15], 16
    $region137: #{forward.1} parent=1 // pred_fallthru
      _
    // Predicated region
    $region138: #{forward.1} parent=1 // pred_check
      _
    $region139: #{forward.1} parent=1 // pred_check_branch
      %303 = sbr.rel (0) target = $region141
    $region140: #{forward.1} parent=1 // pred_region
      %304 = dma.done [#allocation15], 16
    $region141: #{forward.1} parent=1 // pred_fallthru
      _
    // Predicated region
    $region142: #{forward.1} parent=1 // pred_check
      _
    $region143: #{forward.1} parent=1 // pred_check_branch
      %306 = sbr.rel (0) target = $region145
    $region144: #{forward.1} parent=1 // pred_region
      %307 = dma.done [#allocation18], 17920
    $region145: #{forward.1} parent=1 // pred_fallthru
      _
    // Predicated region
    $region146: #{forward.1} parent=1 // pred_check
      _
    $region147: #{forward.1} parent=1 // pred_check_branch
      %309 = sbr.rel (0) target = $region149
    $region148: #{forward.1} parent=1 // pred_region
      %310 = dma.done [#allocation18], 512
    $region149: #{forward.1} parent=1 // pred_fallthru
      _
    // Predicated region
    $region150: #{forward.1} parent=1 // pred_check
      _
    $region151: #{forward.1} parent=1 // pred_check_branch
      %312 = sbr.rel (0) target = $region153
    $region152: #{forward.1} parent=1 // pred_region
      %313 = dma.done [#allocation21], 16
    $region153: #{forward.1} parent=1 // pred_fallthru
      _
    // Predicated region
    $region154: #{forward.1} parent=1 // pred_check
      _
    $region155: #{forward.1} parent=1 // pred_check_branch
      %315 = sbr.rel (0) target = $region157
    $region156: #{forward.1} parent=1 // pred_region
      %316 = dma.done [#allocation21], 16
    $region157: #{forward.1} parent=1 // pred_fallthru
      _
    // Predicated region
    $region158: #{forward.1} parent=1 // pred_check
      _
    $region159: #{forward.1} parent=1 // pred_check_branch
      %318 = sbr.rel (0) target = $region161
    $region160: #{forward.1} parent=1 // pred_region
      %319 = dma.done [#allocation24], 16
    $region161: #{forward.1} parent=1 // pred_fallthru
      _
    // Predicated region
    $region162: #{forward.1} parent=1 // pred_check
      _
    $region163: #{forward.1} parent=1 // pred_check_branch
      %321 = sbr.rel (0) target = $region165
    $region164: #{forward.1} parent=1 // pred_region
      %322 = dma.done [#allocation24], 16
    $region165: #{forward.1} parent=1 // pred_fallthru
      _
    // Predicated region
    $region166: #{forward.1} parent=1 // pred_check
      _
    $region167: #{forward.1} parent=1 // pred_check_branch
      %324 = sbr.rel (0) target = $region169
    $region168: #{forward.1} parent=1 // pred_region
      %325 = dma.done [#allocation27], 128
    $region169: #{forward.1} parent=1 // pred_fallthru
      _
    // Predicated region
    $region170: #{forward.1} parent=1 // pred_check
      _
    $region171: #{forward.1} parent=1 // pred_check_branch
      %327 = sbr.rel (0) target = $region173
    $region172: #{forward.1} parent=1 // pred_region
      %328 = dma.done [#allocation27], 128
    $region173: #{forward.1} parent=1 // pred_fallthru
      _
    // Predicated region
    $region174: #{forward.1} parent=1 // pred_check
      _
    $region175: #{forward.1} parent=1 // pred_check_branch
      %330 = sbr.rel (0) target = $region177
    $region176: #{forward.1} parent=1 // pred_region
      %331 = dma.done [#allocation30], 16
    $region177: #{forward.1} parent=1 // pred_fallthru
      _
    // Predicated region
    $region178: #{forward.1} parent=1 // pred_check
      _
    $region179: #{forward.1} parent=1 // pred_check_branch
      %333 = sbr.rel (0) target = $region181
    $region180: #{forward.1} parent=1 // pred_region
      %334 = dma.done [#allocation30], 16
    $region181: #{forward.1} parent=1 // pred_fallthru
      _
    // Predicated region
    $region182: #{forward.1} parent=1 // pred_check
      _
    $region183: #{forward.1} parent=1 // pred_check_branch
      %336 = sbr.rel (0) target = $region185
    $region184: #{forward.1} parent=1 // pred_region
      %337 = dma.done [#allocation33], 128
    $region185: #{forward.1} parent=1 // pred_fallthru
      _
    // Predicated region
    $region186: #{forward.1} parent=1 // pred_check
      _
    $region187: #{forward.1} parent=1 // pred_check_branch
      %339 = sbr.rel (0) target = $region189
    $region188: #{forward.1} parent=1 // pred_region
      %340 = dma.done [#allocation33], 16
    $region189: #{forward.1} parent=1 // pred_fallthru
      _
    %v341 = vld [vmem:[#allocation2] sm:$0xff]
    %v342 = vld [vmem:[#allocation2 + $0x8] sm:$0xff]
    %v343 = vld [vmem:[#allocation2 + $0x10] sm:$0xff]
    %v344 = vld [vmem:[#allocation2 + $0x18] sm:$0xff]
    %s345 = scalar_lea.vmem [#allocation2], 32
    %v346 = vld [vmem:[%s345] sm:$0xff]
    %v347 = vld [vmem:[%s345 + $0x8] sm:$0xff]
    %v348 = vld [vmem:[%s345 + $0x10] sm:$0xff]
    %v349 = vld [vmem:[%s345 + $0x18] sm:$0xff]
    %v350 = vld [vmem:[#allocation5] sm:$0xff]
    %v351 = vld [vmem:[#allocation5 + $0x8] sm:$0xff]
    %v352 = vld [vmem:[#allocation5 + $0x10] sm:$0xff]
    %v353 = vld [vmem:[#allocation5 + $0x18] sm:$0xff]
    %v354 = vld [vmem:[#allocation5 + $0x20] sm:$0xff]
    %v355 = vld [vmem:[#allocation5 + $0x28] sm:$0xff]
    %v356 = vld [vmem:[#allocation5 + $0x30] sm:$0xff]
    %v357 = vld [vmem:[#allocation5 + $0x38] sm:$0xff]
    %v358 = vld [vmem:[#allocation5 + $0x40] sm:$0xff]
    %v359 = vld [vmem:[#allocation5 + $0x48] sm:$0xff]
    %s360 = scalar_lea.vmem [#allocation5], 80
    %v361 = vld [vmem:[%s360] sm:$0xff]
    %v362 = vld [vmem:[%s360 + $0x8] sm:$0xff]
    %v363 = vld [vmem:[%s360 + $0x10] sm:$0xff]
    %v364 = vld [vmem:[%s360 + $0x18] sm:$0xff]
    %v365 = vld [vmem:[%s360 + $0x20] sm:$0xff]
    %v366 = vld [vmem:[%s360 + $0x28] sm:$0xff]
    %v367 = vld [vmem:[%s360 + $0x30] sm:$0xff]
    %v368 = vld [vmem:[%s360 + $0x38] sm:$0xff]
    %v369 = vld [vmem:[%s360 + $0x40] sm:$0xff]
    %v370 = vld [vmem:[%s360 + $0x48] sm:$0xff]
    %s371 = scalar_lea.vmem [#allocation5], 160
    %v372 = vld [vmem:[%s371] sm:$0xff]
    %v373 = vld [vmem:[%s371 + $0x8] sm:$0xff]
    %v374 = vld [vmem:[%s371 + $0x10] sm:$0xff]
    %v375 = vld [vmem:[%s371 + $0x18] sm:$0xff]
    %v376 = vld [vmem:[%s371 + $0x20] sm:$0xff]
    %v377 = vld [vmem:[%s371 + $0x28] sm:$0xff]
    %v378 = vld [vmem:[%s371 + $0x30] sm:$0xff]
    %v379 = vld [vmem:[%s371 + $0x38] sm:$0xff]
    %v380 = vld [vmem:[%s371 + $0x40] sm:$0xff]
    %v381 = vld [vmem:[%s371 + $0x48] sm:$0xff]
    %s382 = scalar_lea.vmem [#allocation5], 240
    %v383 = vld [vmem:[%s382] sm:$0xff]
    %v384 = vld [vmem:[%s382 + $0x8] sm:$0xff]
    %v385 = vld [vmem:[%s382 + $0x10] sm:$0xff]
    %v386 = vld [vmem:[%s382 + $0x18] sm:$0xff]
    %v387 = vld [vmem:[%s382 + $0x20] sm:$0xff]
    %v388 = vld [vmem:[%s382 + $0x28] sm:$0xff]
    %v389 = vld [vmem:[%s382 + $0x30] sm:$0xff]
    %v390 = vld [vmem:[%s382 + $0x38] sm:$0xff]
    %v391 = vld [vmem:[%s382 + $0x40] sm:$0xff]
    %v392 = vld [vmem:[%s382 + $0x48] sm:$0xff]
    %s393 = scalar_lea.vmem [#allocation5], 320
    %v394 = vld [vmem:[%s393] sm:$0xff]
    %v395 = vld [vmem:[%s393 + $0x8] sm:$0xff]
    %v396 = vld [vmem:[%s393 + $0x10] sm:$0xff]
    %v397 = vld [vmem:[%s393 + $0x18] sm:$0xff]
    %v398 = vld [vmem:[%s393 + $0x20] sm:$0xff]
    %v399 = vld [vmem:[%s393 + $0x28] sm:$0xff]
    %v400 = vld [vmem:[%s393 + $0x30] sm:$0xff]
    %v401 = vld [vmem:[%s393 + $0x38] sm:$0xff]
    %v402 = vld [vmem:[%s393 + $0x40] sm:$0xff]
    %v403 = vld [vmem:[%s393 + $0x48] sm:$0xff]
    %s404 = scalar_lea.vmem [#allocation5], 400
    %v405 = vld [vmem:[%s404] sm:$0xff]
    %v406 = vld [vmem:[%s404 + $0x8] sm:$0xff]
    %v407 = vld [vmem:[%s404 + $0x10] sm:$0xff]
    %v408 = vld [vmem:[%s404 + $0x18] sm:$0xff]
    %v409 = vld [vmem:[%s404 + $0x20] sm:$0xff]
    %v410 = vld [vmem:[%s404 + $0x28] sm:$0xff]
    %v411 = vld [vmem:[%s404 + $0x30] sm:$0xff]
    %v412 = vld [vmem:[%s404 + $0x38] sm:$0xff]
    %v413 = vld [vmem:[%s404 + $0x40] sm:$0xff]
    %v414 = vld [vmem:[%s404 + $0x48] sm:$0xff]
    %s415 = scalar_lea.vmem [#allocation5], 480
    %v416 = vld [vmem:[%s415] sm:$0xff]
    %v417 = vld [vmem:[%s415 + $0x8] sm:$0xff]
    %v418 = vld [vmem:[%s415 + $0x10] sm:$0xff]
    %v419 = vld [vmem:[%s415 + $0x18] sm:$0xff]
    %v420 = vld [vmem:[%s415 + $0x20] sm:$0xff]
    %v421 = vld [vmem:[%s415 + $0x28] sm:$0xff]
    %v422 = vld [vmem:[%s415 + $0x30] sm:$0xff]
    %v423 = vld [vmem:[%s415 + $0x38] sm:$0xff]
    %v424 = vld [vmem:[%s415 + $0x40] sm:$0xff]
    %v425 = vld [vmem:[%s415 + $0x48] sm:$0xff]
    %430 = vrot.lane.b32.xlu0 %v341, 3
    %v431 = vpop.permute.xlu0 %430
    %432 = vrot.lane.b32.xlu0 %v342, 3
    %v433 = vpop.permute.xlu0 %432
    %434 = vrot.lane.b32.xlu0 %v343, 3
    %v435 = vpop.permute.xlu0 %434
    %436 = vrot.lane.b32.xlu0 %v344, 3
    %v437 = vpop.permute.xlu0 %436
    %vm442 = vcmask 23552
    %v443 = vsel %vm442, 0.0, %v431
    %v444 = vsel %vm442, 0.0, %v433
    %v445 = vsel %vm442, 0.0, %v435
    %v446 = vsel %vm442, 0.0, %v437
    %vm447 = vcmask 285696
    %v448 = vsel %vm447, %v443, 0.0
    %v449 = vsel %vm447, %v444, 0.0
    %v450 = vsel %vm447, %v445, 0.0
    %v451 = vsel %vm447, %v446, 0.0
    %vm456 = vcmask 1042432
    %v457 = vrot.slane %v448, 5
    %v458 = vrot.slane %v449, 5
    %v459 = vsel %vm456, %v457, %v458
    %v460 = vrot.slane %v450, 5
    %v461 = vsel %vm456, %v458, %v460
    %v462 = vrot.slane %v451, 5
    %v463 = vsel %vm456, %v460, %v462
    %v466 = vsel %vm456, 0.0, %v457
    %v467 = vsel %vm456, %v462, 0.0
    %vm470 = vcmask 1046528
    %v471 = vrot.slane %v466, 1
    %v472 = vrot.slane %v459, 1
    %v473 = vsel %vm470, %v471, %v472
    %v474 = vrot.slane %v461, 1
    %v475 = vsel %vm470, %v472, %v474
    %v476 = vrot.slane %v463, 1
    %v477 = vsel %vm470, %v474, %v476
    %v478 = vrot.slane %v467, 1
    %v479 = vsel %vm470, %v476, %v478
    %vm480 = vcmask 326656
    %v481 = vsel %vm480, %v473, 0
    %v483 = vsel %vm480, %v475, 0
    %v485 = vsel %vm480, %v477, 0
    %v487 = vsel %vm480, %v479, 0
    %489 = vmatprep.subr.mxu0 0.0
    %490 = vmatpush1.msra.mxu0 0.0
    %491 = vmatprep.subr.mxu0 0.0
    %492 = vmatpush1.msra.mxu0 0.0
    %493 = vmatprep.subr.mxu0 0.0
    %494 = vmatpush1.msra.mxu0 0.0
    %495 = vmatprep.subr.mxu0 0.0
    %496 = vmatpush1.msra.mxu0 0.0
    %497 = vmatprep.subr.mxu0 0.0
    %498 = vmatpush1.msra.mxu0 0.0
    %499 = vmatprep.subr.mxu0 0.0
    %500 = vmatpush1.msra.mxu0 0.0
    %501 = vmatprep.subr.mxu0 0.0
    %502 = vmatpush1.msra.mxu0 0.0
    %503 = vmatprep.subr.mxu0 0.0
    %504 = vmatpush1.msra.mxu0 0.0
    %505 = vmatprep.subr.mxu0 0.0
    %506 = vmatpush1.msra.mxu0 0.0
    %507 = vmatprep.subr.mxu0 0.0
    %508 = vmatpush1.msra.mxu0 0.0
    %509 = vmatprep.subr.mxu0 0.0
    %510 = vmatpush1.msra.mxu0 0.0
    %511 = vmatprep.subr.mxu0 %v370
    %512 = vmatpush1.msra.mxu0 %v369
    %513 = vmatprep.subr.mxu0 %v368
    %514 = vmatpush1.msra.mxu0 %v367
    %515 = vmatprep.subr.mxu0 %v366
    %516 = vmatpush1.msra.mxu0 %v365
    %517 = vmatprep.subr.mxu0 %v364
    %518 = vmatpush1.msra.mxu0 %v363
    %519 = vmatprep.subr.mxu0 %v362
    %520 = vmatpush1.msra.mxu0 %v361
    %521 = vmatprep.subr.mxu0 0.0
    %522 = vmatpush2.msra.mxu0 0.0
    %523 = vmatprep.subr.mxu0 0.0
    %524 = vmatpush2.msra.mxu0 0.0
    %525 = vmatprep.subr.mxu0 0.0
    %526 = vmatpush2.msra.mxu0 0.0
    %527 = vmatprep.subr.mxu0 0.0
    %528 = vmatpush2.msra.mxu0 0.0
    %529 = vmatprep.subr.mxu0 0.0
    %530 = vmatpush2.msra.mxu0 0.0
    %531 = vmatprep.subr.mxu0 0.0
    %532 = vmatpush2.msra.mxu0 0.0
    %533 = vmatprep.subr.mxu0 0.0
    %534 = vmatpush2.msra.mxu0 0.0
    %535 = vmatprep.subr.mxu0 0.0
    %536 = vmatpush2.msra.mxu0 0.0
    %537 = vmatprep.subr.mxu0 0.0
    %538 = vmatpush2.msra.mxu0 0.0
    %539 = vmatprep.subr.mxu0 0.0
    %540 = vmatpush2.msra.mxu0 0.0
    %541 = vmatprep.subr.mxu0 0.0
    %542 = vmatpush2.msra.mxu0 0.0
    %543 = vmatprep.subr.mxu0 0.0
    %544 = vmatpush2.msra.mxu0 0.0
    %545 = vmatprep.subr.mxu0 0.0
    %546 = vmatpush2.msra.mxu0 0.0
    %547 = vmatprep.subr.mxu0 0.0
    %548 = vmatpush2.msra.mxu0 0.0
    %549 = vmatprep.subr.mxu0 0.0
    %550 = vmatpush2.msra.mxu0 0.0
    %551 = vmatprep.subr.mxu0 0.0
    %552 = vmatpush2.msra.mxu0 0.0
    %553 = vmatprep.mubr.f32.mxu0 0.0
    %554 = vmatmul.mubr.f32.gmra.mxu0 %v481
    %v555 = vpop.f32.mrf.mxu0
    %v556 = vadd.f32 0.0, %v555
    %v557 = vpop.f32.mrf.mxu0
    %v558 = vadd.f32 0.0, %v557
    %559 = vmatprep.mubr.f32.mxu0 0.0
    %560 = vmatmul.mubr.f32.gmra.mxu0 %v483
    %v561 = vpop.f32.mrf.mxu0
    %v562 = vadd.f32 0.0, %v561
    %v563 = vpop.f32.mrf.mxu0
    %v564 = vadd.f32 0.0, %v563
    %565 = vmatprep.mubr.f32.mxu0 0.0
    %566 = vmatmul.mubr.f32.gmra.mxu0 %v485
    %v567 = vpop.f32.mrf.mxu0
    %v568 = vadd.f32 0.0, %v567
    %v569 = vpop.f32.mrf.mxu0
    %v570 = vadd.f32 0.0, %v569
    %571 = vmatprep.mubr.f32.mxu0 0.0
    %572 = vmatmul.mubr.f32.gmra.mxu0 %v487
    %v573 = vpop.f32.mrf.mxu0
    %v574 = vadd.f32 0.0, %v573
    %v575 = vpop.f32.mrf.mxu0
    %v576 = vadd.f32 0.0, %v575
    %577 = vdwg.mxu0
    %v578 = vsel %vm480, %v466, 0
    %v580 = vsel %vm480, %v459, 0
    %v582 = vsel %vm480, %v461, 0
    %v584 = vsel %vm480, %v463, 0
    %586 = vmatprep.subr.mxu0 0.0
    %587 = vmatpush1.msra.mxu0 0.0
    %588 = vmatprep.subr.mxu0 0.0
    %589 = vmatpush1.msra.mxu0 0.0
    %590 = vmatprep.subr.mxu0 0.0
    %591 = vmatpush1.msra.mxu0 0.0
    %592 = vmatprep.subr.mxu0 0.0
    %593 = vmatpush1.msra.mxu0 0.0
    %594 = vmatprep.subr.mxu0 0.0
    %595 = vmatpush1.msra.mxu0 0.0
    %596 = vmatprep.subr.mxu0 0.0
    %597 = vmatpush1.msra.mxu0 0.0
    %598 = vmatprep.subr.mxu0 0.0
    %599 = vmatpush1.msra.mxu0 0.0
    %600 = vmatprep.subr.mxu0 0.0
    %601 = vmatpush1.msra.mxu0 0.0
    %602 = vmatprep.subr.mxu0 0.0
    %603 = vmatpush1.msra.mxu0 0.0
    %604 = vmatprep.subr.mxu0 0.0
    %605 = vmatpush1.msra.mxu0 0.0
    %606 = vmatprep.subr.mxu0 0.0
    %607 = vmatpush1.msra.mxu0 0.0
    %608 = vmatprep.subr.mxu0 %v359
    %609 = vmatpush1.msra.mxu0 %v358
    %610 = vmatprep.subr.mxu0 %v357
    %611 = vmatpush1.msra.mxu0 %v356
    %612 = vmatprep.subr.mxu0 %v355
    %613 = vmatpush1.msra.mxu0 %v354
    %614 = vmatprep.subr.mxu0 %v353
    %615 = vmatpush1.msra.mxu0 %v352
    %616 = vmatprep.subr.mxu0 %v351
    %617 = vmatpush1.msra.mxu0 %v350
    %618 = vmatprep.subr.mxu0 0.0
    %619 = vmatpush2.msra.mxu0 0.0
    %620 = vmatprep.subr.mxu0 0.0
    %621 = vmatpush2.msra.mxu0 0.0
    %622 = vmatprep.subr.mxu0 0.0
    %623 = vmatpush2.msra.mxu0 0.0
    %624 = vmatprep.subr.mxu0 0.0
    %625 = vmatpush2.msra.mxu0 0.0
    %626 = vmatprep.subr.mxu0 0.0
    %627 = vmatpush2.msra.mxu0 0.0
    %628 = vmatprep.subr.mxu0 0.0
    %629 = vmatpush2.msra.mxu0 0.0
    %630 = vmatprep.subr.mxu0 0.0
    %631 = vmatpush2.msra.mxu0 0.0
    %632 = vmatprep.subr.mxu0 0.0
    %633 = vmatpush2.msra.mxu0 0.0
    %634 = vmatprep.subr.mxu0 0.0
    %635 = vmatpush2.msra.mxu0 0.0
    %636 = vmatprep.subr.mxu0 0.0
    %637 = vmatpush2.msra.mxu0 0.0
    %638 = vmatprep.subr.mxu0 0.0
    %639 = vmatpush2.msra.mxu0 0.0
    %640 = vmatprep.subr.mxu0 0.0
    %641 = vmatpush2.msra.mxu0 0.0
    %642 = vmatprep.subr.mxu0 0.0
    %643 = vmatpush2.msra.mxu0 0.0
    %644 = vmatprep.subr.mxu0 0.0
    %645 = vmatpush2.msra.mxu0 0.0
    %646 = vmatprep.subr.mxu0 0.0
    %647 = vmatpush2.msra.mxu0 0.0
    %648 = vmatprep.subr.mxu0 0.0
    %649 = vmatpush2.msra.mxu0 0.0
    %650 = vmatprep.mubr.f32.mxu0 0.0
    %651 = vmatmul.mubr.f32.gmra.mxu0 %v578
    %v652 = vpop.f32.mrf.mxu0
    %v653 = vadd.f32 %v556, %v652
    %v654 = vpop.f32.mrf.mxu0
    %v655 = vadd.f32 %v558, %v654
    %656 = vmatprep.mubr.f32.mxu0 0.0
    %657 = vmatmul.mubr.f32.gmra.mxu0 %v580
    %v658 = vpop.f32.mrf.mxu0
    %v659 = vadd.f32 %v562, %v658
    %v660 = vpop.f32.mrf.mxu0
    %v661 = vadd.f32 %v564, %v660
    %662 = vmatprep.mubr.f32.mxu0 0.0
    %663 = vmatmul.mubr.f32.gmra.mxu0 %v582
    %v664 = vpop.f32.mrf.mxu0
    %v665 = vadd.f32 %v568, %v664
    %v666 = vpop.f32.mrf.mxu0
    %v667 = vadd.f32 %v570, %v666
    %668 = vmatprep.mubr.f32.mxu0 0.0
    %669 = vmatmul.mubr.f32.gmra.mxu0 %v584
    %v670 = vpop.f32.mrf.mxu0
    %v671 = vadd.f32 %v574, %v670
    %v672 = vpop.f32.mrf.mxu0
    %v673 = vadd.f32 %v576, %v672
    %674 = vdwg.mxu0
    %vm675 = vcmask 1045504
    %v676 = vrot.slane %v466, 2
    %v677 = vrot.slane %v459, 2
    %v678 = vsel %vm675, %v676, %v677
    %v679 = vrot.slane %v461, 2
    %v680 = vsel %vm675, %v677, %v679
    %v681 = vrot.slane %v463, 2
    %v682 = vsel %vm675, %v679, %v681
    %v683 = vrot.slane %v467, 2
    %v684 = vsel %vm675, %v681, %v683
    %v685 = vsel %vm480, %v678, 0
    %v687 = vsel %vm480, %v680, 0
    %v689 = vsel %vm480, %v682, 0
    %v691 = vsel %vm480, %v684, 0
    %693 = vmatprep.subr.mxu0 0.0
    %694 = vmatpush1.msra.mxu0 0.0
    %695 = vmatprep.subr.mxu0 0.0
    %696 = vmatpush1.msra.mxu0 0.0
    %697 = vmatprep.subr.mxu0 0.0
    %698 = vmatpush1.msra.mxu0 0.0
    %699 = vmatprep.subr.mxu0 0.0
    %700 = vmatpush1.msra.mxu0 0.0
    %701 = vmatprep.subr.mxu0 0.0
    %702 = vmatpush1.msra.mxu0 0.0
    %703 = vmatprep.subr.mxu0 0.0
    %704 = vmatpush1.msra.mxu0 0.0
    %705 = vmatprep.subr.mxu0 0.0
    %706 = vmatpush1.msra.mxu0 0.0
    %707 = vmatprep.subr.mxu0 0.0
    %708 = vmatpush1.msra.mxu0 0.0
    %709 = vmatprep.subr.mxu0 0.0
    %710 = vmatpush1.msra.mxu0 0.0
    %711 = vmatprep.subr.mxu0 0.0
    %712 = vmatpush1.msra.mxu0 0.0
    %713 = vmatprep.subr.mxu0 0.0
    %714 = vmatpush1.msra.mxu0 0.0
    %715 = vmatprep.subr.mxu0 %v381
    %716 = vmatpush1.msra.mxu0 %v380
    %717 = vmatprep.subr.mxu0 %v379
    %718 = vmatpush1.msra.mxu0 %v378
    %719 = vmatprep.subr.mxu0 %v377
    %720 = vmatpush1.msra.mxu0 %v376
    %721 = vmatprep.subr.mxu0 %v375
    %722 = vmatpush1.msra.mxu0 %v374
    %723 = vmatprep.subr.mxu0 %v373
    %724 = vmatpush1.msra.mxu0 %v372
    %725 = vmatprep.subr.mxu0 0.0
    %726 = vmatpush2.msra.mxu0 0.0
    %727 = vmatprep.subr.mxu0 0.0
    %728 = vmatpush2.msra.mxu0 0.0
    %729 = vmatprep.subr.mxu0 0.0
    %730 = vmatpush2.msra.mxu0 0.0
    %731 = vmatprep.subr.mxu0 0.0
    %732 = vmatpush2.msra.mxu0 0.0
    %733 = vmatprep.subr.mxu0 0.0
    %734 = vmatpush2.msra.mxu0 0.0
    %735 = vmatprep.subr.mxu0 0.0
    %736 = vmatpush2.msra.mxu0 0.0
    %737 = vmatprep.subr.mxu0 0.0
    %738 = vmatpush2.msra.mxu0 0.0
    %739 = vmatprep.subr.mxu0 0.0
    %740 = vmatpush2.msra.mxu0 0.0
    %741 = vmatprep.subr.mxu0 0.0
    %742 = vmatpush2.msra.mxu0 0.0
    %743 = vmatprep.subr.mxu0 0.0
    %744 = vmatpush2.msra.mxu0 0.0
    %745 = vmatprep.subr.mxu0 0.0
    %746 = vmatpush2.msra.mxu0 0.0
    %747 = vmatprep.subr.mxu0 0.0
    %748 = vmatpush2.msra.mxu0 0.0
    %749 = vmatprep.subr.mxu0 0.0
    %750 = vmatpush2.msra.mxu0 0.0
    %751 = vmatprep.subr.mxu0 0.0
    %752 = vmatpush2.msra.mxu0 0.0
    %753 = vmatprep.subr.mxu0 0.0
    %754 = vmatpush2.msra.mxu0 0.0
    %755 = vmatprep.subr.mxu0 0.0
    %756 = vmatpush2.msra.mxu0 0.0
    %757 = vmatprep.mubr.f32.mxu0 0.0
    %758 = vmatmul.mubr.f32.gmra.mxu0 %v685
    %v759 = vpop.f32.mrf.mxu0
    %v760 = vadd.f32 0.0, %v759
    %v761 = vpop.f32.mrf.mxu0
    %v762 = vadd.f32 0.0, %v761
    %763 = vmatprep.mubr.f32.mxu0 0.0
    %764 = vmatmul.mubr.f32.gmra.mxu0 %v687
    %v765 = vpop.f32.mrf.mxu0
    %v766 = vadd.f32 0.0, %v765
    %v767 = vpop.f32.mrf.mxu0
    %v768 = vadd.f32 0.0, %v767
    %769 = vmatprep.mubr.f32.mxu0 0.0
    %770 = vmatmul.mubr.f32.gmra.mxu0 %v689
    %v771 = vpop.f32.mrf.mxu0
    %v772 = vadd.f32 0.0, %v771
    %v773 = vpop.f32.mrf.mxu0
    %v774 = vadd.f32 0.0, %v773
    %775 = vmatprep.mubr.f32.mxu0 0.0
    %776 = vmatmul.mubr.f32.gmra.mxu0 %v691
    %v777 = vpop.f32.mrf.mxu0
    %v778 = vadd.f32 0.0, %v777
    %v779 = vpop.f32.mrf.mxu0
    %v780 = vadd.f32 0.0, %v779
    %781 = vdwg.mxu0
    %v782 = vadd.f32 %v653, %v760
    %v783 = vadd.f32 %v655, %v762
    %v784 = vadd.f32 %v659, %v766
    %v785 = vadd.f32 %v661, %v768
    %v786 = vadd.f32 %v665, %v772
    %v787 = vadd.f32 %v667, %v774
    %v788 = vadd.f32 %v671, %v778
    %v789 = vadd.f32 %v673, %v780
    %vm790 = vcmask 1044480
    %v791 = vrot.slane %v466, 3
    %v792 = vrot.slane %v459, 3
    %v793 = vsel %vm790, %v791, %v792
    %v794 = vrot.slane %v461, 3
    %v795 = vsel %vm790, %v792, %v794
    %v796 = vrot.slane %v463, 3
    %v797 = vsel %vm790, %v794, %v796
    %v798 = vrot.slane %v467, 3
    %v799 = vsel %vm790, %v796, %v798
    %v800 = vsel %vm480, %v793, 0
    %v802 = vsel %vm480, %v795, 0
    %v804 = vsel %vm480, %v797, 0
    %v806 = vsel %vm480, %v799, 0
    %808 = vmatprep.subr.mxu0 0.0
    %809 = vmatpush1.msra.mxu0 0.0
    %810 = vmatprep.subr.mxu0 0.0
    %811 = vmatpush1.msra.mxu0 0.0
    %812 = vmatprep.subr.mxu0 0.0
    %813 = vmatpush1.msra.mxu0 0.0
    %814 = vmatprep.subr.mxu0 0.0
    %815 = vmatpush1.msra.mxu0 0.0
    %816 = vmatprep.subr.mxu0 0.0
    %817 = vmatpush1.msra.mxu0 0.0
    %818 = vmatprep.subr.mxu0 0.0
    %819 = vmatpush1.msra.mxu0 0.0
    %820 = vmatprep.subr.mxu0 0.0
    %821 = vmatpush1.msra.mxu0 0.0
    %822 = vmatprep.subr.mxu0 0.0
    %823 = vmatpush1.msra.mxu0 0.0
    %824 = vmatprep.subr.mxu0 0.0
    %825 = vmatpush1.msra.mxu0 0.0
    %826 = vmatprep.subr.mxu0 0.0
    %827 = vmatpush1.msra.mxu0 0.0
    %828 = vmatprep.subr.mxu0 0.0
    %829 = vmatpush1.msra.mxu0 0.0
    %830 = vmatprep.subr.mxu0 %v392
    %831 = vmatpush1.msra.mxu0 %v391
    %832 = vmatprep.subr.mxu0 %v390
    %833 = vmatpush1.msra.mxu0 %v389
    %834 = vmatprep.subr.mxu0 %v388
    %835 = vmatpush1.msra.mxu0 %v387
    %836 = vmatprep.subr.mxu0 %v386
    %837 = vmatpush1.msra.mxu0 %v385
    %838 = vmatprep.subr.mxu0 %v384
    %839 = vmatpush1.msra.mxu0 %v383
    %840 = vmatprep.subr.mxu0 0.0
    %841 = vmatpush2.msra.mxu0 0.0
    %842 = vmatprep.subr.mxu0 0.0
    %843 = vmatpush2.msra.mxu0 0.0
    %844 = vmatprep.subr.mxu0 0.0
    %845 = vmatpush2.msra.mxu0 0.0
    %846 = vmatprep.subr.mxu0 0.0
    %847 = vmatpush2.msra.mxu0 0.0
    %848 = vmatprep.subr.mxu0 0.0
    %849 = vmatpush2.msra.mxu0 0.0
    %850 = vmatprep.subr.mxu0 0.0
    %851 = vmatpush2.msra.mxu0 0.0
    %852 = vmatprep.subr.mxu0 0.0
    %853 = vmatpush2.msra.mxu0 0.0
    %854 = vmatprep.subr.mxu0 0.0
    %855 = vmatpush2.msra.mxu0 0.0
    %856 = vmatprep.subr.mxu0 0.0
    %857 = vmatpush2.msra.mxu0 0.0
    %858 = vmatprep.subr.mxu0 0.0
    %859 = vmatpush2.msra.mxu0 0.0
    %860 = vmatprep.subr.mxu0 0.0
    %861 = vmatpush2.msra.mxu0 0.0
    %862 = vmatprep.subr.mxu0 0.0
    %863 = vmatpush2.msra.mxu0 0.0
    %864 = vmatprep.subr.mxu0 0.0
    %865 = vmatpush2.msra.mxu0 0.0
    %866 = vmatprep.subr.mxu0 0.0
    %867 = vmatpush2.msra.mxu0 0.0
    %868 = vmatprep.subr.mxu0 0.0
    %869 = vmatpush2.msra.mxu0 0.0
    %870 = vmatprep.subr.mxu0 0.0
    %871 = vmatpush2.msra.mxu0 0.0
    %872 = vmatprep.mubr.f32.mxu0 0.0
    %873 = vmatmul.mubr.f32.gmra.mxu0 %v800
    %v874 = vpop.f32.mrf.mxu0
    %v875 = vadd.f32 0.0, %v874
    %v876 = vpop.f32.mrf.mxu0
    %v877 = vadd.f32 0.0, %v876
    %878 = vmatprep.mubr.f32.mxu0 0.0
    %879 = vmatmul.mubr.f32.gmra.mxu0 %v802
    %v880 = vpop.f32.mrf.mxu0
    %v881 = vadd.f32 0.0, %v880
    %v882 = vpop.f32.mrf.mxu0
    %v883 = vadd.f32 0.0, %v882
    %884 = vmatprep.mubr.f32.mxu0 0.0
    %885 = vmatmul.mubr.f32.gmra.mxu0 %v804
    %v886 = vpop.f32.mrf.mxu0
    %v887 = vadd.f32 0.0, %v886
    %v888 = vpop.f32.mrf.mxu0
    %v889 = vadd.f32 0.0, %v888
    %890 = vmatprep.mubr.f32.mxu0 0.0
    %891 = vmatmul.mubr.f32.gmra.mxu0 %v806
    %v892 = vpop.f32.mrf.mxu0
    %v893 = vadd.f32 0.0, %v892
    %v894 = vpop.f32.mrf.mxu0
    %v895 = vadd.f32 0.0, %v894
    %896 = vdwg.mxu0
    %v897 = vadd.f32 %v782, %v875
    %v898 = vadd.f32 %v783, %v877
    %v899 = vadd.f32 %v784, %v881
    %v900 = vadd.f32 %v785, %v883
    %v901 = vadd.f32 %v786, %v887
    %v902 = vadd.f32 %v787, %v889
    %v903 = vadd.f32 %v788, %v893
    %v904 = vadd.f32 %v789, %v895
    %vm905 = vcmask 1043456
    %v906 = vrot.slane %v466, 4
    %v907 = vrot.slane %v459, 4
    %v908 = vsel %vm905, %v906, %v907
    %v909 = vrot.slane %v461, 4
    %v910 = vsel %vm905, %v907, %v909
    %v911 = vrot.slane %v463, 4
    %v912 = vsel %vm905, %v909, %v911
    %v913 = vrot.slane %v467, 4
    %v914 = vsel %vm905, %v911, %v913
    %v915 = vsel %vm480, %v908, 0
    %v917 = vsel %vm480, %v910, 0
    %v919 = vsel %vm480, %v912, 0
    %v921 = vsel %vm480, %v914, 0
    %923 = vmatprep.subr.mxu0 0.0
    %924 = vmatpush1.msra.mxu0 0.0
    %925 = vmatprep.subr.mxu0 0.0
    %926 = vmatpush1.msra.mxu0 0.0
    %927 = vmatprep.subr.mxu0 0.0
    %928 = vmatpush1.msra.mxu0 0.0
    %929 = vmatprep.subr.mxu0 0.0
    %930 = vmatpush1.msra.mxu0 0.0
    %931 = vmatprep.subr.mxu0 0.0
    %932 = vmatpush1.msra.mxu0 0.0
    %933 = vmatprep.subr.mxu0 0.0
    %934 = vmatpush1.msra.mxu0 0.0
    %935 = vmatprep.subr.mxu0 0.0
    %936 = vmatpush1.msra.mxu0 0.0
    %937 = vmatprep.subr.mxu0 0.0
    %938 = vmatpush1.msra.mxu0 0.0
    %939 = vmatprep.subr.mxu0 0.0
    %940 = vmatpush1.msra.mxu0 0.0
    %941 = vmatprep.subr.mxu0 0.0
    %942 = vmatpush1.msra.mxu0 0.0
    %943 = vmatprep.subr.mxu0 0.0
    %944 = vmatpush1.msra.mxu0 0.0
    %945 = vmatprep.subr.mxu0 %v403
    %946 = vmatpush1.msra.mxu0 %v402
    %947 = vmatprep.subr.mxu0 %v401
    %948 = vmatpush1.msra.mxu0 %v400
    %949 = vmatprep.subr.mxu0 %v399
    %950 = vmatpush1.msra.mxu0 %v398
    %951 = vmatprep.subr.mxu0 %v397
    %952 = vmatpush1.msra.mxu0 %v396
    %953 = vmatprep.subr.mxu0 %v395
    %954 = vmatpush1.msra.mxu0 %v394
    %955 = vmatprep.subr.mxu0 0.0
    %956 = vmatpush2.msra.mxu0 0.0
    %957 = vmatprep.subr.mxu0 0.0
    %958 = vmatpush2.msra.mxu0 0.0
    %959 = vmatprep.subr.mxu0 0.0
    %960 = vmatpush2.msra.mxu0 0.0
    %961 = vmatprep.subr.mxu0 0.0
    %962 = vmatpush2.msra.mxu0 0.0
    %963 = vmatprep.subr.mxu0 0.0
    %964 = vmatpush2.msra.mxu0 0.0
    %965 = vmatprep.subr.mxu0 0.0
    %966 = vmatpush2.msra.mxu0 0.0
    %967 = vmatprep.subr.mxu0 0.0
    %968 = vmatpush2.msra.mxu0 0.0
    %969 = vmatprep.subr.mxu0 0.0
    %970 = vmatpush2.msra.mxu0 0.0
    %971 = vmatprep.subr.mxu0 0.0
    %972 = vmatpush2.msra.mxu0 0.0
    %973 = vmatprep.subr.mxu0 0.0
    %974 = vmatpush2.msra.mxu0 0.0
    %975 = vmatprep.subr.mxu0 0.0
    %976 = vmatpush2.msra.mxu0 0.0
    %977 = vmatprep.subr.mxu0 0.0
    %978 = vmatpush2.msra.mxu0 0.0
    %979 = vmatprep.subr.mxu0 0.0
    %980 = vmatpush2.msra.mxu0 0.0
    %981 = vmatprep.subr.mxu0 0.0
    %982 = vmatpush2.msra.mxu0 0.0
    %983 = vmatprep.subr.mxu0 0.0
    %984 = vmatpush2.msra.mxu0 0.0
    %985 = vmatprep.subr.mxu0 0.0
    %986 = vmatpush2.msra.mxu0 0.0
    %987 = vmatprep.mubr.f32.mxu0 0.0
    %988 = vmatmul.mubr.f32.gmra.mxu0 %v915
    %v989 = vpop.f32.mrf.mxu0
    %v990 = vadd.f32 0.0, %v989
    %v991 = vpop.f32.mrf.mxu0
    %v992 = vadd.f32 0.0, %v991
    %993 = vmatprep.mubr.f32.mxu0 0.0
    %994 = vmatmul.mubr.f32.gmra.mxu0 %v917
    %v995 = vpop.f32.mrf.mxu0
    %v996 = vadd.f32 0.0, %v995
    %v997 = vpop.f32.mrf.mxu0
    %v998 = vadd.f32 0.0, %v997
    %999 = vmatprep.mubr.f32.mxu0 0.0
    %1000 = vmatmul.mubr.f32.gmra.mxu0 %v919
    %v1001 = vpop.f32.mrf.mxu0
    %v1002 = vadd.f32 0.0, %v1001
    %v1003 = vpop.f32.mrf.mxu0
    %v1004 = vadd.f32 0.0, %v1003
    %1005 = vmatprep.mubr.f32.mxu0 0.0
    %1006 = vmatmul.mubr.f32.gmra.mxu0 %v921
    %v1007 = vpop.f32.mrf.mxu0
    %v1008 = vadd.f32 0.0, %v1007
    %v1009 = vpop.f32.mrf.mxu0
    %v1010 = vadd.f32 0.0, %v1009
    %1011 = vdwg.mxu0
    %v1012 = vadd.f32 %v897, %v990
    %v1013 = vadd.f32 %v898, %v992
    %v1014 = vadd.f32 %v899, %v996
    %v1015 = vadd.f32 %v900, %v998
    %v1016 = vadd.f32 %v901, %v1002
    %v1017 = vadd.f32 %v902, %v1004
    %v1018 = vadd.f32 %v903, %v1008
    %v1019 = vadd.f32 %v904, %v1010
    %v1020 = vrot.slane %v466, 5
    %v1021 = vrot.slane %v459, 5
    %v1022 = vsel %vm456, %v1020, %v1021
    %v1023 = vrot.slane %v461, 5
    %v1024 = vsel %vm456, %v1021, %v1023
    %v1025 = vrot.slane %v463, 5
    %v1026 = vsel %vm456, %v1023, %v1025
    %v1027 = vrot.slane %v467, 5
    %v1028 = vsel %vm456, %v1025, %v1027
    %v1029 = vsel %vm480, %v1022, 0
    %v1031 = vsel %vm480, %v1024, 0
    %v1033 = vsel %vm480, %v1026, 0
    %v1035 = vsel %vm480, %v1028, 0
    %1037 = vmatprep.subr.mxu0 0.0
    %1038 = vmatpush1.msra.mxu0 0.0
    %1039 = vmatprep.subr.mxu0 0.0
    %1040 = vmatpush1.msra.mxu0 0.0
    %1041 = vmatprep.subr.mxu0 0.0
    %1042 = vmatpush1.msra.mxu0 0.0
    %1043 = vmatprep.subr.mxu0 0.0
    %1044 = vmatpush1.msra.mxu0 0.0
    %1045 = vmatprep.subr.mxu0 0.0
    %1046 = vmatpush1.msra.mxu0 0.0
    %1047 = vmatprep.subr.mxu0 0.0
    %1048 = vmatpush1.msra.mxu0 0.0
    %1049 = vmatprep.subr.mxu0 0.0
    %1050 = vmatpush1.msra.mxu0 0.0
    %1051 = vmatprep.subr.mxu0 0.0
    %1052 = vmatpush1.msra.mxu0 0.0
    %1053 = vmatprep.subr.mxu0 0.0
    %1054 = vmatpush1.msra.mxu0 0.0
    %1055 = vmatprep.subr.mxu0 0.0
    %1056 = vmatpush1.msra.mxu0 0.0
    %1057 = vmatprep.subr.mxu0 0.0
    %1058 = vmatpush1.msra.mxu0 0.0
    %1059 = vmatprep.subr.mxu0 %v414
    %1060 = vmatpush1.msra.mxu0 %v413
    %1061 = vmatprep.subr.mxu0 %v412
    %1062 = vmatpush1.msra.mxu0 %v411
    %1063 = vmatprep.subr.mxu0 %v410
    %1064 = vmatpush1.msra.mxu0 %v409
    %1065 = vmatprep.subr.mxu0 %v408
    %1066 = vmatpush1.msra.mxu0 %v407
    %1067 = vmatprep.subr.mxu0 %v406
    %1068 = vmatpush1.msra.mxu0 %v405
    %1069 = vmatprep.subr.mxu0 0.0
    %1070 = vmatpush2.msra.mxu0 0.0
    %1071 = vmatprep.subr.mxu0 0.0
    %1072 = vmatpush2.msra.mxu0 0.0
    %1073 = vmatprep.subr.mxu0 0.0
    %1074 = vmatpush2.msra.mxu0 0.0
    %1075 = vmatprep.subr.mxu0 0.0
    %1076 = vmatpush2.msra.mxu0 0.0
    %1077 = vmatprep.subr.mxu0 0.0
    %1078 = vmatpush2.msra.mxu0 0.0
    %1079 = vmatprep.subr.mxu0 0.0
    %1080 = vmatpush2.msra.mxu0 0.0
    %1081 = vmatprep.subr.mxu0 0.0
    %1082 = vmatpush2.msra.mxu0 0.0
    %1083 = vmatprep.subr.mxu0 0.0
    %1084 = vmatpush2.msra.mxu0 0.0
    %1085 = vmatprep.subr.mxu0 0.0
    %1086 = vmatpush2.msra.mxu0 0.0
    %1087 = vmatprep.subr.mxu0 0.0
    %1088 = vmatpush2.msra.mxu0 0.0
    %1089 = vmatprep.subr.mxu0 0.0
    %1090 = vmatpush2.msra.mxu0 0.0
    %1091 = vmatprep.subr.mxu0 0.0
    %1092 = vmatpush2.msra.mxu0 0.0
    %1093 = vmatprep.subr.mxu0 0.0
    %1094 = vmatpush2.msra.mxu0 0.0
    %1095 = vmatprep.subr.mxu0 0.0
    %1096 = vmatpush2.msra.mxu0 0.0
    %1097 = vmatprep.subr.mxu0 0.0
    %1098 = vmatpush2.msra.mxu0 0.0
    %1099 = vmatprep.subr.mxu0 0.0
    %1100 = vmatpush2.msra.mxu0 0.0
    %1101 = vmatprep.mubr.f32.mxu0 0.0
    %1102 = vmatmul.mubr.f32.gmra.mxu0 %v1029
    %v1103 = vpop.f32.mrf.mxu0
    %v1104 = vadd.f32 0.0, %v1103
    %v1105 = vpop.f32.mrf.mxu0
    %v1106 = vadd.f32 0.0, %v1105
    %1107 = vmatprep.mubr.f32.mxu0 0.0
    %1108 = vmatmul.mubr.f32.gmra.mxu0 %v1031
    %v1109 = vpop.f32.mrf.mxu0
    %v1110 = vadd.f32 0.0, %v1109
    %v1111 = vpop.f32.mrf.mxu0
    %v1112 = vadd.f32 0.0, %v1111
    %1113 = vmatprep.mubr.f32.mxu0 0.0
    %1114 = vmatmul.mubr.f32.gmra.mxu0 %v1033
    %v1115 = vpop.f32.mrf.mxu0
    %v1116 = vadd.f32 0.0, %v1115
    %v1117 = vpop.f32.mrf.mxu0
    %v1118 = vadd.f32 0.0, %v1117
    %1119 = vmatprep.mubr.f32.mxu0 0.0
    %1120 = vmatmul.mubr.f32.gmra.mxu0 %v1035
    %v1121 = vpop.f32.mrf.mxu0
    %v1122 = vadd.f32 0.0, %v1121
    %v1123 = vpop.f32.mrf.mxu0
    %v1124 = vadd.f32 0.0, %v1123
    %1125 = vdwg.mxu0
    %v1126 = vadd.f32 %v1012, %v1104
    %v1127 = vadd.f32 %v1013, %v1106
    %v1128 = vadd.f32 %v1014, %v1110
    %v1129 = vadd.f32 %v1015, %v1112
    %v1130 = vadd.f32 %v1016, %v1116
    %v1131 = vadd.f32 %v1017, %v1118
    %v1132 = vadd.f32 %v1018, %v1122
    %v1133 = vadd.f32 %v1019, %v1124
    %vm1134 = vcmask 1041408
    %v1135 = vrot.slane %v466, 6
    %v1136 = vrot.slane %v459, 6
    %v1137 = vsel %vm1134, %v1135, %v1136
    %v1138 = vrot.slane %v461, 6
    %v1139 = vsel %vm1134, %v1136, %v1138
    %v1140 = vrot.slane %v463, 6
    %v1141 = vsel %vm1134, %v1138, %v1140
    %v1142 = vrot.slane %v467, 6
    %v1143 = vsel %vm1134, %v1140, %v1142
    %v1144 = vsel %vm480, %v1137, 0
    %v1146 = vsel %vm480, %v1139, 0
    %v1148 = vsel %vm480, %v1141, 0
    %v1150 = vsel %vm480, %v1143, 0
    %1152 = vmatprep.subr.mxu0 0.0
    %1153 = vmatpush1.msra.mxu0 0.0
    %1154 = vmatprep.subr.mxu0 0.0
    %1155 = vmatpush1.msra.mxu0 0.0
    %1156 = vmatprep.subr.mxu0 0.0
    %1157 = vmatpush1.msra.mxu0 0.0
    %1158 = vmatprep.subr.mxu0 0.0
    %1159 = vmatpush1.msra.mxu0 0.0
    %1160 = vmatprep.subr.mxu0 0.0
    %1161 = vmatpush1.msra.mxu0 0.0
    %1162 = vmatprep.subr.mxu0 0.0
    %1163 = vmatpush1.msra.mxu0 0.0
    %1164 = vmatprep.subr.mxu0 0.0
    %1165 = vmatpush1.msra.mxu0 0.0
    %1166 = vmatprep.subr.mxu0 0.0
    %1167 = vmatpush1.msra.mxu0 0.0
    %1168 = vmatprep.subr.mxu0 0.0
    %1169 = vmatpush1.msra.mxu0 0.0
    %1170 = vmatprep.subr.mxu0 0.0
    %1171 = vmatpush1.msra.mxu0 0.0
    %1172 = vmatprep.subr.mxu0 0.0
    %1173 = vmatpush1.msra.mxu0 0.0
    %1174 = vmatprep.subr.mxu0 %v425
    %1175 = vmatpush1.msra.mxu0 %v424
    %1176 = vmatprep.subr.mxu0 %v423
    %1177 = vmatpush1.msra.mxu0 %v422
    %1178 = vmatprep.subr.mxu0 %v421
    %1179 = vmatpush1.msra.mxu0 %v420
    %1180 = vmatprep.subr.mxu0 %v419
    %1181 = vmatpush1.msra.mxu0 %v418
    %1182 = vmatprep.subr.mxu0 %v417
    %1183 = vmatpush1.msra.mxu0 %v416
    %1184 = vmatprep.subr.mxu0 0.0
    %1185 = vmatpush2.msra.mxu0 0.0
    %1186 = vmatprep.subr.mxu0 0.0
    %1187 = vmatpush2.msra.mxu0 0.0
    %1188 = vmatprep.subr.mxu0 0.0
    %1189 = vmatpush2.msra.mxu0 0.0
    %1190 = vmatprep.subr.mxu0 0.0
    %1191 = vmatpush2.msra.mxu0 0.0
    %1192 = vmatprep.subr.mxu0 0.0
    %1193 = vmatpush2.msra.mxu0 0.0
    %1194 = vmatprep.subr.mxu0 0.0
    %1195 = vmatpush2.msra.mxu0 0.0
    %1196 = vmatprep.subr.mxu0 0.0
    %1197 = vmatpush2.msra.mxu0 0.0
    %1198 = vmatprep.subr.mxu0 0.0
    %1199 = vmatpush2.msra.mxu0 0.0
    %1200 = vmatprep.subr.mxu0 0.0
    %1201 = vmatpush2.msra.mxu0 0.0
    %1202 = vmatprep.subr.mxu0 0.0
    %1203 = vmatpush2.msra.mxu0 0.0
    %1204 = vmatprep.subr.mxu0 0.0
    %1205 = vmatpush2.msra.mxu0 0.0
    %1206 = vmatprep.subr.mxu0 0.0
    %1207 = vmatpush2.msra.mxu0 0.0
    %1208 = vmatprep.subr.mxu0 0.0
    %1209 = vmatpush2.msra.mxu0 0.0
    %1210 = vmatprep.subr.mxu0 0.0
    %1211 = vmatpush2.msra.mxu0 0.0
    %1212 = vmatprep.subr.mxu0 0.0
    %1213 = vmatpush2.msra.mxu0 0.0
    %1214 = vmatprep.subr.mxu0 0.0
    %1215 = vmatpush2.msra.mxu0 0.0
    %1216 = vmatprep.mubr.f32.mxu0 0.0
    %1217 = vmatmul.mubr.f32.gmra.mxu0 %v1144
    %v1218 = vpop.f32.mrf.mxu0
    %v1219 = vadd.f32 0.0, %v1218
    %v1220 = vpop.f32.mrf.mxu0
    %v1221 = vadd.f32 0.0, %v1220
    %1222 = vmatprep.mubr.f32.mxu0 0.0
    %1223 = vmatmul.mubr.f32.gmra.mxu0 %v1146
    %v1224 = vpop.f32.mrf.mxu0
    %v1225 = vadd.f32 0.0, %v1224
    %v1226 = vpop.f32.mrf.mxu0
    %v1227 = vadd.f32 0.0, %v1226
    %1228 = vmatprep.mubr.f32.mxu0 0.0
    %1229 = vmatmul.mubr.f32.gmra.mxu0 %v1148
    %v1230 = vpop.f32.mrf.mxu0
    %v1231 = vadd.f32 0.0, %v1230
    %v1232 = vpop.f32.mrf.mxu0
    %v1233 = vadd.f32 0.0, %v1232
    %1234 = vmatprep.mubr.f32.mxu0 0.0
    %1235 = vmatmul.mubr.f32.gmra.mxu0 %v1150
    %v1236 = vpop.f32.mrf.mxu0
    %v1237 = vadd.f32 0.0, %v1236
    %v1238 = vpop.f32.mrf.mxu0
    %v1239 = vadd.f32 0.0, %v1238
    %1240 = vdwg.mxu0
    %v1241 = vadd.f32 %v1126, %v1219
    %v1242 = vadd.f32 %v1127, %v1221
    %v1243 = vadd.f32 %v1128, %v1225
    %v1244 = vadd.f32 %v1129, %v1227
    %v1245 = vadd.f32 %v1130, %v1231
    %v1246 = vadd.f32 %v1131, %v1233
    %v1247 = vadd.f32 %v1132, %v1237
    %v1248 = vadd.f32 %v1133, %v1239
    %1253 = vrot.lane.b32.xlu0 %v346, 3
    %v1254 = vpop.permute.xlu0 %1253
    %1255 = vrot.lane.b32.xlu0 %v347, 3
    %v1256 = vpop.permute.xlu0 %1255
    %1257 = vrot.lane.b32.xlu0 %v348, 3
    %v1258 = vpop.permute.xlu0 %1257
    %1259 = vrot.lane.b32.xlu0 %v349, 3
    %v1260 = vpop.permute.xlu0 %1259
    %v1265 = vsel %vm442, 0.0, %v1254
    %v1266 = vsel %vm442, 0.0, %v1256
    %v1267 = vsel %vm442, 0.0, %v1258
    %v1268 = vsel %vm442, 0.0, %v1260
    %v1269 = vsel %vm447, %v1265, 0.0
    %v1270 = vsel %vm447, %v1266, 0.0
    %v1271 = vsel %vm447, %v1267, 0.0
    %v1272 = vsel %vm447, %v1268, 0.0
    %v1277 = vrot.slane %v1269, 5
    %v1278 = vrot.slane %v1270, 5
    %v1279 = vsel %vm456, %v1277, %v1278
    %v1280 = vrot.slane %v1271, 5
    %v1281 = vsel %vm456, %v1278, %v1280
    %v1282 = vrot.slane %v1272, 5
    %v1283 = vsel %vm456, %v1280, %v1282
    %v1286 = vsel %vm456, 0.0, %v1277
    %v1287 = vsel %vm456, %v1282, 0.0
    %v1290 = vrot.slane %v1286, 1
    %v1291 = vrot.slane %v1279, 1
    %v1292 = vsel %vm470, %v1290, %v1291
    %v1293 = vrot.slane %v1281, 1
    %v1294 = vsel %vm470, %v1291, %v1293
    %v1295 = vrot.slane %v1283, 1
    %v1296 = vsel %vm470, %v1293, %v1295
    %v1297 = vrot.slane %v1287, 1
    %v1298 = vsel %vm470, %v1295, %v1297
    %v1299 = vsel %vm480, %v1292, 0
    %v1301 = vsel %vm480, %v1294, 0
    %v1303 = vsel %vm480, %v1296, 0
    %v1305 = vsel %vm480, %v1298, 0
    %1307 = vmatprep.subr.mxu0 0.0
    %1308 = vmatpush1.msra.mxu0 0.0
    %1309 = vmatprep.subr.mxu0 0.0
    %1310 = vmatpush1.msra.mxu0 0.0
    %1311 = vmatprep.subr.mxu0 0.0
    %1312 = vmatpush1.msra.mxu0 0.0
    %1313 = vmatprep.subr.mxu0 0.0
    %1314 = vmatpush1.msra.mxu0 0.0
    %1315 = vmatprep.subr.mxu0 0.0
    %1316 = vmatpush1.msra.mxu0 0.0
    %1317 = vmatprep.subr.mxu0 0.0
    %1318 = vmatpush1.msra.mxu0 0.0
    %1319 = vmatprep.subr.mxu0 0.0
    %1320 = vmatpush1.msra.mxu0 0.0
    %1321 = vmatprep.subr.mxu0 0.0
    %1322 = vmatpush1.msra.mxu0 0.0
    %1323 = vmatprep.subr.mxu0 0.0
    %1324 = vmatpush1.msra.mxu0 0.0
    %1325 = vmatprep.subr.mxu0 0.0
    %1326 = vmatpush1.msra.mxu0 0.0
    %1327 = vmatprep.subr.mxu0 0.0
    %1328 = vmatpush1.msra.mxu0 0.0
    %1329 = vmatprep.subr.mxu0 %v370
    %1330 = vmatpush1.msra.mxu0 %v369
    %1331 = vmatprep.subr.mxu0 %v368
    %1332 = vmatpush1.msra.mxu0 %v367
    %1333 = vmatprep.subr.mxu0 %v366
    %1334 = vmatpush1.msra.mxu0 %v365
    %1335 = vmatprep.subr.mxu0 %v364
    %1336 = vmatpush1.msra.mxu0 %v363
    %1337 = vmatprep.subr.mxu0 %v362
    %1338 = vmatpush1.msra.mxu0 %v361
    %1339 = vmatprep.subr.mxu0 0.0
    %1340 = vmatpush2.msra.mxu0 0.0
    %1341 = vmatprep.subr.mxu0 0.0
    %1342 = vmatpush2.msra.mxu0 0.0
    %1343 = vmatprep.subr.mxu0 0.0
    %1344 = vmatpush2.msra.mxu0 0.0
    %1345 = vmatprep.subr.mxu0 0.0
    %1346 = vmatpush2.msra.mxu0 0.0
    %1347 = vmatprep.subr.mxu0 0.0
    %1348 = vmatpush2.msra.mxu0 0.0
    %1349 = vmatprep.subr.mxu0 0.0
    %1350 = vmatpush2.msra.mxu0 0.0
    %1351 = vmatprep.subr.mxu0 0.0
    %1352 = vmatpush2.msra.mxu0 0.0
    %1353 = vmatprep.subr.mxu0 0.0
    %1354 = vmatpush2.msra.mxu0 0.0
    %1355 = vmatprep.subr.mxu0 0.0
    %1356 = vmatpush2.msra.mxu0 0.0
    %1357 = vmatprep.subr.mxu0 0.0
    %1358 = vmatpush2.msra.mxu0 0.0
    %1359 = vmatprep.subr.mxu0 0.0
    %1360 = vmatpush2.msra.mxu0 0.0
    %1361 = vmatprep.subr.mxu0 0.0
    %1362 = vmatpush2.msra.mxu0 0.0
    %1363 = vmatprep.subr.mxu0 0.0
    %1364 = vmatpush2.msra.mxu0 0.0
    %1365 = vmatprep.subr.mxu0 0.0
    %1366 = vmatpush2.msra.mxu0 0.0
    %1367 = vmatprep.subr.mxu0 0.0
    %1368 = vmatpush2.msra.mxu0 0.0
    %1369 = vmatprep.subr.mxu0 0.0
    %1370 = vmatpush2.msra.mxu0 0.0
    %1371 = vmatprep.mubr.f32.mxu0 0.0
    %1372 = vmatmul.mubr.f32.gmra.mxu0 %v1299
    %v1373 = vpop.f32.mrf.mxu0
    %v1374 = vadd.f32 0.0, %v1373
    %v1375 = vpop.f32.mrf.mxu0
    %v1376 = vadd.f32 0.0, %v1375
    %1377 = vmatprep.mubr.f32.mxu0 0.0
    %1378 = vmatmul.mubr.f32.gmra.mxu0 %v1301
    %v1379 = vpop.f32.mrf.mxu0
    %v1380 = vadd.f32 0.0, %v1379
    %v1381 = vpop.f32.mrf.mxu0
    %v1382 = vadd.f32 0.0, %v1381
    %1383 = vmatprep.mubr.f32.mxu0 0.0
    %1384 = vmatmul.mubr.f32.gmra.mxu0 %v1303
    %v1385 = vpop.f32.mrf.mxu0
    %v1386 = vadd.f32 0.0, %v1385
    %v1387 = vpop.f32.mrf.mxu0
    %v1388 = vadd.f32 0.0, %v1387
    %1389 = vmatprep.mubr.f32.mxu0 0.0
    %1390 = vmatmul.mubr.f32.gmra.mxu0 %v1305
    %v1391 = vpop.f32.mrf.mxu0
    %v1392 = vadd.f32 0.0, %v1391
    %v1393 = vpop.f32.mrf.mxu0
    %v1394 = vadd.f32 0.0, %v1393
    %1395 = vdwg.mxu0
    %v1396 = vsel %vm480, %v1286, 0
    %v1398 = vsel %vm480, %v1279, 0
    %v1400 = vsel %vm480, %v1281, 0
    %v1402 = vsel %vm480, %v1283, 0
    %1404 = vmatprep.subr.mxu0 0.0
    %1405 = vmatpush1.msra.mxu0 0.0
    %1406 = vmatprep.subr.mxu0 0.0
    %1407 = vmatpush1.msra.mxu0 0.0
    %1408 = vmatprep.subr.mxu0 0.0
    %1409 = vmatpush1.msra.mxu0 0.0
    %1410 = vmatprep.subr.mxu0 0.0
    %1411 = vmatpush1.msra.mxu0 0.0
    %1412 = vmatprep.subr.mxu0 0.0
    %1413 = vmatpush1.msra.mxu0 0.0
    %1414 = vmatprep.subr.mxu0 0.0
    %1415 = vmatpush1.msra.mxu0 0.0
    %1416 = vmatprep.subr.mxu0 0.0
    %1417 = vmatpush1.msra.mxu0 0.0
    %1418 = vmatprep.subr.mxu0 0.0
    %1419 = vmatpush1.msra.mxu0 0.0
    %1420 = vmatprep.subr.mxu0 0.0
    %1421 = vmatpush1.msra.mxu0 0.0
    %1422 = vmatprep.subr.mxu0 0.0
    %1423 = vmatpush1.msra.mxu0 0.0
    %1424 = vmatprep.subr.mxu0 0.0
    %1425 = vmatpush1.msra.mxu0 0.0
    %1426 = vmatprep.subr.mxu0 %v359
    %1427 = vmatpush1.msra.mxu0 %v358
    %1428 = vmatprep.subr.mxu0 %v357
    %1429 = vmatpush1.msra.mxu0 %v356
    %1430 = vmatprep.subr.mxu0 %v355
    %1431 = vmatpush1.msra.mxu0 %v354
    %1432 = vmatprep.subr.mxu0 %v353
    %1433 = vmatpush1.msra.mxu0 %v352
    %1434 = vmatprep.subr.mxu0 %v351
    %1435 = vmatpush1.msra.mxu0 %v350
    %1436 = vmatprep.subr.mxu0 0.0
    %1437 = vmatpush2.msra.mxu0 0.0
    %1438 = vmatprep.subr.mxu0 0.0
    %1439 = vmatpush2.msra.mxu0 0.0
    %1440 = vmatprep.subr.mxu0 0.0
    %1441 = vmatpush2.msra.mxu0 0.0
    %1442 = vmatprep.subr.mxu0 0.0
    %1443 = vmatpush2.msra.mxu0 0.0
    %1444 = vmatprep.subr.mxu0 0.0
    %1445 = vmatpush2.msra.mxu0 0.0
    %1446 = vmatprep.subr.mxu0 0.0
    %1447 = vmatpush2.msra.mxu0 0.0
    %1448 = vmatprep.subr.mxu0 0.0
    %1449 = vmatpush2.msra.mxu0 0.0
    %1450 = vmatprep.subr.mxu0 0.0
    %1451 = vmatpush2.msra.mxu0 0.0
    %1452 = vmatprep.subr.mxu0 0.0
    %1453 = vmatpush2.msra.mxu0 0.0
    %1454 = vmatprep.subr.mxu0 0.0
    %1455 = vmatpush2.msra.mxu0 0.0
    %1456 = vmatprep.subr.mxu0 0.0
    %1457 = vmatpush2.msra.mxu0 0.0
    %1458 = vmatprep.subr.mxu0 0.0
    %1459 = vmatpush2.msra.mxu0 0.0
    %1460 = vmatprep.subr.mxu0 0.0
    %1461 = vmatpush2.msra.mxu0 0.0
    %1462 = vmatprep.subr.mxu0 0.0
    %1463 = vmatpush2.msra.mxu0 0.0
    %1464 = vmatprep.subr.mxu0 0.0
    %1465 = vmatpush2.msra.mxu0 0.0
    %1466 = vmatprep.subr.mxu0 0.0
    %1467 = vmatpush2.msra.mxu0 0.0
    %1468 = vmatprep.mubr.f32.mxu0 0.0
    %1469 = vmatmul.mubr.f32.gmra.mxu0 %v1396
    %v1470 = vpop.f32.mrf.mxu0
    %v1471 = vadd.f32 %v1374, %v1470
    %v1472 = vpop.f32.mrf.mxu0
    %v1473 = vadd.f32 %v1376, %v1472
    %1474 = vmatprep.mubr.f32.mxu0 0.0
    %1475 = vmatmul.mubr.f32.gmra.mxu0 %v1398
    %v1476 = vpop.f32.mrf.mxu0
    %v1477 = vadd.f32 %v1380, %v1476
    %v1478 = vpop.f32.mrf.mxu0
    %v1479 = vadd.f32 %v1382, %v1478
    %1480 = vmatprep.mubr.f32.mxu0 0.0
    %1481 = vmatmul.mubr.f32.gmra.mxu0 %v1400
    %v1482 = vpop.f32.mrf.mxu0
    %v1483 = vadd.f32 %v1386, %v1482
    %v1484 = vpop.f32.mrf.mxu0
    %v1485 = vadd.f32 %v1388, %v1484
    %1486 = vmatprep.mubr.f32.mxu0 0.0
    %1487 = vmatmul.mubr.f32.gmra.mxu0 %v1402
    %v1488 = vpop.f32.mrf.mxu0
    %v1489 = vadd.f32 %v1392, %v1488
    %v1490 = vpop.f32.mrf.mxu0
    %v1491 = vadd.f32 %v1394, %v1490
    %1492 = vdwg.mxu0
    %v1493 = vrot.slane %v1286, 2
    %v1494 = vrot.slane %v1279, 2
    %v1495 = vsel %vm675, %v1493, %v1494
    %v1496 = vrot.slane %v1281, 2
    %v1497 = vsel %vm675, %v1494, %v1496
    %v1498 = vrot.slane %v1283, 2
    %v1499 = vsel %vm675, %v1496, %v1498
    %v1500 = vrot.slane %v1287, 2
    %v1501 = vsel %vm675, %v1498, %v1500
    %v1502 = vsel %vm480, %v1495, 0
    %v1504 = vsel %vm480, %v1497, 0
    %v1506 = vsel %vm480, %v1499, 0
    %v1508 = vsel %vm480, %v1501, 0
    %1510 = vmatprep.subr.mxu0 0.0
    %1511 = vmatpush1.msra.mxu0 0.0
    %1512 = vmatprep.subr.mxu0 0.0
    %1513 = vmatpush1.msra.mxu0 0.0
    %1514 = vmatprep.subr.mxu0 0.0
    %1515 = vmatpush1.msra.mxu0 0.0
    %1516 = vmatprep.subr.mxu0 0.0
    %1517 = vmatpush1.msra.mxu0 0.0
    %1518 = vmatprep.subr.mxu0 0.0
    %1519 = vmatpush1.msra.mxu0 0.0
    %1520 = vmatprep.subr.mxu0 0.0
    %1521 = vmatpush1.msra.mxu0 0.0
    %1522 = vmatprep.subr.mxu0 0.0
    %1523 = vmatpush1.msra.mxu0 0.0
    %1524 = vmatprep.subr.mxu0 0.0
    %1525 = vmatpush1.msra.mxu0 0.0
    %1526 = vmatprep.subr.mxu0 0.0
    %1527 = vmatpush1.msra.mxu0 0.0
    %1528 = vmatprep.subr.mxu0 0.0
    %1529 = vmatpush1.msra.mxu0 0.0
    %1530 = vmatprep.subr.mxu0 0.0
    %1531 = vmatpush1.msra.mxu0 0.0
    %1532 = vmatprep.subr.mxu0 %v381
    %1533 = vmatpush1.msra.mxu0 %v380
    %1534 = vmatprep.subr.mxu0 %v379
    %1535 = vmatpush1.msra.mxu0 %v378
    %1536 = vmatprep.subr.mxu0 %v377
    %1537 = vmatpush1.msra.mxu0 %v376
    %1538 = vmatprep.subr.mxu0 %v375
    %1539 = vmatpush1.msra.mxu0 %v374
    %1540 = vmatprep.subr.mxu0 %v373
    %1541 = vmatpush1.msra.mxu0 %v372
    %1542 = vmatprep.subr.mxu0 0.0
    %1543 = vmatpush2.msra.mxu0 0.0
    %1544 = vmatprep.subr.mxu0 0.0
    %1545 = vmatpush2.msra.mxu0 0.0
    %1546 = vmatprep.subr.mxu0 0.0
    %1547 = vmatpush2.msra.mxu0 0.0
    %1548 = vmatprep.subr.mxu0 0.0
    %1549 = vmatpush2.msra.mxu0 0.0
    %1550 = vmatprep.subr.mxu0 0.0
    %1551 = vmatpush2.msra.mxu0 0.0
    %1552 = vmatprep.subr.mxu0 0.0
    %1553 = vmatpush2.msra.mxu0 0.0
    %1554 = vmatprep.subr.mxu0 0.0
    %1555 = vmatpush2.msra.mxu0 0.0
    %1556 = vmatprep.subr.mxu0 0.0
    %1557 = vmatpush2.msra.mxu0 0.0
    %1558 = vmatprep.subr.mxu0 0.0
    %1559 = vmatpush2.msra.mxu0 0.0
    %1560 = vmatprep.subr.mxu0 0.0
    %1561 = vmatpush2.msra.mxu0 0.0
    %1562 = vmatprep.subr.mxu0 0.0
    %1563 = vmatpush2.msra.mxu0 0.0
    %1564 = vmatprep.subr.mxu0 0.0
    %1565 = vmatpush2.msra.mxu0 0.0
    %1566 = vmatprep.subr.mxu0 0.0
    %1567 = vmatpush2.msra.mxu0 0.0
    %1568 = vmatprep.subr.mxu0 0.0
    %1569 = vmatpush2.msra.mxu0 0.0
    %1570 = vmatprep.subr.mxu0 0.0
    %1571 = vmatpush2.msra.mxu0 0.0
    %1572 = vmatprep.subr.mxu0 0.0
    %1573 = vmatpush2.msra.mxu0 0.0
    %1574 = vmatprep.mubr.f32.mxu0 0.0
    %1575 = vmatmul.mubr.f32.gmra.mxu0 %v1502
    %v1576 = vpop.f32.mrf.mxu0
    %v1577 = vadd.f32 0.0, %v1576
    %v1578 = vpop.f32.mrf.mxu0
    %v1579 = vadd.f32 0.0, %v1578
    %1580 = vmatprep.mubr.f32.mxu0 0.0
    %1581 = vmatmul.mubr.f32.gmra.mxu0 %v1504
    %v1582 = vpop.f32.mrf.mxu0
    %v1583 = vadd.f32 0.0, %v1582
    %v1584 = vpop.f32.mrf.mxu0
    %v1585 = vadd.f32 0.0, %v1584
    %1586 = vmatprep.mubr.f32.mxu0 0.0
    %1587 = vmatmul.mubr.f32.gmra.mxu0 %v1506
    %v1588 = vpop.f32.mrf.mxu0
    %v1589 = vadd.f32 0.0, %v1588
    %v1590 = vpop.f32.mrf.mxu0
    %v1591 = vadd.f32 0.0, %v1590
    %1592 = vmatprep.mubr.f32.mxu0 0.0
    %1593 = vmatmul.mubr.f32.gmra.mxu0 %v1508
    %v1594 = vpop.f32.mrf.mxu0
    %v1595 = vadd.f32 0.0, %v1594
    %v1596 = vpop.f32.mrf.mxu0
    %v1597 = vadd.f32 0.0, %v1596
    %1598 = vdwg.mxu0
    %v1599 = vadd.f32 %v1471, %v1577
    %v1600 = vadd.f32 %v1473, %v1579
    %v1601 = vadd.f32 %v1477, %v1583
    %v1602 = vadd.f32 %v1479, %v1585
    %v1603 = vadd.f32 %v1483, %v1589
    %v1604 = vadd.f32 %v1485, %v1591
    %v1605 = vadd.f32 %v1489, %v1595
    %v1606 = vadd.f32 %v1491, %v1597
    %v1607 = vrot.slane %v1286, 3
    %v1608 = vrot.slane %v1279, 3
    %v1609 = vsel %vm790, %v1607, %v1608
    %v1610 = vrot.slane %v1281, 3
    %v1611 = vsel %vm790, %v1608, %v1610
    %v1612 = vrot.slane %v1283, 3
    %v1613 = vsel %vm790, %v1610, %v1612
    %v1614 = vrot.slane %v1287, 3
    %v1615 = vsel %vm790, %v1612, %v1614
    %v1616 = vsel %vm480, %v1609, 0
    %v1618 = vsel %vm480, %v1611, 0
    %v1620 = vsel %vm480, %v1613, 0
    %v1622 = vsel %vm480, %v1615, 0
    %1624 = vmatprep.subr.mxu0 0.0
    %1625 = vmatpush1.msra.mxu0 0.0
    %1626 = vmatprep.subr.mxu0 0.0
    %1627 = vmatpush1.msra.mxu0 0.0
    %1628 = vmatprep.subr.mxu0 0.0
    %1629 = vmatpush1.msra.mxu0 0.0
    %1630 = vmatprep.subr.mxu0 0.0
    %1631 = vmatpush1.msra.mxu0 0.0
    %1632 = vmatprep.subr.mxu0 0.0
    %1633 = vmatpush1.msra.mxu0 0.0
    %1634 = vmatprep.subr.mxu0 0.0
    %1635 = vmatpush1.msra.mxu0 0.0
    %1636 = vmatprep.subr.mxu0 0.0
    %1637 = vmatpush1.msra.mxu0 0.0
    %1638 = vmatprep.subr.mxu0 0.0
    %1639 = vmatpush1.msra.mxu0 0.0
    %1640 = vmatprep.subr.mxu0 0.0
    %1641 = vmatpush1.msra.mxu0 0.0
    %1642 = vmatprep.subr.mxu0 0.0
    %1643 = vmatpush1.msra.mxu0 0.0
    %1644 = vmatprep.subr.mxu0 0.0
    %1645 = vmatpush1.msra.mxu0 0.0
    %1646 = vmatprep.subr.mxu0 %v392
    %1647 = vmatpush1.msra.mxu0 %v391
    %1648 = vmatprep.subr.mxu0 %v390
    %1649 = vmatpush1.msra.mxu0 %v389
    %1650 = vmatprep.subr.mxu0 %v388
    %1651 = vmatpush1.msra.mxu0 %v387
    %1652 = vmatprep.subr.mxu0 %v386
    %1653 = vmatpush1.msra.mxu0 %v385
    %1654 = vmatprep.subr.mxu0 %v384
    %1655 = vmatpush1.msra.mxu0 %v383
    %1656 = vmatprep.subr.mxu0 0.0
    %1657 = vmatpush2.msra.mxu0 0.0
    %1658 = vmatprep.subr.mxu0 0.0
    %1659 = vmatpush2.msra.mxu0 0.0
    %1660 = vmatprep.subr.mxu0 0.0
    %1661 = vmatpush2.msra.mxu0 0.0
    %1662 = vmatprep.subr.mxu0 0.0
    %1663 = vmatpush2.msra.mxu0 0.0
    %1664 = vmatprep.subr.mxu0 0.0
    %1665 = vmatpush2.msra.mxu0 0.0
    %1666 = vmatprep.subr.mxu0 0.0
    %1667 = vmatpush2.msra.mxu0 0.0
    %1668 = vmatprep.subr.mxu0 0.0
    %1669 = vmatpush2.msra.mxu0 0.0
    %1670 = vmatprep.subr.mxu0 0.0
    %1671 = vmatpush2.msra.mxu0 0.0
    %1672 = vmatprep.subr.mxu0 0.0
    %1673 = vmatpush2.msra.mxu0 0.0
    %1674 = vmatprep.subr.mxu0 0.0
    %1675 = vmatpush2.msra.mxu0 0.0
    %1676 = vmatprep.subr.mxu0 0.0
    %1677 = vmatpush2.msra.mxu0 0.0
    %1678 = vmatprep.subr.mxu0 0.0
    %1679 = vmatpush2.msra.mxu0 0.0
    %1680 = vmatprep.subr.mxu0 0.0
    %1681 = vmatpush2.msra.mxu0 0.0
    %1682 = vmatprep.subr.mxu0 0.0
    %1683 = vmatpush2.msra.mxu0 0.0
    %1684 = vmatprep.subr.mxu0 0.0
    %1685 = vmatpush2.msra.mxu0 0.0
    %1686 = vmatprep.subr.mxu0 0.0
    %1687 = vmatpush2.msra.mxu0 0.0
    %1688 = vmatprep.mubr.f32.mxu0 0.0
    %1689 = vmatmul.mubr.f32.gmra.mxu0 %v1616
    %v1690 = vpop.f32.mrf.mxu0
    %v1691 = vadd.f32 0.0, %v1690
    %v1692 = vpop.f32.mrf.mxu0
    %v1693 = vadd.f32 0.0, %v1692
    %1694 = vmatprep.mubr.f32.mxu0 0.0
    %1695 = vmatmul.mubr.f32.gmra.mxu0 %v1618
    %v1696 = vpop.f32.mrf.mxu0
    %v1697 = vadd.f32 0.0, %v1696
    %v1698 = vpop.f32.mrf.mxu0
    %v1699 = vadd.f32 0.0, %v1698
    %1700 = vmatprep.mubr.f32.mxu0 0.0
    %1701 = vmatmul.mubr.f32.gmra.mxu0 %v1620
    %v1702 = vpop.f32.mrf.mxu0
    %v1703 = vadd.f32 0.0, %v1702
    %v1704 = vpop.f32.mrf.mxu0
    %v1705 = vadd.f32 0.0, %v1704
    %1706 = vmatprep.mubr.f32.mxu0 0.0
    %1707 = vmatmul.mubr.f32.gmra.mxu0 %v1622
    %v1708 = vpop.f32.mrf.mxu0
    %v1709 = vadd.f32 0.0, %v1708
    %v1710 = vpop.f32.mrf.mxu0
    %v1711 = vadd.f32 0.0, %v1710
    %1712 = vdwg.mxu0
    %v1713 = vadd.f32 %v1599, %v1691
    %v1714 = vadd.f32 %v1600, %v1693
    %v1715 = vadd.f32 %v1601, %v1697
    %v1716 = vadd.f32 %v1602, %v1699
    %v1717 = vadd.f32 %v1603, %v1703
    %v1718 = vadd.f32 %v1604, %v1705
    %v1719 = vadd.f32 %v1605, %v1709
    %v1720 = vadd.f32 %v1606, %v1711
    %v1721 = vrot.slane %v1286, 4
    %v1722 = vrot.slane %v1279, 4
    %v1723 = vsel %vm905, %v1721, %v1722
    %v1724 = vrot.slane %v1281, 4
    %v1725 = vsel %vm905, %v1722, %v1724
    %v1726 = vrot.slane %v1283, 4
    %v1727 = vsel %vm905, %v1724, %v1726
    %v1728 = vrot.slane %v1287, 4
    %v1729 = vsel %vm905, %v1726, %v1728
    %v1730 = vsel %vm480, %v1723, 0
    %v1732 = vsel %vm480, %v1725, 0
    %v1734 = vsel %vm480, %v1727, 0
    %v1736 = vsel %vm480, %v1729, 0
    %1738 = vmatprep.subr.mxu0 0.0
    %1739 = vmatpush1.msra.mxu0 0.0
    %1740 = vmatprep.subr.mxu0 0.0
    %1741 = vmatpush1.msra.mxu0 0.0
    %1742 = vmatprep.subr.mxu0 0.0
    %1743 = vmatpush1.msra.mxu0 0.0
    %1744 = vmatprep.subr.mxu0 0.0
    %1745 = vmatpush1.msra.mxu0 0.0
    %1746 = vmatprep.subr.mxu0 0.0
    %1747 = vmatpush1.msra.mxu0 0.0
    %1748 = vmatprep.subr.mxu0 0.0
    %1749 = vmatpush1.msra.mxu0 0.0
    %1750 = vmatprep.subr.mxu0 0.0
    %1751 = vmatpush1.msra.mxu0 0.0
    %1752 = vmatprep.subr.mxu0 0.0
    %1753 = vmatpush1.msra.mxu0 0.0
    %1754 = vmatprep.subr.mxu0 0.0
    %1755 = vmatpush1.msra.mxu0 0.0
    %1756 = vmatprep.subr.mxu0 0.0
    %1757 = vmatpush1.msra.mxu0 0.0
    %1758 = vmatprep.subr.mxu0 0.0
    %1759 = vmatpush1.msra.mxu0 0.0
    %1760 = vmatprep.subr.mxu0 %v403
    %1761 = vmatpush1.msra.mxu0 %v402
    %1762 = vmatprep.subr.mxu0 %v401
    %1763 = vmatpush1.msra.mxu0 %v400
    %1764 = vmatprep.subr.mxu0 %v399
    %1765 = vmatpush1.msra.mxu0 %v398
    %1766 = vmatprep.subr.mxu0 %v397
    %1767 = vmatpush1.msra.mxu0 %v396
    %1768 = vmatprep.subr.mxu0 %v395
    %1769 = vmatpush1.msra.mxu0 %v394
    %1770 = vmatprep.subr.mxu0 0.0
    %1771 = vmatpush2.msra.mxu0 0.0
    %1772 = vmatprep.subr.mxu0 0.0
    %1773 = vmatpush2.msra.mxu0 0.0
    %1774 = vmatprep.subr.mxu0 0.0
    %1775 = vmatpush2.msra.mxu0 0.0
    %1776 = vmatprep.subr.mxu0 0.0
    %1777 = vmatpush2.msra.mxu0 0.0
    %1778 = vmatprep.subr.mxu0 0.0
    %1779 = vmatpush2.msra.mxu0 0.0
    %1780 = vmatprep.subr.mxu0 0.0
    %1781 = vmatpush2.msra.mxu0 0.0
    %1782 = vmatprep.subr.mxu0 0.0
    %1783 = vmatpush2.msra.mxu0 0.0
    %1784 = vmatprep.subr.mxu0 0.0
    %1785 = vmatpush2.msra.mxu0 0.0
    %1786 = vmatprep.subr.mxu0 0.0
    %1787 = vmatpush2.msra.mxu0 0.0
    %1788 = vmatprep.subr.mxu0 0.0
    %1789 = vmatpush2.msra.mxu0 0.0
    %1790 = vmatprep.subr.mxu0 0.0
    %1791 = vmatpush2.msra.mxu0 0.0
    %1792 = vmatprep.subr.mxu0 0.0
    %1793 = vmatpush2.msra.mxu0 0.0
    %1794 = vmatprep.subr.mxu0 0.0
    %1795 = vmatpush2.msra.mxu0 0.0
    %1796 = vmatprep.subr.mxu0 0.0
    %1797 = vmatpush2.msra.mxu0 0.0
    %1798 = vmatprep.subr.mxu0 0.0
    %1799 = vmatpush2.msra.mxu0 0.0
    %1800 = vmatprep.subr.mxu0 0.0
    %1801 = vmatpush2.msra.mxu0 0.0
    %1802 = vmatprep.mubr.f32.mxu0 0.0
    %1803 = vmatmul.mubr.f32.gmra.mxu0 %v1730
    %v1804 = vpop.f32.mrf.mxu0
    %v1805 = vadd.f32 0.0, %v1804
    %v1806 = vpop.f32.mrf.mxu0
    %v1807 = vadd.f32 0.0, %v1806
    %1808 = vmatprep.mubr.f32.mxu0 0.0
    %1809 = vmatmul.mubr.f32.gmra.mxu0 %v1732
    %v1810 = vpop.f32.mrf.mxu0
    %v1811 = vadd.f32 0.0, %v1810
    %v1812 = vpop.f32.mrf.mxu0
    %v1813 = vadd.f32 0.0, %v1812
    %1814 = vmatprep.mubr.f32.mxu0 0.0
    %1815 = vmatmul.mubr.f32.gmra.mxu0 %v1734
    %v1816 = vpop.f32.mrf.mxu0
    %v1817 = vadd.f32 0.0, %v1816
    %v1818 = vpop.f32.mrf.mxu0
    %v1819 = vadd.f32 0.0, %v1818
    %1820 = vmatprep.mubr.f32.mxu0 0.0
    %1821 = vmatmul.mubr.f32.gmra.mxu0 %v1736
    %v1822 = vpop.f32.mrf.mxu0
    %v1823 = vadd.f32 0.0, %v1822
    %v1824 = vpop.f32.mrf.mxu0
    %v1825 = vadd.f32 0.0, %v1824
    %1826 = vdwg.mxu0
    %v1827 = vadd.f32 %v1713, %v1805
    %v1828 = vadd.f32 %v1714, %v1807
    %v1829 = vadd.f32 %v1715, %v1811
    %v1830 = vadd.f32 %v1716, %v1813
    %v1831 = vadd.f32 %v1717, %v1817
    %v1832 = vadd.f32 %v1718, %v1819
    %v1833 = vadd.f32 %v1719, %v1823
    %v1834 = vadd.f32 %v1720, %v1825
    %v1835 = vrot.slane %v1286, 5
    %v1836 = vrot.slane %v1279, 5
    %v1837 = vsel %vm456, %v1835, %v1836
    %v1838 = vrot.slane %v1281, 5
    %v1839 = vsel %vm456, %v1836, %v1838
    %v1840 = vrot.slane %v1283, 5
    %v1841 = vsel %vm456, %v1838, %v1840
    %v1842 = vrot.slane %v1287, 5
    %v1843 = vsel %vm456, %v1840, %v1842
    %v1844 = vsel %vm480, %v1837, 0
    %v1846 = vsel %vm480, %v1839, 0
    %v1848 = vsel %vm480, %v1841, 0
    %v1850 = vsel %vm480, %v1843, 0
    %1852 = vmatprep.subr.mxu0 0.0
    %1853 = vmatpush1.msra.mxu0 0.0
    %1854 = vmatprep.subr.mxu0 0.0
    %1855 = vmatpush1.msra.mxu0 0.0
    %1856 = vmatprep.subr.mxu0 0.0
    %1857 = vmatpush1.msra.mxu0 0.0
    %1858 = vmatprep.subr.mxu0 0.0
    %1859 = vmatpush1.msra.mxu0 0.0
    %1860 = vmatprep.subr.mxu0 0.0
    %1861 = vmatpush1.msra.mxu0 0.0
    %1862 = vmatprep.subr.mxu0 0.0
    %1863 = vmatpush1.msra.mxu0 0.0
    %1864 = vmatprep.subr.mxu0 0.0
    %1865 = vmatpush1.msra.mxu0 0.0
    %1866 = vmatprep.subr.mxu0 0.0
    %1867 = vmatpush1.msra.mxu0 0.0
    %1868 = vmatprep.subr.mxu0 0.0
    %1869 = vmatpush1.msra.mxu0 0.0
    %1870 = vmatprep.subr.mxu0 0.0
    %1871 = vmatpush1.msra.mxu0 0.0
    %1872 = vmatprep.subr.mxu0 0.0
    %1873 = vmatpush1.msra.mxu0 0.0
    %1874 = vmatprep.subr.mxu0 %v414
    %1875 = vmatpush1.msra.mxu0 %v413
    %1876 = vmatprep.subr.mxu0 %v412
    %1877 = vmatpush1.msra.mxu0 %v411
    %1878 = vmatprep.subr.mxu0 %v410
    %1879 = vmatpush1.msra.mxu0 %v409
    %1880 = vmatprep.subr.mxu0 %v408
    %1881 = vmatpush1.msra.mxu0 %v407
    %1882 = vmatprep.subr.mxu0 %v406
    %1883 = vmatpush1.msra.mxu0 %v405
    %1884 = vmatprep.subr.mxu0 0.0
    %1885 = vmatpush2.msra.mxu0 0.0
    %1886 = vmatprep.subr.mxu0 0.0
    %1887 = vmatpush2.msra.mxu0 0.0
    %1888 = vmatprep.subr.mxu0 0.0
    %1889 = vmatpush2.msra.mxu0 0.0
    %1890 = vmatprep.subr.mxu0 0.0
    %1891 = vmatpush2.msra.mxu0 0.0
    %1892 = vmatprep.subr.mxu0 0.0
    %1893 = vmatpush2.msra.mxu0 0.0
    %1894 = vmatprep.subr.mxu0 0.0
    %1895 = vmatpush2.msra.mxu0 0.0
    %1896 = vmatprep.subr.mxu0 0.0
    %1897 = vmatpush2.msra.mxu0 0.0
    %1898 = vmatprep.subr.mxu0 0.0
    %1899 = vmatpush2.msra.mxu0 0.0
    %1900 = vmatprep.subr.mxu0 0.0
    %1901 = vmatpush2.msra.mxu0 0.0
    %1902 = vmatprep.subr.mxu0 0.0
    %1903 = vmatpush2.msra.mxu0 0.0
    %1904 = vmatprep.subr.mxu0 0.0
    %1905 = vmatpush2.msra.mxu0 0.0
    %1906 = vmatprep.subr.mxu0 0.0
    %1907 = vmatpush2.msra.mxu0 0.0
    %1908 = vmatprep.subr.mxu0 0.0
    %1909 = vmatpush2.msra.mxu0 0.0
    %1910 = vmatprep.subr.mxu0 0.0
    %1911 = vmatpush2.msra.mxu0 0.0
    %1912 = vmatprep.subr.mxu0 0.0
    %1913 = vmatpush2.msra.mxu0 0.0
    %1914 = vmatprep.subr.mxu0 0.0
    %1915 = vmatpush2.msra.mxu0 0.0
    %1916 = vmatprep.mubr.f32.mxu0 0.0
    %1917 = vmatmul.mubr.f32.gmra.mxu0 %v1844
    %v1918 = vpop.f32.mrf.mxu0
    %v1919 = vadd.f32 0.0, %v1918
    %v1920 = vpop.f32.mrf.mxu0
    %v1921 = vadd.f32 0.0, %v1920
    %1922 = vmatprep.mubr.f32.mxu0 0.0
    %1923 = vmatmul.mubr.f32.gmra.mxu0 %v1846
    %v1924 = vpop.f32.mrf.mxu0
    %v1925 = vadd.f32 0.0, %v1924
    %v1926 = vpop.f32.mrf.mxu0
    %v1927 = vadd.f32 0.0, %v1926
    %1928 = vmatprep.mubr.f32.mxu0 0.0
    %1929 = vmatmul.mubr.f32.gmra.mxu0 %v1848
    %v1930 = vpop.f32.mrf.mxu0
    %v1931 = vadd.f32 0.0, %v1930
    %v1932 = vpop.f32.mrf.mxu0
    %v1933 = vadd.f32 0.0, %v1932
    %1934 = vmatprep.mubr.f32.mxu0 0.0
    %1935 = vmatmul.mubr.f32.gmra.mxu0 %v1850
    %v1936 = vpop.f32.mrf.mxu0
    %v1937 = vadd.f32 0.0, %v1936
    %v1938 = vpop.f32.mrf.mxu0
    %v1939 = vadd.f32 0.0, %v1938
    %1940 = vdwg.mxu0
    %v1941 = vadd.f32 %v1827, %v1919
    %v1942 = vadd.f32 %v1828, %v1921
    %v1943 = vadd.f32 %v1829, %v1925
    %v1944 = vadd.f32 %v1830, %v1927
    %v1945 = vadd.f32 %v1831, %v1931
    %v1946 = vadd.f32 %v1832, %v1933
    %v1947 = vadd.f32 %v1833, %v1937
    %v1948 = vadd.f32 %v1834, %v1939
    %v1949 = vrot.slane %v1286, 6
    %v1950 = vrot.slane %v1279, 6
    %v1951 = vsel %vm1134, %v1949, %v1950
    %v1952 = vrot.slane %v1281, 6
    %v1953 = vsel %vm1134, %v1950, %v1952
    %v1954 = vrot.slane %v1283, 6
    %v1955 = vsel %vm1134, %v1952, %v1954
    %v1956 = vrot.slane %v1287, 6
    %v1957 = vsel %vm1134, %v1954, %v1956
    %v1958 = vsel %vm480, %v1951, 0
    %v1960 = vsel %vm480, %v1953, 0
    %v1962 = vsel %vm480, %v1955, 0
    %v1964 = vsel %vm480, %v1957, 0
    %1966 = vmatprep.subr.mxu0 0.0
    %1967 = vmatpush1.msra.mxu0 0.0
    %1968 = vmatprep.subr.mxu0 0.0
    %1969 = vmatpush1.msra.mxu0 0.0
    %1970 = vmatprep.subr.mxu0 0.0
    %1971 = vmatpush1.msra.mxu0 0.0
    %1972 = vmatprep.subr.mxu0 0.0
    %1973 = vmatpush1.msra.mxu0 0.0
    %1974 = vmatprep.subr.mxu0 0.0
    %1975 = vmatpush1.msra.mxu0 0.0
    %1976 = vmatprep.subr.mxu0 0.0
    %1977 = vmatpush1.msra.mxu0 0.0
    %1978 = vmatprep.subr.mxu0 0.0
    %1979 = vmatpush1.msra.mxu0 0.0
    %1980 = vmatprep.subr.mxu0 0.0
    %1981 = vmatpush1.msra.mxu0 0.0
    %1982 = vmatprep.subr.mxu0 0.0
    %1983 = vmatpush1.msra.mxu0 0.0
    %1984 = vmatprep.subr.mxu0 0.0
    %1985 = vmatpush1.msra.mxu0 0.0
    %1986 = vmatprep.subr.mxu0 0.0
    %1987 = vmatpush1.msra.mxu0 0.0
    %1988 = vmatprep.subr.mxu0 %v425
    %1989 = vmatpush1.msra.mxu0 %v424
    %1990 = vmatprep.subr.mxu0 %v423
    %1991 = vmatpush1.msra.mxu0 %v422
    %1992 = vmatprep.subr.mxu0 %v421
    %1993 = vmatpush1.msra.mxu0 %v420
    %1994 = vmatprep.subr.mxu0 %v419
    %1995 = vmatpush1.msra.mxu0 %v418
    %1996 = vmatprep.subr.mxu0 %v417
    %1997 = vmatpush1.msra.mxu0 %v416
    %1998 = vmatprep.subr.mxu0 0.0
    %1999 = vmatpush2.msra.mxu0 0.0
    %2000 = vmatprep.subr.mxu0 0.0
    %2001 = vmatpush2.msra.mxu0 0.0
    %2002 = vmatprep.subr.mxu0 0.0
    %2003 = vmatpush2.msra.mxu0 0.0
    %2004 = vmatprep.subr.mxu0 0.0
    %2005 = vmatpush2.msra.mxu0 0.0
    %2006 = vmatprep.subr.mxu0 0.0
    %2007 = vmatpush2.msra.mxu0 0.0
    %2008 = vmatprep.subr.mxu0 0.0
    %2009 = vmatpush2.msra.mxu0 0.0
    %2010 = vmatprep.subr.mxu0 0.0
    %2011 = vmatpush2.msra.mxu0 0.0
    %2012 = vmatprep.subr.mxu0 0.0
    %2013 = vmatpush2.msra.mxu0 0.0
    %2014 = vmatprep.subr.mxu0 0.0
    %2015 = vmatpush2.msra.mxu0 0.0
    %2016 = vmatprep.subr.mxu0 0.0
    %2017 = vmatpush2.msra.mxu0 0.0
    %2018 = vmatprep.subr.mxu0 0.0
    %2019 = vmatpush2.msra.mxu0 0.0
    %2020 = vmatprep.subr.mxu0 0.0
    %2021 = vmatpush2.msra.mxu0 0.0
    %2022 = vmatprep.subr.mxu0 0.0
    %2023 = vmatpush2.msra.mxu0 0.0
    %2024 = vmatprep.subr.mxu0 0.0
    %2025 = vmatpush2.msra.mxu0 0.0
    %2026 = vmatprep.subr.mxu0 0.0
    %2027 = vmatpush2.msra.mxu0 0.0
    %2028 = vmatprep.subr.mxu0 0.0
    %2029 = vmatpush2.msra.mxu0 0.0
    %2030 = vmatprep.mubr.f32.mxu0 0.0
    %2031 = vmatmul.mubr.f32.gmra.mxu0 %v1958
    %v2032 = vpop.f32.mrf.mxu0
    %v2033 = vadd.f32 0.0, %v2032
    %v2034 = vpop.f32.mrf.mxu0
    %v2035 = vadd.f32 0.0, %v2034
    %2036 = vmatprep.mubr.f32.mxu0 0.0
    %2037 = vmatmul.mubr.f32.gmra.mxu0 %v1960
    %v2038 = vpop.f32.mrf.mxu0
    %v2039 = vadd.f32 0.0, %v2038
    %v2040 = vpop.f32.mrf.mxu0
    %v2041 = vadd.f32 0.0, %v2040
    %2042 = vmatprep.mubr.f32.mxu0 0.0
    %2043 = vmatmul.mubr.f32.gmra.mxu0 %v1962
    %v2044 = vpop.f32.mrf.mxu0
    %v2045 = vadd.f32 0.0, %v2044
    %v2046 = vpop.f32.mrf.mxu0
    %v2047 = vadd.f32 0.0, %v2046
    %2048 = vmatprep.mubr.f32.mxu0 0.0
    %2049 = vmatmul.mubr.f32.gmra.mxu0 %v1964
    %v2050 = vpop.f32.mrf.mxu0
    %v2051 = vadd.f32 0.0, %v2050
    %v2052 = vpop.f32.mrf.mxu0
    %v2053 = vadd.f32 0.0, %v2052
    %2054 = vdwg.mxu0
    %v2055 = vadd.f32 %v1941, %v2033
    %v2056 = vadd.f32 %v1942, %v2035
    %v2057 = vadd.f32 %v1943, %v2039
    %v2058 = vadd.f32 %v1944, %v2041
    %v2059 = vadd.f32 %v1945, %v2045
    %v2060 = vadd.f32 %v1946, %v2047
    %v2061 = vadd.f32 %v1947, %v2051
    %v2062 = vadd.f32 %v1948, %v2053
    %v2063 = vadd.f32 %v1241, %v1243
    %v2064 = vadd.f32 %v2063, %v1245
    %v2065 = vadd.f32 %v2064, %v1247
    %v2066 = vrot.slane %v2065, 4
    %v2067 = vadd.f32 %v2065, %v2066
    %v2068 = vrot.slane %v2067, 2
    %v2069 = vadd.f32 %v2067, %v2068
    %v2070 = vrot.slane %v2069, 1
    %v2071 = vadd.f32 %v2069, %v2070
    %v2072 = vadd.f32 %v1242, %v1244
    %v2073 = vadd.f32 %v2072, %v1246
    %v2074 = vadd.f32 %v2073, %v1248
    %v2075 = vrot.slane %v2074, 4
    %v2076 = vadd.f32 %v2074, %v2075
    %v2077 = vrot.slane %v2076, 2
    %v2078 = vadd.f32 %v2076, %v2077
    %v2079 = vrot.slane %v2078, 1
    %v2080 = vadd.f32 %v2078, %v2079
    %v2081 = vmul.f32 %v1241, %v1241
    %v2082 = vmul.f32 %v1242, %v1242
    %v2083 = vmul.f32 %v1243, %v1243
    %v2084 = vmul.f32 %v1244, %v1244
    %v2085 = vmul.f32 %v1245, %v1245
    %v2086 = vmul.f32 %v1246, %v1246
    %v2087 = vmul.f32 %v1247, %v1247
    %v2088 = vmul.f32 %v1248, %v1248
    %v2089 = vadd.f32 %v2081, %v2083
    %v2090 = vadd.f32 %v2089, %v2085
    %v2091 = vadd.f32 %v2090, %v2087
    %v2092 = vrot.slane %v2091, 4
    %v2093 = vadd.f32 %v2091, %v2092
    %v2094 = vrot.slane %v2093, 2
    %v2095 = vadd.f32 %v2093, %v2094
    %v2096 = vrot.slane %v2095, 1
    %v2097 = vadd.f32 %v2095, %v2096
    %v2098 = vadd.f32 %v2082, %v2084
    %v2099 = vadd.f32 %v2098, %v2086
    %v2100 = vadd.f32 %v2099, %v2088
    %v2101 = vrot.slane %v2100, 4
    %v2102 = vadd.f32 %v2100, %v2101
    %v2103 = vrot.slane %v2102, 2
    %v2104 = vadd.f32 %v2102, %v2103
    %v2105 = vrot.slane %v2104, 1
    %v2106 = vadd.f32 %v2104, %v2105
    %v2107 = vadd.f32 %v2055, %v2057
    %v2108 = vadd.f32 %v2107, %v2059
    %v2109 = vadd.f32 %v2108, %v2061
    %v2110 = vrot.slane %v2109, 4
    %v2111 = vadd.f32 %v2109, %v2110
    %v2112 = vrot.slane %v2111, 2
    %v2113 = vadd.f32 %v2111, %v2112
    %v2114 = vrot.slane %v2113, 1
    %v2115 = vadd.f32 %v2113, %v2114
    %v2116 = vadd.f32 %v2056, %v2058
    %v2117 = vadd.f32 %v2116, %v2060
    %v2118 = vadd.f32 %v2117, %v2062
    %v2119 = vrot.slane %v2118, 4
    %v2120 = vadd.f32 %v2118, %v2119
    %v2121 = vrot.slane %v2120, 2
    %v2122 = vadd.f32 %v2120, %v2121
    %v2123 = vrot.slane %v2122, 1
    %v2124 = vadd.f32 %v2122, %v2123
    %v2125 = vadd.f32 %v2071, %v2115
    %v2126 = vadd.f32 %v2080, %v2124
    %v2127 = vmul.f32 %v2055, %v2055
    %v2128 = vmul.f32 %v2056, %v2056
    %v2129 = vmul.f32 %v2057, %v2057
    %v2130 = vmul.f32 %v2058, %v2058
    %v2131 = vmul.f32 %v2059, %v2059
    %v2132 = vmul.f32 %v2060, %v2060
    %v2133 = vmul.f32 %v2061, %v2061
    %v2134 = vmul.f32 %v2062, %v2062
    %v2135 = vadd.f32 %v2127, %v2129
    %v2136 = vadd.f32 %v2135, %v2131
    %v2137 = vadd.f32 %v2136, %v2133
    %v2138 = vrot.slane %v2137, 4
    %v2139 = vadd.f32 %v2137, %v2138
    %v2140 = vrot.slane %v2139, 2
    %v2141 = vadd.f32 %v2139, %v2140
    %v2142 = vrot.slane %v2141, 1
    %v2143 = vadd.f32 %v2141, %v2142
    %v2144 = vadd.f32 %v2128, %v2130
    %v2145 = vadd.f32 %v2144, %v2132
    %v2146 = vadd.f32 %v2145, %v2134
    %v2147 = vrot.slane %v2146, 4
    %v2148 = vadd.f32 %v2146, %v2147
    %v2149 = vrot.slane %v2148, 2
    %v2150 = vadd.f32 %v2148, %v2149
    %v2151 = vrot.slane %v2150, 1
    %v2152 = vadd.f32 %v2150, %v2151
    %v2153 = vadd.f32 %v2097, %v2143
    %v2154 = vadd.f32 %v2106, %v2152
    %v2155 = vld [vmem:[%s2] sm:$0xff]
    %v2156 = vld [vmem:[%s2 + $0x8] sm:$0xff]
    %v2157 = vld [vmem:[%s2 + $0x10] sm:$0xff]
    %v2158 = vld [vmem:[%s2 + $0x18] sm:$0xff]
    %v2159 = vld [vmem:[%s2 + $0x20] sm:$0xff]
    %v2160 = vld [vmem:[%s2 + $0x28] sm:$0xff]
    %v2161 = vld [vmem:[%s2 + $0x30] sm:$0xff]
    %v2162 = vld [vmem:[%s2 + $0x38] sm:$0xff]
    %v2163 = vld [vmem:[%s2 + $0x40] sm:$0xff]
    %v2164 = vld [vmem:[%s2 + $0x48] sm:$0xff]
    %v2165 = vld [vmem:[%s2 + $0x50] sm:$0xff]
    %v2166 = vld [vmem:[%s2 + $0x58] sm:$0xff]
    %v2167 = vld [vmem:[%s2 + $0x60] sm:$0xff]
    %v2168 = vld [vmem:[%s2 + $0x68] sm:$0xff]
    %v2169 = vld [vmem:[%s2 + $0x70] sm:$0xff]
    %v2170 = vld [vmem:[%s2 + $0x78] sm:$0xff]
    %v2171 = vld [vmem:[%s2 + $0x80] sm:$0xff]
    %v2172 = vld [vmem:[%s2 + $0x88] sm:$0xff]
    %v2173 = vld [vmem:[%s2 + $0x90] sm:$0xff]
    %v2174 = vld [vmem:[%s2 + $0x98] sm:$0xff]
    %v2175 = vld [vmem:[%s2 + $0xa0] sm:$0xff]
    %v2176 = vld [vmem:[%s2 + $0xa8] sm:$0xff]
    %v2177 = vld [vmem:[%s2 + $0xb0] sm:$0xff]
    %v2178 = vld [vmem:[%s2 + $0xb8] sm:$0xff]
    %v2179 = vld [vmem:[%s2 + $0xc0] sm:$0xff]
    %v2180 = vld [vmem:[%s2 + $0xc8] sm:$0xff]
    %v2181 = vld [vmem:[%s2 + $0xd0] sm:$0xff]
    %v2182 = vld [vmem:[%s2 + $0xd8] sm:$0xff]
    %v2183 = vld [vmem:[%s2 + $0xe0] sm:$0xff]
    %v2184 = vld [vmem:[%s2 + $0xe8] sm:$0xff]
    %v2185 = vld [vmem:[%s2 + $0xf0] sm:$0xff]
    %v2186 = vld [vmem:[%s2 + $0xf8] sm:$0xff]
    %2187 = vmatprep.subr.mxu0 0.0
    %2188 = vmatpush1.msra.mxu0 %v2170
    %2189 = vmatprep.subr.mxu0 0.0
    %2190 = vmatpush1.msra.mxu0 %v2169
    %2191 = vmatprep.subr.mxu0 0.0
    %2192 = vmatpush1.msra.mxu0 %v2168
    %2193 = vmatprep.subr.mxu0 0.0
    %2194 = vmatpush1.msra.mxu0 %v2167
    %2195 = vmatprep.subr.mxu0 0.0
    %2196 = vmatpush1.msra.mxu0 %v2166
    %2197 = vmatprep.subr.mxu0 0.0
    %2198 = vmatpush1.msra.mxu0 %v2165
    %2199 = vmatprep.subr.mxu0 0.0
    %2200 = vmatpush1.msra.mxu0 %v2164
    %2201 = vmatprep.subr.mxu0 0.0
    %2202 = vmatpush1.msra.mxu0 %v2163
    %2203 = vmatprep.subr.mxu0 0.0
    %2204 = vmatpush1.msra.mxu0 %v2162
    %2205 = vmatprep.subr.mxu0 0.0
    %2206 = vmatpush1.msra.mxu0 %v2161
    %2207 = vmatprep.subr.mxu0 0.0
    %2208 = vmatpush1.msra.mxu0 %v2160
    %2209 = vmatprep.subr.mxu0 0.0
    %2210 = vmatpush1.msra.mxu0 %v2159
    %2211 = vmatprep.subr.mxu0 0.0
    %2212 = vmatpush1.msra.mxu0 %v2158
    %2213 = vmatprep.subr.mxu0 0.0
    %2214 = vmatpush1.msra.mxu0 %v2157
    %2215 = vmatprep.subr.mxu0 0.0
    %2216 = vmatpush1.msra.mxu0 %v2156
    %2217 = vmatprep.subr.mxu0 0.0
    %2218 = vmatpush1.msra.mxu0 %v2155
    %2219 = vmatprep.subr.mxu0 0.0
    %2220 = vmatpush2.msra.mxu0 %v2186
    %2221 = vmatprep.subr.mxu0 0.0
    %2222 = vmatpush2.msra.mxu0 %v2185
    %2223 = vmatprep.subr.mxu0 0.0
    %2224 = vmatpush2.msra.mxu0 %v2184
    %2225 = vmatprep.subr.mxu0 0.0
    %2226 = vmatpush2.msra.mxu0 %v2183
    %2227 = vmatprep.subr.mxu0 0.0
    %2228 = vmatpush2.msra.mxu0 %v2182
    %2229 = vmatprep.subr.mxu0 0.0
    %2230 = vmatpush2.msra.mxu0 %v2181
    %2231 = vmatprep.subr.mxu0 0.0
    %2232 = vmatpush2.msra.mxu0 %v2180
    %2233 = vmatprep.subr.mxu0 0.0
    %2234 = vmatpush2.msra.mxu0 %v2179
    %2235 = vmatprep.subr.mxu0 0.0
    %2236 = vmatpush2.msra.mxu0 %v2178
    %2237 = vmatprep.subr.mxu0 0.0
    %2238 = vmatpush2.msra.mxu0 %v2177
    %2239 = vmatprep.subr.mxu0 0.0
    %2240 = vmatpush2.msra.mxu0 %v2176
    %2241 = vmatprep.subr.mxu0 0.0
    %2242 = vmatpush2.msra.mxu0 %v2175
    %2243 = vmatprep.subr.mxu0 0.0
    %2244 = vmatpush2.msra.mxu0 %v2174
    %2245 = vmatprep.subr.mxu0 0.0
    %2246 = vmatpush2.msra.mxu0 %v2173
    %2247 = vmatprep.subr.mxu0 0.0
    %2248 = vmatpush2.msra.mxu0 %v2172
    %2249 = vmatprep.subr.mxu0 0.0
    %2250 = vmatpush2.msra.mxu0 %v2171
    %2251 = vmatprep.mubr.f32.mxu0 %v2126
    %2252 = vmatmul.mubr.f32.gmra.mxu0 %v2125
    %v2253 = vpop.f32.mrf.mxu0
    %v2254 = vadd.f32 0.0, %v2253
    %v2255 = vpop.f32.mrf.mxu0
    %2256 = vdwg.mxu0
    %v2257 = vmul.f32 %v2254, 0.00048828125
    %2258 = vmatprep.subr.mxu0 0.0
    %2259 = vmatpush1.msra.mxu0 %v2170
    %2260 = vmatprep.subr.mxu0 0.0
    %2261 = vmatpush1.msra.mxu0 %v2169
    %2262 = vmatprep.subr.mxu0 0.0
    %2263 = vmatpush1.msra.mxu0 %v2168
    %2264 = vmatprep.subr.mxu0 0.0
    %2265 = vmatpush1.msra.mxu0 %v2167
    %2266 = vmatprep.subr.mxu0 0.0
    %2267 = vmatpush1.msra.mxu0 %v2166
    %2268 = vmatprep.subr.mxu0 0.0
    %2269 = vmatpush1.msra.mxu0 %v2165
    %2270 = vmatprep.subr.mxu0 0.0
    %2271 = vmatpush1.msra.mxu0 %v2164
    %2272 = vmatprep.subr.mxu0 0.0
    %2273 = vmatpush1.msra.mxu0 %v2163
    %2274 = vmatprep.subr.mxu0 0.0
    %2275 = vmatpush1.msra.mxu0 %v2162
    %2276 = vmatprep.subr.mxu0 0.0
    %2277 = vmatpush1.msra.mxu0 %v2161
    %2278 = vmatprep.subr.mxu0 0.0
    %2279 = vmatpush1.msra.mxu0 %v2160
    %2280 = vmatprep.subr.mxu0 0.0
    %2281 = vmatpush1.msra.mxu0 %v2159
    %2282 = vmatprep.subr.mxu0 0.0
    %2283 = vmatpush1.msra.mxu0 %v2158
    %2284 = vmatprep.subr.mxu0 0.0
    %2285 = vmatpush1.msra.mxu0 %v2157
    %2286 = vmatprep.subr.mxu0 0.0
    %2287 = vmatpush1.msra.mxu0 %v2156
    %2288 = vmatprep.subr.mxu0 0.0
    %2289 = vmatpush1.msra.mxu0 %v2155
    %2290 = vmatprep.subr.mxu0 0.0
    %2291 = vmatpush2.msra.mxu0 %v2186
    %2292 = vmatprep.subr.mxu0 0.0
    %2293 = vmatpush2.msra.mxu0 %v2185
    %2294 = vmatprep.subr.mxu0 0.0
    %2295 = vmatpush2.msra.mxu0 %v2184
    %2296 = vmatprep.subr.mxu0 0.0
    %2297 = vmatpush2.msra.mxu0 %v2183
    %2298 = vmatprep.subr.mxu0 0.0
    %2299 = vmatpush2.msra.mxu0 %v2182
    %2300 = vmatprep.subr.mxu0 0.0
    %2301 = vmatpush2.msra.mxu0 %v2181
    %2302 = vmatprep.subr.mxu0 0.0
    %2303 = vmatpush2.msra.mxu0 %v2180
    %2304 = vmatprep.subr.mxu0 0.0
    %2305 = vmatpush2.msra.mxu0 %v2179
    %2306 = vmatprep.subr.mxu0 0.0
    %2307 = vmatpush2.msra.mxu0 %v2178
    %2308 = vmatprep.subr.mxu0 0.0
    %2309 = vmatpush2.msra.mxu0 %v2177
    %2310 = vmatprep.subr.mxu0 0.0
    %2311 = vmatpush2.msra.mxu0 %v2176
    %2312 = vmatprep.subr.mxu0 0.0
    %2313 = vmatpush2.msra.mxu0 %v2175
    %2314 = vmatprep.subr.mxu0 0.0
    %2315 = vmatpush2.msra.mxu0 %v2174
    %2316 = vmatprep.subr.mxu0 0.0
    %2317 = vmatpush2.msra.mxu0 %v2173
    %2318 = vmatprep.subr.mxu0 0.0
    %2319 = vmatpush2.msra.mxu0 %v2172
    %2320 = vmatprep.subr.mxu0 0.0
    %2321 = vmatpush2.msra.mxu0 %v2171
    %2322 = vmatprep.mubr.f32.mxu0 %v2154
    %2323 = vmatmul.mubr.f32.gmra.mxu0 %v2153
    %v2324 = vpop.f32.mrf.mxu0
    %v2325 = vadd.f32 0.0, %v2324
    %v2326 = vpop.f32.mrf.mxu0
    %2327 = vdwg.mxu0
    %v2328 = vmul.f32 %v2325, 0.00048828125
    %v2329 = vmul.f32 %v2257, %v2257
    %v2330 = vsub.f32 %v2328, %v2329
    %v2331 = vmax.f32 %v2330, 0.0
    %v2332 = vld [vmem:[#allocation8] sm:$0x1]
    %v2333 = vadd.f32 %v2331, 1e-05
    %v2334 = vrsqrt.pop %v2333
    %v2335 = vmul.f32 %v2332, %v2334
    %v2336 = vld [vmem:[#allocation10] sm:$0x1]
    %v2337 = vmul.f32 %v2257, %v2335
    %v2338 = vsub.f32 %v2336, %v2337
    %v2339 = vld [vmem:[#allocation7] sm:$0xff]
    %v2340 = vld [vmem:[#allocation7 + $0x8] sm:$0xff]
    %vm2341 = vcmask 64512
    %v2343 = vsel %vm2341, %v2335, 0
    %2345 = vmatprep.subr.mxu0 0.0
    %2346 = vmatpush1.msra.mxu0 0.0
    %2347 = vmatprep.subr.mxu0 0.0
    %2348 = vmatpush1.msra.mxu0 0.0
    %2349 = vmatprep.subr.mxu0 0.0
    %2350 = vmatpush1.msra.mxu0 0.0
    %2351 = vmatprep.subr.mxu0 0.0
    %2352 = vmatpush1.msra.mxu0 0.0
    %2353 = vmatprep.subr.mxu0 0.0
    %2354 = vmatpush1.msra.mxu0 0.0
    %2355 = vmatprep.subr.mxu0 0.0
    %2356 = vmatpush1.msra.mxu0 0.0
    %2357 = vmatprep.subr.mxu0 0.0
    %2358 = vmatpush1.msra.mxu0 0.0
    %2359 = vmatprep.subr.mxu0 0.0
    %2360 = vmatpush1.msra.mxu0 0.0
    %2361 = vmatprep.subr.mxu0 0.0
    %2362 = vmatpush1.msra.mxu0 0.0
    %2363 = vmatprep.subr.mxu0 0.0
    %2364 = vmatpush1.msra.mxu0 0.0
    %2365 = vmatprep.subr.mxu0 0.0
    %2366 = vmatpush1.msra.mxu0 0.0
    %2367 = vmatprep.subr.mxu0 0.0
    %2368 = vmatpush1.msra.mxu0 0.0
    %2369 = vmatprep.subr.mxu0 0.0
    %2370 = vmatpush1.msra.mxu0 0.0
    %2371 = vmatprep.subr.mxu0 0.0
    %2372 = vmatpush1.msra.mxu0 0.0
    %2373 = vmatprep.subr.mxu0 0.0
    %2374 = vmatpush1.msra.mxu0 0.0
    %2375 = vmatprep.subr.mxu0 %v2340
    %2376 = vmatpush1.msra.mxu0 %v2339
    %2377 = vmatprep.subr.mxu0 0.0
    %2378 = vmatpush2.msra.mxu0 0.0
    %2379 = vmatprep.subr.mxu0 0.0
    %2380 = vmatpush2.msra.mxu0 0.0
    %2381 = vmatprep.subr.mxu0 0.0
    %2382 = vmatpush2.msra.mxu0 0.0
    %2383 = vmatprep.subr.mxu0 0.0
    %2384 = vmatpush2.msra.mxu0 0.0
    %2385 = vmatprep.subr.mxu0 0.0
    %2386 = vmatpush2.msra.mxu0 0.0
    %2387 = vmatprep.subr.mxu0 0.0
    %2388 = vmatpush2.msra.mxu0 0.0
    %2389 = vmatprep.subr.mxu0 0.0
    %2390 = vmatpush2.msra.mxu0 0.0
    %2391 = vmatprep.subr.mxu0 0.0
    %2392 = vmatpush2.msra.mxu0 0.0
    %2393 = vmatprep.subr.mxu0 0.0
    %2394 = vmatpush2.msra.mxu0 0.0
    %2395 = vmatprep.subr.mxu0 0.0
    %2396 = vmatpush2.msra.mxu0 0.0
    %2397 = vmatprep.subr.mxu0 0.0
    %2398 = vmatpush2.msra.mxu0 0.0
    %2399 = vmatprep.subr.mxu0 0.0
    %2400 = vmatpush2.msra.mxu0 0.0
    %2401 = vmatprep.subr.mxu0 0.0
    %2402 = vmatpush2.msra.mxu0 0.0
    %2403 = vmatprep.subr.mxu0 0.0
    %2404 = vmatpush2.msra.mxu0 0.0
    %2405 = vmatprep.subr.mxu0 0.0
    %2406 = vmatpush2.msra.mxu0 0.0
    %2407 = vmatprep.subr.mxu0 0.0
    %2408 = vmatpush2.msra.mxu0 0.0
    %2409 = vmatprep.mubr.f32.mxu0 0.0
    %2410 = vmatmul.mubr.f32.gmra.mxu0 %v2343
    %v2411 = vpop.f32.mrf.mxu0
    %v2412 = vadd.f32 0.0, %v2411
    %v2413 = vpop.f32.mrf.mxu0
    %v2414 = vadd.f32 0.0, %v2413
    %2415 = vdwg.mxu0
    %v2417 = vsel %vm2341, %v2338, 0
    %2419 = vmatprep.subr.mxu0 0.0
    %2420 = vmatpush1.msra.mxu0 0.0
    %2421 = vmatprep.subr.mxu0 0.0
    %2422 = vmatpush1.msra.mxu0 0.0
    %2423 = vmatprep.subr.mxu0 0.0
    %2424 = vmatpush1.msra.mxu0 0.0
    %2425 = vmatprep.subr.mxu0 0.0
    %2426 = vmatpush1.msra.mxu0 0.0
    %2427 = vmatprep.subr.mxu0 0.0
    %2428 = vmatpush1.msra.mxu0 0.0
    %2429 = vmatprep.subr.mxu0 0.0
    %2430 = vmatpush1.msra.mxu0 0.0
    %2431 = vmatprep.subr.mxu0 0.0
    %2432 = vmatpush1.msra.mxu0 0.0
    %2433 = vmatprep.subr.mxu0 0.0
    %2434 = vmatpush1.msra.mxu0 0.0
    %2435 = vmatprep.subr.mxu0 0.0
    %2436 = vmatpush1.msra.mxu0 0.0
    %2437 = vmatprep.subr.mxu0 0.0
    %2438 = vmatpush1.msra.mxu0 0.0
    %2439 = vmatprep.subr.mxu0 0.0
    %2440 = vmatpush1.msra.mxu0 0.0
    %2441 = vmatprep.subr.mxu0 0.0
    %2442 = vmatpush1.msra.mxu0 0.0
    %2443 = vmatprep.subr.mxu0 0.0
    %2444 = vmatpush1.msra.mxu0 0.0
    %2445 = vmatprep.subr.mxu0 0.0
    %2446 = vmatpush1.msra.mxu0 0.0
    %2447 = vmatprep.subr.mxu0 0.0
    %2448 = vmatpush1.msra.mxu0 0.0
    %2449 = vmatprep.subr.mxu0 %v2340
    %2450 = vmatpush1.msra.mxu0 %v2339
    %2451 = vmatprep.subr.mxu0 0.0
    %2452 = vmatpush2.msra.mxu0 0.0
    %2453 = vmatprep.subr.mxu0 0.0
    %2454 = vmatpush2.msra.mxu0 0.0
    %2455 = vmatprep.subr.mxu0 0.0
    %2456 = vmatpush2.msra.mxu0 0.0
    %2457 = vmatprep.subr.mxu0 0.0
    %2458 = vmatpush2.msra.mxu0 0.0
    %2459 = vmatprep.subr.mxu0 0.0
    %2460 = vmatpush2.msra.mxu0 0.0
    %2461 = vmatprep.subr.mxu0 0.0
    %2462 = vmatpush2.msra.mxu0 0.0
    %2463 = vmatprep.subr.mxu0 0.0
    %2464 = vmatpush2.msra.mxu0 0.0
    %2465 = vmatprep.subr.mxu0 0.0
    %2466 = vmatpush2.msra.mxu0 0.0
    %2467 = vmatprep.subr.mxu0 0.0
    %2468 = vmatpush2.msra.mxu0 0.0
    %2469 = vmatprep.subr.mxu0 0.0
    %2470 = vmatpush2.msra.mxu0 0.0
    %2471 = vmatprep.subr.mxu0 0.0
    %2472 = vmatpush2.msra.mxu0 0.0
    %2473 = vmatprep.subr.mxu0 0.0
    %2474 = vmatpush2.msra.mxu0 0.0
    %2475 = vmatprep.subr.mxu0 0.0
    %2476 = vmatpush2.msra.mxu0 0.0
    %2477 = vmatprep.subr.mxu0 0.0
    %2478 = vmatpush2.msra.mxu0 0.0
    %2479 = vmatprep.subr.mxu0 0.0
    %2480 = vmatpush2.msra.mxu0 0.0
    %2481 = vmatprep.subr.mxu0 0.0
    %2482 = vmatpush2.msra.mxu0 0.0
    %2483 = vmatprep.mubr.f32.mxu0 0.0
    %2484 = vmatmul.mubr.f32.gmra.mxu0 %v2417
    %v2485 = vpop.f32.mrf.mxu0
    %v2486 = vadd.f32 0.0, %v2485
    %v2487 = vpop.f32.mrf.mxu0
    %v2488 = vadd.f32 0.0, %v2487
    %2489 = vdwg.mxu0
    %v2490 = vlaneseq
    %v2491 = vshrl.u32 %v2490, 7
    %v2492 = vsub.s32 0, %v2491
    %v2493 = vrot.slane %v2412, %v2492
    %v2494 = vlaneseq
    %v2495 = vshrl.u32 %v2494, 7
    %v2496 = vsub.s32 0, %v2495
    %v2497 = vrot.slane %v2414, %v2496
    %v2498 = vmul.f32 %v1241, %v2493
    %v2499 = vmul.f32 %v1242, %v2497
    %v2500 = vmul.f32 %v1243, %v2493
    %v2501 = vmul.f32 %v1244, %v2497
    %v2502 = vmul.f32 %v1245, %v2493
    %v2503 = vmul.f32 %v1246, %v2497
    %v2504 = vmul.f32 %v1247, %v2493
    %v2505 = vmul.f32 %v1248, %v2497
    %v2506 = vlaneseq
    %v2507 = vshrl.u32 %v2506, 7
    %v2508 = vsub.s32 0, %v2507
    %v2509 = vrot.slane %v2486, %v2508
    %v2510 = vlaneseq
    %v2511 = vshrl.u32 %v2510, 7
    %v2512 = vsub.s32 0, %v2511
    %v2513 = vrot.slane %v2488, %v2512
    %v2514 = vadd.f32 %v2498, %v2509
    %v2515 = vadd.f32 %v2499, %v2513
    %v2516 = vadd.f32 %v2500, %v2509
    %v2517 = vadd.f32 %v2501, %v2513
    %v2518 = vadd.f32 %v2502, %v2509
    %v2519 = vadd.f32 %v2503, %v2513
    %v2520 = vadd.f32 %v2504, %v2509
    %v2521 = vadd.f32 %v2505, %v2513
    %v2522 = vmax.f32 %v2514, 0.0
    %v2523 = vmax.f32 %v2515, 0.0
    %v2524 = vmax.f32 %v2516, 0.0
    %v2525 = vmax.f32 %v2517, 0.0
    %v2526 = vmax.f32 %v2518, 0.0
    %v2527 = vmax.f32 %v2519, 0.0
    %v2528 = vmax.f32 %v2520, 0.0
    %v2529 = vmax.f32 %v2521, 0.0
    %2538 = vrot.lane.b32.xlu0 %v2522, 120
    %v2539 = vpop.permute.xlu0 %2538
    %2540 = vrot.lane.b32.xlu0 %v2523, 120
    %v2541 = vpop.permute.xlu0 %2540
    %2542 = vrot.lane.b32.xlu0 %v2524, 120
    %v2543 = vpop.permute.xlu0 %2542
    %2544 = vrot.lane.b32.xlu0 %v2525, 120
    %v2545 = vpop.permute.xlu0 %2544
    %2546 = vrot.lane.b32.xlu0 %v2526, 120
    %v2547 = vpop.permute.xlu0 %2546
    %2548 = vrot.lane.b32.xlu0 %v2527, 120
    %v2549 = vpop.permute.xlu0 %2548
    %2550 = vrot.lane.b32.xlu0 %v2528, 120
    %v2551 = vpop.permute.xlu0 %2550
    %2552 = vrot.lane.b32.xlu0 %v2529, 120
    %v2553 = vpop.permute.xlu0 %2552
    %vm2554 = vcmask 982016
    %v2555 = vsel %vm2554, %v2539, %v2541
    %v2556 = vsel %vm2554, %v2543, %v2545
    %v2557 = vsel %vm2554, %v2547, %v2549
    %v2558 = vsel %vm2554, %v2551, %v2553
    %v2567 = vmax.f32 %v2522, %v2555
    %v2568 = vmax.f32 %v2523, %v2541
    %v2569 = vmax.f32 %v2524, %v2556
    %v2570 = vmax.f32 %v2525, %v2545
    %v2571 = vmax.f32 %v2526, %v2557
    %v2572 = vmax.f32 %v2527, %v2549
    %v2573 = vmax.f32 %v2528, %v2558
    %v2574 = vmax.f32 %v2529, %v2553
    %2579 = vrot.lane.b32.xlu0 %v2567, 120
    %v2580 = vpop.permute.xlu0 %2579
    %2581 = vrot.lane.b32.xlu0 %v2569, 120
    %v2582 = vpop.permute.xlu0 %2581
    %2583 = vrot.lane.b32.xlu0 %v2571, 120
    %v2584 = vpop.permute.xlu0 %2583
    %2585 = vrot.lane.b32.xlu0 %v2573, 120
    %v2586 = vpop.permute.xlu0 %2585
    %2591 = vrot.lane.b32.xlu0 %v2567, 112
    %v2592 = vpop.permute.xlu0 %2591
    %2593 = vrot.lane.b32.xlu0 %v2569, 112
    %v2594 = vpop.permute.xlu0 %2593
    %2595 = vrot.lane.b32.xlu0 %v2571, 112
    %v2596 = vpop.permute.xlu0 %2595
    %2597 = vrot.lane.b32.xlu0 %v2573, 112
    %v2598 = vpop.permute.xlu0 %2597
    %2603 = vrot.lane.b32.xlu0 %v2567, 104
    %v2604 = vpop.permute.xlu0 %2603
    %2605 = vrot.lane.b32.xlu0 %v2569, 104
    %v2606 = vpop.permute.xlu0 %2605
    %2607 = vrot.lane.b32.xlu0 %v2571, 104
    %v2608 = vpop.permute.xlu0 %2607
    %2609 = vrot.lane.b32.xlu0 %v2573, 104
    %v2610 = vpop.permute.xlu0 %2609
    %2615 = vrot.lane.b32.xlu0 %v2567, 96
    %v2616 = vpop.permute.xlu0 %2615
    %2617 = vrot.lane.b32.xlu0 %v2569, 96
    %v2618 = vpop.permute.xlu0 %2617
    %2619 = vrot.lane.b32.xlu0 %v2571, 96
    %v2620 = vpop.permute.xlu0 %2619
    %2621 = vrot.lane.b32.xlu0 %v2573, 96
    %v2622 = vpop.permute.xlu0 %2621
    %2627 = vrot.lane.b32.xlu0 %v2567, 88
    %v2628 = vpop.permute.xlu0 %2627
    %2629 = vrot.lane.b32.xlu0 %v2569, 88
    %v2630 = vpop.permute.xlu0 %2629
    %2631 = vrot.lane.b32.xlu0 %v2571, 88
    %v2632 = vpop.permute.xlu0 %2631
    %2633 = vrot.lane.b32.xlu0 %v2573, 88
    %v2634 = vpop.permute.xlu0 %2633
    %2639 = vrot.lane.b32.xlu0 %v2567, 80
    %v2640 = vpop.permute.xlu0 %2639
    %2641 = vrot.lane.b32.xlu0 %v2569, 80
    %v2642 = vpop.permute.xlu0 %2641
    %2643 = vrot.lane.b32.xlu0 %v2571, 80
    %v2644 = vpop.permute.xlu0 %2643
    %2645 = vrot.lane.b32.xlu0 %v2573, 80
    %v2646 = vpop.permute.xlu0 %2645
    %2651 = vrot.lane.b32.xlu0 %v2567, 72
    %v2652 = vpop.permute.xlu0 %2651
    %2653 = vrot.lane.b32.xlu0 %v2569, 72
    %v2654 = vpop.permute.xlu0 %2653
    %2655 = vrot.lane.b32.xlu0 %v2571, 72
    %v2656 = vpop.permute.xlu0 %2655
    %2657 = vrot.lane.b32.xlu0 %v2573, 72
    %v2658 = vpop.permute.xlu0 %2657
    %2667 = vrot.lane.b32.xlu0 %v2568, 64
    %v2668 = vpop.permute.xlu0 %2667
    %2669 = vrot.lane.b32.xlu0 %v2570, 64
    %v2670 = vpop.permute.xlu0 %2669
    %2671 = vrot.lane.b32.xlu0 %v2572, 64
    %v2672 = vpop.permute.xlu0 %2671
    %2673 = vrot.lane.b32.xlu0 %v2574, 64
    %v2674 = vpop.permute.xlu0 %2673
    %2679 = vrot.lane.b32.xlu0 %v2568, 56
    %v2680 = vpop.permute.xlu0 %2679
    %2681 = vrot.lane.b32.xlu0 %v2570, 56
    %v2682 = vpop.permute.xlu0 %2681
    %2683 = vrot.lane.b32.xlu0 %v2572, 56
    %v2684 = vpop.permute.xlu0 %2683
    %2685 = vrot.lane.b32.xlu0 %v2574, 56
    %v2686 = vpop.permute.xlu0 %2685
    %2691 = vrot.lane.b32.xlu0 %v2568, 48
    %v2692 = vpop.permute.xlu0 %2691
    %2693 = vrot.lane.b32.xlu0 %v2570, 48
    %v2694 = vpop.permute.xlu0 %2693
    %2695 = vrot.lane.b32.xlu0 %v2572, 48
    %v2696 = vpop.permute.xlu0 %2695
    %2697 = vrot.lane.b32.xlu0 %v2574, 48
    %v2698 = vpop.permute.xlu0 %2697
    %2703 = vrot.lane.b32.xlu0 %v2568, 40
    %v2704 = vpop.permute.xlu0 %2703
    %2705 = vrot.lane.b32.xlu0 %v2570, 40
    %v2706 = vpop.permute.xlu0 %2705
    %2707 = vrot.lane.b32.xlu0 %v2572, 40
    %v2708 = vpop.permute.xlu0 %2707
    %2709 = vrot.lane.b32.xlu0 %v2574, 40
    %v2710 = vpop.permute.xlu0 %2709
    %2715 = vrot.lane.b32.xlu0 %v2568, 32
    %v2716 = vpop.permute.xlu0 %2715
    %2717 = vrot.lane.b32.xlu0 %v2570, 32
    %v2718 = vpop.permute.xlu0 %2717
    %2719 = vrot.lane.b32.xlu0 %v2572, 32
    %v2720 = vpop.permute.xlu0 %2719
    %2721 = vrot.lane.b32.xlu0 %v2574, 32
    %v2722 = vpop.permute.xlu0 %2721
    %2727 = vrot.lane.b32.xlu0 %v2568, 24
    %v2728 = vpop.permute.xlu0 %2727
    %2729 = vrot.lane.b32.xlu0 %v2570, 24
    %v2730 = vpop.permute.xlu0 %2729
    %2731 = vrot.lane.b32.xlu0 %v2572, 24
    %v2732 = vpop.permute.xlu0 %2731
    %2733 = vrot.lane.b32.xlu0 %v2574, 24
    %v2734 = vpop.permute.xlu0 %2733
    %2739 = vrot.lane.b32.xlu0 %v2568, 16
    %v2740 = vpop.permute.xlu0 %2739
    %2741 = vrot.lane.b32.xlu0 %v2570, 16
    %v2742 = vpop.permute.xlu0 %2741
    %2743 = vrot.lane.b32.xlu0 %v2572, 16
    %v2744 = vpop.permute.xlu0 %2743
    %2745 = vrot.lane.b32.xlu0 %v2574, 16
    %v2746 = vpop.permute.xlu0 %2745
    %2751 = vrot.lane.b32.xlu0 %v2568, 8
    %v2752 = vpop.permute.xlu0 %2751
    %2753 = vrot.lane.b32.xlu0 %v2570, 8
    %v2754 = vpop.permute.xlu0 %2753
    %2755 = vrot.lane.b32.xlu0 %v2572, 8
    %v2756 = vpop.permute.xlu0 %2755
    %2757 = vrot.lane.b32.xlu0 %v2574, 8
    %v2758 = vpop.permute.xlu0 %2757
    %v2763 = vsel %vm2341, %v2567, %v2580
    %v2764 = vsel %vm2341, %v2569, %v2582
    %v2765 = vsel %vm2341, %v2571, %v2584
    %v2766 = vsel %vm2341, %v2573, %v2586
    %vm2767 = vcmask 130048
    %v2768 = vsel %vm2767, %v2763, %v2592
    %v2769 = vsel %vm2767, %v2764, %v2594
    %v2770 = vsel %vm2767, %v2765, %v2596
    %v2771 = vsel %vm2767, %v2766, %v2598
    %vm2772 = vcmask 195584
    %v2773 = vsel %vm2772, %v2768, %v2604
    %v2774 = vsel %vm2772, %v2769, %v2606
    %v2775 = vsel %vm2772, %v2770, %v2608
    %v2776 = vsel %vm2772, %v2771, %v2610
    %vm2777 = vcmask 261120
    %v2778 = vsel %vm2777, %v2773, %v2616
    %v2779 = vsel %vm2777, %v2774, %v2618
    %v2780 = vsel %vm2777, %v2775, %v2620
    %v2781 = vsel %vm2777, %v2776, %v2622
    %v2782 = vsel %vm480, %v2778, %v2628
    %v2783 = vsel %vm480, %v2779, %v2630
    %v2784 = vsel %vm480, %v2780, %v2632
    %v2785 = vsel %vm480, %v2781, %v2634
    %vm2786 = vcmask 392192
    %v2787 = vsel %vm2786, %v2782, %v2640
    %v2788 = vsel %vm2786, %v2783, %v2642
    %v2789 = vsel %vm2786, %v2784, %v2644
    %v2790 = vsel %vm2786, %v2785, %v2646
    %vm2791 = vcmask 457728
    %v2792 = vsel %vm2791, %v2787, %v2652
    %v2793 = vsel %vm2791, %v2788, %v2654
    %v2794 = vsel %vm2791, %v2789, %v2656
    %v2795 = vsel %vm2791, %v2790, %v2658
    %vm2796 = vcmask 523264
    %v2797 = vsel %vm2796, %v2792, %v2668
    %v2798 = vsel %vm2796, %v2793, %v2670
    %v2799 = vsel %vm2796, %v2794, %v2672
    %v2800 = vsel %vm2796, %v2795, %v2674
    %vm2801 = vcmask 588800
    %v2802 = vsel %vm2801, %v2797, %v2680
    %v2803 = vsel %vm2801, %v2798, %v2682
    %v2804 = vsel %vm2801, %v2799, %v2684
    %v2805 = vsel %vm2801, %v2800, %v2686
    %vm2806 = vcmask 654336
    %v2807 = vsel %vm2806, %v2802, %v2692
    %v2808 = vsel %vm2806, %v2803, %v2694
    %v2809 = vsel %vm2806, %v2804, %v2696
    %v2810 = vsel %vm2806, %v2805, %v2698
    %vm2811 = vcmask 719872
    %v2812 = vsel %vm2811, %v2807, %v2704
    %v2813 = vsel %vm2811, %v2808, %v2706
    %v2814 = vsel %vm2811, %v2809, %v2708
    %v2815 = vsel %vm2811, %v2810, %v2710
    %vm2816 = vcmask 785408
    %v2817 = vsel %vm2816, %v2812, %v2716
    %v2818 = vsel %vm2816, %v2813, %v2718
    %v2819 = vsel %vm2816, %v2814, %v2720
    %v2820 = vsel %vm2816, %v2815, %v2722
    %vm2821 = vcmask 850944
    %v2822 = vsel %vm2821, %v2817, %v2728
    %v2823 = vsel %vm2821, %v2818, %v2730
    %v2824 = vsel %vm2821, %v2819, %v2732
    %v2825 = vsel %vm2821, %v2820, %v2734
    %vm2826 = vcmask 916480
    %v2827 = vsel %vm2826, %v2822, %v2740
    %v2828 = vsel %vm2826, %v2823, %v2742
    %v2829 = vsel %vm2826, %v2824, %v2744
    %v2830 = vsel %vm2826, %v2825, %v2746
    %v2831 = vsel %vm2554, %v2827, %v2752
    %v2832 = vsel %vm2554, %v2828, %v2754
    %v2833 = vsel %vm2554, %v2829, %v2756
    %v2834 = vsel %vm2554, %v2830, %v2758
    %v2839 = vrot.slane %v2831, 1
    %v2840 = vrot.slane %v2832, 1
    %v2841 = vsel %vm470, %v2839, %v2840
    %v2842 = vrot.slane %v2833, 1
    %v2843 = vsel %vm470, %v2840, %v2842
    %v2844 = vrot.slane %v2834, 1
    %v2845 = vsel %vm470, %v2842, %v2844
    %v2850 = vmax.f32 %v2831, %v2841
    %v2851 = vmax.f32 %v2832, %v2843
    %v2852 = vmax.f32 %v2833, %v2845
    %v2853 = vmax.f32 %v2834, %v2844
    %v2855 = vrot.slane %v2850, 1
    %v2857 = vrot.slane %v2850, 2
    %v2859 = vrot.slane %v2850, 3
    %v2862 = vrot.slane %v2851, 4
    %v2864 = vrot.slane %v2851, 5
    %v2866 = vrot.slane %v2851, 6
    %v2868 = vrot.slane %v2851, 7
    %v2871 = vrot.slane %v2852, 1
    %v2873 = vrot.slane %v2852, 2
    %v2875 = vrot.slane %v2852, 3
    %v2878 = vrot.slane %v2853, 4
    %v2880 = vrot.slane %v2853, 5
    %v2882 = vrot.slane %v2853, 6
    %v2884 = vrot.slane %v2853, 7
    %vm2886 = vcmask 1040384
    %v2887 = vsel %vm2886, %v2850, %v2855
    %v2888 = vsel %vm1134, %v2887, %v2857
    %v2889 = vsel %vm456, %v2888, %v2859
    %v2890 = vsel %vm905, %v2889, %v2862
    %v2891 = vsel %vm790, %v2890, %v2864
    %v2892 = vsel %vm675, %v2891, %v2866
    %v2893 = vsel %vm470, %v2892, %v2868
    %v2894 = vsel %vm2886, %v2852, %v2871
    %v2895 = vsel %vm1134, %v2894, %v2873
    %v2896 = vsel %vm456, %v2895, %v2875
    %v2897 = vsel %vm905, %v2896, %v2878
    %v2898 = vsel %vm790, %v2897, %v2880
    %v2899 = vsel %vm675, %v2898, %v2882
    %v2900 = vsel %vm470, %v2899, %v2884
    %v2901 = vmul.f32 %v2055, %v2493
    %v2902 = vmul.f32 %v2056, %v2497
    %v2903 = vmul.f32 %v2057, %v2493
    %v2904 = vmul.f32 %v2058, %v2497
    %v2905 = vmul.f32 %v2059, %v2493
    %v2906 = vmul.f32 %v2060, %v2497
    %v2907 = vmul.f32 %v2061, %v2493
    %v2908 = vmul.f32 %v2062, %v2497
    %v2909 = vadd.f32 %v2901, %v2509
    %v2910 = vadd.f32 %v2902, %v2513
    %v2911 = vadd.f32 %v2903, %v2509
    %v2912 = vadd.f32 %v2904, %v2513
    %v2913 = vadd.f32 %v2905, %v2509
    %v2914 = vadd.f32 %v2906, %v2513
    %v2915 = vadd.f32 %v2907, %v2509
    %v2916 = vadd.f32 %v2908, %v2513
    %v2917 = vmax.f32 %v2909, 0.0
    %v2918 = vmax.f32 %v2910, 0.0
    %v2919 = vmax.f32 %v2911, 0.0
    %v2920 = vmax.f32 %v2912, 0.0
    %v2921 = vmax.f32 %v2913, 0.0
    %v2922 = vmax.f32 %v2914, 0.0
    %v2923 = vmax.f32 %v2915, 0.0
    %v2924 = vmax.f32 %v2916, 0.0
    %2933 = vrot.lane.b32.xlu0 %v2917, 120
    %v2934 = vpop.permute.xlu0 %2933
    %2935 = vrot.lane.b32.xlu0 %v2918, 120
    %v2936 = vpop.permute.xlu0 %2935
    %2937 = vrot.lane.b32.xlu0 %v2919, 120
    %v2938 = vpop.permute.xlu0 %2937
    %2939 = vrot.lane.b32.xlu0 %v2920, 120
    %v2940 = vpop.permute.xlu0 %2939
    %2941 = vrot.lane.b32.xlu0 %v2921, 120
    %v2942 = vpop.permute.xlu0 %2941
    %2943 = vrot.lane.b32.xlu0 %v2922, 120
    %v2944 = vpop.permute.xlu0 %2943
    %2945 = vrot.lane.b32.xlu0 %v2923, 120
    %v2946 = vpop.permute.xlu0 %2945
    %2947 = vrot.lane.b32.xlu0 %v2924, 120
    %v2948 = vpop.permute.xlu0 %2947
    %v2949 = vsel %vm2554, %v2934, %v2936
    %v2950 = vsel %vm2554, %v2938, %v2940
    %v2951 = vsel %vm2554, %v2942, %v2944
    %v2952 = vsel %vm2554, %v2946, %v2948
    %v2961 = vmax.f32 %v2917, %v2949
    %v2962 = vmax.f32 %v2918, %v2936
    %v2963 = vmax.f32 %v2919, %v2950
    %v2964 = vmax.f32 %v2920, %v2940
    %v2965 = vmax.f32 %v2921, %v2951
    %v2966 = vmax.f32 %v2922, %v2944
    %v2967 = vmax.f32 %v2923, %v2952
    %v2968 = vmax.f32 %v2924, %v2948
    %2973 = vrot.lane.b32.xlu0 %v2961, 120
    %v2974 = vpop.permute.xlu0 %2973
    %2975 = vrot.lane.b32.xlu0 %v2963, 120
    %v2976 = vpop.permute.xlu0 %2975
    %2977 = vrot.lane.b32.xlu0 %v2965, 120
    %v2978 = vpop.permute.xlu0 %2977
    %2979 = vrot.lane.b32.xlu0 %v2967, 120
    %v2980 = vpop.permute.xlu0 %2979
    %2985 = vrot.lane.b32.xlu0 %v2961, 112
    %v2986 = vpop.permute.xlu0 %2985
    %2987 = vrot.lane.b32.xlu0 %v2963, 112
    %v2988 = vpop.permute.xlu0 %2987
    %2989 = vrot.lane.b32.xlu0 %v2965, 112
    %v2990 = vpop.permute.xlu0 %2989
    %2991 = vrot.lane.b32.xlu0 %v2967, 112
    %v2992 = vpop.permute.xlu0 %2991
    %2997 = vrot.lane.b32.xlu0 %v2961, 104
    %v2998 = vpop.permute.xlu0 %2997
    %2999 = vrot.lane.b32.xlu0 %v2963, 104
    %v3000 = vpop.permute.xlu0 %2999
    %3001 = vrot.lane.b32.xlu0 %v2965, 104
    %v3002 = vpop.permute.xlu0 %3001
    %3003 = vrot.lane.b32.xlu0 %v2967, 104
    %v3004 = vpop.permute.xlu0 %3003
    %3009 = vrot.lane.b32.xlu0 %v2961, 96
    %v3010 = vpop.permute.xlu0 %3009
    %3011 = vrot.lane.b32.xlu0 %v2963, 96
    %v3012 = vpop.permute.xlu0 %3011
    %3013 = vrot.lane.b32.xlu0 %v2965, 96
    %v3014 = vpop.permute.xlu0 %3013
    %3015 = vrot.lane.b32.xlu0 %v2967, 96
    %v3016 = vpop.permute.xlu0 %3015
    %3021 = vrot.lane.b32.xlu0 %v2961, 88
    %v3022 = vpop.permute.xlu0 %3021
    %3023 = vrot.lane.b32.xlu0 %v2963, 88
    %v3024 = vpop.permute.xlu0 %3023
    %3025 = vrot.lane.b32.xlu0 %v2965, 88
    %v3026 = vpop.permute.xlu0 %3025
    %3027 = vrot.lane.b32.xlu0 %v2967, 88
    %v3028 = vpop.permute.xlu0 %3027
    %3033 = vrot.lane.b32.xlu0 %v2961, 80
    %v3034 = vpop.permute.xlu0 %3033
    %3035 = vrot.lane.b32.xlu0 %v2963, 80
    %v3036 = vpop.permute.xlu0 %3035
    %3037 = vrot.lane.b32.xlu0 %v2965, 80
    %v3038 = vpop.permute.xlu0 %3037
    %3039 = vrot.lane.b32.xlu0 %v2967, 80
    %v3040 = vpop.permute.xlu0 %3039
    %3045 = vrot.lane.b32.xlu0 %v2961, 72
    %v3046 = vpop.permute.xlu0 %3045
    %3047 = vrot.lane.b32.xlu0 %v2963, 72
    %v3048 = vpop.permute.xlu0 %3047
    %3049 = vrot.lane.b32.xlu0 %v2965, 72
    %v3050 = vpop.permute.xlu0 %3049
    %3051 = vrot.lane.b32.xlu0 %v2967, 72
    %v3052 = vpop.permute.xlu0 %3051
    %3061 = vrot.lane.b32.xlu0 %v2962, 64
    %v3062 = vpop.permute.xlu0 %3061
    %3063 = vrot.lane.b32.xlu0 %v2964, 64
    %v3064 = vpop.permute.xlu0 %3063
    %3065 = vrot.lane.b32.xlu0 %v2966, 64
    %v3066 = vpop.permute.xlu0 %3065
    %3067 = vrot.lane.b32.xlu0 %v2968, 64
    %v3068 = vpop.permute.xlu0 %3067
    %3073 = vrot.lane.b32.xlu0 %v2962, 56
    %v3074 = vpop.permute.xlu0 %3073
    %3075 = vrot.lane.b32.xlu0 %v2964, 56
    %v3076 = vpop.permute.xlu0 %3075
    %3077 = vrot.lane.b32.xlu0 %v2966, 56
    %v3078 = vpop.permute.xlu0 %3077
    %3079 = vrot.lane.b32.xlu0 %v2968, 56
    %v3080 = vpop.permute.xlu0 %3079
    %3085 = vrot.lane.b32.xlu0 %v2962, 48
    %v3086 = vpop.permute.xlu0 %3085
    %3087 = vrot.lane.b32.xlu0 %v2964, 48
    %v3088 = vpop.permute.xlu0 %3087
    %3089 = vrot.lane.b32.xlu0 %v2966, 48
    %v3090 = vpop.permute.xlu0 %3089
    %3091 = vrot.lane.b32.xlu0 %v2968, 48
    %v3092 = vpop.permute.xlu0 %3091
    %3097 = vrot.lane.b32.xlu0 %v2962, 40
    %v3098 = vpop.permute.xlu0 %3097
    %3099 = vrot.lane.b32.xlu0 %v2964, 40
    %v3100 = vpop.permute.xlu0 %3099
    %3101 = vrot.lane.b32.xlu0 %v2966, 40
    %v3102 = vpop.permute.xlu0 %3101
    %3103 = vrot.lane.b32.xlu0 %v2968, 40
    %v3104 = vpop.permute.xlu0 %3103
    %3109 = vrot.lane.b32.xlu0 %v2962, 32
    %v3110 = vpop.permute.xlu0 %3109
    %3111 = vrot.lane.b32.xlu0 %v2964, 32
    %v3112 = vpop.permute.xlu0 %3111
    %3113 = vrot.lane.b32.xlu0 %v2966, 32
    %v3114 = vpop.permute.xlu0 %3113
    %3115 = vrot.lane.b32.xlu0 %v2968, 32
    %v3116 = vpop.permute.xlu0 %3115
    %3121 = vrot.lane.b32.xlu0 %v2962, 24
    %v3122 = vpop.permute.xlu0 %3121
    %3123 = vrot.lane.b32.xlu0 %v2964, 24
    %v3124 = vpop.permute.xlu0 %3123
    %3125 = vrot.lane.b32.xlu0 %v2966, 24
    %v3126 = vpop.permute.xlu0 %3125
    %3127 = vrot.lane.b32.xlu0 %v2968, 24
    %v3128 = vpop.permute.xlu0 %3127
    %3133 = vrot.lane.b32.xlu0 %v2962, 16
    %v3134 = vpop.permute.xlu0 %3133
    %3135 = vrot.lane.b32.xlu0 %v2964, 16
    %v3136 = vpop.permute.xlu0 %3135
    %3137 = vrot.lane.b32.xlu0 %v2966, 16
    %v3138 = vpop.permute.xlu0 %3137
    %3139 = vrot.lane.b32.xlu0 %v2968, 16
    %v3140 = vpop.permute.xlu0 %3139
    %3145 = vrot.lane.b32.xlu0 %v2962, 8
    %v3146 = vpop.permute.xlu0 %3145
    %3147 = vrot.lane.b32.xlu0 %v2964, 8
    %v3148 = vpop.permute.xlu0 %3147
    %3149 = vrot.lane.b32.xlu0 %v2966, 8
    %v3150 = vpop.permute.xlu0 %3149
    %3151 = vrot.lane.b32.xlu0 %v2968, 8
    %v3152 = vpop.permute.xlu0 %3151
    %v3157 = vsel %vm2341, %v2961, %v2974
    %v3158 = vsel %vm2341, %v2963, %v2976
    %v3159 = vsel %vm2341, %v2965, %v2978
    %v3160 = vsel %vm2341, %v2967, %v2980
    %v3161 = vsel %vm2767, %v3157, %v2986
    %v3162 = vsel %vm2767, %v3158, %v2988
    %v3163 = vsel %vm2767, %v3159, %v2990
    %v3164 = vsel %vm2767, %v3160, %v2992
    %v3165 = vsel %vm2772, %v3161, %v2998
    %v3166 = vsel %vm2772, %v3162, %v3000
    %v3167 = vsel %vm2772, %v3163, %v3002
    %v3168 = vsel %vm2772, %v3164, %v3004
    %v3169 = vsel %vm2777, %v3165, %v3010
    %v3170 = vsel %vm2777, %v3166, %v3012
    %v3171 = vsel %vm2777, %v3167, %v3014
    %v3172 = vsel %vm2777, %v3168, %v3016
    %v3173 = vsel %vm480, %v3169, %v3022
    %v3174 = vsel %vm480, %v3170, %v3024
    %v3175 = vsel %vm480, %v3171, %v3026
    %v3176 = vsel %vm480, %v3172, %v3028
    %v3177 = vsel %vm2786, %v3173, %v3034
    %v3178 = vsel %vm2786, %v3174, %v3036
    %v3179 = vsel %vm2786, %v3175, %v3038
    %v3180 = vsel %vm2786, %v3176, %v3040
    %v3181 = vsel %vm2791, %v3177, %v3046
    %v3182 = vsel %vm2791, %v3178, %v3048
    %v3183 = vsel %vm2791, %v3179, %v3050
    %v3184 = vsel %vm2791, %v3180, %v3052
    %v3185 = vsel %vm2796, %v3181, %v3062
    %v3186 = vsel %vm2796, %v3182, %v3064
    %v3187 = vsel %vm2796, %v3183, %v3066
    %v3188 = vsel %vm2796, %v3184, %v3068
    %v3189 = vsel %vm2801, %v3185, %v3074
    %v3190 = vsel %vm2801, %v3186, %v3076
    %v3191 = vsel %vm2801, %v3187, %v3078
    %v3192 = vsel %vm2801, %v3188, %v3080
    %v3193 = vsel %vm2806, %v3189, %v3086
    %v3194 = vsel %vm2806, %v3190, %v3088
    %v3195 = vsel %vm2806, %v3191, %v3090
    %v3196 = vsel %vm2806, %v3192, %v3092
    %v3197 = vsel %vm2811, %v3193, %v3098
    %v3198 = vsel %vm2811, %v3194, %v3100
    %v3199 = vsel %vm2811, %v3195, %v3102
    %v3200 = vsel %vm2811, %v3196, %v3104
    %v3201 = vsel %vm2816, %v3197, %v3110
    %v3202 = vsel %vm2816, %v3198, %v3112
    %v3203 = vsel %vm2816, %v3199, %v3114
    %v3204 = vsel %vm2816, %v3200, %v3116
    %v3205 = vsel %vm2821, %v3201, %v3122
    %v3206 = vsel %vm2821, %v3202, %v3124
    %v3207 = vsel %vm2821, %v3203, %v3126
    %v3208 = vsel %vm2821, %v3204, %v3128
    %v3209 = vsel %vm2826, %v3205, %v3134
    %v3210 = vsel %vm2826, %v3206, %v3136
    %v3211 = vsel %vm2826, %v3207, %v3138
    %v3212 = vsel %vm2826, %v3208, %v3140
    %v3213 = vsel %vm2554, %v3209, %v3146
    %v3214 = vsel %vm2554, %v3210, %v3148
    %v3215 = vsel %vm2554, %v3211, %v3150
    %v3216 = vsel %vm2554, %v3212, %v3152
    %v3221 = vrot.slane %v3213, 1
    %v3222 = vrot.slane %v3214, 1
    %v3223 = vsel %vm470, %v3221, %v3222
    %v3224 = vrot.slane %v3215, 1
    %v3225 = vsel %vm470, %v3222, %v3224
    %v3226 = vrot.slane %v3216, 1
    %v3227 = vsel %vm470, %v3224, %v3226
    %v3232 = vmax.f32 %v3213, %v3223
    %v3233 = vmax.f32 %v3214, %v3225
    %v3234 = vmax.f32 %v3215, %v3227
    %v3235 = vmax.f32 %v3216, %v3226
    %v3237 = vrot.slane %v3232, 1
    %v3239 = vrot.slane %v3232, 2
    %v3241 = vrot.slane %v3232, 3
    %v3244 = vrot.slane %v3233, 4
    %v3246 = vrot.slane %v3233, 5
    %v3248 = vrot.slane %v3233, 6
    %v3250 = vrot.slane %v3233, 7
    %v3253 = vrot.slane %v3234, 1
    %v3255 = vrot.slane %v3234, 2
    %v3257 = vrot.slane %v3234, 3
    %v3260 = vrot.slane %v3235, 4
    %v3262 = vrot.slane %v3235, 5
    %v3264 = vrot.slane %v3235, 6
    %v3266 = vrot.slane %v3235, 7
    %v3268 = vsel %vm2886, %v3232, %v3237
    %v3269 = vsel %vm1134, %v3268, %v3239
    %v3270 = vsel %vm456, %v3269, %v3241
    %v3271 = vsel %vm905, %v3270, %v3244
    %v3272 = vsel %vm790, %v3271, %v3246
    %v3273 = vsel %vm675, %v3272, %v3248
    %v3274 = vsel %vm470, %v3273, %v3250
    %v3275 = vsel %vm2886, %v3234, %v3253
    %v3276 = vsel %vm1134, %v3275, %v3255
    %v3277 = vsel %vm456, %v3276, %v3257
    %v3278 = vsel %vm905, %v3277, %v3260
    %v3279 = vsel %vm790, %v3278, %v3262
    %v3280 = vsel %vm675, %v3279, %v3264
    %v3281 = vsel %vm470, %v3280, %v3266
    %v3282 = vld [vmem:[#allocation11] sm:$0xff]
    %v3283 = vld [vmem:[#allocation11 + $0x8] sm:$0xff]
    %v3284 = vld [vmem:[#allocation11 + $0x10] sm:$0xff]
    %v3285 = vld [vmem:[#allocation11 + $0x18] sm:$0xff]
    %v3286 = vld [vmem:[#allocation11 + $0x20] sm:$0xff]
    %v3287 = vld [vmem:[#allocation11 + $0x28] sm:$0xff]
    %v3288 = vld [vmem:[#allocation11 + $0x30] sm:$0xff]
    %v3289 = vld [vmem:[#allocation11 + $0x38] sm:$0xff]
    %v3290 = vld [vmem:[#allocation11 + $0x40] sm:$0xff]
    %v3291 = vld [vmem:[#allocation11 + $0x48] sm:$0xff]
    %v3292 = vld [vmem:[#allocation11 + $0x50] sm:$0xff]
    %v3293 = vld [vmem:[#allocation11 + $0x58] sm:$0xff]
    %v3294 = vld [vmem:[#allocation11 + $0x60] sm:$0xff]
    %v3295 = vld [vmem:[#allocation11 + $0x68] sm:$0xff]
    %v3296 = vld [vmem:[#allocation11 + $0x70] sm:$0xff]
    %v3297 = vld [vmem:[#allocation11 + $0x78] sm:$0xff]
    %v3298 = vld [vmem:[#allocation11 + $0x80] sm:$0xff]
    %v3299 = vld [vmem:[#allocation11 + $0x88] sm:$0xff]
    %v3300 = vld [vmem:[#allocation11 + $0x90] sm:$0xff]
    %v3301 = vld [vmem:[#allocation11 + $0x98] sm:$0xff]
    %v3302 = vld [vmem:[#allocation11 + $0xa0] sm:$0xff]
    %v3303 = vld [vmem:[#allocation11 + $0xa8] sm:$0xff]
    %v3304 = vld [vmem:[#allocation11 + $0xb0] sm:$0xff]
    %v3305 = vld [vmem:[#allocation11 + $0xb8] sm:$0xff]
    %v3306 = vld [vmem:[#allocation11 + $0xc0] sm:$0xff]
    %v3307 = vld [vmem:[#allocation11 + $0xc8] sm:$0xff]
    %v3308 = vld [vmem:[#allocation11 + $0xd0] sm:$0xff]
    %v3309 = vld [vmem:[#allocation11 + $0xd8] sm:$0xff]
    %v3310 = vld [vmem:[#allocation11 + $0xe0] sm:$0xff]
    %v3311 = vld [vmem:[#allocation11 + $0xe8] sm:$0xff]
    %v3312 = vld [vmem:[#allocation11 + $0xf0] sm:$0xff]
    %v3313 = vld [vmem:[#allocation11 + $0xf8] sm:$0xff]
    %v3314 = vld [vmem:[#allocation11 + $0x100] sm:$0xff]
    %v3315 = vld [vmem:[#allocation11 + $0x108] sm:$0xff]
    %v3316 = vld [vmem:[#allocation11 + $0x110] sm:$0xff]
    %v3317 = vld [vmem:[#allocation11 + $0x118] sm:$0xff]
    %v3318 = vld [vmem:[#allocation11 + $0x120] sm:$0xff]
    %v3319 = vld [vmem:[#allocation11 + $0x128] sm:$0xff]
    %v3320 = vld [vmem:[#allocation11 + $0x130] sm:$0xff]
    %v3321 = vld [vmem:[#allocation11 + $0x138] sm:$0xff]
    %v3322 = vld [vmem:[#allocation11 + $0x140] sm:$0xff]
    %v3323 = vld [vmem:[#allocation11 + $0x148] sm:$0xff]
    %v3324 = vld [vmem:[#allocation11 + $0x150] sm:$0xff]
    %v3325 = vld [vmem:[#allocation11 + $0x158] sm:$0xff]
    %s3326 = scalar_lea.vmem [#allocation11], 352
    %v3327 = vld [vmem:[%s3326] sm:$0xff]
    %v3328 = vld [vmem:[%s3326 + $0x8] sm:$0xff]
    %v3329 = vld [vmem:[%s3326 + $0x10] sm:$0xff]
    %v3330 = vld [vmem:[%s3326 + $0x18] sm:$0xff]
    %v3331 = vld [vmem:[%s3326 + $0x20] sm:$0xff]
    %v3332 = vld [vmem:[%s3326 + $0x28] sm:$0xff]
    %v3333 = vld [vmem:[%s3326 + $0x30] sm:$0xff]
    %v3334 = vld [vmem:[%s3326 + $0x38] sm:$0xff]
    %v3335 = vld [vmem:[%s3326 + $0x40] sm:$0xff]
    %v3336 = vld [vmem:[%s3326 + $0x48] sm:$0xff]
    %v3337 = vld [vmem:[%s3326 + $0x50] sm:$0xff]
    %v3338 = vld [vmem:[%s3326 + $0x58] sm:$0xff]
    %v3339 = vld [vmem:[%s3326 + $0x60] sm:$0xff]
    %v3340 = vld [vmem:[%s3326 + $0x68] sm:$0xff]
    %v3341 = vld [vmem:[%s3326 + $0x70] sm:$0xff]
    %v3342 = vld [vmem:[%s3326 + $0x78] sm:$0xff]
    %v3343 = vld [vmem:[%s3326 + $0x80] sm:$0xff]
    %v3344 = vld [vmem:[%s3326 + $0x88] sm:$0xff]
    %v3345 = vld [vmem:[%s3326 + $0x90] sm:$0xff]
    %v3346 = vld [vmem:[%s3326 + $0x98] sm:$0xff]
    %v3347 = vld [vmem:[%s3326 + $0xa0] sm:$0xff]
    %v3348 = vld [vmem:[%s3326 + $0xa8] sm:$0xff]
    %v3349 = vld [vmem:[%s3326 + $0xb0] sm:$0xff]
    %v3350 = vld [vmem:[%s3326 + $0xb8] sm:$0xff]
    %v3351 = vld [vmem:[%s3326 + $0xc0] sm:$0xff]
    %v3352 = vld [vmem:[%s3326 + $0xc8] sm:$0xff]
    %v3353 = vld [vmem:[%s3326 + $0xd0] sm:$0xff]
    %v3354 = vld [vmem:[%s3326 + $0xd8] sm:$0xff]
    %v3355 = vld [vmem:[%s3326 + $0xe0] sm:$0xff]
    %v3356 = vld [vmem:[%s3326 + $0xe8] sm:$0xff]
    %v3357 = vld [vmem:[%s3326 + $0xf0] sm:$0xff]
    %v3358 = vld [vmem:[%s3326 + $0xf8] sm:$0xff]
    %v3359 = vld [vmem:[%s3326 + $0x100] sm:$0xff]
    %v3360 = vld [vmem:[%s3326 + $0x108] sm:$0xff]
    %v3361 = vld [vmem:[%s3326 + $0x110] sm:$0xff]
    %v3362 = vld [vmem:[%s3326 + $0x118] sm:$0xff]
    %v3363 = vld [vmem:[%s3326 + $0x120] sm:$0xff]
    %v3364 = vld [vmem:[%s3326 + $0x128] sm:$0xff]
    %v3365 = vld [vmem:[%s3326 + $0x130] sm:$0xff]
    %v3366 = vld [vmem:[%s3326 + $0x138] sm:$0xff]
    %v3367 = vld [vmem:[%s3326 + $0x140] sm:$0xff]
    %v3368 = vld [vmem:[%s3326 + $0x148] sm:$0xff]
    %v3369 = vld [vmem:[%s3326 + $0x150] sm:$0xff]
    %v3370 = vld [vmem:[%s3326 + $0x158] sm:$0xff]
    %s3371 = scalar_lea.vmem [#allocation11], 704
    %v3372 = vld [vmem:[%s3371] sm:$0xff]
    %v3373 = vld [vmem:[%s3371 + $0x8] sm:$0xff]
    %v3374 = vld [vmem:[%s3371 + $0x10] sm:$0xff]
    %v3375 = vld [vmem:[%s3371 + $0x18] sm:$0xff]
    %v3376 = vld [vmem:[%s3371 + $0x20] sm:$0xff]
    %v3377 = vld [vmem:[%s3371 + $0x28] sm:$0xff]
    %v3378 = vld [vmem:[%s3371 + $0x30] sm:$0xff]
    %v3379 = vld [vmem:[%s3371 + $0x38] sm:$0xff]
    %v3380 = vld [vmem:[%s3371 + $0x40] sm:$0xff]
    %v3381 = vld [vmem:[%s3371 + $0x48] sm:$0xff]
    %v3382 = vld [vmem:[%s3371 + $0x50] sm:$0xff]
    %v3383 = vld [vmem:[%s3371 + $0x58] sm:$0xff]
    %v3384 = vld [vmem:[%s3371 + $0x60] sm:$0xff]
    %v3385 = vld [vmem:[%s3371 + $0x68] sm:$0xff]
    %v3386 = vld [vmem:[%s3371 + $0x70] sm:$0xff]
    %v3387 = vld [vmem:[%s3371 + $0x78] sm:$0xff]
    %v3388 = vld [vmem:[%s3371 + $0x80] sm:$0xff]
    %v3389 = vld [vmem:[%s3371 + $0x88] sm:$0xff]
    %v3390 = vld [vmem:[%s3371 + $0x90] sm:$0xff]
    %v3391 = vld [vmem:[%s3371 + $0x98] sm:$0xff]
    %v3392 = vld [vmem:[%s3371 + $0xa0] sm:$0xff]
    %v3393 = vld [vmem:[%s3371 + $0xa8] sm:$0xff]
    %v3394 = vld [vmem:[%s3371 + $0xb0] sm:$0xff]
    %v3395 = vld [vmem:[%s3371 + $0xb8] sm:$0xff]
    %v3396 = vld [vmem:[%s3371 + $0xc0] sm:$0xff]
    %v3397 = vld [vmem:[%s3371 + $0xc8] sm:$0xff]
    %v3398 = vld [vmem:[%s3371 + $0xd0] sm:$0xff]
    %v3399 = vld [vmem:[%s3371 + $0xd8] sm:$0xff]
    %v3400 = vld [vmem:[%s3371 + $0xe0] sm:$0xff]
    %v3401 = vld [vmem:[%s3371 + $0xe8] sm:$0xff]
    %v3402 = vld [vmem:[%s3371 + $0xf0] sm:$0xff]
    %v3403 = vld [vmem:[%s3371 + $0xf8] sm:$0xff]
    %v3404 = vld [vmem:[%s3371 + $0x100] sm:$0xff]
    %v3405 = vld [vmem:[%s3371 + $0x108] sm:$0xff]
    %v3406 = vld [vmem:[%s3371 + $0x110] sm:$0xff]
    %v3407 = vld [vmem:[%s3371 + $0x118] sm:$0xff]
    %v3408 = vld [vmem:[%s3371 + $0x120] sm:$0xff]
    %v3409 = vld [vmem:[%s3371 + $0x128] sm:$0xff]
    %v3410 = vld [vmem:[%s3371 + $0x130] sm:$0xff]
    %v3411 = vld [vmem:[%s3371 + $0x138] sm:$0xff]
    %v3412 = vld [vmem:[%s3371 + $0x140] sm:$0xff]
    %v3413 = vld [vmem:[%s3371 + $0x148] sm:$0xff]
    %v3414 = vld [vmem:[%s3371 + $0x150] sm:$0xff]
    %v3415 = vld [vmem:[%s3371 + $0x158] sm:$0xff]
    %s3416 = scalar_lea.vmem [#allocation11], 1056
    %v3417 = vld [vmem:[%s3416] sm:$0xff]
    %v3418 = vld [vmem:[%s3416 + $0x8] sm:$0xff]
    %v3419 = vld [vmem:[%s3416 + $0x10] sm:$0xff]
    %v3420 = vld [vmem:[%s3416 + $0x18] sm:$0xff]
    %v3421 = vld [vmem:[%s3416 + $0x20] sm:$0xff]
    %v3422 = vld [vmem:[%s3416 + $0x28] sm:$0xff]
    %v3423 = vld [vmem:[%s3416 + $0x30] sm:$0xff]
    %v3424 = vld [vmem:[%s3416 + $0x38] sm:$0xff]
    %v3425 = vld [vmem:[%s3416 + $0x40] sm:$0xff]
    %v3426 = vld [vmem:[%s3416 + $0x48] sm:$0xff]
    %v3427 = vld [vmem:[%s3416 + $0x50] sm:$0xff]
    %v3428 = vld [vmem:[%s3416 + $0x58] sm:$0xff]
    %v3429 = vld [vmem:[%s3416 + $0x60] sm:$0xff]
    %v3430 = vld [vmem:[%s3416 + $0x68] sm:$0xff]
    %v3431 = vld [vmem:[%s3416 + $0x70] sm:$0xff]
    %v3432 = vld [vmem:[%s3416 + $0x78] sm:$0xff]
    %v3433 = vld [vmem:[%s3416 + $0x80] sm:$0xff]
    %v3434 = vld [vmem:[%s3416 + $0x88] sm:$0xff]
    %v3435 = vld [vmem:[%s3416 + $0x90] sm:$0xff]
    %v3436 = vld [vmem:[%s3416 + $0x98] sm:$0xff]
    %v3437 = vld [vmem:[%s3416 + $0xa0] sm:$0xff]
    %v3438 = vld [vmem:[%s3416 + $0xa8] sm:$0xff]
    %v3439 = vld [vmem:[%s3416 + $0xb0] sm:$0xff]
    %v3440 = vld [vmem:[%s3416 + $0xb8] sm:$0xff]
    %v3441 = vld [vmem:[%s3416 + $0xc0] sm:$0xff]
    %v3442 = vld [vmem:[%s3416 + $0xc8] sm:$0xff]
    %v3443 = vld [vmem:[%s3416 + $0xd0] sm:$0xff]
    %v3444 = vld [vmem:[%s3416 + $0xd8] sm:$0xff]
    %v3445 = vld [vmem:[%s3416 + $0xe0] sm:$0xff]
    %v3446 = vld [vmem:[%s3416 + $0xe8] sm:$0xff]
    %v3447 = vld [vmem:[%s3416 + $0xf0] sm:$0xff]
    %v3448 = vld [vmem:[%s3416 + $0xf8] sm:$0xff]
    %v3449 = vld [vmem:[%s3416 + $0x100] sm:$0xff]
    %v3450 = vld [vmem:[%s3416 + $0x108] sm:$0xff]
    %v3451 = vld [vmem:[%s3416 + $0x110] sm:$0xff]
    %v3452 = vld [vmem:[%s3416 + $0x118] sm:$0xff]
    %v3453 = vld [vmem:[%s3416 + $0x120] sm:$0xff]
    %v3454 = vld [vmem:[%s3416 + $0x128] sm:$0xff]
    %v3455 = vld [vmem:[%s3416 + $0x130] sm:$0xff]
    %v3456 = vld [vmem:[%s3416 + $0x138] sm:$0xff]
    %v3457 = vld [vmem:[%s3416 + $0x140] sm:$0xff]
    %v3458 = vld [vmem:[%s3416 + $0x148] sm:$0xff]
    %v3459 = vld [vmem:[%s3416 + $0x150] sm:$0xff]
    %v3460 = vld [vmem:[%s3416 + $0x158] sm:$0xff]
    %s3461 = scalar_lea.vmem [#allocation11], 1408
    %v3462 = vld [vmem:[%s3461] sm:$0xff]
    %v3463 = vld [vmem:[%s3461 + $0x8] sm:$0xff]
    %v3464 = vld [vmem:[%s3461 + $0x10] sm:$0xff]
    %v3465 = vld [vmem:[%s3461 + $0x18] sm:$0xff]
    %v3466 = vld [vmem:[%s3461 + $0x20] sm:$0xff]
    %v3467 = vld [vmem:[%s3461 + $0x28] sm:$0xff]
    %v3468 = vld [vmem:[%s3461 + $0x30] sm:$0xff]
    %v3469 = vld [vmem:[%s3461 + $0x38] sm:$0xff]
    %v3470 = vld [vmem:[%s3461 + $0x40] sm:$0xff]
    %v3471 = vld [vmem:[%s3461 + $0x48] sm:$0xff]
    %v3472 = vld [vmem:[%s3461 + $0x50] sm:$0xff]
    %v3473 = vld [vmem:[%s3461 + $0x58] sm:$0xff]
    %v3474 = vld [vmem:[%s3461 + $0x60] sm:$0xff]
    %v3475 = vld [vmem:[%s3461 + $0x68] sm:$0xff]
    %v3476 = vld [vmem:[%s3461 + $0x70] sm:$0xff]
    %v3477 = vld [vmem:[%s3461 + $0x78] sm:$0xff]
    %v3478 = vld [vmem:[%s3461 + $0x80] sm:$0xff]
    %v3479 = vld [vmem:[%s3461 + $0x88] sm:$0xff]
    %v3480 = vld [vmem:[%s3461 + $0x90] sm:$0xff]
    %v3481 = vld [vmem:[%s3461 + $0x98] sm:$0xff]
    %v3482 = vld [vmem:[%s3461 + $0xa0] sm:$0xff]
    %v3483 = vld [vmem:[%s3461 + $0xa8] sm:$0xff]
    %v3484 = vld [vmem:[%s3461 + $0xb0] sm:$0xff]
    %v3485 = vld [vmem:[%s3461 + $0xb8] sm:$0xff]
    %v3486 = vld [vmem:[%s3461 + $0xc0] sm:$0xff]
    %v3487 = vld [vmem:[%s3461 + $0xc8] sm:$0xff]
    %v3488 = vld [vmem:[%s3461 + $0xd0] sm:$0xff]
    %v3489 = vld [vmem:[%s3461 + $0xd8] sm:$0xff]
    %v3490 = vld [vmem:[%s3461 + $0xe0] sm:$0xff]
    %v3491 = vld [vmem:[%s3461 + $0xe8] sm:$0xff]
    %v3492 = vld [vmem:[%s3461 + $0xf0] sm:$0xff]
    %v3493 = vld [vmem:[%s3461 + $0xf8] sm:$0xff]
    %v3494 = vld [vmem:[%s3461 + $0x100] sm:$0xff]
    %v3495 = vld [vmem:[%s3461 + $0x108] sm:$0xff]
    %v3496 = vld [vmem:[%s3461 + $0x110] sm:$0xff]
    %v3497 = vld [vmem:[%s3461 + $0x118] sm:$0xff]
    %v3498 = vld [vmem:[%s3461 + $0x120] sm:$0xff]
    %v3499 = vld [vmem:[%s3461 + $0x128] sm:$0xff]
    %v3500 = vld [vmem:[%s3461 + $0x130] sm:$0xff]
    %v3501 = vld [vmem:[%s3461 + $0x138] sm:$0xff]
    %v3502 = vld [vmem:[%s3461 + $0x140] sm:$0xff]
    %v3503 = vld [vmem:[%s3461 + $0x148] sm:$0xff]
    %v3504 = vld [vmem:[%s3461 + $0x150] sm:$0xff]
    %v3505 = vld [vmem:[%s3461 + $0x158] sm:$0xff]
    %s3506 = scalar_lea.vmem [#allocation11], 1760
    %v3507 = vld [vmem:[%s3506] sm:$0xff]
    %v3508 = vld [vmem:[%s3506 + $0x8] sm:$0xff]
    %v3509 = vld [vmem:[%s3506 + $0x10] sm:$0xff]
    %v3510 = vld [vmem:[%s3506 + $0x18] sm:$0xff]
    %v3511 = vld [vmem:[%s3506 + $0x20] sm:$0xff]
    %v3512 = vld [vmem:[%s3506 + $0x28] sm:$0xff]
    %v3513 = vld [vmem:[%s3506 + $0x30] sm:$0xff]
    %v3514 = vld [vmem:[%s3506 + $0x38] sm:$0xff]
    %v3515 = vld [vmem:[%s3506 + $0x40] sm:$0xff]
    %v3516 = vld [vmem:[%s3506 + $0x48] sm:$0xff]
    %v3517 = vld [vmem:[%s3506 + $0x50] sm:$0xff]
    %v3518 = vld [vmem:[%s3506 + $0x58] sm:$0xff]
    %v3519 = vld [vmem:[%s3506 + $0x60] sm:$0xff]
    %v3520 = vld [vmem:[%s3506 + $0x68] sm:$0xff]
    %v3521 = vld [vmem:[%s3506 + $0x70] sm:$0xff]
    %v3522 = vld [vmem:[%s3506 + $0x78] sm:$0xff]
    %v3523 = vld [vmem:[%s3506 + $0x80] sm:$0xff]
    %v3524 = vld [vmem:[%s3506 + $0x88] sm:$0xff]
    %v3525 = vld [vmem:[%s3506 + $0x90] sm:$0xff]
    %v3526 = vld [vmem:[%s3506 + $0x98] sm:$0xff]
    %v3527 = vld [vmem:[%s3506 + $0xa0] sm:$0xff]
    %v3528 = vld [vmem:[%s3506 + $0xa8] sm:$0xff]
    %v3529 = vld [vmem:[%s3506 + $0xb0] sm:$0xff]
    %v3530 = vld [vmem:[%s3506 + $0xb8] sm:$0xff]
    %v3531 = vld [vmem:[%s3506 + $0xc0] sm:$0xff]
    %v3532 = vld [vmem:[%s3506 + $0xc8] sm:$0xff]
    %v3533 = vld [vmem:[%s3506 + $0xd0] sm:$0xff]
    %v3534 = vld [vmem:[%s3506 + $0xd8] sm:$0xff]
    %v3535 = vld [vmem:[%s3506 + $0xe0] sm:$0xff]
    %v3536 = vld [vmem:[%s3506 + $0xe8] sm:$0xff]
    %v3537 = vld [vmem:[%s3506 + $0xf0] sm:$0xff]
    %v3538 = vld [vmem:[%s3506 + $0xf8] sm:$0xff]
    %v3539 = vld [vmem:[%s3506 + $0x100] sm:$0xff]
    %v3540 = vld [vmem:[%s3506 + $0x108] sm:$0xff]
    %v3541 = vld [vmem:[%s3506 + $0x110] sm:$0xff]
    %v3542 = vld [vmem:[%s3506 + $0x118] sm:$0xff]
    %v3543 = vld [vmem:[%s3506 + $0x120] sm:$0xff]
    %v3544 = vld [vmem:[%s3506 + $0x128] sm:$0xff]
    %v3545 = vld [vmem:[%s3506 + $0x130] sm:$0xff]
    %v3546 = vld [vmem:[%s3506 + $0x138] sm:$0xff]
    %v3547 = vld [vmem:[%s3506 + $0x140] sm:$0xff]
    %v3548 = vld [vmem:[%s3506 + $0x148] sm:$0xff]
    %v3549 = vld [vmem:[%s3506 + $0x150] sm:$0xff]
    %v3550 = vld [vmem:[%s3506 + $0x158] sm:$0xff]
    %s3551 = scalar_lea.vmem [#allocation11], 2112
    %v3552 = vld [vmem:[%s3551] sm:$0xff]
    %v3553 = vld [vmem:[%s3551 + $0x8] sm:$0xff]
    %v3554 = vld [vmem:[%s3551 + $0x10] sm:$0xff]
    %v3555 = vld [vmem:[%s3551 + $0x18] sm:$0xff]
    %v3556 = vld [vmem:[%s3551 + $0x20] sm:$0xff]
    %v3557 = vld [vmem:[%s3551 + $0x28] sm:$0xff]
    %v3558 = vld [vmem:[%s3551 + $0x30] sm:$0xff]
    %v3559 = vld [vmem:[%s3551 + $0x38] sm:$0xff]
    %v3560 = vld [vmem:[%s3551 + $0x40] sm:$0xff]
    %v3561 = vld [vmem:[%s3551 + $0x48] sm:$0xff]
    %v3562 = vld [vmem:[%s3551 + $0x50] sm:$0xff]
    %v3563 = vld [vmem:[%s3551 + $0x58] sm:$0xff]
    %v3564 = vld [vmem:[%s3551 + $0x60] sm:$0xff]
    %v3565 = vld [vmem:[%s3551 + $0x68] sm:$0xff]
    %v3566 = vld [vmem:[%s3551 + $0x70] sm:$0xff]
    %v3567 = vld [vmem:[%s3551 + $0x78] sm:$0xff]
    %v3568 = vld [vmem:[%s3551 + $0x80] sm:$0xff]
    %v3569 = vld [vmem:[%s3551 + $0x88] sm:$0xff]
    %v3570 = vld [vmem:[%s3551 + $0x90] sm:$0xff]
    %v3571 = vld [vmem:[%s3551 + $0x98] sm:$0xff]
    %v3572 = vld [vmem:[%s3551 + $0xa0] sm:$0xff]
    %v3573 = vld [vmem:[%s3551 + $0xa8] sm:$0xff]
    %v3574 = vld [vmem:[%s3551 + $0xb0] sm:$0xff]
    %v3575 = vld [vmem:[%s3551 + $0xb8] sm:$0xff]
    %v3576 = vld [vmem:[%s3551 + $0xc0] sm:$0xff]
    %v3577 = vld [vmem:[%s3551 + $0xc8] sm:$0xff]
    %v3578 = vld [vmem:[%s3551 + $0xd0] sm:$0xff]
    %v3579 = vld [vmem:[%s3551 + $0xd8] sm:$0xff]
    %v3580 = vld [vmem:[%s3551 + $0xe0] sm:$0xff]
    %v3581 = vld [vmem:[%s3551 + $0xe8] sm:$0xff]
    %v3582 = vld [vmem:[%s3551 + $0xf0] sm:$0xff]
    %v3583 = vld [vmem:[%s3551 + $0xf8] sm:$0xff]
    %v3584 = vld [vmem:[%s3551 + $0x100] sm:$0xff]
    %v3585 = vld [vmem:[%s3551 + $0x108] sm:$0xff]
    %v3586 = vld [vmem:[%s3551 + $0x110] sm:$0xff]
    %v3587 = vld [vmem:[%s3551 + $0x118] sm:$0xff]
    %v3588 = vld [vmem:[%s3551 + $0x120] sm:$0xff]
    %v3589 = vld [vmem:[%s3551 + $0x128] sm:$0xff]
    %v3590 = vld [vmem:[%s3551 + $0x130] sm:$0xff]
    %v3591 = vld [vmem:[%s3551 + $0x138] sm:$0xff]
    %v3592 = vld [vmem:[%s3551 + $0x140] sm:$0xff]
    %v3593 = vld [vmem:[%s3551 + $0x148] sm:$0xff]
    %v3594 = vld [vmem:[%s3551 + $0x150] sm:$0xff]
    %v3595 = vld [vmem:[%s3551 + $0x158] sm:$0xff]
    %3598 = vrot.lane.b32.xlu0 %v2893, 24
    %v3599 = vpop.permute.xlu0 %3598
    %3600 = vrot.lane.b32.xlu0 %v2900, 24
    %v3601 = vpop.permute.xlu0 %3600
    %v3604 = vsel %vm2772, 0.0, %v3599
    %v3605 = vsel %vm2772, 0.0, %v3601
    %v3606 = vsel %vm2772, %v3599, 0.0
    %v3607 = vsel %vm2772, %v3601, 0.0
    %v3612 = vrot.slane %v3604, 5
    %v3613 = vrot.slane %v3606, 5
    %v3614 = vrot.slane %v3605, 5
    %v3615 = vsel %vm456, %v3612, %v3614
    %v3616 = vrot.slane %v3607, 5
    %v3617 = vsel %vm456, %v3613, %v3616
    %v3623 = vsel %vm456, 0.0, %v3612
    %v3624 = vsel %vm456, 0.0, %v3613
    %v3625 = vsel %vm456, %v3614, 0.0
    %v3626 = vsel %vm456, %v3616, 0.0
    %v3631 = vrot.slane %v3623, 1
    %v3632 = vrot.slane %v3615, 1
    %v3633 = vsel %vm470, %v3631, %v3632
    %v3634 = vrot.slane %v3624, 1
    %v3635 = vrot.slane %v3617, 1
    %v3636 = vsel %vm470, %v3634, %v3635
    %v3637 = vrot.slane %v3625, 1
    %v3638 = vsel %vm470, %v3632, %v3637
    %v3639 = vrot.slane %v3626, 1
    %v3640 = vsel %vm470, %v3635, %v3639
    %v3643 = vsel %vm2786, %v3636, 0
    %v3645 = vsel %vm2786, %v3640, 0
    %3647 = vmatprep.subr.mxu0 %v3358
    %3648 = vmatpush1.msra.mxu0 %v3357
    %3649 = vmatprep.subr.mxu0 %v3356
    %3650 = vmatpush1.msra.mxu0 %v3355
    %3651 = vmatprep.subr.mxu0 %v3354
    %3652 = vmatpush1.msra.mxu0 %v3353
    %3653 = vmatprep.subr.mxu0 %v3352
    %3654 = vmatpush1.msra.mxu0 %v3351
    %3655 = vmatprep.subr.mxu0 %v3350
    %3656 = vmatpush1.msra.mxu0 %v3349
    %3657 = vmatprep.subr.mxu0 %v3348
    %3658 = vmatpush1.msra.mxu0 %v3347
    %3659 = vmatprep.subr.mxu0 %v3346
    %3660 = vmatpush1.msra.mxu0 %v3345
    %3661 = vmatprep.subr.mxu0 %v3344
    %3662 = vmatpush1.msra.mxu0 %v3343
    %3663 = vmatprep.subr.mxu0 %v3342
    %3664 = vmatpush1.msra.mxu0 %v3341
    %3665 = vmatprep.subr.mxu0 %v3340
    %3666 = vmatpush1.msra.mxu0 %v3339
    %3667 = vmatprep.subr.mxu0 %v3338
    %3668 = vmatpush1.msra.mxu0 %v3337
    %3669 = vmatprep.subr.mxu0 %v3336
    %3670 = vmatpush1.msra.mxu0 %v3335
    %3671 = vmatprep.subr.mxu0 %v3334
    %3672 = vmatpush1.msra.mxu0 %v3333
    %3673 = vmatprep.subr.mxu0 %v3332
    %3674 = vmatpush1.msra.mxu0 %v3331
    %3675 = vmatprep.subr.mxu0 %v3330
    %3676 = vmatpush1.msra.mxu0 %v3329
    %3677 = vmatprep.subr.mxu0 %v3328
    %3678 = vmatpush1.msra.mxu0 %v3327
    %3679 = vmatprep.subr.mxu0 0.0
    %3680 = vmatpush2.msra.mxu0 0.0
    %3681 = vmatprep.subr.mxu0 0.0
    %3682 = vmatpush2.msra.mxu0 0.0
    %3683 = vmatprep.subr.mxu0 0.0
    %3684 = vmatpush2.msra.mxu0 0.0
    %3685 = vmatprep.subr.mxu0 0.0
    %3686 = vmatpush2.msra.mxu0 0.0
    %3687 = vmatprep.subr.mxu0 0.0
    %3688 = vmatpush2.msra.mxu0 0.0
    %3689 = vmatprep.subr.mxu0 0.0
    %3690 = vmatpush2.msra.mxu0 0.0
    %3691 = vmatprep.subr.mxu0 0.0
    %3692 = vmatpush2.msra.mxu0 0.0
    %3693 = vmatprep.subr.mxu0 0.0
    %3694 = vmatpush2.msra.mxu0 0.0
    %3695 = vmatprep.subr.mxu0 0.0
    %3696 = vmatpush2.msra.mxu0 0.0
    %3697 = vmatprep.subr.mxu0 0.0
    %3698 = vmatpush2.msra.mxu0 0.0
    %3699 = vmatprep.subr.mxu0 %v3370
    %3700 = vmatpush2.msra.mxu0 %v3369
    %3701 = vmatprep.subr.mxu0 %v3368
    %3702 = vmatpush2.msra.mxu0 %v3367
    %3703 = vmatprep.subr.mxu0 %v3366
    %3704 = vmatpush2.msra.mxu0 %v3365
    %3705 = vmatprep.subr.mxu0 %v3364
    %3706 = vmatpush2.msra.mxu0 %v3363
    %3707 = vmatprep.subr.mxu0 %v3362
    %3708 = vmatpush2.msra.mxu0 %v3361
    %3709 = vmatprep.subr.mxu0 %v3360
    %3710 = vmatpush2.msra.mxu0 %v3359
    %3711 = vmatprep.mubr.f32.mxu0 %v3643
    %3712 = vmatmul.mubr.f32.gmra.mxu0 %v3633
    %v3713 = vpop.f32.mrf.mxu0
    %v3714 = vadd.f32 0.0, %v3713
    %v3715 = vpop.f32.mrf.mxu0
    %v3716 = vadd.f32 0.0, %v3715
    %3717 = vmatprep.mubr.f32.mxu0 %v3645
    %3718 = vmatmul.mubr.f32.gmra.mxu0 %v3638
    %v3719 = vpop.f32.mrf.mxu0
    %v3720 = vadd.f32 0.0, %v3719
    %v3721 = vpop.f32.mrf.mxu0
    %v3722 = vadd.f32 0.0, %v3721
    %3723 = vdwg.mxu0
    %v3724 = vsel %vm2786, %v3624, 0
    %v3726 = vsel %vm2786, %v3617, 0
    %3728 = vmatprep.subr.mxu0 %v3313
    %3729 = vmatpush1.msra.mxu0 %v3312
    %3730 = vmatprep.subr.mxu0 %v3311
    %3731 = vmatpush1.msra.mxu0 %v3310
    %3732 = vmatprep.subr.mxu0 %v3309
    %3733 = vmatpush1.msra.mxu0 %v3308
    %3734 = vmatprep.subr.mxu0 %v3307
    %3735 = vmatpush1.msra.mxu0 %v3306
    %3736 = vmatprep.subr.mxu0 %v3305
    %3737 = vmatpush1.msra.mxu0 %v3304
    %3738 = vmatprep.subr.mxu0 %v3303
    %3739 = vmatpush1.msra.mxu0 %v3302
    %3740 = vmatprep.subr.mxu0 %v3301
    %3741 = vmatpush1.msra.mxu0 %v3300
    %3742 = vmatprep.subr.mxu0 %v3299
    %3743 = vmatpush1.msra.mxu0 %v3298
    %3744 = vmatprep.subr.mxu0 %v3297
    %3745 = vmatpush1.msra.mxu0 %v3296
    %3746 = vmatprep.subr.mxu0 %v3295
    %3747 = vmatpush1.msra.mxu0 %v3294
    %3748 = vmatprep.subr.mxu0 %v3293
    %3749 = vmatpush1.msra.mxu0 %v3292
    %3750 = vmatprep.subr.mxu0 %v3291
    %3751 = vmatpush1.msra.mxu0 %v3290
    %3752 = vmatprep.subr.mxu0 %v3289
    %3753 = vmatpush1.msra.mxu0 %v3288
    %3754 = vmatprep.subr.mxu0 %v3287
    %3755 = vmatpush1.msra.mxu0 %v3286
    %3756 = vmatprep.subr.mxu0 %v3285
    %3757 = vmatpush1.msra.mxu0 %v3284
    %3758 = vmatprep.subr.mxu0 %v3283
    %3759 = vmatpush1.msra.mxu0 %v3282
    %3760 = vmatprep.subr.mxu0 0.0
    %3761 = vmatpush2.msra.mxu0 0.0
    %3762 = vmatprep.subr.mxu0 0.0
    %3763 = vmatpush2.msra.mxu0 0.0
    %3764 = vmatprep.subr.mxu0 0.0
    %3765 = vmatpush2.msra.mxu0 0.0
    %3766 = vmatprep.subr.mxu0 0.0
    %3767 = vmatpush2.msra.mxu0 0.0
    %3768 = vmatprep.subr.mxu0 0.0
    %3769 = vmatpush2.msra.mxu0 0.0
    %3770 = vmatprep.subr.mxu0 0.0
    %3771 = vmatpush2.msra.mxu0 0.0
    %3772 = vmatprep.subr.mxu0 0.0
    %3773 = vmatpush2.msra.mxu0 0.0
    %3774 = vmatprep.subr.mxu0 0.0
    %3775 = vmatpush2.msra.mxu0 0.0
    %3776 = vmatprep.subr.mxu0 0.0
    %3777 = vmatpush2.msra.mxu0 0.0
    %3778 = vmatprep.subr.mxu0 0.0
    %3779 = vmatpush2.msra.mxu0 0.0
    %3780 = vmatprep.subr.mxu0 %v3325
    %3781 = vmatpush2.msra.mxu0 %v3324
    %3782 = vmatprep.subr.mxu0 %v3323
    %3783 = vmatpush2.msra.mxu0 %v3322
    %3784 = vmatprep.subr.mxu0 %v3321
    %3785 = vmatpush2.msra.mxu0 %v3320
    %3786 = vmatprep.subr.mxu0 %v3319
    %3787 = vmatpush2.msra.mxu0 %v3318
    %3788 = vmatprep.subr.mxu0 %v3317
    %3789 = vmatpush2.msra.mxu0 %v3316
    %3790 = vmatprep.subr.mxu0 %v3315
    %3791 = vmatpush2.msra.mxu0 %v3314
    %3792 = vmatprep.mubr.f32.mxu0 %v3724
    %3793 = vmatmul.mubr.f32.gmra.mxu0 %v3623
    %v3794 = vpop.f32.mrf.mxu0
    %v3795 = vadd.f32 %v3714, %v3794
    %v3796 = vpop.f32.mrf.mxu0
    %v3797 = vadd.f32 %v3716, %v3796
    %3798 = vmatprep.mubr.f32.mxu0 %v3726
    %3799 = vmatmul.mubr.f32.gmra.mxu0 %v3615
    %v3800 = vpop.f32.mrf.mxu0
    %v3801 = vadd.f32 %v3720, %v3800
    %v3802 = vpop.f32.mrf.mxu0
    %v3803 = vadd.f32 %v3722, %v3802
    %3804 = vdwg.mxu0
    %v3805 = vrot.slane %v3623, 2
    %v3806 = vrot.slane %v3615, 2
    %v3807 = vsel %vm675, %v3805, %v3806
    %v3808 = vrot.slane %v3624, 2
    %v3809 = vrot.slane %v3617, 2
    %v3810 = vsel %vm675, %v3808, %v3809
    %v3811 = vrot.slane %v3625, 2
    %v3812 = vsel %vm675, %v3806, %v3811
    %v3813 = vrot.slane %v3626, 2
    %v3814 = vsel %vm675, %v3809, %v3813
    %v3817 = vsel %vm2786, %v3810, 0
    %v3819 = vsel %vm2786, %v3814, 0
    %3821 = vmatprep.subr.mxu0 %v3403
    %3822 = vmatpush1.msra.mxu0 %v3402
    %3823 = vmatprep.subr.mxu0 %v3401
    %3824 = vmatpush1.msra.mxu0 %v3400
    %3825 = vmatprep.subr.mxu0 %v3399
    %3826 = vmatpush1.msra.mxu0 %v3398
    %3827 = vmatprep.subr.mxu0 %v3397
    %3828 = vmatpush1.msra.mxu0 %v3396
    %3829 = vmatprep.subr.mxu0 %v3395
    %3830 = vmatpush1.msra.mxu0 %v3394
    %3831 = vmatprep.subr.mxu0 %v3393
    %3832 = vmatpush1.msra.mxu0 %v3392
    %3833 = vmatprep.subr.mxu0 %v3391
    %3834 = vmatpush1.msra.mxu0 %v3390
    %3835 = vmatprep.subr.mxu0 %v3389
    %3836 = vmatpush1.msra.mxu0 %v3388
    %3837 = vmatprep.subr.mxu0 %v3387
    %3838 = vmatpush1.msra.mxu0 %v3386
    %3839 = vmatprep.subr.mxu0 %v3385
    %3840 = vmatpush1.msra.mxu0 %v3384
    %3841 = vmatprep.subr.mxu0 %v3383
    %3842 = vmatpush1.msra.mxu0 %v3382
    %3843 = vmatprep.subr.mxu0 %v3381
    %3844 = vmatpush1.msra.mxu0 %v3380
    %3845 = vmatprep.subr.mxu0 %v3379
    %3846 = vmatpush1.msra.mxu0 %v3378
    %3847 = vmatprep.subr.mxu0 %v3377
    %3848 = vmatpush1.msra.mxu0 %v3376
    %3849 = vmatprep.subr.mxu0 %v3375
    %3850 = vmatpush1.msra.mxu0 %v3374
    %3851 = vmatprep.subr.mxu0 %v3373
    %3852 = vmatpush1.msra.mxu0 %v3372
    %3853 = vmatprep.subr.mxu0 0.0
    %3854 = vmatpush2.msra.mxu0 0.0
    %3855 = vmatprep.subr.mxu0 0.0
    %3856 = vmatpush2.msra.mxu0 0.0
    %3857 = vmatprep.subr.mxu0 0.0
    %3858 = vmatpush2.msra.mxu0 0.0
    %3859 = vmatprep.subr.mxu0 0.0
    %3860 = vmatpush2.msra.mxu0 0.0
    %3861 = vmatprep.subr.mxu0 0.0
    %3862 = vmatpush2.msra.mxu0 0.0
    %3863 = vmatprep.subr.mxu0 0.0
    %3864 = vmatpush2.msra.mxu0 0.0
    %3865 = vmatprep.subr.mxu0 0.0
    %3866 = vmatpush2.msra.mxu0 0.0
    %3867 = vmatprep.subr.mxu0 0.0
    %3868 = vmatpush2.msra.mxu0 0.0
    %3869 = vmatprep.subr.mxu0 0.0
    %3870 = vmatpush2.msra.mxu0 0.0
    %3871 = vmatprep.subr.mxu0 0.0
    %3872 = vmatpush2.msra.mxu0 0.0
    %3873 = vmatprep.subr.mxu0 %v3415
    %3874 = vmatpush2.msra.mxu0 %v3414
    %3875 = vmatprep.subr.mxu0 %v3413
    %3876 = vmatpush2.msra.mxu0 %v3412
    %3877 = vmatprep.subr.mxu0 %v3411
    %3878 = vmatpush2.msra.mxu0 %v3410
    %3879 = vmatprep.subr.mxu0 %v3409
    %3880 = vmatpush2.msra.mxu0 %v3408
    %3881 = vmatprep.subr.mxu0 %v3407
    %3882 = vmatpush2.msra.mxu0 %v3406
    %3883 = vmatprep.subr.mxu0 %v3405
    %3884 = vmatpush2.msra.mxu0 %v3404
    %3885 = vmatprep.mubr.f32.mxu0 %v3817
    %3886 = vmatmul.mubr.f32.gmra.mxu0 %v3807
    %v3887 = vpop.f32.mrf.mxu0
    %v3888 = vadd.f32 0.0, %v3887
    %v3889 = vpop.f32.mrf.mxu0
    %v3890 = vadd.f32 0.0, %v3889
    %3891 = vmatprep.mubr.f32.mxu0 %v3819
    %3892 = vmatmul.mubr.f32.gmra.mxu0 %v3812
    %v3893 = vpop.f32.mrf.mxu0
    %v3894 = vadd.f32 0.0, %v3893
    %v3895 = vpop.f32.mrf.mxu0
    %v3896 = vadd.f32 0.0, %v3895
    %3897 = vdwg.mxu0
    %v3898 = vadd.f32 %v3795, %v3888
    %v3899 = vadd.f32 %v3797, %v3890
    %v3900 = vadd.f32 %v3801, %v3894
    %v3901 = vadd.f32 %v3803, %v3896
    %v3902 = vrot.slane %v3623, 3
    %v3903 = vrot.slane %v3615, 3
    %v3904 = vsel %vm790, %v3902, %v3903
    %v3905 = vrot.slane %v3624, 3
    %v3906 = vrot.slane %v3617, 3
    %v3907 = vsel %vm790, %v3905, %v3906
    %v3908 = vrot.slane %v3625, 3
    %v3909 = vsel %vm790, %v3903, %v3908
    %v3910 = vrot.slane %v3626, 3
    %v3911 = vsel %vm790, %v3906, %v3910
    %v3914 = vsel %vm2786, %v3907, 0
    %v3916 = vsel %vm2786, %v3911, 0
    %3918 = vmatprep.subr.mxu0 %v3448
    %3919 = vmatpush1.msra.mxu0 %v3447
    %3920 = vmatprep.subr.mxu0 %v3446
    %3921 = vmatpush1.msra.mxu0 %v3445
    %3922 = vmatprep.subr.mxu0 %v3444
    %3923 = vmatpush1.msra.mxu0 %v3443
    %3924 = vmatprep.subr.mxu0 %v3442
    %3925 = vmatpush1.msra.mxu0 %v3441
    %3926 = vmatprep.subr.mxu0 %v3440
    %3927 = vmatpush1.msra.mxu0 %v3439
    %3928 = vmatprep.subr.mxu0 %v3438
    %3929 = vmatpush1.msra.mxu0 %v3437
    %3930 = vmatprep.subr.mxu0 %v3436
    %3931 = vmatpush1.msra.mxu0 %v3435
    %3932 = vmatprep.subr.mxu0 %v3434
    %3933 = vmatpush1.msra.mxu0 %v3433
    %3934 = vmatprep.subr.mxu0 %v3432
    %3935 = vmatpush1.msra.mxu0 %v3431
    %3936 = vmatprep.subr.mxu0 %v3430
    %3937 = vmatpush1.msra.mxu0 %v3429
    %3938 = vmatprep.subr.mxu0 %v3428
    %3939 = vmatpush1.msra.mxu0 %v3427
    %3940 = vmatprep.subr.mxu0 %v3426
    %3941 = vmatpush1.msra.mxu0 %v3425
    %3942 = vmatprep.subr.mxu0 %v3424
    %3943 = vmatpush1.msra.mxu0 %v3423
    %3944 = vmatprep.subr.mxu0 %v3422
    %3945 = vmatpush1.msra.mxu0 %v3421
    %3946 = vmatprep.subr.mxu0 %v3420
    %3947 = vmatpush1.msra.mxu0 %v3419
    %3948 = vmatprep.subr.mxu0 %v3418
    %3949 = vmatpush1.msra.mxu0 %v3417
    %3950 = vmatprep.subr.mxu0 0.0
    %3951 = vmatpush2.msra.mxu0 0.0
    %3952 = vmatprep.subr.mxu0 0.0
    %3953 = vmatpush2.msra.mxu0 0.0
    %3954 = vmatprep.subr.mxu0 0.0
    %3955 = vmatpush2.msra.mxu0 0.0
    %3956 = vmatprep.subr.mxu0 0.0
    %3957 = vmatpush2.msra.mxu0 0.0
    %3958 = vmatprep.subr.mxu0 0.0
    %3959 = vmatpush2.msra.mxu0 0.0
    %3960 = vmatprep.subr.mxu0 0.0
    %3961 = vmatpush2.msra.mxu0 0.0
    %3962 = vmatprep.subr.mxu0 0.0
    %3963 = vmatpush2.msra.mxu0 0.0
    %3964 = vmatprep.subr.mxu0 0.0
    %3965 = vmatpush2.msra.mxu0 0.0
    %3966 = vmatprep.subr.mxu0 0.0
    %3967 = vmatpush2.msra.mxu0 0.0
    %3968 = vmatprep.subr.mxu0 0.0
    %3969 = vmatpush2.msra.mxu0 0.0
    %3970 = vmatprep.subr.mxu0 %v3460
    %3971 = vmatpush2.msra.mxu0 %v3459
    %3972 = vmatprep.subr.mxu0 %v3458
    %3973 = vmatpush2.msra.mxu0 %v3457
    %3974 = vmatprep.subr.mxu0 %v3456
    %3975 = vmatpush2.msra.mxu0 %v3455
    %3976 = vmatprep.subr.mxu0 %v3454
    %3977 = vmatpush2.msra.mxu0 %v3453
    %3978 = vmatprep.subr.mxu0 %v3452
    %3979 = vmatpush2.msra.mxu0 %v3451
    %3980 = vmatprep.subr.mxu0 %v3450
    %3981 = vmatpush2.msra.mxu0 %v3449
    %3982 = vmatprep.mubr.f32.mxu0 %v3914
    %3983 = vmatmul.mubr.f32.gmra.mxu0 %v3904
    %v3984 = vpop.f32.mrf.mxu0
    %v3985 = vadd.f32 0.0, %v3984
    %v3986 = vpop.f32.mrf.mxu0
    %v3987 = vadd.f32 0.0, %v3986
    %3988 = vmatprep.mubr.f32.mxu0 %v3916
    %3989 = vmatmul.mubr.f32.gmra.mxu0 %v3909
    %v3990 = vpop.f32.mrf.mxu0
    %v3991 = vadd.f32 0.0, %v3990
    %v3992 = vpop.f32.mrf.mxu0
    %v3993 = vadd.f32 0.0, %v3992
    %3994 = vdwg.mxu0
    %v3995 = vadd.f32 %v3898, %v3985
    %v3996 = vadd.f32 %v3899, %v3987
    %v3997 = vadd.f32 %v3900, %v3991
    %v3998 = vadd.f32 %v3901, %v3993
    %v3999 = vrot.slane %v3623, 4
    %v4000 = vrot.slane %v3615, 4
    %v4001 = vsel %vm905, %v3999, %v4000
    %v4002 = vrot.slane %v3624, 4
    %v4003 = vrot.slane %v3617, 4
    %v4004 = vsel %vm905, %v4002, %v4003
    %v4005 = vrot.slane %v3625, 4
    %v4006 = vsel %vm905, %v4000, %v4005
    %v4007 = vrot.slane %v3626, 4
    %v4008 = vsel %vm905, %v4003, %v4007
    %v4011 = vsel %vm2786, %v4004, 0
    %v4013 = vsel %vm2786, %v4008, 0
    %4015 = vmatprep.subr.mxu0 %v3493
    %4016 = vmatpush1.msra.mxu0 %v3492
    %4017 = vmatprep.subr.mxu0 %v3491
    %4018 = vmatpush1.msra.mxu0 %v3490
    %4019 = vmatprep.subr.mxu0 %v3489
    %4020 = vmatpush1.msra.mxu0 %v3488
    %4021 = vmatprep.subr.mxu0 %v3487
    %4022 = vmatpush1.msra.mxu0 %v3486
    %4023 = vmatprep.subr.mxu0 %v3485
    %4024 = vmatpush1.msra.mxu0 %v3484
    %4025 = vmatprep.subr.mxu0 %v3483
    %4026 = vmatpush1.msra.mxu0 %v3482
    %4027 = vmatprep.subr.mxu0 %v3481
    %4028 = vmatpush1.msra.mxu0 %v3480
    %4029 = vmatprep.subr.mxu0 %v3479
    %4030 = vmatpush1.msra.mxu0 %v3478
    %4031 = vmatprep.subr.mxu0 %v3477
    %4032 = vmatpush1.msra.mxu0 %v3476
    %4033 = vmatprep.subr.mxu0 %v3475
    %4034 = vmatpush1.msra.mxu0 %v3474
    %4035 = vmatprep.subr.mxu0 %v3473
    %4036 = vmatpush1.msra.mxu0 %v3472
    %4037 = vmatprep.subr.mxu0 %v3471
    %4038 = vmatpush1.msra.mxu0 %v3470
    %4039 = vmatprep.subr.mxu0 %v3469
    %4040 = vmatpush1.msra.mxu0 %v3468
    %4041 = vmatprep.subr.mxu0 %v3467
    %4042 = vmatpush1.msra.mxu0 %v3466
    %4043 = vmatprep.subr.mxu0 %v3465
    %4044 = vmatpush1.msra.mxu0 %v3464
    %4045 = vmatprep.subr.mxu0 %v3463
    %4046 = vmatpush1.msra.mxu0 %v3462
    %4047 = vmatprep.subr.mxu0 0.0
    %4048 = vmatpush2.msra.mxu0 0.0
    %4049 = vmatprep.subr.mxu0 0.0
    %4050 = vmatpush2.msra.mxu0 0.0
    %4051 = vmatprep.subr.mxu0 0.0
    %4052 = vmatpush2.msra.mxu0 0.0
    %4053 = vmatprep.subr.mxu0 0.0
    %4054 = vmatpush2.msra.mxu0 0.0
    %4055 = vmatprep.subr.mxu0 0.0
    %4056 = vmatpush2.msra.mxu0 0.0
    %4057 = vmatprep.subr.mxu0 0.0
    %4058 = vmatpush2.msra.mxu0 0.0
    %4059 = vmatprep.subr.mxu0 0.0
    %4060 = vmatpush2.msra.mxu0 0.0
    %4061 = vmatprep.subr.mxu0 0.0
    %4062 = vmatpush2.msra.mxu0 0.0
    %4063 = vmatprep.subr.mxu0 0.0
    %4064 = vmatpush2.msra.mxu0 0.0
    %4065 = vmatprep.subr.mxu0 0.0
    %4066 = vmatpush2.msra.mxu0 0.0
    %4067 = vmatprep.subr.mxu0 %v3505
    %4068 = vmatpush2.msra.mxu0 %v3504
    %4069 = vmatprep.subr.mxu0 %v3503
    %4070 = vmatpush2.msra.mxu0 %v3502
    %4071 = vmatprep.subr.mxu0 %v3501
    %4072 = vmatpush2.msra.mxu0 %v3500
    %4073 = vmatprep.subr.mxu0 %v3499
    %4074 = vmatpush2.msra.mxu0 %v3498
    %4075 = vmatprep.subr.mxu0 %v3497
    %4076 = vmatpush2.msra.mxu0 %v3496
    %4077 = vmatprep.subr.mxu0 %v3495
    %4078 = vmatpush2.msra.mxu0 %v3494
    %4079 = vmatprep.mubr.f32.mxu0 %v4011
    %4080 = vmatmul.mubr.f32.gmra.mxu0 %v4001
    %v4081 = vpop.f32.mrf.mxu0
    %v4082 = vadd.f32 0.0, %v4081
    %v4083 = vpop.f32.mrf.mxu0
    %v4084 = vadd.f32 0.0, %v4083
    %4085 = vmatprep.mubr.f32.mxu0 %v4013
    %4086 = vmatmul.mubr.f32.gmra.mxu0 %v4006
    %v4087 = vpop.f32.mrf.mxu0
    %v4088 = vadd.f32 0.0, %v4087
    %v4089 = vpop.f32.mrf.mxu0
    %v4090 = vadd.f32 0.0, %v4089
    %4091 = vdwg.mxu0
    %v4092 = vadd.f32 %v3995, %v4082
    %v4093 = vadd.f32 %v3996, %v4084
    %v4094 = vadd.f32 %v3997, %v4088
    %v4095 = vadd.f32 %v3998, %v4090
    %v4096 = vrot.slane %v3623, 5
    %v4097 = vrot.slane %v3615, 5
    %v4098 = vsel %vm456, %v4096, %v4097
    %v4099 = vrot.slane %v3624, 5
    %v4100 = vrot.slane %v3617, 5
    %v4101 = vsel %vm456, %v4099, %v4100
    %v4102 = vrot.slane %v3625, 5
    %v4103 = vsel %vm456, %v4097, %v4102
    %v4104 = vrot.slane %v3626, 5
    %v4105 = vsel %vm456, %v4100, %v4104
    %v4108 = vsel %vm2786, %v4101, 0
    %v4110 = vsel %vm2786, %v4105, 0
    %4112 = vmatprep.subr.mxu0 %v3538
    %4113 = vmatpush1.msra.mxu0 %v3537
    %4114 = vmatprep.subr.mxu0 %v3536
    %4115 = vmatpush1.msra.mxu0 %v3535
    %4116 = vmatprep.subr.mxu0 %v3534
    %4117 = vmatpush1.msra.mxu0 %v3533
    %4118 = vmatprep.subr.mxu0 %v3532
    %4119 = vmatpush1.msra.mxu0 %v3531
    %4120 = vmatprep.subr.mxu0 %v3530
    %4121 = vmatpush1.msra.mxu0 %v3529
    %4122 = vmatprep.subr.mxu0 %v3528
    %4123 = vmatpush1.msra.mxu0 %v3527
    %4124 = vmatprep.subr.mxu0 %v3526
    %4125 = vmatpush1.msra.mxu0 %v3525
    %4126 = vmatprep.subr.mxu0 %v3524
    %4127 = vmatpush1.msra.mxu0 %v3523
    %4128 = vmatprep.subr.mxu0 %v3522
    %4129 = vmatpush1.msra.mxu0 %v3521
    %4130 = vmatprep.subr.mxu0 %v3520
    %4131 = vmatpush1.msra.mxu0 %v3519
    %4132 = vmatprep.subr.mxu0 %v3518
    %4133 = vmatpush1.msra.mxu0 %v3517
    %4134 = vmatprep.subr.mxu0 %v3516
    %4135 = vmatpush1.msra.mxu0 %v3515
    %4136 = vmatprep.subr.mxu0 %v3514
    %4137 = vmatpush1.msra.mxu0 %v3513
    %4138 = vmatprep.subr.mxu0 %v3512
    %4139 = vmatpush1.msra.mxu0 %v3511
    %4140 = vmatprep.subr.mxu0 %v3510
    %4141 = vmatpush1.msra.mxu0 %v3509
    %4142 = vmatprep.subr.mxu0 %v3508
    %4143 = vmatpush1.msra.mxu0 %v3507
    %4144 = vmatprep.subr.mxu0 0.0
    %4145 = vmatpush2.msra.mxu0 0.0
    %4146 = vmatprep.subr.mxu0 0.0
    %4147 = vmatpush2.msra.mxu0 0.0
    %4148 = vmatprep.subr.mxu0 0.0
    %4149 = vmatpush2.msra.mxu0 0.0
    %4150 = vmatprep.subr.mxu0 0.0
    %4151 = vmatpush2.msra.mxu0 0.0
    %4152 = vmatprep.subr.mxu0 0.0
    %4153 = vmatpush2.msra.mxu0 0.0
    %4154 = vmatprep.subr.mxu0 0.0
    %4155 = vmatpush2.msra.mxu0 0.0
    %4156 = vmatprep.subr.mxu0 0.0
    %4157 = vmatpush2.msra.mxu0 0.0
    %4158 = vmatprep.subr.mxu0 0.0
    %4159 = vmatpush2.msra.mxu0 0.0
    %4160 = vmatprep.subr.mxu0 0.0
    %4161 = vmatpush2.msra.mxu0 0.0
    %4162 = vmatprep.subr.mxu0 0.0
    %4163 = vmatpush2.msra.mxu0 0.0
    %4164 = vmatprep.subr.mxu0 %v3550
    %4165 = vmatpush2.msra.mxu0 %v3549
    %4166 = vmatprep.subr.mxu0 %v3548
    %4167 = vmatpush2.msra.mxu0 %v3547
    %4168 = vmatprep.subr.mxu0 %v3546
    %4169 = vmatpush2.msra.mxu0 %v3545
    %4170 = vmatprep.subr.mxu0 %v3544
    %4171 = vmatpush2.msra.mxu0 %v3543
    %4172 = vmatprep.subr.mxu0 %v3542
    %4173 = vmatpush2.msra.mxu0 %v3541
    %4174 = vmatprep.subr.mxu0 %v3540
    %4175 = vmatpush2.msra.mxu0 %v3539
    %4176 = vmatprep.mubr.f32.mxu0 %v4108
    %4177 = vmatmul.mubr.f32.gmra.mxu0 %v4098
    %v4178 = vpop.f32.mrf.mxu0
    %v4179 = vadd.f32 0.0, %v4178
    %v4180 = vpop.f32.mrf.mxu0
    %v4181 = vadd.f32 0.0, %v4180
    %4182 = vmatprep.mubr.f32.mxu0 %v4110
    %4183 = vmatmul.mubr.f32.gmra.mxu0 %v4103
    %v4184 = vpop.f32.mrf.mxu0
    %v4185 = vadd.f32 0.0, %v4184
    %v4186 = vpop.f32.mrf.mxu0
    %v4187 = vadd.f32 0.0, %v4186
    %4188 = vdwg.mxu0
    %v4189 = vadd.f32 %v4092, %v4179
    %v4190 = vadd.f32 %v4093, %v4181
    %v4191 = vadd.f32 %v4094, %v4185
    %v4192 = vadd.f32 %v4095, %v4187
    %v4193 = vrot.slane %v3623, 6
    %v4194 = vrot.slane %v3615, 6
    %v4195 = vsel %vm1134, %v4193, %v4194
    %v4196 = vrot.slane %v3624, 6
    %v4197 = vrot.slane %v3617, 6
    %v4198 = vsel %vm1134, %v4196, %v4197
    %v4199 = vrot.slane %v3625, 6
    %v4200 = vsel %vm1134, %v4194, %v4199
    %v4201 = vrot.slane %v3626, 6
    %v4202 = vsel %vm1134, %v4197, %v4201
    %v4205 = vsel %vm2786, %v4198, 0
    %v4207 = vsel %vm2786, %v4202, 0
    %4209 = vmatprep.subr.mxu0 %v3583
    %4210 = vmatpush1.msra.mxu0 %v3582
    %4211 = vmatprep.subr.mxu0 %v3581
    %4212 = vmatpush1.msra.mxu0 %v3580
    %4213 = vmatprep.subr.mxu0 %v3579
    %4214 = vmatpush1.msra.mxu0 %v3578
    %4215 = vmatprep.subr.mxu0 %v3577
    %4216 = vmatpush1.msra.mxu0 %v3576
    %4217 = vmatprep.subr.mxu0 %v3575
    %4218 = vmatpush1.msra.mxu0 %v3574
    %4219 = vmatprep.subr.mxu0 %v3573
    %4220 = vmatpush1.msra.mxu0 %v3572
    %4221 = vmatprep.subr.mxu0 %v3571
    %4222 = vmatpush1.msra.mxu0 %v3570
    %4223 = vmatprep.subr.mxu0 %v3569
    %4224 = vmatpush1.msra.mxu0 %v3568
    %4225 = vmatprep.subr.mxu0 %v3567
    %4226 = vmatpush1.msra.mxu0 %v3566
    %4227 = vmatprep.subr.mxu0 %v3565
    %4228 = vmatpush1.msra.mxu0 %v3564
    %4229 = vmatprep.subr.mxu0 %v3563
    %4230 = vmatpush1.msra.mxu0 %v3562
    %4231 = vmatprep.subr.mxu0 %v3561
    %4232 = vmatpush1.msra.mxu0 %v3560
    %4233 = vmatprep.subr.mxu0 %v3559
    %4234 = vmatpush1.msra.mxu0 %v3558
    %4235 = vmatprep.subr.mxu0 %v3557
    %4236 = vmatpush1.msra.mxu0 %v3556
    %4237 = vmatprep.subr.mxu0 %v3555
    %4238 = vmatpush1.msra.mxu0 %v3554
    %4239 = vmatprep.subr.mxu0 %v3553
    %4240 = vmatpush1.msra.mxu0 %v3552
    %4241 = vmatprep.subr.mxu0 0.0
    %4242 = vmatpush2.msra.mxu0 0.0
    %4243 = vmatprep.subr.mxu0 0.0
    %4244 = vmatpush2.msra.mxu0 0.0
    %4245 = vmatprep.subr.mxu0 0.0
    %4246 = vmatpush2.msra.mxu0 0.0
    %4247 = vmatprep.subr.mxu0 0.0
    %4248 = vmatpush2.msra.mxu0 0.0
    %4249 = vmatprep.subr.mxu0 0.0
    %4250 = vmatpush2.msra.mxu0 0.0
    %4251 = vmatprep.subr.mxu0 0.0
    %4252 = vmatpush2.msra.mxu0 0.0
    %4253 = vmatprep.subr.mxu0 0.0
    %4254 = vmatpush2.msra.mxu0 0.0
    %4255 = vmatprep.subr.mxu0 0.0
    %4256 = vmatpush2.msra.mxu0 0.0
    %4257 = vmatprep.subr.mxu0 0.0
    %4258 = vmatpush2.msra.mxu0 0.0
    %4259 = vmatprep.subr.mxu0 0.0
    %4260 = vmatpush2.msra.mxu0 0.0
    %4261 = vmatprep.subr.mxu0 %v3595
    %4262 = vmatpush2.msra.mxu0 %v3594
    %4263 = vmatprep.subr.mxu0 %v3593
    %4264 = vmatpush2.msra.mxu0 %v3592
    %4265 = vmatprep.subr.mxu0 %v3591
    %4266 = vmatpush2.msra.mxu0 %v3590
    %4267 = vmatprep.subr.mxu0 %v3589
    %4268 = vmatpush2.msra.mxu0 %v3588
    %4269 = vmatprep.subr.mxu0 %v3587
    %4270 = vmatpush2.msra.mxu0 %v3586
    %4271 = vmatprep.subr.mxu0 %v3585
    %4272 = vmatpush2.msra.mxu0 %v3584
    %4273 = vmatprep.mubr.f32.mxu0 %v4205
    %4274 = vmatmul.mubr.f32.gmra.mxu0 %v4195
    %v4275 = vpop.f32.mrf.mxu0
    %v4276 = vadd.f32 0.0, %v4275
    %v4277 = vpop.f32.mrf.mxu0
    %v4278 = vadd.f32 0.0, %v4277
    %4279 = vmatprep.mubr.f32.mxu0 %v4207
    %4280 = vmatmul.mubr.f32.gmra.mxu0 %v4200
    %v4281 = vpop.f32.mrf.mxu0
    %v4282 = vadd.f32 0.0, %v4281
    %v4283 = vpop.f32.mrf.mxu0
    %v4284 = vadd.f32 0.0, %v4283
    %4285 = vdwg.mxu0
    %v4286 = vadd.f32 %v4189, %v4276
    %v4287 = vadd.f32 %v4190, %v4278
    %v4288 = vadd.f32 %v4191, %v4282
    %v4289 = vadd.f32 %v4192, %v4284
    %4292 = vrot.lane.b32.xlu0 %v3274, 24
    %v4293 = vpop.permute.xlu0 %4292
    %4294 = vrot.lane.b32.xlu0 %v3281, 24
    %v4295 = vpop.permute.xlu0 %4294
    %v4298 = vsel %vm2772, 0.0, %v4293
    %v4299 = vsel %vm2772, 0.0, %v4295
    %v4300 = vsel %vm2772, %v4293, 0.0
    %v4301 = vsel %vm2772, %v4295, 0.0
    %v4306 = vrot.slane %v4298, 5
    %v4307 = vrot.slane %v4300, 5
    %v4308 = vrot.slane %v4299, 5
    %v4309 = vsel %vm456, %v4306, %v4308
    %v4310 = vrot.slane %v4301, 5
    %v4311 = vsel %vm456, %v4307, %v4310
    %v4317 = vsel %vm456, 0.0, %v4306
    %v4318 = vsel %vm456, 0.0, %v4307
    %v4319 = vsel %vm456, %v4308, 0.0
    %v4320 = vsel %vm456, %v4310, 0.0
    %v4325 = vrot.slane %v4317, 1
    %v4326 = vrot.slane %v4309, 1
    %v4327 = vsel %vm470, %v4325, %v4326
    %v4328 = vrot.slane %v4318, 1
    %v4329 = vrot.slane %v4311, 1
    %v4330 = vsel %vm470, %v4328, %v4329
    %v4331 = vrot.slane %v4319, 1
    %v4332 = vsel %vm470, %v4326, %v4331
    %v4333 = vrot.slane %v4320, 1
    %v4334 = vsel %vm470, %v4329, %v4333
    %v4337 = vsel %vm2786, %v4330, 0
    %v4339 = vsel %vm2786, %v4334, 0
    %4341 = vmatprep.subr.mxu0 %v3358
    %4342 = vmatpush1.msra.mxu0 %v3357
    %4343 = vmatprep.subr.mxu0 %v3356
    %4344 = vmatpush1.msra.mxu0 %v3355
    %4345 = vmatprep.subr.mxu0 %v3354
    %4346 = vmatpush1.msra.mxu0 %v3353
    %4347 = vmatprep.subr.mxu0 %v3352
    %4348 = vmatpush1.msra.mxu0 %v3351
    %4349 = vmatprep.subr.mxu0 %v3350
    %4350 = vmatpush1.msra.mxu0 %v3349
    %4351 = vmatprep.subr.mxu0 %v3348
    %4352 = vmatpush1.msra.mxu0 %v3347
    %4353 = vmatprep.subr.mxu0 %v3346
    %4354 = vmatpush1.msra.mxu0 %v3345
    %4355 = vmatprep.subr.mxu0 %v3344
    %4356 = vmatpush1.msra.mxu0 %v3343
    %4357 = vmatprep.subr.mxu0 %v3342
    %4358 = vmatpush1.msra.mxu0 %v3341
    %4359 = vmatprep.subr.mxu0 %v3340
    %4360 = vmatpush1.msra.mxu0 %v3339
    %4361 = vmatprep.subr.mxu0 %v3338
    %4362 = vmatpush1.msra.mxu0 %v3337
    %4363 = vmatprep.subr.mxu0 %v3336
    %4364 = vmatpush1.msra.mxu0 %v3335
    %4365 = vmatprep.subr.mxu0 %v3334
    %4366 = vmatpush1.msra.mxu0 %v3333
    %4367 = vmatprep.subr.mxu0 %v3332
    %4368 = vmatpush1.msra.mxu0 %v3331
    %4369 = vmatprep.subr.mxu0 %v3330
    %4370 = vmatpush1.msra.mxu0 %v3329
    %4371 = vmatprep.subr.mxu0 %v3328
    %4372 = vmatpush1.msra.mxu0 %v3327
    %4373 = vmatprep.subr.mxu0 0.0
    %4374 = vmatpush2.msra.mxu0 0.0
    %4375 = vmatprep.subr.mxu0 0.0
    %4376 = vmatpush2.msra.mxu0 0.0
    %4377 = vmatprep.subr.mxu0 0.0
    %4378 = vmatpush2.msra.mxu0 0.0
    %4379 = vmatprep.subr.mxu0 0.0
    %4380 = vmatpush2.msra.mxu0 0.0
    %4381 = vmatprep.subr.mxu0 0.0
    %4382 = vmatpush2.msra.mxu0 0.0
    %4383 = vmatprep.subr.mxu0 0.0
    %4384 = vmatpush2.msra.mxu0 0.0
    %4385 = vmatprep.subr.mxu0 0.0
    %4386 = vmatpush2.msra.mxu0 0.0
    %4387 = vmatprep.subr.mxu0 0.0
    %4388 = vmatpush2.msra.mxu0 0.0
    %4389 = vmatprep.subr.mxu0 0.0
    %4390 = vmatpush2.msra.mxu0 0.0
    %4391 = vmatprep.subr.mxu0 0.0
    %4392 = vmatpush2.msra.mxu0 0.0
    %4393 = vmatprep.subr.mxu0 %v3370
    %4394 = vmatpush2.msra.mxu0 %v3369
    %4395 = vmatprep.subr.mxu0 %v3368
    %4396 = vmatpush2.msra.mxu0 %v3367
    %4397 = vmatprep.subr.mxu0 %v3366
    %4398 = vmatpush2.msra.mxu0 %v3365
    %4399 = vmatprep.subr.mxu0 %v3364
    %4400 = vmatpush2.msra.mxu0 %v3363
    %4401 = vmatprep.subr.mxu0 %v3362
    %4402 = vmatpush2.msra.mxu0 %v3361
    %4403 = vmatprep.subr.mxu0 %v3360
    %4404 = vmatpush2.msra.mxu0 %v3359
    %4405 = vmatprep.mubr.f32.mxu0 %v4337
    %4406 = vmatmul.mubr.f32.gmra.mxu0 %v4327
    %v4407 = vpop.f32.mrf.mxu0
    %v4408 = vadd.f32 0.0, %v4407
    %v4409 = vpop.f32.mrf.mxu0
    %v4410 = vadd.f32 0.0, %v4409
    %4411 = vmatprep.mubr.f32.mxu0 %v4339
    %4412 = vmatmul.mubr.f32.gmra.mxu0 %v4332
    %v4413 = vpop.f32.mrf.mxu0
    %v4414 = vadd.f32 0.0, %v4413
    %v4415 = vpop.f32.mrf.mxu0
    %v4416 = vadd.f32 0.0, %v4415
    %4417 = vdwg.mxu0
    %v4418 = vsel %vm2786, %v4318, 0
    %v4420 = vsel %vm2786, %v4311, 0
    %4422 = vmatprep.subr.mxu0 %v3313
    %4423 = vmatpush1.msra.mxu0 %v3312
    %4424 = vmatprep.subr.mxu0 %v3311
    %4425 = vmatpush1.msra.mxu0 %v3310
    %4426 = vmatprep.subr.mxu0 %v3309
    %4427 = vmatpush1.msra.mxu0 %v3308
    %4428 = vmatprep.subr.mxu0 %v3307
    %4429 = vmatpush1.msra.mxu0 %v3306
    %4430 = vmatprep.subr.mxu0 %v3305
    %4431 = vmatpush1.msra.mxu0 %v3304
    %4432 = vmatprep.subr.mxu0 %v3303
    %4433 = vmatpush1.msra.mxu0 %v3302
    %4434 = vmatprep.subr.mxu0 %v3301
    %4435 = vmatpush1.msra.mxu0 %v3300
    %4436 = vmatprep.subr.mxu0 %v3299
    %4437 = vmatpush1.msra.mxu0 %v3298
    %4438 = vmatprep.subr.mxu0 %v3297
    %4439 = vmatpush1.msra.mxu0 %v3296
    %4440 = vmatprep.subr.mxu0 %v3295
    %4441 = vmatpush1.msra.mxu0 %v3294
    %4442 = vmatprep.subr.mxu0 %v3293
    %4443 = vmatpush1.msra.mxu0 %v3292
    %4444 = vmatprep.subr.mxu0 %v3291
    %4445 = vmatpush1.msra.mxu0 %v3290
    %4446 = vmatprep.subr.mxu0 %v3289
    %4447 = vmatpush1.msra.mxu0 %v3288
    %4448 = vmatprep.subr.mxu0 %v3287
    %4449 = vmatpush1.msra.mxu0 %v3286
    %4450 = vmatprep.subr.mxu0 %v3285
    %4451 = vmatpush1.msra.mxu0 %v3284
    %4452 = vmatprep.subr.mxu0 %v3283
    %4453 = vmatpush1.msra.mxu0 %v3282
    %4454 = vmatprep.subr.mxu0 0.0
    %4455 = vmatpush2.msra.mxu0 0.0
    %4456 = vmatprep.subr.mxu0 0.0
    %4457 = vmatpush2.msra.mxu0 0.0
    %4458 = vmatprep.subr.mxu0 0.0
    %4459 = vmatpush2.msra.mxu0 0.0
    %4460 = vmatprep.subr.mxu0 0.0
    %4461 = vmatpush2.msra.mxu0 0.0
    %4462 = vmatprep.subr.mxu0 0.0
    %4463 = vmatpush2.msra.mxu0 0.0
    %4464 = vmatprep.subr.mxu0 0.0
    %4465 = vmatpush2.msra.mxu0 0.0
    %4466 = vmatprep.subr.mxu0 0.0
    %4467 = vmatpush2.msra.mxu0 0.0
    %4468 = vmatprep.subr.mxu0 0.0
    %4469 = vmatpush2.msra.mxu0 0.0
    %4470 = vmatprep.subr.mxu0 0.0
    %4471 = vmatpush2.msra.mxu0 0.0
    %4472 = vmatprep.subr.mxu0 0.0
    %4473 = vmatpush2.msra.mxu0 0.0
    %4474 = vmatprep.subr.mxu0 %v3325
    %4475 = vmatpush2.msra.mxu0 %v3324
    %4476 = vmatprep.subr.mxu0 %v3323
    %4477 = vmatpush2.msra.mxu0 %v3322
    %4478 = vmatprep.subr.mxu0 %v3321
    %4479 = vmatpush2.msra.mxu0 %v3320
    %4480 = vmatprep.subr.mxu0 %v3319
    %4481 = vmatpush2.msra.mxu0 %v3318
    %4482 = vmatprep.subr.mxu0 %v3317
    %4483 = vmatpush2.msra.mxu0 %v3316
    %4484 = vmatprep.subr.mxu0 %v3315
    %4485 = vmatpush2.msra.mxu0 %v3314
    %4486 = vmatprep.mubr.f32.mxu0 %v4418
    %4487 = vmatmul.mubr.f32.gmra.mxu0 %v4317
    %v4488 = vpop.f32.mrf.mxu0
    %v4489 = vadd.f32 %v4408, %v4488
    %v4490 = vpop.f32.mrf.mxu0
    %v4491 = vadd.f32 %v4410, %v4490
    %4492 = vmatprep.mubr.f32.mxu0 %v4420
    %4493 = vmatmul.mubr.f32.gmra.mxu0 %v4309
    %v4494 = vpop.f32.mrf.mxu0
    %v4495 = vadd.f32 %v4414, %v4494
    %v4496 = vpop.f32.mrf.mxu0
    %v4497 = vadd.f32 %v4416, %v4496
    %4498 = vdwg.mxu0
    %v4499 = vrot.slane %v4317, 2
    %v4500 = vrot.slane %v4309, 2
    %v4501 = vsel %vm675, %v4499, %v4500
    %v4502 = vrot.slane %v4318, 2
    %v4503 = vrot.slane %v4311, 2
    %v4504 = vsel %vm675, %v4502, %v4503
    %v4505 = vrot.slane %v4319, 2
    %v4506 = vsel %vm675, %v4500, %v4505
    %v4507 = vrot.slane %v4320, 2
    %v4508 = vsel %vm675, %v4503, %v4507
    %v4511 = vsel %vm2786, %v4504, 0
    %v4513 = vsel %vm2786, %v4508, 0
    %4515 = vmatprep.subr.mxu0 %v3403
    %4516 = vmatpush1.msra.mxu0 %v3402
    %4517 = vmatprep.subr.mxu0 %v3401
    %4518 = vmatpush1.msra.mxu0 %v3400
    %4519 = vmatprep.subr.mxu0 %v3399
    %4520 = vmatpush1.msra.mxu0 %v3398
    %4521 = vmatprep.subr.mxu0 %v3397
    %4522 = vmatpush1.msra.mxu0 %v3396
    %4523 = vmatprep.subr.mxu0 %v3395
    %4524 = vmatpush1.msra.mxu0 %v3394
    %4525 = vmatprep.subr.mxu0 %v3393
    %4526 = vmatpush1.msra.mxu0 %v3392
    %4527 = vmatprep.subr.mxu0 %v3391
    %4528 = vmatpush1.msra.mxu0 %v3390
    %4529 = vmatprep.subr.mxu0 %v3389
    %4530 = vmatpush1.msra.mxu0 %v3388
    %4531 = vmatprep.subr.mxu0 %v3387
    %4532 = vmatpush1.msra.mxu0 %v3386
    %4533 = vmatprep.subr.mxu0 %v3385
    %4534 = vmatpush1.msra.mxu0 %v3384
    %4535 = vmatprep.subr.mxu0 %v3383
    %4536 = vmatpush1.msra.mxu0 %v3382
    %4537 = vmatprep.subr.mxu0 %v3381
    %4538 = vmatpush1.msra.mxu0 %v3380
    %4539 = vmatprep.subr.mxu0 %v3379
    %4540 = vmatpush1.msra.mxu0 %v3378
    %4541 = vmatprep.subr.mxu0 %v3377
    %4542 = vmatpush1.msra.mxu0 %v3376
    %4543 = vmatprep.subr.mxu0 %v3375
    %4544 = vmatpush1.msra.mxu0 %v3374
    %4545 = vmatprep.subr.mxu0 %v3373
    %4546 = vmatpush1.msra.mxu0 %v3372
    %4547 = vmatprep.subr.mxu0 0.0
    %4548 = vmatpush2.msra.mxu0 0.0
    %4549 = vmatprep.subr.mxu0 0.0
    %4550 = vmatpush2.msra.mxu0 0.0
    %4551 = vmatprep.subr.mxu0 0.0
    %4552 = vmatpush2.msra.mxu0 0.0
    %4553 = vmatprep.subr.mxu0 0.0
    %4554 = vmatpush2.msra.mxu0 0.0
    %4555 = vmatprep.subr.mxu0 0.0
    %4556 = vmatpush2.msra.mxu0 0.0
    %4557 = vmatprep.subr.mxu0 0.0
    %4558 = vmatpush2.msra.mxu0 0.0
    %4559 = vmatprep.subr.mxu0 0.0
    %4560 = vmatpush2.msra.mxu0 0.0
    %4561 = vmatprep.subr.mxu0 0.0
    %4562 = vmatpush2.msra.mxu0 0.0
    %4563 = vmatprep.subr.mxu0 0.0
    %4564 = vmatpush2.msra.mxu0 0.0
    %4565 = vmatprep.subr.mxu0 0.0
    %4566 = vmatpush2.msra.mxu0 0.0
    %4567 = vmatprep.subr.mxu0 %v3415
    %4568 = vmatpush2.msra.mxu0 %v3414
    %4569 = vmatprep.subr.mxu0 %v3413
    %4570 = vmatpush2.msra.mxu0 %v3412
    %4571 = vmatprep.subr.mxu0 %v3411
    %4572 = vmatpush2.msra.mxu0 %v3410
    %4573 = vmatprep.subr.mxu0 %v3409
    %4574 = vmatpush2.msra.mxu0 %v3408
    %4575 = vmatprep.subr.mxu0 %v3407
    %4576 = vmatpush2.msra.mxu0 %v3406
    %4577 = vmatprep.subr.mxu0 %v3405
    %4578 = vmatpush2.msra.mxu0 %v3404
    %4579 = vmatprep.mubr.f32.mxu0 %v4511
    %4580 = vmatmul.mubr.f32.gmra.mxu0 %v4501
    %v4581 = vpop.f32.mrf.mxu0
    %v4582 = vadd.f32 0.0, %v4581
    %v4583 = vpop.f32.mrf.mxu0
    %v4584 = vadd.f32 0.0, %v4583
    %4585 = vmatprep.mubr.f32.mxu0 %v4513
    %4586 = vmatmul.mubr.f32.gmra.mxu0 %v4506
    %v4587 = vpop.f32.mrf.mxu0
    %v4588 = vadd.f32 0.0, %v4587
    %v4589 = vpop.f32.mrf.mxu0
    %v4590 = vadd.f32 0.0, %v4589
    %4591 = vdwg.mxu0
    %v4592 = vadd.f32 %v4489, %v4582
    %v4593 = vadd.f32 %v4491, %v4584
    %v4594 = vadd.f32 %v4495, %v4588
    %v4595 = vadd.f32 %v4497, %v4590
    %v4596 = vrot.slane %v4317, 3
    %v4597 = vrot.slane %v4309, 3
    %v4598 = vsel %vm790, %v4596, %v4597
    %v4599 = vrot.slane %v4318, 3
    %v4600 = vrot.slane %v4311, 3
    %v4601 = vsel %vm790, %v4599, %v4600
    %v4602 = vrot.slane %v4319, 3
    %v4603 = vsel %vm790, %v4597, %v4602
    %v4604 = vrot.slane %v4320, 3
    %v4605 = vsel %vm790, %v4600, %v4604
    %v4608 = vsel %vm2786, %v4601, 0
    %v4610 = vsel %vm2786, %v4605, 0
    %4612 = vmatprep.subr.mxu0 %v3448
    %4613 = vmatpush1.msra.mxu0 %v3447
    %4614 = vmatprep.subr.mxu0 %v3446
    %4615 = vmatpush1.msra.mxu0 %v3445
    %4616 = vmatprep.subr.mxu0 %v3444
    %4617 = vmatpush1.msra.mxu0 %v3443
    %4618 = vmatprep.subr.mxu0 %v3442
    %4619 = vmatpush1.msra.mxu0 %v3441
    %4620 = vmatprep.subr.mxu0 %v3440
    %4621 = vmatpush1.msra.mxu0 %v3439
    %4622 = vmatprep.subr.mxu0 %v3438
    %4623 = vmatpush1.msra.mxu0 %v3437
    %4624 = vmatprep.subr.mxu0 %v3436
    %4625 = vmatpush1.msra.mxu0 %v3435
    %4626 = vmatprep.subr.mxu0 %v3434
    %4627 = vmatpush1.msra.mxu0 %v3433
    %4628 = vmatprep.subr.mxu0 %v3432
    %4629 = vmatpush1.msra.mxu0 %v3431
    %4630 = vmatprep.subr.mxu0 %v3430
    %4631 = vmatpush1.msra.mxu0 %v3429
    %4632 = vmatprep.subr.mxu0 %v3428
    %4633 = vmatpush1.msra.mxu0 %v3427
    %4634 = vmatprep.subr.mxu0 %v3426
    %4635 = vmatpush1.msra.mxu0 %v3425
    %4636 = vmatprep.subr.mxu0 %v3424
    %4637 = vmatpush1.msra.mxu0 %v3423
    %4638 = vmatprep.subr.mxu0 %v3422
    %4639 = vmatpush1.msra.mxu0 %v3421
    %4640 = vmatprep.subr.mxu0 %v3420
    %4641 = vmatpush1.msra.mxu0 %v3419
    %4642 = vmatprep.subr.mxu0 %v3418
    %4643 = vmatpush1.msra.mxu0 %v3417
    %4644 = vmatprep.subr.mxu0 0.0
    %4645 = vmatpush2.msra.mxu0 0.0
    %4646 = vmatprep.subr.mxu0 0.0
    %4647 = vmatpush2.msra.mxu0 0.0
    %4648 = vmatprep.subr.mxu0 0.0
    %4649 = vmatpush2.msra.mxu0 0.0
    %4650 = vmatprep.subr.mxu0 0.0
    %4651 = vmatpush2.msra.mxu0 0.0
    %4652 = vmatprep.subr.mxu0 0.0
    %4653 = vmatpush2.msra.mxu0 0.0
    %4654 = vmatprep.subr.mxu0 0.0
    %4655 = vmatpush2.msra.mxu0 0.0
    %4656 = vmatprep.subr.mxu0 0.0
    %4657 = vmatpush2.msra.mxu0 0.0
    %4658 = vmatprep.subr.mxu0 0.0
    %4659 = vmatpush2.msra.mxu0 0.0
    %4660 = vmatprep.subr.mxu0 0.0
    %4661 = vmatpush2.msra.mxu0 0.0
    %4662 = vmatprep.subr.mxu0 0.0
    %4663 = vmatpush2.msra.mxu0 0.0
    %4664 = vmatprep.subr.mxu0 %v3460
    %4665 = vmatpush2.msra.mxu0 %v3459
    %4666 = vmatprep.subr.mxu0 %v3458
    %4667 = vmatpush2.msra.mxu0 %v3457
    %4668 = vmatprep.subr.mxu0 %v3456
    %4669 = vmatpush2.msra.mxu0 %v3455
    %4670 = vmatprep.subr.mxu0 %v3454
    %4671 = vmatpush2.msra.mxu0 %v3453
    %4672 = vmatprep.subr.mxu0 %v3452
    %4673 = vmatpush2.msra.mxu0 %v3451
    %4674 = vmatprep.subr.mxu0 %v3450
    %4675 = vmatpush2.msra.mxu0 %v3449
    %4676 = vmatprep.mubr.f32.mxu0 %v4608
    %4677 = vmatmul.mubr.f32.gmra.mxu0 %v4598
    %v4678 = vpop.f32.mrf.mxu0
    %v4679 = vadd.f32 0.0, %v4678
    %v4680 = vpop.f32.mrf.mxu0
    %v4681 = vadd.f32 0.0, %v4680
    %4682 = vmatprep.mubr.f32.mxu0 %v4610
    %4683 = vmatmul.mubr.f32.gmra.mxu0 %v4603
    %v4684 = vpop.f32.mrf.mxu0
    %v4685 = vadd.f32 0.0, %v4684
    %v4686 = vpop.f32.mrf.mxu0
    %v4687 = vadd.f32 0.0, %v4686
    %4688 = vdwg.mxu0
    %v4689 = vadd.f32 %v4592, %v4679
    %v4690 = vadd.f32 %v4593, %v4681
    %v4691 = vadd.f32 %v4594, %v4685
    %v4692 = vadd.f32 %v4595, %v4687
    %v4693 = vrot.slane %v4317, 4
    %v4694 = vrot.slane %v4309, 4
    %v4695 = vsel %vm905, %v4693, %v4694
    %v4696 = vrot.slane %v4318, 4
    %v4697 = vrot.slane %v4311, 4
    %v4698 = vsel %vm905, %v4696, %v4697
    %v4699 = vrot.slane %v4319, 4
    %v4700 = vsel %vm905, %v4694, %v4699
    %v4701 = vrot.slane %v4320, 4
    %v4702 = vsel %vm905, %v4697, %v4701
    %v4705 = vsel %vm2786, %v4698, 0
    %v4707 = vsel %vm2786, %v4702, 0
    %4709 = vmatprep.subr.mxu0 %v3493
    %4710 = vmatpush1.msra.mxu0 %v3492
    %4711 = vmatprep.subr.mxu0 %v3491
    %4712 = vmatpush1.msra.mxu0 %v3490
    %4713 = vmatprep.subr.mxu0 %v3489
    %4714 = vmatpush1.msra.mxu0 %v3488
    %4715 = vmatprep.subr.mxu0 %v3487
    %4716 = vmatpush1.msra.mxu0 %v3486
    %4717 = vmatprep.subr.mxu0 %v3485
    %4718 = vmatpush1.msra.mxu0 %v3484
    %4719 = vmatprep.subr.mxu0 %v3483
    %4720 = vmatpush1.msra.mxu0 %v3482
    %4721 = vmatprep.subr.mxu0 %v3481
    %4722 = vmatpush1.msra.mxu0 %v3480
    %4723 = vmatprep.subr.mxu0 %v3479
    %4724 = vmatpush1.msra.mxu0 %v3478
    %4725 = vmatprep.subr.mxu0 %v3477
    %4726 = vmatpush1.msra.mxu0 %v3476
    %4727 = vmatprep.subr.mxu0 %v3475
    %4728 = vmatpush1.msra.mxu0 %v3474
    %4729 = vmatprep.subr.mxu0 %v3473
    %4730 = vmatpush1.msra.mxu0 %v3472
    %4731 = vmatprep.subr.mxu0 %v3471
    %4732 = vmatpush1.msra.mxu0 %v3470
    %4733 = vmatprep.subr.mxu0 %v3469
    %4734 = vmatpush1.msra.mxu0 %v3468
    %4735 = vmatprep.subr.mxu0 %v3467
    %4736 = vmatpush1.msra.mxu0 %v3466
    %4737 = vmatprep.subr.mxu0 %v3465
    %4738 = vmatpush1.msra.mxu0 %v3464
    %4739 = vmatprep.subr.mxu0 %v3463
    %4740 = vmatpush1.msra.mxu0 %v3462
    %4741 = vmatprep.subr.mxu0 0.0
    %4742 = vmatpush2.msra.mxu0 0.0
    %4743 = vmatprep.subr.mxu0 0.0
    %4744 = vmatpush2.msra.mxu0 0.0
    %4745 = vmatprep.subr.mxu0 0.0
    %4746 = vmatpush2.msra.mxu0 0.0
    %4747 = vmatprep.subr.mxu0 0.0
    %4748 = vmatpush2.msra.mxu0 0.0
    %4749 = vmatprep.subr.mxu0 0.0
    %4750 = vmatpush2.msra.mxu0 0.0
    %4751 = vmatprep.subr.mxu0 0.0
    %4752 = vmatpush2.msra.mxu0 0.0
    %4753 = vmatprep.subr.mxu0 0.0
    %4754 = vmatpush2.msra.mxu0 0.0
    %4755 = vmatprep.subr.mxu0 0.0
    %4756 = vmatpush2.msra.mxu0 0.0
    %4757 = vmatprep.subr.mxu0 0.0
    %4758 = vmatpush2.msra.mxu0 0.0
    %4759 = vmatprep.subr.mxu0 0.0
    %4760 = vmatpush2.msra.mxu0 0.0
    %4761 = vmatprep.subr.mxu0 %v3505
    %4762 = vmatpush2.msra.mxu0 %v3504
    %4763 = vmatprep.subr.mxu0 %v3503
    %4764 = vmatpush2.msra.mxu0 %v3502
    %4765 = vmatprep.subr.mxu0 %v3501
    %4766 = vmatpush2.msra.mxu0 %v3500
    %4767 = vmatprep.subr.mxu0 %v3499
    %4768 = vmatpush2.msra.mxu0 %v3498
    %4769 = vmatprep.subr.mxu0 %v3497
    %4770 = vmatpush2.msra.mxu0 %v3496
    %4771 = vmatprep.subr.mxu0 %v3495
    %4772 = vmatpush2.msra.mxu0 %v3494
    %4773 = vmatprep.mubr.f32.mxu0 %v4705
    %4774 = vmatmul.mubr.f32.gmra.mxu0 %v4695
    %v4775 = vpop.f32.mrf.mxu0
    %v4776 = vadd.f32 0.0, %v4775
    %v4777 = vpop.f32.mrf.mxu0
    %v4778 = vadd.f32 0.0, %v4777
    %4779 = vmatprep.mubr.f32.mxu0 %v4707
    %4780 = vmatmul.mubr.f32.gmra.mxu0 %v4700
    %v4781 = vpop.f32.mrf.mxu0
    %v4782 = vadd.f32 0.0, %v4781
    %v4783 = vpop.f32.mrf.mxu0
    %v4784 = vadd.f32 0.0, %v4783
    %4785 = vdwg.mxu0
    %v4786 = vadd.f32 %v4689, %v4776
    %v4787 = vadd.f32 %v4690, %v4778
    %v4788 = vadd.f32 %v4691, %v4782
    %v4789 = vadd.f32 %v4692, %v4784
    %v4790 = vrot.slane %v4317, 5
    %v4791 = vrot.slane %v4309, 5
    %v4792 = vsel %vm456, %v4790, %v4791
    %v4793 = vrot.slane %v4318, 5
    %v4794 = vrot.slane %v4311, 5
    %v4795 = vsel %vm456, %v4793, %v4794
    %v4796 = vrot.slane %v4319, 5
    %v4797 = vsel %vm456, %v4791, %v4796
    %v4798 = vrot.slane %v4320, 5
    %v4799 = vsel %vm456, %v4794, %v4798
    %v4802 = vsel %vm2786, %v4795, 0
    %v4804 = vsel %vm2786, %v4799, 0
    %4806 = vmatprep.subr.mxu0 %v3538
    %4807 = vmatpush1.msra.mxu0 %v3537
    %4808 = vmatprep.subr.mxu0 %v3536
    %4809 = vmatpush1.msra.mxu0 %v3535
    %4810 = vmatprep.subr.mxu0 %v3534
    %4811 = vmatpush1.msra.mxu0 %v3533
    %4812 = vmatprep.subr.mxu0 %v3532
    %4813 = vmatpush1.msra.mxu0 %v3531
    %4814 = vmatprep.subr.mxu0 %v3530
    %4815 = vmatpush1.msra.mxu0 %v3529
    %4816 = vmatprep.subr.mxu0 %v3528
    %4817 = vmatpush1.msra.mxu0 %v3527
    %4818 = vmatprep.subr.mxu0 %v3526
    %4819 = vmatpush1.msra.mxu0 %v3525
    %4820 = vmatprep.subr.mxu0 %v3524
    %4821 = vmatpush1.msra.mxu0 %v3523
    %4822 = vmatprep.subr.mxu0 %v3522
    %4823 = vmatpush1.msra.mxu0 %v3521
    %4824 = vmatprep.subr.mxu0 %v3520
    %4825 = vmatpush1.msra.mxu0 %v3519
    %4826 = vmatprep.subr.mxu0 %v3518
    %4827 = vmatpush1.msra.mxu0 %v3517
    %4828 = vmatprep.subr.mxu0 %v3516
    %4829 = vmatpush1.msra.mxu0 %v3515
    %4830 = vmatprep.subr.mxu0 %v3514
    %4831 = vmatpush1.msra.mxu0 %v3513
    %4832 = vmatprep.subr.mxu0 %v3512
    %4833 = vmatpush1.msra.mxu0 %v3511
    %4834 = vmatprep.subr.mxu0 %v3510
    %4835 = vmatpush1.msra.mxu0 %v3509
    %4836 = vmatprep.subr.mxu0 %v3508
    %4837 = vmatpush1.msra.mxu0 %v3507
    %4838 = vmatprep.subr.mxu0 0.0
    %4839 = vmatpush2.msra.mxu0 0.0
    %4840 = vmatprep.subr.mxu0 0.0
    %4841 = vmatpush2.msra.mxu0 0.0
    %4842 = vmatprep.subr.mxu0 0.0
    %4843 = vmatpush2.msra.mxu0 0.0
    %4844 = vmatprep.subr.mxu0 0.0
    %4845 = vmatpush2.msra.mxu0 0.0
    %4846 = vmatprep.subr.mxu0 0.0
    %4847 = vmatpush2.msra.mxu0 0.0
    %4848 = vmatprep.subr.mxu0 0.0
    %4849 = vmatpush2.msra.mxu0 0.0
    %4850 = vmatprep.subr.mxu0 0.0
    %4851 = vmatpush2.msra.mxu0 0.0
    %4852 = vmatprep.subr.mxu0 0.0
    %4853 = vmatpush2.msra.mxu0 0.0
    %4854 = vmatprep.subr.mxu0 0.0
    %4855 = vmatpush2.msra.mxu0 0.0
    %4856 = vmatprep.subr.mxu0 0.0
    %4857 = vmatpush2.msra.mxu0 0.0
    %4858 = vmatprep.subr.mxu0 %v3550
    %4859 = vmatpush2.msra.mxu0 %v3549
    %4860 = vmatprep.subr.mxu0 %v3548
    %4861 = vmatpush2.msra.mxu0 %v3547
    %4862 = vmatprep.subr.mxu0 %v3546
    %4863 = vmatpush2.msra.mxu0 %v3545
    %4864 = vmatprep.subr.mxu0 %v3544
    %4865 = vmatpush2.msra.mxu0 %v3543
    %4866 = vmatprep.subr.mxu0 %v3542
    %4867 = vmatpush2.msra.mxu0 %v3541
    %4868 = vmatprep.subr.mxu0 %v3540
    %4869 = vmatpush2.msra.mxu0 %v3539
    %4870 = vmatprep.mubr.f32.mxu0 %v4802
    %4871 = vmatmul.mubr.f32.gmra.mxu0 %v4792
    %v4872 = vpop.f32.mrf.mxu0
    %v4873 = vadd.f32 0.0, %v4872
    %v4874 = vpop.f32.mrf.mxu0
    %v4875 = vadd.f32 0.0, %v4874
    %4876 = vmatprep.mubr.f32.mxu0 %v4804
    %4877 = vmatmul.mubr.f32.gmra.mxu0 %v4797
    %v4878 = vpop.f32.mrf.mxu0
    %v4879 = vadd.f32 0.0, %v4878
    %v4880 = vpop.f32.mrf.mxu0
    %v4881 = vadd.f32 0.0, %v4880
    %4882 = vdwg.mxu0
    %v4883 = vadd.f32 %v4786, %v4873
    %v4884 = vadd.f32 %v4787, %v4875
    %v4885 = vadd.f32 %v4788, %v4879
    %v4886 = vadd.f32 %v4789, %v4881
    %v4887 = vrot.slane %v4317, 6
    %v4888 = vrot.slane %v4309, 6
    %v4889 = vsel %vm1134, %v4887, %v4888
    %v4890 = vrot.slane %v4318, 6
    %v4891 = vrot.slane %v4311, 6
    %v4892 = vsel %vm1134, %v4890, %v4891
    %v4893 = vrot.slane %v4319, 6
    %v4894 = vsel %vm1134, %v4888, %v4893
    %v4895 = vrot.slane %v4320, 6
    %v4896 = vsel %vm1134, %v4891, %v4895
    %v4899 = vsel %vm2786, %v4892, 0
    %v4901 = vsel %vm2786, %v4896, 0
    %4903 = vmatprep.subr.mxu0 %v3583
    %4904 = vmatpush1.msra.mxu0 %v3582
    %4905 = vmatprep.subr.mxu0 %v3581
    %4906 = vmatpush1.msra.mxu0 %v3580
    %4907 = vmatprep.subr.mxu0 %v3579
    %4908 = vmatpush1.msra.mxu0 %v3578
    %4909 = vmatprep.subr.mxu0 %v3577
    %4910 = vmatpush1.msra.mxu0 %v3576
    %4911 = vmatprep.subr.mxu0 %v3575
    %4912 = vmatpush1.msra.mxu0 %v3574
    %4913 = vmatprep.subr.mxu0 %v3573
    %4914 = vmatpush1.msra.mxu0 %v3572
    %4915 = vmatprep.subr.mxu0 %v3571
    %4916 = vmatpush1.msra.mxu0 %v3570
    %4917 = vmatprep.subr.mxu0 %v3569
    %4918 = vmatpush1.msra.mxu0 %v3568
    %4919 = vmatprep.subr.mxu0 %v3567
    %4920 = vmatpush1.msra.mxu0 %v3566
    %4921 = vmatprep.subr.mxu0 %v3565
    %4922 = vmatpush1.msra.mxu0 %v3564
    %4923 = vmatprep.subr.mxu0 %v3563
    %4924 = vmatpush1.msra.mxu0 %v3562
    %4925 = vmatprep.subr.mxu0 %v3561
    %4926 = vmatpush1.msra.mxu0 %v3560
    %4927 = vmatprep.subr.mxu0 %v3559
    %4928 = vmatpush1.msra.mxu0 %v3558
    %4929 = vmatprep.subr.mxu0 %v3557
    %4930 = vmatpush1.msra.mxu0 %v3556
    %4931 = vmatprep.subr.mxu0 %v3555
    %4932 = vmatpush1.msra.mxu0 %v3554
    %4933 = vmatprep.subr.mxu0 %v3553
    %4934 = vmatpush1.msra.mxu0 %v3552
    %4935 = vmatprep.subr.mxu0 0.0
    %4936 = vmatpush2.msra.mxu0 0.0
    %4937 = vmatprep.subr.mxu0 0.0
    %4938 = vmatpush2.msra.mxu0 0.0
    %4939 = vmatprep.subr.mxu0 0.0
    %4940 = vmatpush2.msra.mxu0 0.0
    %4941 = vmatprep.subr.mxu0 0.0
    %4942 = vmatpush2.msra.mxu0 0.0
    %4943 = vmatprep.subr.mxu0 0.0
    %4944 = vmatpush2.msra.mxu0 0.0
    %4945 = vmatprep.subr.mxu0 0.0
    %4946 = vmatpush2.msra.mxu0 0.0
    %4947 = vmatprep.subr.mxu0 0.0
    %4948 = vmatpush2.msra.mxu0 0.0
    %4949 = vmatprep.subr.mxu0 0.0
    %4950 = vmatpush2.msra.mxu0 0.0
    %4951 = vmatprep.subr.mxu0 0.0
    %4952 = vmatpush2.msra.mxu0 0.0
    %4953 = vmatprep.subr.mxu0 0.0
    %4954 = vmatpush2.msra.mxu0 0.0
    %4955 = vmatprep.subr.mxu0 %v3595
    %4956 = vmatpush2.msra.mxu0 %v3594
    %4957 = vmatprep.subr.mxu0 %v3593
    %4958 = vmatpush2.msra.mxu0 %v3592
    %4959 = vmatprep.subr.mxu0 %v3591
    %4960 = vmatpush2.msra.mxu0 %v3590
    %4961 = vmatprep.subr.mxu0 %v3589
    %4962 = vmatpush2.msra.mxu0 %v3588
    %4963 = vmatprep.subr.mxu0 %v3587
    %4964 = vmatpush2.msra.mxu0 %v3586
    %4965 = vmatprep.subr.mxu0 %v3585
    %4966 = vmatpush2.msra.mxu0 %v3584
    %4967 = vmatprep.mubr.f32.mxu0 %v4899
    %4968 = vmatmul.mubr.f32.gmra.mxu0 %v4889
    %v4969 = vpop.f32.mrf.mxu0
    %v4970 = vadd.f32 0.0, %v4969
    %v4971 = vpop.f32.mrf.mxu0
    %v4972 = vadd.f32 0.0, %v4971
    %4973 = vmatprep.mubr.f32.mxu0 %v4901
    %4974 = vmatmul.mubr.f32.gmra.mxu0 %v4894
    %v4975 = vpop.f32.mrf.mxu0
    %v4976 = vadd.f32 0.0, %v4975
    %v4977 = vpop.f32.mrf.mxu0
    %v4978 = vadd.f32 0.0, %v4977
    %4979 = vdwg.mxu0
    %v4980 = vadd.f32 %v4883, %v4970
    %v4981 = vadd.f32 %v4884, %v4972
    %v4982 = vadd.f32 %v4885, %v4976
    %v4983 = vadd.f32 %v4886, %v4978
    %v4984 = vadd.f32 %v4286, %v4288
    %v4985 = vrot.slane %v4984, 4
    %v4986 = vadd.f32 %v4984, %v4985
    %v4987 = vrot.slane %v4986, 2
    %v4988 = vadd.f32 %v4986, %v4987
    %v4989 = vrot.slane %v4988, 1
    %v4990 = vadd.f32 %v4988, %v4989
    %v4991 = vadd.f32 %v4287, %v4289
    %v4992 = vrot.slane %v4991, 4
    %v4993 = vadd.f32 %v4991, %v4992
    %v4994 = vrot.slane %v4993, 2
    %v4995 = vadd.f32 %v4993, %v4994
    %v4996 = vrot.slane %v4995, 1
    %v4997 = vadd.f32 %v4995, %v4996
    %v4998 = vmul.f32 %v4286, %v4286
    %v4999 = vmul.f32 %v4287, %v4287
    %v5000 = vmul.f32 %v4288, %v4288
    %v5001 = vmul.f32 %v4289, %v4289
    %v5002 = vadd.f32 %v4998, %v5000
    %v5003 = vrot.slane %v5002, 4
    %v5004 = vadd.f32 %v5002, %v5003
    %v5005 = vrot.slane %v5004, 2
    %v5006 = vadd.f32 %v5004, %v5005
    %v5007 = vrot.slane %v5006, 1
    %v5008 = vadd.f32 %v5006, %v5007
    %v5009 = vadd.f32 %v4999, %v5001
    %v5010 = vrot.slane %v5009, 4
    %v5011 = vadd.f32 %v5009, %v5010
    %v5012 = vrot.slane %v5011, 2
    %v5013 = vadd.f32 %v5011, %v5012
    %v5014 = vrot.slane %v5013, 1
    %v5015 = vadd.f32 %v5013, %v5014
    %v5016 = vadd.f32 %v4980, %v4982
    %v5017 = vrot.slane %v5016, 4
    %v5018 = vadd.f32 %v5016, %v5017
    %v5019 = vrot.slane %v5018, 2
    %v5020 = vadd.f32 %v5018, %v5019
    %v5021 = vrot.slane %v5020, 1
    %v5022 = vadd.f32 %v5020, %v5021
    %v5023 = vadd.f32 %v4981, %v4983
    %v5024 = vrot.slane %v5023, 4
    %v5025 = vadd.f32 %v5023, %v5024
    %v5026 = vrot.slane %v5025, 2
    %v5027 = vadd.f32 %v5025, %v5026
    %v5028 = vrot.slane %v5027, 1
    %v5029 = vadd.f32 %v5027, %v5028
    %v5030 = vadd.f32 %v4990, %v5022
    %v5031 = vadd.f32 %v4997, %v5029
    %v5032 = vmul.f32 %v4980, %v4980
    %v5033 = vmul.f32 %v4981, %v4981
    %v5034 = vmul.f32 %v4982, %v4982
    %v5035 = vmul.f32 %v4983, %v4983
    %v5036 = vadd.f32 %v5032, %v5034
    %v5037 = vrot.slane %v5036, 4
    %v5038 = vadd.f32 %v5036, %v5037
    %v5039 = vrot.slane %v5038, 2
    %v5040 = vadd.f32 %v5038, %v5039
    %v5041 = vrot.slane %v5040, 1
    %v5042 = vadd.f32 %v5040, %v5041
    %v5043 = vadd.f32 %v5033, %v5035
    %v5044 = vrot.slane %v5043, 4
    %v5045 = vadd.f32 %v5043, %v5044
    %v5046 = vrot.slane %v5045, 2
    %v5047 = vadd.f32 %v5045, %v5046
    %v5048 = vrot.slane %v5047, 1
    %v5049 = vadd.f32 %v5047, %v5048
    %v5050 = vadd.f32 %v5008, %v5042
    %v5051 = vadd.f32 %v5015, %v5049
    %v5052 = vld [vmem:[%s7] sm:$0xff]
    %v5053 = vld [vmem:[%s7 + $0x8] sm:$0xff]
    %v5054 = vld [vmem:[%s7 + $0x10] sm:$0xff]
    %v5055 = vld [vmem:[%s7 + $0x18] sm:$0xff]
    %v5056 = vld [vmem:[%s7 + $0x20] sm:$0xff]
    %v5057 = vld [vmem:[%s7 + $0x28] sm:$0xff]
    %v5058 = vld [vmem:[%s7 + $0x30] sm:$0xff]
    %v5059 = vld [vmem:[%s7 + $0x38] sm:$0xff]
    %v5060 = vld [vmem:[%s7 + $0x40] sm:$0xff]
    %v5061 = vld [vmem:[%s7 + $0x48] sm:$0xff]
    %v5062 = vld [vmem:[%s7 + $0x50] sm:$0xff]
    %v5063 = vld [vmem:[%s7 + $0x58] sm:$0xff]
    %v5064 = vld [vmem:[%s7 + $0x60] sm:$0xff]
    %v5065 = vld [vmem:[%s7 + $0x68] sm:$0xff]
    %v5066 = vld [vmem:[%s7 + $0x70] sm:$0xff]
    %v5067 = vld [vmem:[%s7 + $0x78] sm:$0xff]
    %v5068 = vld [vmem:[%s7 + $0x80] sm:$0xff]
    %v5069 = vld [vmem:[%s7 + $0x88] sm:$0xff]
    %v5070 = vld [vmem:[%s7 + $0x90] sm:$0xff]
    %v5071 = vld [vmem:[%s7 + $0x98] sm:$0xff]
    %v5072 = vld [vmem:[%s7 + $0xa0] sm:$0xff]
    %v5073 = vld [vmem:[%s7 + $0xa8] sm:$0xff]
    %v5074 = vld [vmem:[%s7 + $0xb0] sm:$0xff]
    %v5075 = vld [vmem:[%s7 + $0xb8] sm:$0xff]
    %v5076 = vld [vmem:[%s7 + $0xc0] sm:$0xff]
    %v5077 = vld [vmem:[%s7 + $0xc8] sm:$0xff]
    %v5078 = vld [vmem:[%s7 + $0xd0] sm:$0xff]
    %v5079 = vld [vmem:[%s7 + $0xd8] sm:$0xff]
    %v5080 = vld [vmem:[%s7 + $0xe0] sm:$0xff]
    %v5081 = vld [vmem:[%s7 + $0xe8] sm:$0xff]
    %v5082 = vld [vmem:[%s7 + $0xf0] sm:$0xff]
    %v5083 = vld [vmem:[%s7 + $0xf8] sm:$0xff]
    %5084 = vmatprep.subr.mxu0 0.0
    %5085 = vmatpush1.msra.mxu0 %v5067
    %5086 = vmatprep.subr.mxu0 0.0
    %5087 = vmatpush1.msra.mxu0 %v5066
    %5088 = vmatprep.subr.mxu0 0.0
    %5089 = vmatpush1.msra.mxu0 %v5065
    %5090 = vmatprep.subr.mxu0 0.0
    %5091 = vmatpush1.msra.mxu0 %v5064
    %5092 = vmatprep.subr.mxu0 0.0
    %5093 = vmatpush1.msra.mxu0 %v5063
    %5094 = vmatprep.subr.mxu0 0.0
    %5095 = vmatpush1.msra.mxu0 %v5062
    %5096 = vmatprep.subr.mxu0 0.0
    %5097 = vmatpush1.msra.mxu0 %v5061
    %5098 = vmatprep.subr.mxu0 0.0
    %5099 = vmatpush1.msra.mxu0 %v5060
    %5100 = vmatprep.subr.mxu0 0.0
    %5101 = vmatpush1.msra.mxu0 %v5059
    %5102 = vmatprep.subr.mxu0 0.0
    %5103 = vmatpush1.msra.mxu0 %v5058
    %5104 = vmatprep.subr.mxu0 0.0
    %5105 = vmatpush1.msra.mxu0 %v5057
    %5106 = vmatprep.subr.mxu0 0.0
    %5107 = vmatpush1.msra.mxu0 %v5056
    %5108 = vmatprep.subr.mxu0 0.0
    %5109 = vmatpush1.msra.mxu0 %v5055
    %5110 = vmatprep.subr.mxu0 0.0
    %5111 = vmatpush1.msra.mxu0 %v5054
    %5112 = vmatprep.subr.mxu0 0.0
    %5113 = vmatpush1.msra.mxu0 %v5053
    %5114 = vmatprep.subr.mxu0 0.0
    %5115 = vmatpush1.msra.mxu0 %v5052
    %5116 = vmatprep.subr.mxu0 0.0
    %5117 = vmatpush2.msra.mxu0 %v5083
    %5118 = vmatprep.subr.mxu0 0.0
    %5119 = vmatpush2.msra.mxu0 %v5082
    %5120 = vmatprep.subr.mxu0 0.0
    %5121 = vmatpush2.msra.mxu0 %v5081
    %5122 = vmatprep.subr.mxu0 0.0
    %5123 = vmatpush2.msra.mxu0 %v5080
    %5124 = vmatprep.subr.mxu0 0.0
    %5125 = vmatpush2.msra.mxu0 %v5079
    %5126 = vmatprep.subr.mxu0 0.0
    %5127 = vmatpush2.msra.mxu0 %v5078
    %5128 = vmatprep.subr.mxu0 0.0
    %5129 = vmatpush2.msra.mxu0 %v5077
    %5130 = vmatprep.subr.mxu0 0.0
    %5131 = vmatpush2.msra.mxu0 %v5076
    %5132 = vmatprep.subr.mxu0 0.0
    %5133 = vmatpush2.msra.mxu0 %v5075
    %5134 = vmatprep.subr.mxu0 0.0
    %5135 = vmatpush2.msra.mxu0 %v5074
    %5136 = vmatprep.subr.mxu0 0.0
    %5137 = vmatpush2.msra.mxu0 %v5073
    %5138 = vmatprep.subr.mxu0 0.0
    %5139 = vmatpush2.msra.mxu0 %v5072
    %5140 = vmatprep.subr.mxu0 0.0
    %5141 = vmatpush2.msra.mxu0 %v5071
    %5142 = vmatprep.subr.mxu0 0.0
    %5143 = vmatpush2.msra.mxu0 %v5070
    %5144 = vmatprep.subr.mxu0 0.0
    %5145 = vmatpush2.msra.mxu0 %v5069
    %5146 = vmatprep.subr.mxu0 0.0
    %5147 = vmatpush2.msra.mxu0 %v5068
    %5148 = vmatprep.mubr.f32.mxu0 %v5031
    %5149 = vmatmul.mubr.f32.gmra.mxu0 %v5030
    %v5150 = vpop.f32.mrf.mxu0
    %v5151 = vadd.f32 0.0, %v5150
    %v5152 = vpop.f32.mrf.mxu0
    %5153 = vdwg.mxu0
    %v5154 = vmul.f32 %v5151, 0.001953125
    %5155 = vmatprep.subr.mxu0 0.0
    %5156 = vmatpush1.msra.mxu0 %v5067
    %5157 = vmatprep.subr.mxu0 0.0
    %5158 = vmatpush1.msra.mxu0 %v5066
    %5159 = vmatprep.subr.mxu0 0.0
    %5160 = vmatpush1.msra.mxu0 %v5065
    %5161 = vmatprep.subr.mxu0 0.0
    %5162 = vmatpush1.msra.mxu0 %v5064
    %5163 = vmatprep.subr.mxu0 0.0
    %5164 = vmatpush1.msra.mxu0 %v5063
    %5165 = vmatprep.subr.mxu0 0.0
    %5166 = vmatpush1.msra.mxu0 %v5062
    %5167 = vmatprep.subr.mxu0 0.0
    %5168 = vmatpush1.msra.mxu0 %v5061
    %5169 = vmatprep.subr.mxu0 0.0
    %5170 = vmatpush1.msra.mxu0 %v5060
    %5171 = vmatprep.subr.mxu0 0.0
    %5172 = vmatpush1.msra.mxu0 %v5059
    %5173 = vmatprep.subr.mxu0 0.0
    %5174 = vmatpush1.msra.mxu0 %v5058
    %5175 = vmatprep.subr.mxu0 0.0
    %5176 = vmatpush1.msra.mxu0 %v5057
    %5177 = vmatprep.subr.mxu0 0.0
    %5178 = vmatpush1.msra.mxu0 %v5056
    %5179 = vmatprep.subr.mxu0 0.0
    %5180 = vmatpush1.msra.mxu0 %v5055
    %5181 = vmatprep.subr.mxu0 0.0
    %5182 = vmatpush1.msra.mxu0 %v5054
    %5183 = vmatprep.subr.mxu0 0.0
    %5184 = vmatpush1.msra.mxu0 %v5053
    %5185 = vmatprep.subr.mxu0 0.0
    %5186 = vmatpush1.msra.mxu0 %v5052
    %5187 = vmatprep.subr.mxu0 0.0
    %5188 = vmatpush2.msra.mxu0 %v5083
    %5189 = vmatprep.subr.mxu0 0.0
    %5190 = vmatpush2.msra.mxu0 %v5082
    %5191 = vmatprep.subr.mxu0 0.0
    %5192 = vmatpush2.msra.mxu0 %v5081
    %5193 = vmatprep.subr.mxu0 0.0
    %5194 = vmatpush2.msra.mxu0 %v5080
    %5195 = vmatprep.subr.mxu0 0.0
    %5196 = vmatpush2.msra.mxu0 %v5079
    %5197 = vmatprep.subr.mxu0 0.0
    %5198 = vmatpush2.msra.mxu0 %v5078
    %5199 = vmatprep.subr.mxu0 0.0
    %5200 = vmatpush2.msra.mxu0 %v5077
    %5201 = vmatprep.subr.mxu0 0.0
    %5202 = vmatpush2.msra.mxu0 %v5076
    %5203 = vmatprep.subr.mxu0 0.0
    %5204 = vmatpush2.msra.mxu0 %v5075
    %5205 = vmatprep.subr.mxu0 0.0
    %5206 = vmatpush2.msra.mxu0 %v5074
    %5207 = vmatprep.subr.mxu0 0.0
    %5208 = vmatpush2.msra.mxu0 %v5073
    %5209 = vmatprep.subr.mxu0 0.0
    %5210 = vmatpush2.msra.mxu0 %v5072
    %5211 = vmatprep.subr.mxu0 0.0
    %5212 = vmatpush2.msra.mxu0 %v5071
    %5213 = vmatprep.subr.mxu0 0.0
    %5214 = vmatpush2.msra.mxu0 %v5070
    %5215 = vmatprep.subr.mxu0 0.0
    %5216 = vmatpush2.msra.mxu0 %v5069
    %5217 = vmatprep.subr.mxu0 0.0
    %5218 = vmatpush2.msra.mxu0 %v5068
    %5219 = vmatprep.mubr.f32.mxu0 %v5051
    %5220 = vmatmul.mubr.f32.gmra.mxu0 %v5050
    %v5221 = vpop.f32.mrf.mxu0
    %v5222 = vadd.f32 0.0, %v5221
    %v5223 = vpop.f32.mrf.mxu0
    %5224 = vdwg.mxu0
    %v5225 = vmul.f32 %v5222, 0.001953125
    %v5226 = vmul.f32 %v5154, %v5154
    %v5227 = vsub.f32 %v5225, %v5226
    %v5228 = vmax.f32 %v5227, 0.0
    %v5229 = vld [vmem:[#allocation14] sm:$0x1]
    %v5230 = vadd.f32 %v5228, 1e-05
    %v5231 = vrsqrt.pop %v5230
    %v5232 = vmul.f32 %v5229, %v5231
    %v5233 = vld [vmem:[#allocation16] sm:$0x1]
    %v5234 = vmul.f32 %v5154, %v5232
    %v5235 = vsub.f32 %v5233, %v5234
    %v5236 = vld [vmem:[#allocation13] sm:$0xff]
    %v5237 = vld [vmem:[#allocation13 + $0x8] sm:$0xff]
    %v5238 = vld [vmem:[#allocation13 + $0x10] sm:$0xff]
    %v5239 = vld [vmem:[#allocation13 + $0x18] sm:$0xff]
    %v5241 = vsel %vm2767, %v5232, 0
    %5243 = vmatprep.subr.mxu0 0.0
    %5244 = vmatpush1.msra.mxu0 0.0
    %5245 = vmatprep.subr.mxu0 0.0
    %5246 = vmatpush1.msra.mxu0 0.0
    %5247 = vmatprep.subr.mxu0 0.0
    %5248 = vmatpush1.msra.mxu0 0.0
    %5249 = vmatprep.subr.mxu0 0.0
    %5250 = vmatpush1.msra.mxu0 0.0
    %5251 = vmatprep.subr.mxu0 0.0
    %5252 = vmatpush1.msra.mxu0 0.0
    %5253 = vmatprep.subr.mxu0 0.0
    %5254 = vmatpush1.msra.mxu0 0.0
    %5255 = vmatprep.subr.mxu0 0.0
    %5256 = vmatpush1.msra.mxu0 0.0
    %5257 = vmatprep.subr.mxu0 0.0
    %5258 = vmatpush1.msra.mxu0 0.0
    %5259 = vmatprep.subr.mxu0 0.0
    %5260 = vmatpush1.msra.mxu0 0.0
    %5261 = vmatprep.subr.mxu0 0.0
    %5262 = vmatpush1.msra.mxu0 0.0
    %5263 = vmatprep.subr.mxu0 0.0
    %5264 = vmatpush1.msra.mxu0 0.0
    %5265 = vmatprep.subr.mxu0 0.0
    %5266 = vmatpush1.msra.mxu0 0.0
    %5267 = vmatprep.subr.mxu0 0.0
    %5268 = vmatpush1.msra.mxu0 0.0
    %5269 = vmatprep.subr.mxu0 0.0
    %5270 = vmatpush1.msra.mxu0 0.0
    %5271 = vmatprep.subr.mxu0 %v5239
    %5272 = vmatpush1.msra.mxu0 %v5238
    %5273 = vmatprep.subr.mxu0 %v5237
    %5274 = vmatpush1.msra.mxu0 %v5236
    %5275 = vmatprep.subr.mxu0 0.0
    %5276 = vmatpush2.msra.mxu0 0.0
    %5277 = vmatprep.subr.mxu0 0.0
    %5278 = vmatpush2.msra.mxu0 0.0
    %5279 = vmatprep.subr.mxu0 0.0
    %5280 = vmatpush2.msra.mxu0 0.0
    %5281 = vmatprep.subr.mxu0 0.0
    %5282 = vmatpush2.msra.mxu0 0.0
    %5283 = vmatprep.subr.mxu0 0.0
    %5284 = vmatpush2.msra.mxu0 0.0
    %5285 = vmatprep.subr.mxu0 0.0
    %5286 = vmatpush2.msra.mxu0 0.0
    %5287 = vmatprep.subr.mxu0 0.0
    %5288 = vmatpush2.msra.mxu0 0.0
    %5289 = vmatprep.subr.mxu0 0.0
    %5290 = vmatpush2.msra.mxu0 0.0
    %5291 = vmatprep.subr.mxu0 0.0
    %5292 = vmatpush2.msra.mxu0 0.0
    %5293 = vmatprep.subr.mxu0 0.0
    %5294 = vmatpush2.msra.mxu0 0.0
    %5295 = vmatprep.subr.mxu0 0.0
    %5296 = vmatpush2.msra.mxu0 0.0
    %5297 = vmatprep.subr.mxu0 0.0
    %5298 = vmatpush2.msra.mxu0 0.0
    %5299 = vmatprep.subr.mxu0 0.0
    %5300 = vmatpush2.msra.mxu0 0.0
    %5301 = vmatprep.subr.mxu0 0.0
    %5302 = vmatpush2.msra.mxu0 0.0
    %5303 = vmatprep.subr.mxu0 0.0
    %5304 = vmatpush2.msra.mxu0 0.0
    %5305 = vmatprep.subr.mxu0 0.0
    %5306 = vmatpush2.msra.mxu0 0.0
    %5307 = vmatprep.mubr.f32.mxu0 0.0
    %5308 = vmatmul.mubr.f32.gmra.mxu0 %v5241
    %v5309 = vpop.f32.mrf.mxu0
    %v5310 = vadd.f32 0.0, %v5309
    %v5311 = vpop.f32.mrf.mxu0
    %v5312 = vadd.f32 0.0, %v5311
    %5313 = vdwg.mxu0
    %v5315 = vsel %vm2767, %v5235, 0
    %5317 = vmatprep.subr.mxu0 0.0
    %5318 = vmatpush1.msra.mxu0 0.0
    %5319 = vmatprep.subr.mxu0 0.0
    %5320 = vmatpush1.msra.mxu0 0.0
    %5321 = vmatprep.subr.mxu0 0.0
    %5322 = vmatpush1.msra.mxu0 0.0
    %5323 = vmatprep.subr.mxu0 0.0
    %5324 = vmatpush1.msra.mxu0 0.0
    %5325 = vmatprep.subr.mxu0 0.0
    %5326 = vmatpush1.msra.mxu0 0.0
    %5327 = vmatprep.subr.mxu0 0.0
    %5328 = vmatpush1.msra.mxu0 0.0
    %5329 = vmatprep.subr.mxu0 0.0
    %5330 = vmatpush1.msra.mxu0 0.0
    %5331 = vmatprep.subr.mxu0 0.0
    %5332 = vmatpush1.msra.mxu0 0.0
    %5333 = vmatprep.subr.mxu0 0.0
    %5334 = vmatpush1.msra.mxu0 0.0
    %5335 = vmatprep.subr.mxu0 0.0
    %5336 = vmatpush1.msra.mxu0 0.0
    %5337 = vmatprep.subr.mxu0 0.0
    %5338 = vmatpush1.msra.mxu0 0.0
    %5339 = vmatprep.subr.mxu0 0.0
    %5340 = vmatpush1.msra.mxu0 0.0
    %5341 = vmatprep.subr.mxu0 0.0
    %5342 = vmatpush1.msra.mxu0 0.0
    %5343 = vmatprep.subr.mxu0 0.0
    %5344 = vmatpush1.msra.mxu0 0.0
    %5345 = vmatprep.subr.mxu0 %v5239
    %5346 = vmatpush1.msra.mxu0 %v5238
    %5347 = vmatprep.subr.mxu0 %v5237
    %5348 = vmatpush1.msra.mxu0 %v5236
    %5349 = vmatprep.subr.mxu0 0.0
    %5350 = vmatpush2.msra.mxu0 0.0
    %5351 = vmatprep.subr.mxu0 0.0
    %5352 = vmatpush2.msra.mxu0 0.0
    %5353 = vmatprep.subr.mxu0 0.0
    %5354 = vmatpush2.msra.mxu0 0.0
    %5355 = vmatprep.subr.mxu0 0.0
    %5356 = vmatpush2.msra.mxu0 0.0
    %5357 = vmatprep.subr.mxu0 0.0
    %5358 = vmatpush2.msra.mxu0 0.0
    %5359 = vmatprep.subr.mxu0 0.0
    %5360 = vmatpush2.msra.mxu0 0.0
    %5361 = vmatprep.subr.mxu0 0.0
    %5362 = vmatpush2.msra.mxu0 0.0
    %5363 = vmatprep.subr.mxu0 0.0
    %5364 = vmatpush2.msra.mxu0 0.0
    %5365 = vmatprep.subr.mxu0 0.0
    %5366 = vmatpush2.msra.mxu0 0.0
    %5367 = vmatprep.subr.mxu0 0.0
    %5368 = vmatpush2.msra.mxu0 0.0
    %5369 = vmatprep.subr.mxu0 0.0
    %5370 = vmatpush2.msra.mxu0 0.0
    %5371 = vmatprep.subr.mxu0 0.0
    %5372 = vmatpush2.msra.mxu0 0.0
    %5373 = vmatprep.subr.mxu0 0.0
    %5374 = vmatpush2.msra.mxu0 0.0
    %5375 = vmatprep.subr.mxu0 0.0
    %5376 = vmatpush2.msra.mxu0 0.0
    %5377 = vmatprep.subr.mxu0 0.0
    %5378 = vmatpush2.msra.mxu0 0.0
    %5379 = vmatprep.subr.mxu0 0.0
    %5380 = vmatpush2.msra.mxu0 0.0
    %5381 = vmatprep.mubr.f32.mxu0 0.0
    %5382 = vmatmul.mubr.f32.gmra.mxu0 %v5315
    %v5383 = vpop.f32.mrf.mxu0
    %v5384 = vadd.f32 0.0, %v5383
    %v5385 = vpop.f32.mrf.mxu0
    %v5386 = vadd.f32 0.0, %v5385
    %5387 = vdwg.mxu0
    %v5388 = vlaneseq
    %v5389 = vshrl.u32 %v5388, 7
    %v5390 = vsub.s32 0, %v5389
    %v5391 = vrot.slane %v5310, %v5390
    %v5392 = vlaneseq
    %v5393 = vshrl.u32 %v5392, 7
    %v5394 = vsub.s32 0, %v5393
    %v5395 = vrot.slane %v5312, %v5394
    %v5396 = vmul.f32 %v4286, %v5391
    %v5397 = vmul.f32 %v4287, %v5395
    %v5398 = vmul.f32 %v4288, %v5391
    %v5399 = vmul.f32 %v4289, %v5395
    %v5400 = vlaneseq
    %v5401 = vshrl.u32 %v5400, 7
    %v5402 = vsub.s32 0, %v5401
    %v5403 = vrot.slane %v5384, %v5402
    %v5404 = vlaneseq
    %v5405 = vshrl.u32 %v5404, 7
    %v5406 = vsub.s32 0, %v5405
    %v5407 = vrot.slane %v5386, %v5406
    %v5408 = vadd.f32 %v5396, %v5403
    %v5409 = vadd.f32 %v5397, %v5407
    %v5410 = vadd.f32 %v5398, %v5403
    %v5411 = vadd.f32 %v5399, %v5407
    %v5412 = vmax.f32 %v5408, 0.0
    %v5413 = vmax.f32 %v5409, 0.0
    %v5414 = vmax.f32 %v5410, 0.0
    %v5415 = vmax.f32 %v5411, 0.0
    %5420 = vrot.lane.b32.xlu0 %v5412, 112
    %v5421 = vpop.permute.xlu0 %5420
    %5422 = vrot.lane.b32.xlu0 %v5413, 112
    %v5423 = vpop.permute.xlu0 %5422
    %5424 = vrot.lane.b32.xlu0 %v5414, 112
    %v5425 = vpop.permute.xlu0 %5424
    %5426 = vrot.lane.b32.xlu0 %v5415, 112
    %v5427 = vpop.permute.xlu0 %5426
    %v5428 = vsel %vm2826, %v5421, %v5423
    %v5429 = vsel %vm2826, %v5425, %v5427
    %v5434 = vmax.f32 %v5412, %v5428
    %v5435 = vmax.f32 %v5413, %v5423
    %v5436 = vmax.f32 %v5414, %v5429
    %v5437 = vmax.f32 %v5415, %v5427
    %5438 = vrot.lane.b32.xlu0 %v5412, 96
    %v5439 = vpop.permute.xlu0 %5438
    %5440 = vrot.lane.b32.xlu0 %v5413, 96
    %v5441 = vpop.permute.xlu0 %5440
    %5442 = vrot.lane.b32.xlu0 %v5414, 96
    %v5443 = vpop.permute.xlu0 %5442
    %5444 = vrot.lane.b32.xlu0 %v5415, 96
    %v5445 = vpop.permute.xlu0 %5444
    %v5446 = vsel %vm2816, %v5439, %v5441
    %v5447 = vsel %vm2816, %v5443, %v5445
    %v5452 = vmax.f32 %v5434, %v5446
    %v5453 = vmax.f32 %v5435, %v5441
    %v5454 = vmax.f32 %v5436, %v5447
    %v5455 = vmax.f32 %v5437, %v5445
    %5456 = vrot.lane.b32.xlu0 %v5412, 80
    %v5457 = vpop.permute.xlu0 %5456
    %5458 = vrot.lane.b32.xlu0 %v5413, 80
    %v5459 = vpop.permute.xlu0 %5458
    %5460 = vrot.lane.b32.xlu0 %v5414, 80
    %v5461 = vpop.permute.xlu0 %5460
    %5462 = vrot.lane.b32.xlu0 %v5415, 80
    %v5463 = vpop.permute.xlu0 %5462
    %v5464 = vsel %vm2806, %v5457, %v5459
    %v5465 = vsel %vm2806, %v5461, %v5463
    %v5470 = vmax.f32 %v5452, %v5464
    %v5471 = vmax.f32 %v5453, %v5459
    %v5472 = vmax.f32 %v5454, %v5465
    %v5473 = vmax.f32 %v5455, %v5463
    %5476 = vrot.lane.b32.xlu0 %v5470, 80
    %v5477 = vpop.permute.xlu0 %5476
    %5478 = vrot.lane.b32.xlu0 %v5472, 80
    %v5479 = vpop.permute.xlu0 %5478
    %5484 = vrot.lane.b32.xlu0 %v5471, 32
    %v5485 = vpop.permute.xlu0 %5484
    %5486 = vrot.lane.b32.xlu0 %v5473, 32
    %v5487 = vpop.permute.xlu0 %5486
    %5490 = vrot.lane.b32.xlu0 %v5471, 112
    %v5491 = vpop.permute.xlu0 %5490
    %5492 = vrot.lane.b32.xlu0 %v5473, 112
    %v5493 = vpop.permute.xlu0 %5492
    %v5496 = vsel %vm2767, %v5470, %v5477
    %v5497 = vsel %vm2767, %v5472, %v5479
    %v5498 = vsel %vm2777, %v5496, %v5485
    %v5499 = vsel %vm2777, %v5497, %v5487
    %v5500 = vsel %vm2786, %v5498, %v5491
    %v5501 = vsel %vm2786, %v5499, %v5493
    %v5504 = vrot.slane %v5500, 1
    %v5505 = vrot.slane %v5501, 1
    %v5506 = vsel %vm470, %v5504, %v5505
    %v5509 = vmax.f32 %v5500, %v5506
    %v5510 = vmax.f32 %v5501, %v5505
    %v5511 = vrot.slane %v5500, 2
    %v5512 = vrot.slane %v5501, 2
    %v5513 = vsel %vm675, %v5511, %v5512
    %v5516 = vmax.f32 %v5509, %v5513
    %v5517 = vmax.f32 %v5510, %v5512
    %v5518 = vrot.slane %v5500, 3
    %v5519 = vrot.slane %v5501, 3
    %v5520 = vsel %vm790, %v5518, %v5519
    %v5523 = vmax.f32 %v5516, %v5520
    %v5524 = vmax.f32 %v5517, %v5519
    %v5526 = vrot.slane %v5523, 3
    %v5529 = vrot.slane %v5524, 6
    %v5531 = vrot.slane %v5524, 1
    %v5533 = vsel %vm2886, %v5523, %v5526
    %v5534 = vsel %vm1134, %v5533, %v5529
    %v5535 = vsel %vm456, %v5534, %v5531
    %v5536 = vmul.f32 %v4980, %v5391
    %v5537 = vmul.f32 %v4981, %v5395
    %v5538 = vmul.f32 %v4982, %v5391
    %v5539 = vmul.f32 %v4983, %v5395
    %v5540 = vadd.f32 %v5536, %v5403
    %v5541 = vadd.f32 %v5537, %v5407
    %v5542 = vadd.f32 %v5538, %v5403
    %v5543 = vadd.f32 %v5539, %v5407
    %v5544 = vmax.f32 %v5540, 0.0
    %v5545 = vmax.f32 %v5541, 0.0
    %v5546 = vmax.f32 %v5542, 0.0
    %v5547 = vmax.f32 %v5543, 0.0
    %5552 = vrot.lane.b32.xlu0 %v5544, 112
    %v5553 = vpop.permute.xlu0 %5552
    %5554 = vrot.lane.b32.xlu0 %v5545, 112
    %v5555 = vpop.permute.xlu0 %5554
    %5556 = vrot.lane.b32.xlu0 %v5546, 112
    %v5557 = vpop.permute.xlu0 %5556
    %5558 = vrot.lane.b32.xlu0 %v5547, 112
    %v5559 = vpop.permute.xlu0 %5558
    %v5560 = vsel %vm2826, %v5553, %v5555
    %v5561 = vsel %vm2826, %v5557, %v5559
    %v5566 = vmax.f32 %v5544, %v5560
    %v5567 = vmax.f32 %v5545, %v5555
    %v5568 = vmax.f32 %v5546, %v5561
    %v5569 = vmax.f32 %v5547, %v5559
    %5570 = vrot.lane.b32.xlu0 %v5544, 96
    %v5571 = vpop.permute.xlu0 %5570
    %5572 = vrot.lane.b32.xlu0 %v5545, 96
    %v5573 = vpop.permute.xlu0 %5572
    %5574 = vrot.lane.b32.xlu0 %v5546, 96
    %v5575 = vpop.permute.xlu0 %5574
    %5576 = vrot.lane.b32.xlu0 %v5547, 96
    %v5577 = vpop.permute.xlu0 %5576
    %v5578 = vsel %vm2816, %v5571, %v5573
    %v5579 = vsel %vm2816, %v5575, %v5577
    %v5584 = vmax.f32 %v5566, %v5578
    %v5585 = vmax.f32 %v5567, %v5573
    %v5586 = vmax.f32 %v5568, %v5579
    %v5587 = vmax.f32 %v5569, %v5577
    %5588 = vrot.lane.b32.xlu0 %v5544, 80
    %v5589 = vpop.permute.xlu0 %5588
    %5590 = vrot.lane.b32.xlu0 %v5545, 80
    %v5591 = vpop.permute.xlu0 %5590
    %5592 = vrot.lane.b32.xlu0 %v5546, 80
    %v5593 = vpop.permute.xlu0 %5592
    %5594 = vrot.lane.b32.xlu0 %v5547, 80
    %v5595 = vpop.permute.xlu0 %5594
    %v5596 = vsel %vm2806, %v5589, %v5591
    %v5597 = vsel %vm2806, %v5593, %v5595
    %v5602 = vmax.f32 %v5584, %v5596
    %v5603 = vmax.f32 %v5585, %v5591
    %v5604 = vmax.f32 %v5586, %v5597
    %v5605 = vmax.f32 %v5587, %v5595
    %5608 = vrot.lane.b32.xlu0 %v5602, 80
    %v5609 = vpop.permute.xlu0 %5608
    %5610 = vrot.lane.b32.xlu0 %v5604, 80
    %v5611 = vpop.permute.xlu0 %5610
    %5616 = vrot.lane.b32.xlu0 %v5603, 32
    %v5617 = vpop.permute.xlu0 %5616
    %5618 = vrot.lane.b32.xlu0 %v5605, 32
    %v5619 = vpop.permute.xlu0 %5618
    %5622 = vrot.lane.b32.xlu0 %v5603, 112
    %v5623 = vpop.permute.xlu0 %5622
    %5624 = vrot.lane.b32.xlu0 %v5605, 112
    %v5625 = vpop.permute.xlu0 %5624
    %v5628 = vsel %vm2767, %v5602, %v5609
    %v5629 = vsel %vm2767, %v5604, %v5611
    %v5630 = vsel %vm2777, %v5628, %v5617
    %v5631 = vsel %vm2777, %v5629, %v5619
    %v5632 = vsel %vm2786, %v5630, %v5623
    %v5633 = vsel %vm2786, %v5631, %v5625
    %v5636 = vrot.slane %v5632, 1
    %v5637 = vrot.slane %v5633, 1
    %v5638 = vsel %vm470, %v5636, %v5637
    %v5641 = vmax.f32 %v5632, %v5638
    %v5642 = vmax.f32 %v5633, %v5637
    %v5643 = vrot.slane %v5632, 2
    %v5644 = vrot.slane %v5633, 2
    %v5645 = vsel %vm675, %v5643, %v5644
    %v5648 = vmax.f32 %v5641, %v5645
    %v5649 = vmax.f32 %v5642, %v5644
    %v5650 = vrot.slane %v5632, 3
    %v5651 = vrot.slane %v5633, 3
    %v5652 = vsel %vm790, %v5650, %v5651
    %v5655 = vmax.f32 %v5648, %v5652
    %v5656 = vmax.f32 %v5649, %v5651
    %v5658 = vrot.slane %v5655, 3
    %v5661 = vrot.slane %v5656, 6
    %v5663 = vrot.slane %v5656, 1
    %v5665 = vsel %vm2886, %v5655, %v5658
    %v5666 = vsel %vm1134, %v5665, %v5661
    %v5667 = vsel %vm456, %v5666, %v5663
    %v5668 = vld [vmem:[#allocation17] sm:$0xff]
    %v5669 = vld [vmem:[#allocation17 + $0x8] sm:$0xff]
    %v5670 = vld [vmem:[#allocation17 + $0x10] sm:$0xff]
    %v5671 = vld [vmem:[#allocation17 + $0x18] sm:$0xff]
    %v5672 = vld [vmem:[#allocation17 + $0x20] sm:$0xff]
    %v5673 = vld [vmem:[#allocation17 + $0x28] sm:$0xff]
    %v5674 = vld [vmem:[#allocation17 + $0x30] sm:$0xff]
    %v5675 = vld [vmem:[#allocation17 + $0x38] sm:$0xff]
    %v5676 = vld [vmem:[#allocation17 + $0x40] sm:$0xff]
    %v5677 = vld [vmem:[#allocation17 + $0x48] sm:$0xff]
    %v5678 = vld [vmem:[#allocation17 + $0x50] sm:$0xff]
    %v5679 = vld [vmem:[#allocation17 + $0x58] sm:$0xff]
    %v5680 = vld [vmem:[#allocation17 + $0x60] sm:$0xff]
    %v5681 = vld [vmem:[#allocation17 + $0x68] sm:$0xff]
    %v5682 = vld [vmem:[#allocation17 + $0x70] sm:$0xff]
    %v5683 = vld [vmem:[#allocation17 + $0x78] sm:$0xff]
    %v5684 = vld [vmem:[#allocation17 + $0x80] sm:$0xff]
    %v5685 = vld [vmem:[#allocation17 + $0x88] sm:$0xff]
    %v5686 = vld [vmem:[#allocation17 + $0x90] sm:$0xff]
    %v5687 = vld [vmem:[#allocation17 + $0x98] sm:$0xff]
    %s5688 = scalar_lea.vmem [#allocation17], 160
    %v5689 = vld [vmem:[%s5688] sm:$0xff]
    %v5690 = vld [vmem:[%s5688 + $0x8] sm:$0xff]
    %v5691 = vld [vmem:[%s5688 + $0x10] sm:$0xff]
    %v5692 = vld [vmem:[%s5688 + $0x18] sm:$0xff]
    %v5693 = vld [vmem:[%s5688 + $0x20] sm:$0xff]
    %v5694 = vld [vmem:[%s5688 + $0x28] sm:$0xff]
    %v5695 = vld [vmem:[%s5688 + $0x30] sm:$0xff]
    %v5696 = vld [vmem:[%s5688 + $0x38] sm:$0xff]
    %v5697 = vld [vmem:[%s5688 + $0x40] sm:$0xff]
    %v5698 = vld [vmem:[%s5688 + $0x48] sm:$0xff]
    %v5699 = vld [vmem:[%s5688 + $0x50] sm:$0xff]
    %v5700 = vld [vmem:[%s5688 + $0x58] sm:$0xff]
    %v5701 = vld [vmem:[%s5688 + $0x60] sm:$0xff]
    %v5702 = vld [vmem:[%s5688 + $0x68] sm:$0xff]
    %v5703 = vld [vmem:[%s5688 + $0x70] sm:$0xff]
    %v5704 = vld [vmem:[%s5688 + $0x78] sm:$0xff]
    %v5705 = vld [vmem:[%s5688 + $0x80] sm:$0xff]
    %v5706 = vld [vmem:[%s5688 + $0x88] sm:$0xff]
    %v5707 = vld [vmem:[%s5688 + $0x90] sm:$0xff]
    %v5708 = vld [vmem:[%s5688 + $0x98] sm:$0xff]
    %s5709 = scalar_lea.vmem [#allocation17], 320
    %v5710 = vld [vmem:[%s5709] sm:$0xff]
    %v5711 = vld [vmem:[%s5709 + $0x8] sm:$0xff]
    %v5712 = vld [vmem:[%s5709 + $0x10] sm:$0xff]
    %v5713 = vld [vmem:[%s5709 + $0x18] sm:$0xff]
    %v5714 = vld [vmem:[%s5709 + $0x20] sm:$0xff]
    %v5715 = vld [vmem:[%s5709 + $0x28] sm:$0xff]
    %v5716 = vld [vmem:[%s5709 + $0x30] sm:$0xff]
    %v5717 = vld [vmem:[%s5709 + $0x38] sm:$0xff]
    %v5718 = vld [vmem:[%s5709 + $0x40] sm:$0xff]
    %v5719 = vld [vmem:[%s5709 + $0x48] sm:$0xff]
    %v5720 = vld [vmem:[%s5709 + $0x50] sm:$0xff]
    %v5721 = vld [vmem:[%s5709 + $0x58] sm:$0xff]
    %v5722 = vld [vmem:[%s5709 + $0x60] sm:$0xff]
    %v5723 = vld [vmem:[%s5709 + $0x68] sm:$0xff]
    %v5724 = vld [vmem:[%s5709 + $0x70] sm:$0xff]
    %v5725 = vld [vmem:[%s5709 + $0x78] sm:$0xff]
    %v5726 = vld [vmem:[%s5709 + $0x80] sm:$0xff]
    %v5727 = vld [vmem:[%s5709 + $0x88] sm:$0xff]
    %v5728 = vld [vmem:[%s5709 + $0x90] sm:$0xff]
    %v5729 = vld [vmem:[%s5709 + $0x98] sm:$0xff]
    %s5730 = scalar_lea.vmem [#allocation17], 480
    %v5731 = vld [vmem:[%s5730] sm:$0xff]
    %v5732 = vld [vmem:[%s5730 + $0x8] sm:$0xff]
    %v5733 = vld [vmem:[%s5730 + $0x10] sm:$0xff]
    %v5734 = vld [vmem:[%s5730 + $0x18] sm:$0xff]
    %v5735 = vld [vmem:[%s5730 + $0x20] sm:$0xff]
    %v5736 = vld [vmem:[%s5730 + $0x28] sm:$0xff]
    %v5737 = vld [vmem:[%s5730 + $0x30] sm:$0xff]
    %v5738 = vld [vmem:[%s5730 + $0x38] sm:$0xff]
    %v5739 = vld [vmem:[%s5730 + $0x40] sm:$0xff]
    %v5740 = vld [vmem:[%s5730 + $0x48] sm:$0xff]
    %v5741 = vld [vmem:[%s5730 + $0x50] sm:$0xff]
    %v5742 = vld [vmem:[%s5730 + $0x58] sm:$0xff]
    %v5743 = vld [vmem:[%s5730 + $0x60] sm:$0xff]
    %v5744 = vld [vmem:[%s5730 + $0x68] sm:$0xff]
    %v5745 = vld [vmem:[%s5730 + $0x70] sm:$0xff]
    %v5746 = vld [vmem:[%s5730 + $0x78] sm:$0xff]
    %v5747 = vld [vmem:[%s5730 + $0x80] sm:$0xff]
    %v5748 = vld [vmem:[%s5730 + $0x88] sm:$0xff]
    %v5749 = vld [vmem:[%s5730 + $0x90] sm:$0xff]
    %v5750 = vld [vmem:[%s5730 + $0x98] sm:$0xff]
    %s5751 = scalar_lea.vmem [#allocation17], 640
    %v5752 = vld [vmem:[%s5751] sm:$0xff]
    %v5753 = vld [vmem:[%s5751 + $0x8] sm:$0xff]
    %v5754 = vld [vmem:[%s5751 + $0x10] sm:$0xff]
    %v5755 = vld [vmem:[%s5751 + $0x18] sm:$0xff]
    %v5756 = vld [vmem:[%s5751 + $0x20] sm:$0xff]
    %v5757 = vld [vmem:[%s5751 + $0x28] sm:$0xff]
    %v5758 = vld [vmem:[%s5751 + $0x30] sm:$0xff]
    %v5759 = vld [vmem:[%s5751 + $0x38] sm:$0xff]
    %v5760 = vld [vmem:[%s5751 + $0x40] sm:$0xff]
    %v5761 = vld [vmem:[%s5751 + $0x48] sm:$0xff]
    %v5762 = vld [vmem:[%s5751 + $0x50] sm:$0xff]
    %v5763 = vld [vmem:[%s5751 + $0x58] sm:$0xff]
    %v5764 = vld [vmem:[%s5751 + $0x60] sm:$0xff]
    %v5765 = vld [vmem:[%s5751 + $0x68] sm:$0xff]
    %v5766 = vld [vmem:[%s5751 + $0x70] sm:$0xff]
    %v5767 = vld [vmem:[%s5751 + $0x78] sm:$0xff]
    %v5768 = vld [vmem:[%s5751 + $0x80] sm:$0xff]
    %v5769 = vld [vmem:[%s5751 + $0x88] sm:$0xff]
    %v5770 = vld [vmem:[%s5751 + $0x90] sm:$0xff]
    %v5771 = vld [vmem:[%s5751 + $0x98] sm:$0xff]
    %s5772 = scalar_lea.vmem [#allocation17], 800
    %v5773 = vld [vmem:[%s5772] sm:$0xff]
    %v5774 = vld [vmem:[%s5772 + $0x8] sm:$0xff]
    %v5775 = vld [vmem:[%s5772 + $0x10] sm:$0xff]
    %v5776 = vld [vmem:[%s5772 + $0x18] sm:$0xff]
    %v5777 = vld [vmem:[%s5772 + $0x20] sm:$0xff]
    %v5778 = vld [vmem:[%s5772 + $0x28] sm:$0xff]
    %v5779 = vld [vmem:[%s5772 + $0x30] sm:$0xff]
    %v5780 = vld [vmem:[%s5772 + $0x38] sm:$0xff]
    %v5781 = vld [vmem:[%s5772 + $0x40] sm:$0xff]
    %v5782 = vld [vmem:[%s5772 + $0x48] sm:$0xff]
    %v5783 = vld [vmem:[%s5772 + $0x50] sm:$0xff]
    %v5784 = vld [vmem:[%s5772 + $0x58] sm:$0xff]
    %v5785 = vld [vmem:[%s5772 + $0x60] sm:$0xff]
    %v5786 = vld [vmem:[%s5772 + $0x68] sm:$0xff]
    %v5787 = vld [vmem:[%s5772 + $0x70] sm:$0xff]
    %v5788 = vld [vmem:[%s5772 + $0x78] sm:$0xff]
    %v5789 = vld [vmem:[%s5772 + $0x80] sm:$0xff]
    %v5790 = vld [vmem:[%s5772 + $0x88] sm:$0xff]
    %v5791 = vld [vmem:[%s5772 + $0x90] sm:$0xff]
    %v5792 = vld [vmem:[%s5772 + $0x98] sm:$0xff]
    %s5793 = scalar_lea.vmem [#allocation17], 960
    %v5794 = vld [vmem:[%s5793] sm:$0xff]
    %v5795 = vld [vmem:[%s5793 + $0x8] sm:$0xff]
    %v5796 = vld [vmem:[%s5793 + $0x10] sm:$0xff]
    %v5797 = vld [vmem:[%s5793 + $0x18] sm:$0xff]
    %v5798 = vld [vmem:[%s5793 + $0x20] sm:$0xff]
    %v5799 = vld [vmem:[%s5793 + $0x28] sm:$0xff]
    %v5800 = vld [vmem:[%s5793 + $0x30] sm:$0xff]
    %v5801 = vld [vmem:[%s5793 + $0x38] sm:$0xff]
    %v5802 = vld [vmem:[%s5793 + $0x40] sm:$0xff]
    %v5803 = vld [vmem:[%s5793 + $0x48] sm:$0xff]
    %v5804 = vld [vmem:[%s5793 + $0x50] sm:$0xff]
    %v5805 = vld [vmem:[%s5793 + $0x58] sm:$0xff]
    %v5806 = vld [vmem:[%s5793 + $0x60] sm:$0xff]
    %v5807 = vld [vmem:[%s5793 + $0x68] sm:$0xff]
    %v5808 = vld [vmem:[%s5793 + $0x70] sm:$0xff]
    %v5809 = vld [vmem:[%s5793 + $0x78] sm:$0xff]
    %v5810 = vld [vmem:[%s5793 + $0x80] sm:$0xff]
    %v5811 = vld [vmem:[%s5793 + $0x88] sm:$0xff]
    %v5812 = vld [vmem:[%s5793 + $0x90] sm:$0xff]
    %v5813 = vld [vmem:[%s5793 + $0x98] sm:$0xff]
    %5815 = vrot.lane.b32.xlu0 %v5535, 48
    %v5816 = vpop.permute.xlu0 %5815
    %v5818 = vsel %vm2786, 0.0, %v5816
    %v5819 = vsel %vm2826, %v5818, 0.0
    %v5822 = vrot.slane %v5819, 5
    %v5823 = vrot.slane 0.0, 5
    %v5826 = vsel %vm456, 0.0, %v5822
    %v5827 = vsel %vm456, 0.0, %v5823
    %v5828 = vsel %vm470, %v5826, 0.0
    %v5829 = vsel %vm470, %v5827, 0.0
    %v5832 = vrot.slane %v5828, 1
    %v5833 = vrot.slane %v5829, 1
    %v5835 = vsel %vm2777, %v5833, 0
    %5837 = vmatprep.subr.mxu0 0.0
    %5838 = vmatpush1.msra.mxu0 %v5704
    %5839 = vmatprep.subr.mxu0 0.0
    %5840 = vmatpush1.msra.mxu0 %v5703
    %5841 = vmatprep.subr.mxu0 0.0
    %5842 = vmatpush1.msra.mxu0 %v5702
    %5843 = vmatprep.subr.mxu0 0.0
    %5844 = vmatpush1.msra.mxu0 %v5701
    %5845 = vmatprep.subr.mxu0 0.0
    %5846 = vmatpush1.msra.mxu0 %v5700
    %5847 = vmatprep.subr.mxu0 0.0
    %5848 = vmatpush1.msra.mxu0 %v5699
    %5849 = vmatprep.subr.mxu0 0.0
    %5850 = vmatpush1.msra.mxu0 %v5698
    %5851 = vmatprep.subr.mxu0 0.0
    %5852 = vmatpush1.msra.mxu0 %v5697
    %5853 = vmatprep.subr.mxu0 0.0
    %5854 = vmatpush1.msra.mxu0 %v5696
    %5855 = vmatprep.subr.mxu0 0.0
    %5856 = vmatpush1.msra.mxu0 %v5695
    %5857 = vmatprep.subr.mxu0 0.0
    %5858 = vmatpush1.msra.mxu0 %v5694
    %5859 = vmatprep.subr.mxu0 0.0
    %5860 = vmatpush1.msra.mxu0 %v5693
    %5861 = vmatprep.subr.mxu0 0.0
    %5862 = vmatpush1.msra.mxu0 %v5692
    %5863 = vmatprep.subr.mxu0 0.0
    %5864 = vmatpush1.msra.mxu0 %v5691
    %5865 = vmatprep.subr.mxu0 0.0
    %5866 = vmatpush1.msra.mxu0 %v5690
    %5867 = vmatprep.subr.mxu0 0.0
    %5868 = vmatpush1.msra.mxu0 %v5689
    %5869 = vmatprep.subr.mxu0 0.0
    %5870 = vmatpush2.msra.mxu0 0.0
    %5871 = vmatprep.subr.mxu0 0.0
    %5872 = vmatpush2.msra.mxu0 0.0
    %5873 = vmatprep.subr.mxu0 0.0
    %5874 = vmatpush2.msra.mxu0 0.0
    %5875 = vmatprep.subr.mxu0 0.0
    %5876 = vmatpush2.msra.mxu0 0.0
    %5877 = vmatprep.subr.mxu0 0.0
    %5878 = vmatpush2.msra.mxu0 0.0
    %5879 = vmatprep.subr.mxu0 0.0
    %5880 = vmatpush2.msra.mxu0 0.0
    %5881 = vmatprep.subr.mxu0 0.0
    %5882 = vmatpush2.msra.mxu0 0.0
    %5883 = vmatprep.subr.mxu0 0.0
    %5884 = vmatpush2.msra.mxu0 0.0
    %5885 = vmatprep.subr.mxu0 0.0
    %5886 = vmatpush2.msra.mxu0 0.0
    %5887 = vmatprep.subr.mxu0 0.0
    %5888 = vmatpush2.msra.mxu0 0.0
    %5889 = vmatprep.subr.mxu0 0.0
    %5890 = vmatpush2.msra.mxu0 0.0
    %5891 = vmatprep.subr.mxu0 0.0
    %5892 = vmatpush2.msra.mxu0 0.0
    %5893 = vmatprep.subr.mxu0 0.0
    %5894 = vmatpush2.msra.mxu0 %v5708
    %5895 = vmatprep.subr.mxu0 0.0
    %5896 = vmatpush2.msra.mxu0 %v5707
    %5897 = vmatprep.subr.mxu0 0.0
    %5898 = vmatpush2.msra.mxu0 %v5706
    %5899 = vmatprep.subr.mxu0 0.0
    %5900 = vmatpush2.msra.mxu0 %v5705
    %5901 = vmatprep.mubr.f32.mxu0 %v5835
    %5902 = vmatmul.mubr.f32.gmra.mxu0 %v5832
    %v5903 = vpop.f32.mrf.mxu0
    %v5904 = vadd.f32 0.0, %v5903
    %v5905 = vpop.f32.mrf.mxu0
    %5906 = vdwg.mxu0
    %v5907 = vsel %vm2777, %v5829, 0
    %5909 = vmatprep.subr.mxu0 0.0
    %5910 = vmatpush1.msra.mxu0 %v5683
    %5911 = vmatprep.subr.mxu0 0.0
    %5912 = vmatpush1.msra.mxu0 %v5682
    %5913 = vmatprep.subr.mxu0 0.0
    %5914 = vmatpush1.msra.mxu0 %v5681
    %5915 = vmatprep.subr.mxu0 0.0
    %5916 = vmatpush1.msra.mxu0 %v5680
    %5917 = vmatprep.subr.mxu0 0.0
    %5918 = vmatpush1.msra.mxu0 %v5679
    %5919 = vmatprep.subr.mxu0 0.0
    %5920 = vmatpush1.msra.mxu0 %v5678
    %5921 = vmatprep.subr.mxu0 0.0
    %5922 = vmatpush1.msra.mxu0 %v5677
    %5923 = vmatprep.subr.mxu0 0.0
    %5924 = vmatpush1.msra.mxu0 %v5676
    %5925 = vmatprep.subr.mxu0 0.0
    %5926 = vmatpush1.msra.mxu0 %v5675
    %5927 = vmatprep.subr.mxu0 0.0
    %5928 = vmatpush1.msra.mxu0 %v5674
    %5929 = vmatprep.subr.mxu0 0.0
    %5930 = vmatpush1.msra.mxu0 %v5673
    %5931 = vmatprep.subr.mxu0 0.0
    %5932 = vmatpush1.msra.mxu0 %v5672
    %5933 = vmatprep.subr.mxu0 0.0
    %5934 = vmatpush1.msra.mxu0 %v5671
    %5935 = vmatprep.subr.mxu0 0.0
    %5936 = vmatpush1.msra.mxu0 %v5670
    %5937 = vmatprep.subr.mxu0 0.0
    %5938 = vmatpush1.msra.mxu0 %v5669
    %5939 = vmatprep.subr.mxu0 0.0
    %5940 = vmatpush1.msra.mxu0 %v5668
    %5941 = vmatprep.subr.mxu0 0.0
    %5942 = vmatpush2.msra.mxu0 0.0
    %5943 = vmatprep.subr.mxu0 0.0
    %5944 = vmatpush2.msra.mxu0 0.0
    %5945 = vmatprep.subr.mxu0 0.0
    %5946 = vmatpush2.msra.mxu0 0.0
    %5947 = vmatprep.subr.mxu0 0.0
    %5948 = vmatpush2.msra.mxu0 0.0
    %5949 = vmatprep.subr.mxu0 0.0
    %5950 = vmatpush2.msra.mxu0 0.0
    %5951 = vmatprep.subr.mxu0 0.0
    %5952 = vmatpush2.msra.mxu0 0.0
    %5953 = vmatprep.subr.mxu0 0.0
    %5954 = vmatpush2.msra.mxu0 0.0
    %5955 = vmatprep.subr.mxu0 0.0
    %5956 = vmatpush2.msra.mxu0 0.0
    %5957 = vmatprep.subr.mxu0 0.0
    %5958 = vmatpush2.msra.mxu0 0.0
    %5959 = vmatprep.subr.mxu0 0.0
    %5960 = vmatpush2.msra.mxu0 0.0
    %5961 = vmatprep.subr.mxu0 0.0
    %5962 = vmatpush2.msra.mxu0 0.0
    %5963 = vmatprep.subr.mxu0 0.0
    %5964 = vmatpush2.msra.mxu0 0.0
    %5965 = vmatprep.subr.mxu0 0.0
    %5966 = vmatpush2.msra.mxu0 %v5687
    %5967 = vmatprep.subr.mxu0 0.0
    %5968 = vmatpush2.msra.mxu0 %v5686
    %5969 = vmatprep.subr.mxu0 0.0
    %5970 = vmatpush2.msra.mxu0 %v5685
    %5971 = vmatprep.subr.mxu0 0.0
    %5972 = vmatpush2.msra.mxu0 %v5684
    %5973 = vmatprep.mubr.f32.mxu0 %v5907
    %5974 = vmatmul.mubr.f32.gmra.mxu0 %v5828
    %v5975 = vpop.f32.mrf.mxu0
    %v5976 = vadd.f32 %v5904, %v5975
    %v5977 = vpop.f32.mrf.mxu0
    %5978 = vdwg.mxu0
    %v5979 = vrot.slane %v5828, 2
    %v5980 = vrot.slane %v5829, 2
    %v5982 = vsel %vm2777, %v5980, 0
    %5984 = vmatprep.subr.mxu0 0.0
    %5985 = vmatpush1.msra.mxu0 %v5725
    %5986 = vmatprep.subr.mxu0 0.0
    %5987 = vmatpush1.msra.mxu0 %v5724
    %5988 = vmatprep.subr.mxu0 0.0
    %5989 = vmatpush1.msra.mxu0 %v5723
    %5990 = vmatprep.subr.mxu0 0.0
    %5991 = vmatpush1.msra.mxu0 %v5722
    %5992 = vmatprep.subr.mxu0 0.0
    %5993 = vmatpush1.msra.mxu0 %v5721
    %5994 = vmatprep.subr.mxu0 0.0
    %5995 = vmatpush1.msra.mxu0 %v5720
    %5996 = vmatprep.subr.mxu0 0.0
    %5997 = vmatpush1.msra.mxu0 %v5719
    %5998 = vmatprep.subr.mxu0 0.0
    %5999 = vmatpush1.msra.mxu0 %v5718
    %6000 = vmatprep.subr.mxu0 0.0
    %6001 = vmatpush1.msra.mxu0 %v5717
    %6002 = vmatprep.subr.mxu0 0.0
    %6003 = vmatpush1.msra.mxu0 %v5716
    %6004 = vmatprep.subr.mxu0 0.0
    %6005 = vmatpush1.msra.mxu0 %v5715
    %6006 = vmatprep.subr.mxu0 0.0
    %6007 = vmatpush1.msra.mxu0 %v5714
    %6008 = vmatprep.subr.mxu0 0.0
    %6009 = vmatpush1.msra.mxu0 %v5713
    %6010 = vmatprep.subr.mxu0 0.0
    %6011 = vmatpush1.msra.mxu0 %v5712
    %6012 = vmatprep.subr.mxu0 0.0
    %6013 = vmatpush1.msra.mxu0 %v5711
    %6014 = vmatprep.subr.mxu0 0.0
    %6015 = vmatpush1.msra.mxu0 %v5710
    %6016 = vmatprep.subr.mxu0 0.0
    %6017 = vmatpush2.msra.mxu0 0.0
    %6018 = vmatprep.subr.mxu0 0.0
    %6019 = vmatpush2.msra.mxu0 0.0
    %6020 = vmatprep.subr.mxu0 0.0
    %6021 = vmatpush2.msra.mxu0 0.0
    %6022 = vmatprep.subr.mxu0 0.0
    %6023 = vmatpush2.msra.mxu0 0.0
    %6024 = vmatprep.subr.mxu0 0.0
    %6025 = vmatpush2.msra.mxu0 0.0
    %6026 = vmatprep.subr.mxu0 0.0
    %6027 = vmatpush2.msra.mxu0 0.0
    %6028 = vmatprep.subr.mxu0 0.0
    %6029 = vmatpush2.msra.mxu0 0.0
    %6030 = vmatprep.subr.mxu0 0.0
    %6031 = vmatpush2.msra.mxu0 0.0
    %6032 = vmatprep.subr.mxu0 0.0
    %6033 = vmatpush2.msra.mxu0 0.0
    %6034 = vmatprep.subr.mxu0 0.0
    %6035 = vmatpush2.msra.mxu0 0.0
    %6036 = vmatprep.subr.mxu0 0.0
    %6037 = vmatpush2.msra.mxu0 0.0
    %6038 = vmatprep.subr.mxu0 0.0
    %6039 = vmatpush2.msra.mxu0 0.0
    %6040 = vmatprep.subr.mxu0 0.0
    %6041 = vmatpush2.msra.mxu0 %v5729
    %6042 = vmatprep.subr.mxu0 0.0
    %6043 = vmatpush2.msra.mxu0 %v5728
    %6044 = vmatprep.subr.mxu0 0.0
    %6045 = vmatpush2.msra.mxu0 %v5727
    %6046 = vmatprep.subr.mxu0 0.0
    %6047 = vmatpush2.msra.mxu0 %v5726
    %6048 = vmatprep.mubr.f32.mxu0 %v5982
    %6049 = vmatmul.mubr.f32.gmra.mxu0 %v5979
    %v6050 = vpop.f32.mrf.mxu0
    %v6051 = vadd.f32 0.0, %v6050
    %v6052 = vpop.f32.mrf.mxu0
    %6053 = vdwg.mxu0
    %v6054 = vadd.f32 %v5976, %v6051
    %v6055 = vrot.slane %v5828, 3
    %v6056 = vrot.slane %v5829, 3
    %v6058 = vsel %vm2777, %v6056, 0
    %6060 = vmatprep.subr.mxu0 0.0
    %6061 = vmatpush1.msra.mxu0 %v5746
    %6062 = vmatprep.subr.mxu0 0.0
    %6063 = vmatpush1.msra.mxu0 %v5745
    %6064 = vmatprep.subr.mxu0 0.0
    %6065 = vmatpush1.msra.mxu0 %v5744
    %6066 = vmatprep.subr.mxu0 0.0
    %6067 = vmatpush1.msra.mxu0 %v5743
    %6068 = vmatprep.subr.mxu0 0.0
    %6069 = vmatpush1.msra.mxu0 %v5742
    %6070 = vmatprep.subr.mxu0 0.0
    %6071 = vmatpush1.msra.mxu0 %v5741
    %6072 = vmatprep.subr.mxu0 0.0
    %6073 = vmatpush1.msra.mxu0 %v5740
    %6074 = vmatprep.subr.mxu0 0.0
    %6075 = vmatpush1.msra.mxu0 %v5739
    %6076 = vmatprep.subr.mxu0 0.0
    %6077 = vmatpush1.msra.mxu0 %v5738
    %6078 = vmatprep.subr.mxu0 0.0
    %6079 = vmatpush1.msra.mxu0 %v5737
    %6080 = vmatprep.subr.mxu0 0.0
    %6081 = vmatpush1.msra.mxu0 %v5736
    %6082 = vmatprep.subr.mxu0 0.0
    %6083 = vmatpush1.msra.mxu0 %v5735
    %6084 = vmatprep.subr.mxu0 0.0
    %6085 = vmatpush1.msra.mxu0 %v5734
    %6086 = vmatprep.subr.mxu0 0.0
    %6087 = vmatpush1.msra.mxu0 %v5733
    %6088 = vmatprep.subr.mxu0 0.0
    %6089 = vmatpush1.msra.mxu0 %v5732
    %6090 = vmatprep.subr.mxu0 0.0
    %6091 = vmatpush1.msra.mxu0 %v5731
    %6092 = vmatprep.subr.mxu0 0.0
    %6093 = vmatpush2.msra.mxu0 0.0
    %6094 = vmatprep.subr.mxu0 0.0
    %6095 = vmatpush2.msra.mxu0 0.0
    %6096 = vmatprep.subr.mxu0 0.0
    %6097 = vmatpush2.msra.mxu0 0.0
    %6098 = vmatprep.subr.mxu0 0.0
    %6099 = vmatpush2.msra.mxu0 0.0
    %6100 = vmatprep.subr.mxu0 0.0
    %6101 = vmatpush2.msra.mxu0 0.0
    %6102 = vmatprep.subr.mxu0 0.0
    %6103 = vmatpush2.msra.mxu0 0.0
    %6104 = vmatprep.subr.mxu0 0.0
    %6105 = vmatpush2.msra.mxu0 0.0
    %6106 = vmatprep.subr.mxu0 0.0
    %6107 = vmatpush2.msra.mxu0 0.0
    %6108 = vmatprep.subr.mxu0 0.0
    %6109 = vmatpush2.msra.mxu0 0.0
    %6110 = vmatprep.subr.mxu0 0.0
    %6111 = vmatpush2.msra.mxu0 0.0
    %6112 = vmatprep.subr.mxu0 0.0
    %6113 = vmatpush2.msra.mxu0 0.0
    %6114 = vmatprep.subr.mxu0 0.0
    %6115 = vmatpush2.msra.mxu0 0.0
    %6116 = vmatprep.subr.mxu0 0.0
    %6117 = vmatpush2.msra.mxu0 %v5750
    %6118 = vmatprep.subr.mxu0 0.0
    %6119 = vmatpush2.msra.mxu0 %v5749
    %6120 = vmatprep.subr.mxu0 0.0
    %6121 = vmatpush2.msra.mxu0 %v5748
    %6122 = vmatprep.subr.mxu0 0.0
    %6123 = vmatpush2.msra.mxu0 %v5747
    %6124 = vmatprep.mubr.f32.mxu0 %v6058
    %6125 = vmatmul.mubr.f32.gmra.mxu0 %v6055
    %v6126 = vpop.f32.mrf.mxu0
    %v6127 = vadd.f32 0.0, %v6126
    %v6128 = vpop.f32.mrf.mxu0
    %6129 = vdwg.mxu0
    %v6130 = vadd.f32 %v6054, %v6127
    %v6131 = vrot.slane %v5828, 4
    %v6132 = vrot.slane %v5829, 4
    %v6134 = vsel %vm2777, %v6132, 0
    %6136 = vmatprep.subr.mxu0 0.0
    %6137 = vmatpush1.msra.mxu0 %v5767
    %6138 = vmatprep.subr.mxu0 0.0
    %6139 = vmatpush1.msra.mxu0 %v5766
    %6140 = vmatprep.subr.mxu0 0.0
    %6141 = vmatpush1.msra.mxu0 %v5765
    %6142 = vmatprep.subr.mxu0 0.0
    %6143 = vmatpush1.msra.mxu0 %v5764
    %6144 = vmatprep.subr.mxu0 0.0
    %6145 = vmatpush1.msra.mxu0 %v5763
    %6146 = vmatprep.subr.mxu0 0.0
    %6147 = vmatpush1.msra.mxu0 %v5762
    %6148 = vmatprep.subr.mxu0 0.0
    %6149 = vmatpush1.msra.mxu0 %v5761
    %6150 = vmatprep.subr.mxu0 0.0
    %6151 = vmatpush1.msra.mxu0 %v5760
    %6152 = vmatprep.subr.mxu0 0.0
    %6153 = vmatpush1.msra.mxu0 %v5759
    %6154 = vmatprep.subr.mxu0 0.0
    %6155 = vmatpush1.msra.mxu0 %v5758
    %6156 = vmatprep.subr.mxu0 0.0
    %6157 = vmatpush1.msra.mxu0 %v5757
    %6158 = vmatprep.subr.mxu0 0.0
    %6159 = vmatpush1.msra.mxu0 %v5756
    %6160 = vmatprep.subr.mxu0 0.0
    %6161 = vmatpush1.msra.mxu0 %v5755
    %6162 = vmatprep.subr.mxu0 0.0
    %6163 = vmatpush1.msra.mxu0 %v5754
    %6164 = vmatprep.subr.mxu0 0.0
    %6165 = vmatpush1.msra.mxu0 %v5753
    %6166 = vmatprep.subr.mxu0 0.0
    %6167 = vmatpush1.msra.mxu0 %v5752
    %6168 = vmatprep.subr.mxu0 0.0
    %6169 = vmatpush2.msra.mxu0 0.0
    %6170 = vmatprep.subr.mxu0 0.0
    %6171 = vmatpush2.msra.mxu0 0.0
    %6172 = vmatprep.subr.mxu0 0.0
    %6173 = vmatpush2.msra.mxu0 0.0
    %6174 = vmatprep.subr.mxu0 0.0
    %6175 = vmatpush2.msra.mxu0 0.0
    %6176 = vmatprep.subr.mxu0 0.0
    %6177 = vmatpush2.msra.mxu0 0.0
    %6178 = vmatprep.subr.mxu0 0.0
    %6179 = vmatpush2.msra.mxu0 0.0
    %6180 = vmatprep.subr.mxu0 0.0
    %6181 = vmatpush2.msra.mxu0 0.0
    %6182 = vmatprep.subr.mxu0 0.0
    %6183 = vmatpush2.msra.mxu0 0.0
    %6184 = vmatprep.subr.mxu0 0.0
    %6185 = vmatpush2.msra.mxu0 0.0
    %6186 = vmatprep.subr.mxu0 0.0
    %6187 = vmatpush2.msra.mxu0 0.0
    %6188 = vmatprep.subr.mxu0 0.0
    %6189 = vmatpush2.msra.mxu0 0.0
    %6190 = vmatprep.subr.mxu0 0.0
    %6191 = vmatpush2.msra.mxu0 0.0
    %6192 = vmatprep.subr.mxu0 0.0
    %6193 = vmatpush2.msra.mxu0 %v5771
    %6194 = vmatprep.subr.mxu0 0.0
    %6195 = vmatpush2.msra.mxu0 %v5770
    %6196 = vmatprep.subr.mxu0 0.0
    %6197 = vmatpush2.msra.mxu0 %v5769
    %6198 = vmatprep.subr.mxu0 0.0
    %6199 = vmatpush2.msra.mxu0 %v5768
    %6200 = vmatprep.mubr.f32.mxu0 %v6134
    %6201 = vmatmul.mubr.f32.gmra.mxu0 %v6131
    %v6202 = vpop.f32.mrf.mxu0
    %v6203 = vadd.f32 0.0, %v6202
    %v6204 = vpop.f32.mrf.mxu0
    %6205 = vdwg.mxu0
    %v6206 = vadd.f32 %v6130, %v6203
    %v6207 = vrot.slane %v5828, 5
    %v6208 = vsel %vm456, %v6207, %v5823
    %v6209 = vrot.slane %v5829, 5
    %v6210 = vsel %vm456, %v6209, %v5823
    %v6212 = vsel %vm2777, %v6210, 0
    %6214 = vmatprep.subr.mxu0 0.0
    %6215 = vmatpush1.msra.mxu0 %v5788
    %6216 = vmatprep.subr.mxu0 0.0
    %6217 = vmatpush1.msra.mxu0 %v5787
    %6218 = vmatprep.subr.mxu0 0.0
    %6219 = vmatpush1.msra.mxu0 %v5786
    %6220 = vmatprep.subr.mxu0 0.0
    %6221 = vmatpush1.msra.mxu0 %v5785
    %6222 = vmatprep.subr.mxu0 0.0
    %6223 = vmatpush1.msra.mxu0 %v5784
    %6224 = vmatprep.subr.mxu0 0.0
    %6225 = vmatpush1.msra.mxu0 %v5783
    %6226 = vmatprep.subr.mxu0 0.0
    %6227 = vmatpush1.msra.mxu0 %v5782
    %6228 = vmatprep.subr.mxu0 0.0
    %6229 = vmatpush1.msra.mxu0 %v5781
    %6230 = vmatprep.subr.mxu0 0.0
    %6231 = vmatpush1.msra.mxu0 %v5780
    %6232 = vmatprep.subr.mxu0 0.0
    %6233 = vmatpush1.msra.mxu0 %v5779
    %6234 = vmatprep.subr.mxu0 0.0
    %6235 = vmatpush1.msra.mxu0 %v5778
    %6236 = vmatprep.subr.mxu0 0.0
    %6237 = vmatpush1.msra.mxu0 %v5777
    %6238 = vmatprep.subr.mxu0 0.0
    %6239 = vmatpush1.msra.mxu0 %v5776
    %6240 = vmatprep.subr.mxu0 0.0
    %6241 = vmatpush1.msra.mxu0 %v5775
    %6242 = vmatprep.subr.mxu0 0.0
    %6243 = vmatpush1.msra.mxu0 %v5774
    %6244 = vmatprep.subr.mxu0 0.0
    %6245 = vmatpush1.msra.mxu0 %v5773
    %6246 = vmatprep.subr.mxu0 0.0
    %6247 = vmatpush2.msra.mxu0 0.0
    %6248 = vmatprep.subr.mxu0 0.0
    %6249 = vmatpush2.msra.mxu0 0.0
    %6250 = vmatprep.subr.mxu0 0.0
    %6251 = vmatpush2.msra.mxu0 0.0
    %6252 = vmatprep.subr.mxu0 0.0
    %6253 = vmatpush2.msra.mxu0 0.0
    %6254 = vmatprep.subr.mxu0 0.0
    %6255 = vmatpush2.msra.mxu0 0.0
    %6256 = vmatprep.subr.mxu0 0.0
    %6257 = vmatpush2.msra.mxu0 0.0
    %6258 = vmatprep.subr.mxu0 0.0
    %6259 = vmatpush2.msra.mxu0 0.0
    %6260 = vmatprep.subr.mxu0 0.0
    %6261 = vmatpush2.msra.mxu0 0.0
    %6262 = vmatprep.subr.mxu0 0.0
    %6263 = vmatpush2.msra.mxu0 0.0
    %6264 = vmatprep.subr.mxu0 0.0
    %6265 = vmatpush2.msra.mxu0 0.0
    %6266 = vmatprep.subr.mxu0 0.0
    %6267 = vmatpush2.msra.mxu0 0.0
    %6268 = vmatprep.subr.mxu0 0.0
    %6269 = vmatpush2.msra.mxu0 0.0
    %6270 = vmatprep.subr.mxu0 0.0
    %6271 = vmatpush2.msra.mxu0 %v5792
    %6272 = vmatprep.subr.mxu0 0.0
    %6273 = vmatpush2.msra.mxu0 %v5791
    %6274 = vmatprep.subr.mxu0 0.0
    %6275 = vmatpush2.msra.mxu0 %v5790
    %6276 = vmatprep.subr.mxu0 0.0
    %6277 = vmatpush2.msra.mxu0 %v5789
    %6278 = vmatprep.mubr.f32.mxu0 %v6212
    %6279 = vmatmul.mubr.f32.gmra.mxu0 %v6208
    %v6280 = vpop.f32.mrf.mxu0
    %v6281 = vadd.f32 0.0, %v6280
    %v6282 = vpop.f32.mrf.mxu0
    %6283 = vdwg.mxu0
    %v6284 = vadd.f32 %v6206, %v6281
    %v6285 = vrot.slane %v5828, 6
    %v6286 = vrot.slane 0.0, 6
    %v6287 = vsel %vm1134, %v6285, %v6286
    %v6288 = vrot.slane %v5829, 6
    %v6289 = vsel %vm1134, %v6288, %v6286
    %v6291 = vsel %vm2777, %v6289, 0
    %6293 = vmatprep.subr.mxu0 0.0
    %6294 = vmatpush1.msra.mxu0 %v5809
    %6295 = vmatprep.subr.mxu0 0.0
    %6296 = vmatpush1.msra.mxu0 %v5808
    %6297 = vmatprep.subr.mxu0 0.0
    %6298 = vmatpush1.msra.mxu0 %v5807
    %6299 = vmatprep.subr.mxu0 0.0
    %6300 = vmatpush1.msra.mxu0 %v5806
    %6301 = vmatprep.subr.mxu0 0.0
    %6302 = vmatpush1.msra.mxu0 %v5805
    %6303 = vmatprep.subr.mxu0 0.0
    %6304 = vmatpush1.msra.mxu0 %v5804
    %6305 = vmatprep.subr.mxu0 0.0
    %6306 = vmatpush1.msra.mxu0 %v5803
    %6307 = vmatprep.subr.mxu0 0.0
    %6308 = vmatpush1.msra.mxu0 %v5802
    %6309 = vmatprep.subr.mxu0 0.0
    %6310 = vmatpush1.msra.mxu0 %v5801
    %6311 = vmatprep.subr.mxu0 0.0
    %6312 = vmatpush1.msra.mxu0 %v5800
    %6313 = vmatprep.subr.mxu0 0.0
    %6314 = vmatpush1.msra.mxu0 %v5799
    %6315 = vmatprep.subr.mxu0 0.0
    %6316 = vmatpush1.msra.mxu0 %v5798
    %6317 = vmatprep.subr.mxu0 0.0
    %6318 = vmatpush1.msra.mxu0 %v5797
    %6319 = vmatprep.subr.mxu0 0.0
    %6320 = vmatpush1.msra.mxu0 %v5796
    %6321 = vmatprep.subr.mxu0 0.0
    %6322 = vmatpush1.msra.mxu0 %v5795
    %6323 = vmatprep.subr.mxu0 0.0
    %6324 = vmatpush1.msra.mxu0 %v5794
    %6325 = vmatprep.subr.mxu0 0.0
    %6326 = vmatpush2.msra.mxu0 0.0
    %6327 = vmatprep.subr.mxu0 0.0
    %6328 = vmatpush2.msra.mxu0 0.0
    %6329 = vmatprep.subr.mxu0 0.0
    %6330 = vmatpush2.msra.mxu0 0.0
    %6331 = vmatprep.subr.mxu0 0.0
    %6332 = vmatpush2.msra.mxu0 0.0
    %6333 = vmatprep.subr.mxu0 0.0
    %6334 = vmatpush2.msra.mxu0 0.0
    %6335 = vmatprep.subr.mxu0 0.0
    %6336 = vmatpush2.msra.mxu0 0.0
    %6337 = vmatprep.subr.mxu0 0.0
    %6338 = vmatpush2.msra.mxu0 0.0
    %6339 = vmatprep.subr.mxu0 0.0
    %6340 = vmatpush2.msra.mxu0 0.0
    %6341 = vmatprep.subr.mxu0 0.0
    %6342 = vmatpush2.msra.mxu0 0.0
    %6343 = vmatprep.subr.mxu0 0.0
    %6344 = vmatpush2.msra.mxu0 0.0
    %6345 = vmatprep.subr.mxu0 0.0
    %6346 = vmatpush2.msra.mxu0 0.0
    %6347 = vmatprep.subr.mxu0 0.0
    %6348 = vmatpush2.msra.mxu0 0.0
    %6349 = vmatprep.subr.mxu0 0.0
    %6350 = vmatpush2.msra.mxu0 %v5813
    %6351 = vmatprep.subr.mxu0 0.0
    %6352 = vmatpush2.msra.mxu0 %v5812
    %6353 = vmatprep.subr.mxu0 0.0
    %6354 = vmatpush2.msra.mxu0 %v5811
    %6355 = vmatprep.subr.mxu0 0.0
    %6356 = vmatpush2.msra.mxu0 %v5810
    %6357 = vmatprep.mubr.f32.mxu0 %v6291
    %6358 = vmatmul.mubr.f32.gmra.mxu0 %v6287
    %v6359 = vpop.f32.mrf.mxu0
    %v6360 = vadd.f32 0.0, %v6359
    %v6361 = vpop.f32.mrf.mxu0
    %6362 = vdwg.mxu0
    %v6363 = vadd.f32 %v6284, %v6360
    %6365 = vrot.lane.b32.xlu0 %v5667, 48
    %v6366 = vpop.permute.xlu0 %6365
    %v6368 = vsel %vm2786, 0.0, %v6366
    %v6369 = vsel %vm2826, %v6368, 0.0
    %v6371 = vrot.slane %v6369, 5
    %v6373 = vsel %vm456, 0.0, %v6371
    %v6374 = vsel %vm470, %v6373, 0.0
    %v6376 = vrot.slane %v6374, 1
    %6378 = vmatprep.subr.mxu0 0.0
    %6379 = vmatpush1.msra.mxu0 %v5704
    %6380 = vmatprep.subr.mxu0 0.0
    %6381 = vmatpush1.msra.mxu0 %v5703
    %6382 = vmatprep.subr.mxu0 0.0
    %6383 = vmatpush1.msra.mxu0 %v5702
    %6384 = vmatprep.subr.mxu0 0.0
    %6385 = vmatpush1.msra.mxu0 %v5701
    %6386 = vmatprep.subr.mxu0 0.0
    %6387 = vmatpush1.msra.mxu0 %v5700
    %6388 = vmatprep.subr.mxu0 0.0
    %6389 = vmatpush1.msra.mxu0 %v5699
    %6390 = vmatprep.subr.mxu0 0.0
    %6391 = vmatpush1.msra.mxu0 %v5698
    %6392 = vmatprep.subr.mxu0 0.0
    %6393 = vmatpush1.msra.mxu0 %v5697
    %6394 = vmatprep.subr.mxu0 0.0
    %6395 = vmatpush1.msra.mxu0 %v5696
    %6396 = vmatprep.subr.mxu0 0.0
    %6397 = vmatpush1.msra.mxu0 %v5695
    %6398 = vmatprep.subr.mxu0 0.0
    %6399 = vmatpush1.msra.mxu0 %v5694
    %6400 = vmatprep.subr.mxu0 0.0
    %6401 = vmatpush1.msra.mxu0 %v5693
    %6402 = vmatprep.subr.mxu0 0.0
    %6403 = vmatpush1.msra.mxu0 %v5692
    %6404 = vmatprep.subr.mxu0 0.0
    %6405 = vmatpush1.msra.mxu0 %v5691
    %6406 = vmatprep.subr.mxu0 0.0
    %6407 = vmatpush1.msra.mxu0 %v5690
    %6408 = vmatprep.subr.mxu0 0.0
    %6409 = vmatpush1.msra.mxu0 %v5689
    %6410 = vmatprep.subr.mxu0 0.0
    %6411 = vmatpush2.msra.mxu0 0.0
    %6412 = vmatprep.subr.mxu0 0.0
    %6413 = vmatpush2.msra.mxu0 0.0
    %6414 = vmatprep.subr.mxu0 0.0
    %6415 = vmatpush2.msra.mxu0 0.0
    %6416 = vmatprep.subr.mxu0 0.0
    %6417 = vmatpush2.msra.mxu0 0.0
    %6418 = vmatprep.subr.mxu0 0.0
    %6419 = vmatpush2.msra.mxu0 0.0
    %6420 = vmatprep.subr.mxu0 0.0
    %6421 = vmatpush2.msra.mxu0 0.0
    %6422 = vmatprep.subr.mxu0 0.0
    %6423 = vmatpush2.msra.mxu0 0.0
    %6424 = vmatprep.subr.mxu0 0.0
    %6425 = vmatpush2.msra.mxu0 0.0
    %6426 = vmatprep.subr.mxu0 0.0
    %6427 = vmatpush2.msra.mxu0 0.0
    %6428 = vmatprep.subr.mxu0 0.0
    %6429 = vmatpush2.msra.mxu0 0.0
    %6430 = vmatprep.subr.mxu0 0.0
    %6431 = vmatpush2.msra.mxu0 0.0
    %6432 = vmatprep.subr.mxu0 0.0
    %6433 = vmatpush2.msra.mxu0 0.0
    %6434 = vmatprep.subr.mxu0 0.0
    %6435 = vmatpush2.msra.mxu0 %v5708
    %6436 = vmatprep.subr.mxu0 0.0
    %6437 = vmatpush2.msra.mxu0 %v5707
    %6438 = vmatprep.subr.mxu0 0.0
    %6439 = vmatpush2.msra.mxu0 %v5706
    %6440 = vmatprep.subr.mxu0 0.0
    %6441 = vmatpush2.msra.mxu0 %v5705
    %6442 = vmatprep.mubr.f32.mxu0 %v5835
    %6443 = vmatmul.mubr.f32.gmra.mxu0 %v6376
    %v6444 = vpop.f32.mrf.mxu0
    %v6445 = vadd.f32 0.0, %v6444
    %v6446 = vpop.f32.mrf.mxu0
    %6447 = vdwg.mxu0
    %6448 = vmatprep.subr.mxu0 0.0
    %6449 = vmatpush1.msra.mxu0 %v5683
    %6450 = vmatprep.subr.mxu0 0.0
    %6451 = vmatpush1.msra.mxu0 %v5682
    %6452 = vmatprep.subr.mxu0 0.0
    %6453 = vmatpush1.msra.mxu0 %v5681
    %6454 = vmatprep.subr.mxu0 0.0
    %6455 = vmatpush1.msra.mxu0 %v5680
    %6456 = vmatprep.subr.mxu0 0.0
    %6457 = vmatpush1.msra.mxu0 %v5679
    %6458 = vmatprep.subr.mxu0 0.0
    %6459 = vmatpush1.msra.mxu0 %v5678
    %6460 = vmatprep.subr.mxu0 0.0
    %6461 = vmatpush1.msra.mxu0 %v5677
    %6462 = vmatprep.subr.mxu0 0.0
    %6463 = vmatpush1.msra.mxu0 %v5676
    %6464 = vmatprep.subr.mxu0 0.0
    %6465 = vmatpush1.msra.mxu0 %v5675
    %6466 = vmatprep.subr.mxu0 0.0
    %6467 = vmatpush1.msra.mxu0 %v5674
    %6468 = vmatprep.subr.mxu0 0.0
    %6469 = vmatpush1.msra.mxu0 %v5673
    %6470 = vmatprep.subr.mxu0 0.0
    %6471 = vmatpush1.msra.mxu0 %v5672
    %6472 = vmatprep.subr.mxu0 0.0
    %6473 = vmatpush1.msra.mxu0 %v5671
    %6474 = vmatprep.subr.mxu0 0.0
    %6475 = vmatpush1.msra.mxu0 %v5670
    %6476 = vmatprep.subr.mxu0 0.0
    %6477 = vmatpush1.msra.mxu0 %v5669
    %6478 = vmatprep.subr.mxu0 0.0
    %6479 = vmatpush1.msra.mxu0 %v5668
    %6480 = vmatprep.subr.mxu0 0.0
    %6481 = vmatpush2.msra.mxu0 0.0
    %6482 = vmatprep.subr.mxu0 0.0
    %6483 = vmatpush2.msra.mxu0 0.0
    %6484 = vmatprep.subr.mxu0 0.0
    %6485 = vmatpush2.msra.mxu0 0.0
    %6486 = vmatprep.subr.mxu0 0.0
    %6487 = vmatpush2.msra.mxu0 0.0
    %6488 = vmatprep.subr.mxu0 0.0
    %6489 = vmatpush2.msra.mxu0 0.0
    %6490 = vmatprep.subr.mxu0 0.0
    %6491 = vmatpush2.msra.mxu0 0.0
    %6492 = vmatprep.subr.mxu0 0.0
    %6493 = vmatpush2.msra.mxu0 0.0
    %6494 = vmatprep.subr.mxu0 0.0
    %6495 = vmatpush2.msra.mxu0 0.0
    %6496 = vmatprep.subr.mxu0 0.0
    %6497 = vmatpush2.msra.mxu0 0.0
    %6498 = vmatprep.subr.mxu0 0.0
    %6499 = vmatpush2.msra.mxu0 0.0
    %6500 = vmatprep.subr.mxu0 0.0
    %6501 = vmatpush2.msra.mxu0 0.0
    %6502 = vmatprep.subr.mxu0 0.0
    %6503 = vmatpush2.msra.mxu0 0.0
    %6504 = vmatprep.subr.mxu0 0.0
    %6505 = vmatpush2.msra.mxu0 %v5687
    %6506 = vmatprep.subr.mxu0 0.0
    %6507 = vmatpush2.msra.mxu0 %v5686
    %6508 = vmatprep.subr.mxu0 0.0
    %6509 = vmatpush2.msra.mxu0 %v5685
    %6510 = vmatprep.subr.mxu0 0.0
    %6511 = vmatpush2.msra.mxu0 %v5684
    %6512 = vmatprep.mubr.f32.mxu0 %v5907
    %6513 = vmatmul.mubr.f32.gmra.mxu0 %v6374
    %v6514 = vpop.f32.mrf.mxu0
    %v6515 = vadd.f32 %v6445, %v6514
    %v6516 = vpop.f32.mrf.mxu0
    %6517 = vdwg.mxu0
    %v6518 = vrot.slane %v6374, 2
    %6520 = vmatprep.subr.mxu0 0.0
    %6521 = vmatpush1.msra.mxu0 %v5725
    %6522 = vmatprep.subr.mxu0 0.0
    %6523 = vmatpush1.msra.mxu0 %v5724
    %6524 = vmatprep.subr.mxu0 0.0
    %6525 = vmatpush1.msra.mxu0 %v5723
    %6526 = vmatprep.subr.mxu0 0.0
    %6527 = vmatpush1.msra.mxu0 %v5722
    %6528 = vmatprep.subr.mxu0 0.0
    %6529 = vmatpush1.msra.mxu0 %v5721
    %6530 = vmatprep.subr.mxu0 0.0
    %6531 = vmatpush1.msra.mxu0 %v5720
    %6532 = vmatprep.subr.mxu0 0.0
    %6533 = vmatpush1.msra.mxu0 %v5719
    %6534 = vmatprep.subr.mxu0 0.0
    %6535 = vmatpush1.msra.mxu0 %v5718
    %6536 = vmatprep.subr.mxu0 0.0
    %6537 = vmatpush1.msra.mxu0 %v5717
    %6538 = vmatprep.subr.mxu0 0.0
    %6539 = vmatpush1.msra.mxu0 %v5716
    %6540 = vmatprep.subr.mxu0 0.0
    %6541 = vmatpush1.msra.mxu0 %v5715
    %6542 = vmatprep.subr.mxu0 0.0
    %6543 = vmatpush1.msra.mxu0 %v5714
    %6544 = vmatprep.subr.mxu0 0.0
    %6545 = vmatpush1.msra.mxu0 %v5713
    %6546 = vmatprep.subr.mxu0 0.0
    %6547 = vmatpush1.msra.mxu0 %v5712
    %6548 = vmatprep.subr.mxu0 0.0
    %6549 = vmatpush1.msra.mxu0 %v5711
    %6550 = vmatprep.subr.mxu0 0.0
    %6551 = vmatpush1.msra.mxu0 %v5710
    %6552 = vmatprep.subr.mxu0 0.0
    %6553 = vmatpush2.msra.mxu0 0.0
    %6554 = vmatprep.subr.mxu0 0.0
    %6555 = vmatpush2.msra.mxu0 0.0
    %6556 = vmatprep.subr.mxu0 0.0
    %6557 = vmatpush2.msra.mxu0 0.0
    %6558 = vmatprep.subr.mxu0 0.0
    %6559 = vmatpush2.msra.mxu0 0.0
    %6560 = vmatprep.subr.mxu0 0.0
    %6561 = vmatpush2.msra.mxu0 0.0
    %6562 = vmatprep.subr.mxu0 0.0
    %6563 = vmatpush2.msra.mxu0 0.0
    %6564 = vmatprep.subr.mxu0 0.0
    %6565 = vmatpush2.msra.mxu0 0.0
    %6566 = vmatprep.subr.mxu0 0.0
    %6567 = vmatpush2.msra.mxu0 0.0
    %6568 = vmatprep.subr.mxu0 0.0
    %6569 = vmatpush2.msra.mxu0 0.0
    %6570 = vmatprep.subr.mxu0 0.0
    %6571 = vmatpush2.msra.mxu0 0.0
    %6572 = vmatprep.subr.mxu0 0.0
    %6573 = vmatpush2.msra.mxu0 0.0
    %6574 = vmatprep.subr.mxu0 0.0
    %6575 = vmatpush2.msra.mxu0 0.0
    %6576 = vmatprep.subr.mxu0 0.0
    %6577 = vmatpush2.msra.mxu0 %v5729
    %6578 = vmatprep.subr.mxu0 0.0
    %6579 = vmatpush2.msra.mxu0 %v5728
    %6580 = vmatprep.subr.mxu0 0.0
    %6581 = vmatpush2.msra.mxu0 %v5727
    %6582 = vmatprep.subr.mxu0 0.0
    %6583 = vmatpush2.msra.mxu0 %v5726
    %6584 = vmatprep.mubr.f32.mxu0 %v5982
    %6585 = vmatmul.mubr.f32.gmra.mxu0 %v6518
    %v6586 = vpop.f32.mrf.mxu0
    %v6587 = vadd.f32 0.0, %v6586
    %v6588 = vpop.f32.mrf.mxu0
    %6589 = vdwg.mxu0
    %v6590 = vadd.f32 %v6515, %v6587
    %v6591 = vrot.slane %v6374, 3
    %6593 = vmatprep.subr.mxu0 0.0
    %6594 = vmatpush1.msra.mxu0 %v5746
    %6595 = vmatprep.subr.mxu0 0.0
    %6596 = vmatpush1.msra.mxu0 %v5745
    %6597 = vmatprep.subr.mxu0 0.0
    %6598 = vmatpush1.msra.mxu0 %v5744
    %6599 = vmatprep.subr.mxu0 0.0
    %6600 = vmatpush1.msra.mxu0 %v5743
    %6601 = vmatprep.subr.mxu0 0.0
    %6602 = vmatpush1.msra.mxu0 %v5742
    %6603 = vmatprep.subr.mxu0 0.0
    %6604 = vmatpush1.msra.mxu0 %v5741
    %6605 = vmatprep.subr.mxu0 0.0
    %6606 = vmatpush1.msra.mxu0 %v5740
    %6607 = vmatprep.subr.mxu0 0.0
    %6608 = vmatpush1.msra.mxu0 %v5739
    %6609 = vmatprep.subr.mxu0 0.0
    %6610 = vmatpush1.msra.mxu0 %v5738
    %6611 = vmatprep.subr.mxu0 0.0
    %6612 = vmatpush1.msra.mxu0 %v5737
    %6613 = vmatprep.subr.mxu0 0.0
    %6614 = vmatpush1.msra.mxu0 %v5736
    %6615 = vmatprep.subr.mxu0 0.0
    %6616 = vmatpush1.msra.mxu0 %v5735
    %6617 = vmatprep.subr.mxu0 0.0
    %6618 = vmatpush1.msra.mxu0 %v5734
    %6619 = vmatprep.subr.mxu0 0.0
    %6620 = vmatpush1.msra.mxu0 %v5733
    %6621 = vmatprep.subr.mxu0 0.0
    %6622 = vmatpush1.msra.mxu0 %v5732
    %6623 = vmatprep.subr.mxu0 0.0
    %6624 = vmatpush1.msra.mxu0 %v5731
    %6625 = vmatprep.subr.mxu0 0.0
    %6626 = vmatpush2.msra.mxu0 0.0
    %6627 = vmatprep.subr.mxu0 0.0
    %6628 = vmatpush2.msra.mxu0 0.0
    %6629 = vmatprep.subr.mxu0 0.0
    %6630 = vmatpush2.msra.mxu0 0.0
    %6631 = vmatprep.subr.mxu0 0.0
    %6632 = vmatpush2.msra.mxu0 0.0
    %6633 = vmatprep.subr.mxu0 0.0
    %6634 = vmatpush2.msra.mxu0 0.0
    %6635 = vmatprep.subr.mxu0 0.0
    %6636 = vmatpush2.msra.mxu0 0.0
    %6637 = vmatprep.subr.mxu0 0.0
    %6638 = vmatpush2.msra.mxu0 0.0
    %6639 = vmatprep.subr.mxu0 0.0
    %6640 = vmatpush2.msra.mxu0 0.0
    %6641 = vmatprep.subr.mxu0 0.0
    %6642 = vmatpush2.msra.mxu0 0.0
    %6643 = vmatprep.subr.mxu0 0.0
    %6644 = vmatpush2.msra.mxu0 0.0
    %6645 = vmatprep.subr.mxu0 0.0
    %6646 = vmatpush2.msra.mxu0 0.0
    %6647 = vmatprep.subr.mxu0 0.0
    %6648 = vmatpush2.msra.mxu0 0.0
    %6649 = vmatprep.subr.mxu0 0.0
    %6650 = vmatpush2.msra.mxu0 %v5750
    %6651 = vmatprep.subr.mxu0 0.0
    %6652 = vmatpush2.msra.mxu0 %v5749
    %6653 = vmatprep.subr.mxu0 0.0
    %6654 = vmatpush2.msra.mxu0 %v5748
    %6655 = vmatprep.subr.mxu0 0.0
    %6656 = vmatpush2.msra.mxu0 %v5747
    %6657 = vmatprep.mubr.f32.mxu0 %v6058
    %6658 = vmatmul.mubr.f32.gmra.mxu0 %v6591
    %v6659 = vpop.f32.mrf.mxu0
    %v6660 = vadd.f32 0.0, %v6659
    %v6661 = vpop.f32.mrf.mxu0
    %6662 = vdwg.mxu0
    %v6663 = vadd.f32 %v6590, %v6660
    %v6664 = vrot.slane %v6374, 4
    %6666 = vmatprep.subr.mxu0 0.0
    %6667 = vmatpush1.msra.mxu0 %v5767
    %6668 = vmatprep.subr.mxu0 0.0
    %6669 = vmatpush1.msra.mxu0 %v5766
    %6670 = vmatprep.subr.mxu0 0.0
    %6671 = vmatpush1.msra.mxu0 %v5765
    %6672 = vmatprep.subr.mxu0 0.0
    %6673 = vmatpush1.msra.mxu0 %v5764
    %6674 = vmatprep.subr.mxu0 0.0
    %6675 = vmatpush1.msra.mxu0 %v5763
    %6676 = vmatprep.subr.mxu0 0.0
    %6677 = vmatpush1.msra.mxu0 %v5762
    %6678 = vmatprep.subr.mxu0 0.0
    %6679 = vmatpush1.msra.mxu0 %v5761
    %6680 = vmatprep.subr.mxu0 0.0
    %6681 = vmatpush1.msra.mxu0 %v5760
    %6682 = vmatprep.subr.mxu0 0.0
    %6683 = vmatpush1.msra.mxu0 %v5759
    %6684 = vmatprep.subr.mxu0 0.0
    %6685 = vmatpush1.msra.mxu0 %v5758
    %6686 = vmatprep.subr.mxu0 0.0
    %6687 = vmatpush1.msra.mxu0 %v5757
    %6688 = vmatprep.subr.mxu0 0.0
    %6689 = vmatpush1.msra.mxu0 %v5756
    %6690 = vmatprep.subr.mxu0 0.0
    %6691 = vmatpush1.msra.mxu0 %v5755
    %6692 = vmatprep.subr.mxu0 0.0
    %6693 = vmatpush1.msra.mxu0 %v5754
    %6694 = vmatprep.subr.mxu0 0.0
    %6695 = vmatpush1.msra.mxu0 %v5753
    %6696 = vmatprep.subr.mxu0 0.0
    %6697 = vmatpush1.msra.mxu0 %v5752
    %6698 = vmatprep.subr.mxu0 0.0
    %6699 = vmatpush2.msra.mxu0 0.0
    %6700 = vmatprep.subr.mxu0 0.0
    %6701 = vmatpush2.msra.mxu0 0.0
    %6702 = vmatprep.subr.mxu0 0.0
    %6703 = vmatpush2.msra.mxu0 0.0
    %6704 = vmatprep.subr.mxu0 0.0
    %6705 = vmatpush2.msra.mxu0 0.0
    %6706 = vmatprep.subr.mxu0 0.0
    %6707 = vmatpush2.msra.mxu0 0.0
    %6708 = vmatprep.subr.mxu0 0.0
    %6709 = vmatpush2.msra.mxu0 0.0
    %6710 = vmatprep.subr.mxu0 0.0
    %6711 = vmatpush2.msra.mxu0 0.0
    %6712 = vmatprep.subr.mxu0 0.0
    %6713 = vmatpush2.msra.mxu0 0.0
    %6714 = vmatprep.subr.mxu0 0.0
    %6715 = vmatpush2.msra.mxu0 0.0
    %6716 = vmatprep.subr.mxu0 0.0
    %6717 = vmatpush2.msra.mxu0 0.0
    %6718 = vmatprep.subr.mxu0 0.0
    %6719 = vmatpush2.msra.mxu0 0.0
    %6720 = vmatprep.subr.mxu0 0.0
    %6721 = vmatpush2.msra.mxu0 0.0
    %6722 = vmatprep.subr.mxu0 0.0
    %6723 = vmatpush2.msra.mxu0 %v5771
    %6724 = vmatprep.subr.mxu0 0.0
    %6725 = vmatpush2.msra.mxu0 %v5770
    %6726 = vmatprep.subr.mxu0 0.0
    %6727 = vmatpush2.msra.mxu0 %v5769
    %6728 = vmatprep.subr.mxu0 0.0
    %6729 = vmatpush2.msra.mxu0 %v5768
    %6730 = vmatprep.mubr.f32.mxu0 %v6134
    %6731 = vmatmul.mubr.f32.gmra.mxu0 %v6664
    %v6732 = vpop.f32.mrf.mxu0
    %v6733 = vadd.f32 0.0, %v6732
    %v6734 = vpop.f32.mrf.mxu0
    %6735 = vdwg.mxu0
    %v6736 = vadd.f32 %v6663, %v6733
    %v6737 = vrot.slane %v6374, 5
    %v6738 = vsel %vm456, %v6737, %v5823
    %6740 = vmatprep.subr.mxu0 0.0
    %6741 = vmatpush1.msra.mxu0 %v5788
    %6742 = vmatprep.subr.mxu0 0.0
    %6743 = vmatpush1.msra.mxu0 %v5787
    %6744 = vmatprep.subr.mxu0 0.0
    %6745 = vmatpush1.msra.mxu0 %v5786
    %6746 = vmatprep.subr.mxu0 0.0
    %6747 = vmatpush1.msra.mxu0 %v5785
    %6748 = vmatprep.subr.mxu0 0.0
    %6749 = vmatpush1.msra.mxu0 %v5784
    %6750 = vmatprep.subr.mxu0 0.0
    %6751 = vmatpush1.msra.mxu0 %v5783
    %6752 = vmatprep.subr.mxu0 0.0
    %6753 = vmatpush1.msra.mxu0 %v5782
    %6754 = vmatprep.subr.mxu0 0.0
    %6755 = vmatpush1.msra.mxu0 %v5781
    %6756 = vmatprep.subr.mxu0 0.0
    %6757 = vmatpush1.msra.mxu0 %v5780
    %6758 = vmatprep.subr.mxu0 0.0
    %6759 = vmatpush1.msra.mxu0 %v5779
    %6760 = vmatprep.subr.mxu0 0.0
    %6761 = vmatpush1.msra.mxu0 %v5778
    %6762 = vmatprep.subr.mxu0 0.0
    %6763 = vmatpush1.msra.mxu0 %v5777
    %6764 = vmatprep.subr.mxu0 0.0
    %6765 = vmatpush1.msra.mxu0 %v5776
    %6766 = vmatprep.subr.mxu0 0.0
    %6767 = vmatpush1.msra.mxu0 %v5775
    %6768 = vmatprep.subr.mxu0 0.0
    %6769 = vmatpush1.msra.mxu0 %v5774
    %6770 = vmatprep.subr.mxu0 0.0
    %6771 = vmatpush1.msra.mxu0 %v5773
    %6772 = vmatprep.subr.mxu0 0.0
    %6773 = vmatpush2.msra.mxu0 0.0
    %6774 = vmatprep.subr.mxu0 0.0
    %6775 = vmatpush2.msra.mxu0 0.0
    %6776 = vmatprep.subr.mxu0 0.0
    %6777 = vmatpush2.msra.mxu0 0.0
    %6778 = vmatprep.subr.mxu0 0.0
    %6779 = vmatpush2.msra.mxu0 0.0
    %6780 = vmatprep.subr.mxu0 0.0
    %6781 = vmatpush2.msra.mxu0 0.0
    %6782 = vmatprep.subr.mxu0 0.0
    %6783 = vmatpush2.msra.mxu0 0.0
    %6784 = vmatprep.subr.mxu0 0.0
    %6785 = vmatpush2.msra.mxu0 0.0
    %6786 = vmatprep.subr.mxu0 0.0
    %6787 = vmatpush2.msra.mxu0 0.0
    %6788 = vmatprep.subr.mxu0 0.0
    %6789 = vmatpush2.msra.mxu0 0.0
    %6790 = vmatprep.subr.mxu0 0.0
    %6791 = vmatpush2.msra.mxu0 0.0
    %6792 = vmatprep.subr.mxu0 0.0
    %6793 = vmatpush2.msra.mxu0 0.0
    %6794 = vmatprep.subr.mxu0 0.0
    %6795 = vmatpush2.msra.mxu0 0.0
    %6796 = vmatprep.subr.mxu0 0.0
    %6797 = vmatpush2.msra.mxu0 %v5792
    %6798 = vmatprep.subr.mxu0 0.0
    %6799 = vmatpush2.msra.mxu0 %v5791
    %6800 = vmatprep.subr.mxu0 0.0
    %6801 = vmatpush2.msra.mxu0 %v5790
    %6802 = vmatprep.subr.mxu0 0.0
    %6803 = vmatpush2.msra.mxu0 %v5789
    %6804 = vmatprep.mubr.f32.mxu0 %v6212
    %6805 = vmatmul.mubr.f32.gmra.mxu0 %v6738
    %v6806 = vpop.f32.mrf.mxu0
    %v6807 = vadd.f32 0.0, %v6806
    %v6808 = vpop.f32.mrf.mxu0
    %6809 = vdwg.mxu0
    %v6810 = vadd.f32 %v6736, %v6807
    %v6811 = vrot.slane %v6374, 6
    %v6812 = vsel %vm1134, %v6811, %v6286
    %6814 = vmatprep.subr.mxu0 0.0
    %6815 = vmatpush1.msra.mxu0 %v5809
    %6816 = vmatprep.subr.mxu0 0.0
    %6817 = vmatpush1.msra.mxu0 %v5808
    %6818 = vmatprep.subr.mxu0 0.0
    %6819 = vmatpush1.msra.mxu0 %v5807
    %6820 = vmatprep.subr.mxu0 0.0
    %6821 = vmatpush1.msra.mxu0 %v5806
    %6822 = vmatprep.subr.mxu0 0.0
    %6823 = vmatpush1.msra.mxu0 %v5805
    %6824 = vmatprep.subr.mxu0 0.0
    %6825 = vmatpush1.msra.mxu0 %v5804
    %6826 = vmatprep.subr.mxu0 0.0
    %6827 = vmatpush1.msra.mxu0 %v5803
    %6828 = vmatprep.subr.mxu0 0.0
    %6829 = vmatpush1.msra.mxu0 %v5802
    %6830 = vmatprep.subr.mxu0 0.0
    %6831 = vmatpush1.msra.mxu0 %v5801
    %6832 = vmatprep.subr.mxu0 0.0
    %6833 = vmatpush1.msra.mxu0 %v5800
    %6834 = vmatprep.subr.mxu0 0.0
    %6835 = vmatpush1.msra.mxu0 %v5799
    %6836 = vmatprep.subr.mxu0 0.0
    %6837 = vmatpush1.msra.mxu0 %v5798
    %6838 = vmatprep.subr.mxu0 0.0
    %6839 = vmatpush1.msra.mxu0 %v5797
    %6840 = vmatprep.subr.mxu0 0.0
    %6841 = vmatpush1.msra.mxu0 %v5796
    %6842 = vmatprep.subr.mxu0 0.0
    %6843 = vmatpush1.msra.mxu0 %v5795
    %6844 = vmatprep.subr.mxu0 0.0
    %6845 = vmatpush1.msra.mxu0 %v5794
    %6846 = vmatprep.subr.mxu0 0.0
    %6847 = vmatpush2.msra.mxu0 0.0
    %6848 = vmatprep.subr.mxu0 0.0
    %6849 = vmatpush2.msra.mxu0 0.0
    %6850 = vmatprep.subr.mxu0 0.0
    %6851 = vmatpush2.msra.mxu0 0.0
    %6852 = vmatprep.subr.mxu0 0.0
    %6853 = vmatpush2.msra.mxu0 0.0
    %6854 = vmatprep.subr.mxu0 0.0
    %6855 = vmatpush2.msra.mxu0 0.0
    %6856 = vmatprep.subr.mxu0 0.0
    %6857 = vmatpush2.msra.mxu0 0.0
    %6858 = vmatprep.subr.mxu0 0.0
    %6859 = vmatpush2.msra.mxu0 0.0
    %6860 = vmatprep.subr.mxu0 0.0
    %6861 = vmatpush2.msra.mxu0 0.0
    %6862 = vmatprep.subr.mxu0 0.0
    %6863 = vmatpush2.msra.mxu0 0.0
    %6864 = vmatprep.subr.mxu0 0.0
    %6865 = vmatpush2.msra.mxu0 0.0
    %6866 = vmatprep.subr.mxu0 0.0
    %6867 = vmatpush2.msra.mxu0 0.0
    %6868 = vmatprep.subr.mxu0 0.0
    %6869 = vmatpush2.msra.mxu0 0.0
    %6870 = vmatprep.subr.mxu0 0.0
    %6871 = vmatpush2.msra.mxu0 %v5813
    %6872 = vmatprep.subr.mxu0 0.0
    %6873 = vmatpush2.msra.mxu0 %v5812
    %6874 = vmatprep.subr.mxu0 0.0
    %6875 = vmatpush2.msra.mxu0 %v5811
    %6876 = vmatprep.subr.mxu0 0.0
    %6877 = vmatpush2.msra.mxu0 %v5810
    %6878 = vmatprep.mubr.f32.mxu0 %v6291
    %6879 = vmatmul.mubr.f32.gmra.mxu0 %v6812
    %v6880 = vpop.f32.mrf.mxu0
    %v6881 = vadd.f32 0.0, %v6880
    %v6882 = vpop.f32.mrf.mxu0
    %6883 = vdwg.mxu0
    %v6884 = vadd.f32 %v6810, %v6881
    %v6885 = vsel %vm905, %v6363, 0.0
    %v6886 = vrot.slane %v6885, 4
    %v6887 = vadd.f32 %v6885, %v6886
    %v6888 = vrot.slane %v6887, 2
    %v6889 = vadd.f32 %v6887, %v6888
    %v6890 = vrot.slane %v6889, 1
    %v6891 = vadd.f32 %v6889, %v6890
    %v6892 = vmul.f32 %v6363, %v6363
    %v6893 = vsel %vm905, %v6892, 0.0
    %v6894 = vrot.slane %v6893, 4
    %v6895 = vadd.f32 %v6893, %v6894
    %v6896 = vrot.slane %v6895, 2
    %v6897 = vadd.f32 %v6895, %v6896
    %v6898 = vrot.slane %v6897, 1
    %v6899 = vadd.f32 %v6897, %v6898
    %v6900 = vsel %vm905, %v6884, 0.0
    %v6901 = vrot.slane %v6900, 4
    %v6902 = vadd.f32 %v6900, %v6901
    %v6903 = vrot.slane %v6902, 2
    %v6904 = vadd.f32 %v6902, %v6903
    %v6905 = vrot.slane %v6904, 1
    %v6906 = vadd.f32 %v6904, %v6905
    %v6907 = vadd.f32 %v6891, %v6906
    %v6908 = vmul.f32 %v6884, %v6884
    %v6909 = vsel %vm905, %v6908, 0.0
    %v6910 = vrot.slane %v6909, 4
    %v6911 = vadd.f32 %v6909, %v6910
    %v6912 = vrot.slane %v6911, 2
    %v6913 = vadd.f32 %v6911, %v6912
    %v6914 = vrot.slane %v6913, 1
    %v6915 = vadd.f32 %v6913, %v6914
    %v6916 = vadd.f32 %v6899, %v6915
    %v6917 = vld [vmem:[%s12] sm:$0xff]
    %v6918 = vld [vmem:[%s12 + $0x8] sm:$0xff]
    %v6919 = vld [vmem:[%s12 + $0x10] sm:$0xff]
    %v6920 = vld [vmem:[%s12 + $0x18] sm:$0xff]
    %v6921 = vld [vmem:[%s12 + $0x20] sm:$0xff]
    %v6922 = vld [vmem:[%s12 + $0x28] sm:$0xff]
    %v6923 = vld [vmem:[%s12 + $0x30] sm:$0xff]
    %v6924 = vld [vmem:[%s12 + $0x38] sm:$0xff]
    %v6925 = vld [vmem:[%s12 + $0x40] sm:$0xff]
    %v6926 = vld [vmem:[%s12 + $0x48] sm:$0xff]
    %v6927 = vld [vmem:[%s12 + $0x50] sm:$0xff]
    %v6928 = vld [vmem:[%s12 + $0x58] sm:$0xff]
    %v6929 = vld [vmem:[%s12 + $0x60] sm:$0xff]
    %v6930 = vld [vmem:[%s12 + $0x68] sm:$0xff]
    %v6931 = vld [vmem:[%s12 + $0x70] sm:$0xff]
    %v6932 = vld [vmem:[%s12 + $0x78] sm:$0xff]
    %6933 = vmatprep.subr.mxu0 0.0
    %6934 = vmatpush1.msra.mxu0 %v6932
    %6935 = vmatprep.subr.mxu0 0.0
    %6936 = vmatpush1.msra.mxu0 %v6931
    %6937 = vmatprep.subr.mxu0 0.0
    %6938 = vmatpush1.msra.mxu0 %v6930
    %6939 = vmatprep.subr.mxu0 0.0
    %6940 = vmatpush1.msra.mxu0 %v6929
    %6941 = vmatprep.subr.mxu0 0.0
    %6942 = vmatpush1.msra.mxu0 %v6928
    %6943 = vmatprep.subr.mxu0 0.0
    %6944 = vmatpush1.msra.mxu0 %v6927
    %6945 = vmatprep.subr.mxu0 0.0
    %6946 = vmatpush1.msra.mxu0 %v6926
    %6947 = vmatprep.subr.mxu0 0.0
    %6948 = vmatpush1.msra.mxu0 %v6925
    %6949 = vmatprep.subr.mxu0 0.0
    %6950 = vmatpush1.msra.mxu0 %v6924
    %6951 = vmatprep.subr.mxu0 0.0
    %6952 = vmatpush1.msra.mxu0 %v6923
    %6953 = vmatprep.subr.mxu0 0.0
    %6954 = vmatpush1.msra.mxu0 %v6922
    %6955 = vmatprep.subr.mxu0 0.0
    %6956 = vmatpush1.msra.mxu0 %v6921
    %6957 = vmatprep.subr.mxu0 0.0
    %6958 = vmatpush1.msra.mxu0 %v6920
    %6959 = vmatprep.subr.mxu0 0.0
    %6960 = vmatpush1.msra.mxu0 %v6919
    %6961 = vmatprep.subr.mxu0 0.0
    %6962 = vmatpush1.msra.mxu0 %v6918
    %6963 = vmatprep.subr.mxu0 0.0
    %6964 = vmatpush1.msra.mxu0 %v6917
    %6965 = vmatprep.subr.mxu0 0.0
    %6966 = vmatpush2.msra.mxu0 0.0
    %6967 = vmatprep.subr.mxu0 0.0
    %6968 = vmatpush2.msra.mxu0 0.0
    %6969 = vmatprep.subr.mxu0 0.0
    %6970 = vmatpush2.msra.mxu0 0.0
    %6971 = vmatprep.subr.mxu0 0.0
    %6972 = vmatpush2.msra.mxu0 0.0
    %6973 = vmatprep.subr.mxu0 0.0
    %6974 = vmatpush2.msra.mxu0 0.0
    %6975 = vmatprep.subr.mxu0 0.0
    %6976 = vmatpush2.msra.mxu0 0.0
    %6977 = vmatprep.subr.mxu0 0.0
    %6978 = vmatpush2.msra.mxu0 0.0
    %6979 = vmatprep.subr.mxu0 0.0
    %6980 = vmatpush2.msra.mxu0 0.0
    %6981 = vmatprep.subr.mxu0 0.0
    %6982 = vmatpush2.msra.mxu0 0.0
    %6983 = vmatprep.subr.mxu0 0.0
    %6984 = vmatpush2.msra.mxu0 0.0
    %6985 = vmatprep.subr.mxu0 0.0
    %6986 = vmatpush2.msra.mxu0 0.0
    %6987 = vmatprep.subr.mxu0 0.0
    %6988 = vmatpush2.msra.mxu0 0.0
    %6989 = vmatprep.subr.mxu0 0.0
    %6990 = vmatpush2.msra.mxu0 0.0
    %6991 = vmatprep.subr.mxu0 0.0
    %6992 = vmatpush2.msra.mxu0 0.0
    %6993 = vmatprep.subr.mxu0 0.0
    %6994 = vmatpush2.msra.mxu0 0.0
    %6995 = vmatprep.subr.mxu0 0.0
    %6996 = vmatpush2.msra.mxu0 0.0
    %6997 = vmatprep.mubr.f32.mxu0 0.0
    %6998 = vmatmul.mubr.f32.gmra.mxu0 %v6907
    %v6999 = vpop.f32.mrf.mxu0
    %v7000 = vadd.f32 0.0, %v6999
    %v7001 = vpop.f32.mrf.mxu0
    %7002 = vdwg.mxu0
    %v7003 = vmul.f32 %v7000, 0.03125
    %7004 = vmatprep.subr.mxu0 0.0
    %7005 = vmatpush1.msra.mxu0 %v6932
    %7006 = vmatprep.subr.mxu0 0.0
    %7007 = vmatpush1.msra.mxu0 %v6931
    %7008 = vmatprep.subr.mxu0 0.0
    %7009 = vmatpush1.msra.mxu0 %v6930
    %7010 = vmatprep.subr.mxu0 0.0
    %7011 = vmatpush1.msra.mxu0 %v6929
    %7012 = vmatprep.subr.mxu0 0.0
    %7013 = vmatpush1.msra.mxu0 %v6928
    %7014 = vmatprep.subr.mxu0 0.0
    %7015 = vmatpush1.msra.mxu0 %v6927
    %7016 = vmatprep.subr.mxu0 0.0
    %7017 = vmatpush1.msra.mxu0 %v6926
    %7018 = vmatprep.subr.mxu0 0.0
    %7019 = vmatpush1.msra.mxu0 %v6925
    %7020 = vmatprep.subr.mxu0 0.0
    %7021 = vmatpush1.msra.mxu0 %v6924
    %7022 = vmatprep.subr.mxu0 0.0
    %7023 = vmatpush1.msra.mxu0 %v6923
    %7024 = vmatprep.subr.mxu0 0.0
    %7025 = vmatpush1.msra.mxu0 %v6922
    %7026 = vmatprep.subr.mxu0 0.0
    %7027 = vmatpush1.msra.mxu0 %v6921
    %7028 = vmatprep.subr.mxu0 0.0
    %7029 = vmatpush1.msra.mxu0 %v6920
    %7030 = vmatprep.subr.mxu0 0.0
    %7031 = vmatpush1.msra.mxu0 %v6919
    %7032 = vmatprep.subr.mxu0 0.0
    %7033 = vmatpush1.msra.mxu0 %v6918
    %7034 = vmatprep.subr.mxu0 0.0
    %7035 = vmatpush1.msra.mxu0 %v6917
    %7036 = vmatprep.subr.mxu0 0.0
    %7037 = vmatpush2.msra.mxu0 0.0
    %7038 = vmatprep.subr.mxu0 0.0
    %7039 = vmatpush2.msra.mxu0 0.0
    %7040 = vmatprep.subr.mxu0 0.0
    %7041 = vmatpush2.msra.mxu0 0.0
    %7042 = vmatprep.subr.mxu0 0.0
    %7043 = vmatpush2.msra.mxu0 0.0
    %7044 = vmatprep.subr.mxu0 0.0
    %7045 = vmatpush2.msra.mxu0 0.0
    %7046 = vmatprep.subr.mxu0 0.0
    %7047 = vmatpush2.msra.mxu0 0.0
    %7048 = vmatprep.subr.mxu0 0.0
    %7049 = vmatpush2.msra.mxu0 0.0
    %7050 = vmatprep.subr.mxu0 0.0
    %7051 = vmatpush2.msra.mxu0 0.0
    %7052 = vmatprep.subr.mxu0 0.0
    %7053 = vmatpush2.msra.mxu0 0.0
    %7054 = vmatprep.subr.mxu0 0.0
    %7055 = vmatpush2.msra.mxu0 0.0
    %7056 = vmatprep.subr.mxu0 0.0
    %7057 = vmatpush2.msra.mxu0 0.0
    %7058 = vmatprep.subr.mxu0 0.0
    %7059 = vmatpush2.msra.mxu0 0.0
    %7060 = vmatprep.subr.mxu0 0.0
    %7061 = vmatpush2.msra.mxu0 0.0
    %7062 = vmatprep.subr.mxu0 0.0
    %7063 = vmatpush2.msra.mxu0 0.0
    %7064 = vmatprep.subr.mxu0 0.0
    %7065 = vmatpush2.msra.mxu0 0.0
    %7066 = vmatprep.subr.mxu0 0.0
    %7067 = vmatpush2.msra.mxu0 0.0
    %7068 = vmatprep.mubr.f32.mxu0 0.0
    %7069 = vmatmul.mubr.f32.gmra.mxu0 %v6916
    %v7070 = vpop.f32.mrf.mxu0
    %v7071 = vadd.f32 0.0, %v7070
    %v7072 = vpop.f32.mrf.mxu0
    %7073 = vdwg.mxu0
    %v7074 = vmul.f32 %v7071, 0.03125
    %v7075 = vmul.f32 %v7003, %v7003
    %v7076 = vsub.f32 %v7074, %v7075
    %v7077 = vmax.f32 %v7076, 0.0
    %v7078 = vld [vmem:[#allocation20] sm:$0x1]
    %v7079 = vadd.f32 %v7077, 1e-05
    %v7080 = vrsqrt.pop %v7079
    %v7081 = vmul.f32 %v7078, %v7080
    %v7082 = vld [vmem:[#allocation22] sm:$0x1]
    %v7083 = vmul.f32 %v7003, %v7081
    %v7084 = vsub.f32 %v7082, %v7083
    %v7085 = vld [vmem:[#allocation19] sm:$0xff]
    %v7086 = vld [vmem:[#allocation19 + $0x8] sm:$0xff]
    %v7087 = vld [vmem:[#allocation19 + $0x10] sm:$0xff]
    %v7088 = vld [vmem:[#allocation19 + $0x18] sm:$0xff]
    %v7090 = vsel %vm2777, %v7081, 0
    %7092 = vmatprep.subr.mxu0 0.0
    %7093 = vmatpush1.msra.mxu0 0.0
    %7094 = vmatprep.subr.mxu0 0.0
    %7095 = vmatpush1.msra.mxu0 0.0
    %7096 = vmatprep.subr.mxu0 0.0
    %7097 = vmatpush1.msra.mxu0 0.0
    %7098 = vmatprep.subr.mxu0 0.0
    %7099 = vmatpush1.msra.mxu0 0.0
    %7100 = vmatprep.subr.mxu0 0.0
    %7101 = vmatpush1.msra.mxu0 0.0
    %7102 = vmatprep.subr.mxu0 0.0
    %7103 = vmatpush1.msra.mxu0 0.0
    %7104 = vmatprep.subr.mxu0 0.0
    %7105 = vmatpush1.msra.mxu0 0.0
    %7106 = vmatprep.subr.mxu0 0.0
    %7107 = vmatpush1.msra.mxu0 0.0
    %7108 = vmatprep.subr.mxu0 0.0
    %7109 = vmatpush1.msra.mxu0 0.0
    %7110 = vmatprep.subr.mxu0 0.0
    %7111 = vmatpush1.msra.mxu0 0.0
    %7112 = vmatprep.subr.mxu0 0.0
    %7113 = vmatpush1.msra.mxu0 0.0
    %7114 = vmatprep.subr.mxu0 0.0
    %7115 = vmatpush1.msra.mxu0 0.0
    %7116 = vmatprep.subr.mxu0 0.0
    %7117 = vmatpush1.msra.mxu0 %v7088
    %7118 = vmatprep.subr.mxu0 0.0
    %7119 = vmatpush1.msra.mxu0 %v7087
    %7120 = vmatprep.subr.mxu0 0.0
    %7121 = vmatpush1.msra.mxu0 %v7086
    %7122 = vmatprep.subr.mxu0 0.0
    %7123 = vmatpush1.msra.mxu0 %v7085
    %7124 = vmatprep.subr.mxu0 0.0
    %7125 = vmatpush2.msra.mxu0 0.0
    %7126 = vmatprep.subr.mxu0 0.0
    %7127 = vmatpush2.msra.mxu0 0.0
    %7128 = vmatprep.subr.mxu0 0.0
    %7129 = vmatpush2.msra.mxu0 0.0
    %7130 = vmatprep.subr.mxu0 0.0
    %7131 = vmatpush2.msra.mxu0 0.0
    %7132 = vmatprep.subr.mxu0 0.0
    %7133 = vmatpush2.msra.mxu0 0.0
    %7134 = vmatprep.subr.mxu0 0.0
    %7135 = vmatpush2.msra.mxu0 0.0
    %7136 = vmatprep.subr.mxu0 0.0
    %7137 = vmatpush2.msra.mxu0 0.0
    %7138 = vmatprep.subr.mxu0 0.0
    %7139 = vmatpush2.msra.mxu0 0.0
    %7140 = vmatprep.subr.mxu0 0.0
    %7141 = vmatpush2.msra.mxu0 0.0
    %7142 = vmatprep.subr.mxu0 0.0
    %7143 = vmatpush2.msra.mxu0 0.0
    %7144 = vmatprep.subr.mxu0 0.0
    %7145 = vmatpush2.msra.mxu0 0.0
    %7146 = vmatprep.subr.mxu0 0.0
    %7147 = vmatpush2.msra.mxu0 0.0
    %7148 = vmatprep.subr.mxu0 0.0
    %7149 = vmatpush2.msra.mxu0 0.0
    %7150 = vmatprep.subr.mxu0 0.0
    %7151 = vmatpush2.msra.mxu0 0.0
    %7152 = vmatprep.subr.mxu0 0.0
    %7153 = vmatpush2.msra.mxu0 0.0
    %7154 = vmatprep.subr.mxu0 0.0
    %7155 = vmatpush2.msra.mxu0 0.0
    %7156 = vmatprep.mubr.f32.mxu0 0.0
    %7157 = vmatmul.mubr.f32.gmra.mxu0 %v7090
    %v7158 = vpop.f32.mrf.mxu0
    %v7159 = vadd.f32 0.0, %v7158
    %v7160 = vpop.f32.mrf.mxu0
    %7161 = vdwg.mxu0
    %v7163 = vsel %vm2777, %v7084, 0
    %7165 = vmatprep.subr.mxu0 0.0
    %7166 = vmatpush1.msra.mxu0 0.0
    %7167 = vmatprep.subr.mxu0 0.0
    %7168 = vmatpush1.msra.mxu0 0.0
    %7169 = vmatprep.subr.mxu0 0.0
    %7170 = vmatpush1.msra.mxu0 0.0
    %7171 = vmatprep.subr.mxu0 0.0
    %7172 = vmatpush1.msra.mxu0 0.0
    %7173 = vmatprep.subr.mxu0 0.0
    %7174 = vmatpush1.msra.mxu0 0.0
    %7175 = vmatprep.subr.mxu0 0.0
    %7176 = vmatpush1.msra.mxu0 0.0
    %7177 = vmatprep.subr.mxu0 0.0
    %7178 = vmatpush1.msra.mxu0 0.0
    %7179 = vmatprep.subr.mxu0 0.0
    %7180 = vmatpush1.msra.mxu0 0.0
    %7181 = vmatprep.subr.mxu0 0.0
    %7182 = vmatpush1.msra.mxu0 0.0
    %7183 = vmatprep.subr.mxu0 0.0
    %7184 = vmatpush1.msra.mxu0 0.0
    %7185 = vmatprep.subr.mxu0 0.0
    %7186 = vmatpush1.msra.mxu0 0.0
    %7187 = vmatprep.subr.mxu0 0.0
    %7188 = vmatpush1.msra.mxu0 0.0
    %7189 = vmatprep.subr.mxu0 0.0
    %7190 = vmatpush1.msra.mxu0 %v7088
    %7191 = vmatprep.subr.mxu0 0.0
    %7192 = vmatpush1.msra.mxu0 %v7087
    %7193 = vmatprep.subr.mxu0 0.0
    %7194 = vmatpush1.msra.mxu0 %v7086
    %7195 = vmatprep.subr.mxu0 0.0
    %7196 = vmatpush1.msra.mxu0 %v7085
    %7197 = vmatprep.subr.mxu0 0.0
    %7198 = vmatpush2.msra.mxu0 0.0
    %7199 = vmatprep.subr.mxu0 0.0
    %7200 = vmatpush2.msra.mxu0 0.0
    %7201 = vmatprep.subr.mxu0 0.0
    %7202 = vmatpush2.msra.mxu0 0.0
    %7203 = vmatprep.subr.mxu0 0.0
    %7204 = vmatpush2.msra.mxu0 0.0
    %7205 = vmatprep.subr.mxu0 0.0
    %7206 = vmatpush2.msra.mxu0 0.0
    %7207 = vmatprep.subr.mxu0 0.0
    %7208 = vmatpush2.msra.mxu0 0.0
    %7209 = vmatprep.subr.mxu0 0.0
    %7210 = vmatpush2.msra.mxu0 0.0
    %7211 = vmatprep.subr.mxu0 0.0
    %7212 = vmatpush2.msra.mxu0 0.0
    %7213 = vmatprep.subr.mxu0 0.0
    %7214 = vmatpush2.msra.mxu0 0.0
    %7215 = vmatprep.subr.mxu0 0.0
    %7216 = vmatpush2.msra.mxu0 0.0
    %7217 = vmatprep.subr.mxu0 0.0
    %7218 = vmatpush2.msra.mxu0 0.0
    %7219 = vmatprep.subr.mxu0 0.0
    %7220 = vmatpush2.msra.mxu0 0.0
    %7221 = vmatprep.subr.mxu0 0.0
    %7222 = vmatpush2.msra.mxu0 0.0
    %7223 = vmatprep.subr.mxu0 0.0
    %7224 = vmatpush2.msra.mxu0 0.0
    %7225 = vmatprep.subr.mxu0 0.0
    %7226 = vmatpush2.msra.mxu0 0.0
    %7227 = vmatprep.subr.mxu0 0.0
    %7228 = vmatpush2.msra.mxu0 0.0
    %7229 = vmatprep.mubr.f32.mxu0 0.0
    %7230 = vmatmul.mubr.f32.gmra.mxu0 %v7163
    %v7231 = vpop.f32.mrf.mxu0
    %v7232 = vadd.f32 0.0, %v7231
    %v7233 = vpop.f32.mrf.mxu0
    %7234 = vdwg.mxu0
    %v7235 = vlaneseq
    %v7236 = vshrl.u32 %v7235, 7
    %v7237 = vsub.s32 0, %v7236
    %v7238 = vrot.slane %v7159, %v7237
    %v7239 = vmul.f32 %v6363, %v7238
    %v7240 = vlaneseq
    %v7241 = vshrl.u32 %v7240, 7
    %v7242 = vsub.s32 0, %v7241
    %v7243 = vrot.slane %v7232, %v7242
    %v7244 = vadd.f32 %v7239, %v7243
    %v7245 = vmax.f32 %v7244, 0.0
    %7247 = vrot.lane.b32.xlu0 %v7245, 96
    %v7248 = vpop.permute.xlu0 %7247
    %v7250 = vmax.f32 %v7245, %v7248
    %7251 = vrot.lane.b32.xlu0 %v7245, 64
    %v7252 = vpop.permute.xlu0 %7251
    %v7254 = vmax.f32 %v7250, %v7252
    %7255 = vrot.lane.b32.xlu0 %v7245, 32
    %v7256 = vpop.permute.xlu0 %7255
    %v7258 = vmax.f32 %v7254, %v7256
    %v7260 = vrot.slane %v7258, 1
    %v7262 = vmax.f32 %v7258, %v7260
    %v7263 = vrot.slane %v7258, 2
    %v7265 = vmax.f32 %v7262, %v7263
    %v7266 = vrot.slane %v7258, 3
    %v7268 = vmax.f32 %v7265, %v7266
    %v7269 = vmul.f32 %v6884, %v7238
    %v7270 = vadd.f32 %v7269, %v7243
    %v7271 = vmax.f32 %v7270, 0.0
    %7273 = vrot.lane.b32.xlu0 %v7271, 96
    %v7274 = vpop.permute.xlu0 %7273
    %v7276 = vmax.f32 %v7271, %v7274
    %7277 = vrot.lane.b32.xlu0 %v7271, 64
    %v7278 = vpop.permute.xlu0 %7277
    %v7280 = vmax.f32 %v7276, %v7278
    %7281 = vrot.lane.b32.xlu0 %v7271, 32
    %v7282 = vpop.permute.xlu0 %7281
    %v7284 = vmax.f32 %v7280, %v7282
    %v7286 = vrot.slane %v7284, 1
    %v7288 = vmax.f32 %v7284, %v7286
    %v7289 = vrot.slane %v7284, 2
    %v7291 = vmax.f32 %v7288, %v7289
    %v7292 = vrot.slane %v7284, 3
    %v7294 = vmax.f32 %v7291, %v7292
    %v7296 = vrot.slane %v7294, 7
    %v7298 = vsel %vm2886, %v7268, %v7296
    %v7299 = vld [vmem:[%s16] sm:$0xff]
    %v7300 = vld [vmem:[%s16 + $0x8] sm:$0xff]
    %v7301 = vld [vmem:[%s16 + $0x10] sm:$0xff]
    %v7302 = vld [vmem:[%s16 + $0x18] sm:$0xff]
    %v7303 = vld [vmem:[#allocation23] sm:$0x1]
    %v7305 = vlaneseq
    %v7306 = vshrl.u32 %v7305, 7
    %v7307 = vsub.s32 0, %v7306
    %v7308 = vrot.slane %v7303, %v7307
    %v7311 = vsel %vm2777, %v7298, 0
    %7313 = vmatprep.subr.mxu0 0.0
    %7314 = vmatpush1.msra.mxu0 0.0
    %7315 = vmatprep.subr.mxu0 0.0
    %7316 = vmatpush1.msra.mxu0 0.0
    %7317 = vmatprep.subr.mxu0 0.0
    %7318 = vmatpush1.msra.mxu0 0.0
    %7319 = vmatprep.subr.mxu0 0.0
    %7320 = vmatpush1.msra.mxu0 0.0
    %7321 = vmatprep.subr.mxu0 0.0
    %7322 = vmatpush1.msra.mxu0 0.0
    %7323 = vmatprep.subr.mxu0 0.0
    %7324 = vmatpush1.msra.mxu0 0.0
    %7325 = vmatprep.subr.mxu0 0.0
    %7326 = vmatpush1.msra.mxu0 0.0
    %7327 = vmatprep.subr.mxu0 0.0
    %7328 = vmatpush1.msra.mxu0 0.0
    %7329 = vmatprep.subr.mxu0 0.0
    %7330 = vmatpush1.msra.mxu0 0.0
    %7331 = vmatprep.subr.mxu0 0.0
    %7332 = vmatpush1.msra.mxu0 0.0
    %7333 = vmatprep.subr.mxu0 0.0
    %7334 = vmatpush1.msra.mxu0 0.0
    %7335 = vmatprep.subr.mxu0 0.0
    %7336 = vmatpush1.msra.mxu0 0.0
    %7337 = vmatprep.subr.mxu0 0.0
    %7338 = vmatpush1.msra.mxu0 %v7302
    %7339 = vmatprep.subr.mxu0 0.0
    %7340 = vmatpush1.msra.mxu0 %v7301
    %7341 = vmatprep.subr.mxu0 0.0
    %7342 = vmatpush1.msra.mxu0 %v7300
    %7343 = vmatprep.subr.mxu0 0.0
    %7344 = vmatpush1.msra.mxu0 %v7299
    %7345 = vmatprep.subr.mxu0 0.0
    %7346 = vmatpush2.msra.mxu0 0.0
    %7347 = vmatprep.subr.mxu0 0.0
    %7348 = vmatpush2.msra.mxu0 0.0
    %7349 = vmatprep.subr.mxu0 0.0
    %7350 = vmatpush2.msra.mxu0 0.0
    %7351 = vmatprep.subr.mxu0 0.0
    %7352 = vmatpush2.msra.mxu0 0.0
    %7353 = vmatprep.subr.mxu0 0.0
    %7354 = vmatpush2.msra.mxu0 0.0
    %7355 = vmatprep.subr.mxu0 0.0
    %7356 = vmatpush2.msra.mxu0 0.0
    %7357 = vmatprep.subr.mxu0 0.0
    %7358 = vmatpush2.msra.mxu0 0.0
    %7359 = vmatprep.subr.mxu0 0.0
    %7360 = vmatpush2.msra.mxu0 0.0
    %7361 = vmatprep.subr.mxu0 0.0
    %7362 = vmatpush2.msra.mxu0 0.0
    %7363 = vmatprep.subr.mxu0 0.0
    %7364 = vmatpush2.msra.mxu0 0.0
    %7365 = vmatprep.subr.mxu0 0.0
    %7366 = vmatpush2.msra.mxu0 0.0
    %7367 = vmatprep.subr.mxu0 0.0
    %7368 = vmatpush2.msra.mxu0 0.0
    %7369 = vmatprep.subr.mxu0 0.0
    %7370 = vmatpush2.msra.mxu0 0.0
    %7371 = vmatprep.subr.mxu0 0.0
    %7372 = vmatpush2.msra.mxu0 0.0
    %7373 = vmatprep.subr.mxu0 0.0
    %7374 = vmatpush2.msra.mxu0 0.0
    %7375 = vmatprep.subr.mxu0 0.0
    %7376 = vmatpush2.msra.mxu0 0.0
    %7377 = vmatprep.mubr.f32.mxu0 0.0
    %7378 = vmatmul.mubr.f32.gmra.mxu0 %v7311
    %v7379 = vpop.f32.mrf.mxu0
    %v7380 = vadd.f32 %v7308, %v7379
    %v7381 = vpop.f32.mrf.mxu0
    %7382 = vdwg.mxu0
    %v7383 = vmax.f32 %v7380, 0.0
    %v7384 = vld [vmem:[%s18] sm:$0xff]
    %v7385 = vld [vmem:[%s18 + $0x8] sm:$0xff]
    %v7386 = vld [vmem:[#allocation25] sm:$0x1]
    %v7388 = vlaneseq
    %v7389 = vshrl.u32 %v7388, 7
    %v7390 = vsub.s32 0, %v7389
    %v7391 = vrot.slane %v7386, %v7390
    %v7394 = vsel %vm2767, %v7383, 0
    %7396 = vmatprep.subr.mxu0 0.0
    %7397 = vmatpush1.msra.mxu0 0.0
    %7398 = vmatprep.subr.mxu0 0.0
    %7399 = vmatpush1.msra.mxu0 0.0
    %7400 = vmatprep.subr.mxu0 0.0
    %7401 = vmatpush1.msra.mxu0 0.0
    %7402 = vmatprep.subr.mxu0 0.0
    %7403 = vmatpush1.msra.mxu0 0.0
    %7404 = vmatprep.subr.mxu0 0.0
    %7405 = vmatpush1.msra.mxu0 0.0
    %7406 = vmatprep.subr.mxu0 0.0
    %7407 = vmatpush1.msra.mxu0 0.0
    %7408 = vmatprep.subr.mxu0 0.0
    %7409 = vmatpush1.msra.mxu0 0.0
    %7410 = vmatprep.subr.mxu0 0.0
    %7411 = vmatpush1.msra.mxu0 0.0
    %7412 = vmatprep.subr.mxu0 0.0
    %7413 = vmatpush1.msra.mxu0 0.0
    %7414 = vmatprep.subr.mxu0 0.0
    %7415 = vmatpush1.msra.mxu0 0.0
    %7416 = vmatprep.subr.mxu0 0.0
    %7417 = vmatpush1.msra.mxu0 0.0
    %7418 = vmatprep.subr.mxu0 0.0
    %7419 = vmatpush1.msra.mxu0 0.0
    %7420 = vmatprep.subr.mxu0 0.0
    %7421 = vmatpush1.msra.mxu0 0.0
    %7422 = vmatprep.subr.mxu0 0.0
    %7423 = vmatpush1.msra.mxu0 0.0
    %7424 = vmatprep.subr.mxu0 0.0
    %7425 = vmatpush1.msra.mxu0 %v7385
    %7426 = vmatprep.subr.mxu0 0.0
    %7427 = vmatpush1.msra.mxu0 %v7384
    %7428 = vmatprep.subr.mxu0 0.0
    %7429 = vmatpush2.msra.mxu0 0.0
    %7430 = vmatprep.subr.mxu0 0.0
    %7431 = vmatpush2.msra.mxu0 0.0
    %7432 = vmatprep.subr.mxu0 0.0
    %7433 = vmatpush2.msra.mxu0 0.0
    %7434 = vmatprep.subr.mxu0 0.0
    %7435 = vmatpush2.msra.mxu0 0.0
    %7436 = vmatprep.subr.mxu0 0.0
    %7437 = vmatpush2.msra.mxu0 0.0
    %7438 = vmatprep.subr.mxu0 0.0
    %7439 = vmatpush2.msra.mxu0 0.0
    %7440 = vmatprep.subr.mxu0 0.0
    %7441 = vmatpush2.msra.mxu0 0.0
    %7442 = vmatprep.subr.mxu0 0.0
    %7443 = vmatpush2.msra.mxu0 0.0
    %7444 = vmatprep.subr.mxu0 0.0
    %7445 = vmatpush2.msra.mxu0 0.0
    %7446 = vmatprep.subr.mxu0 0.0
    %7447 = vmatpush2.msra.mxu0 0.0
    %7448 = vmatprep.subr.mxu0 0.0
    %7449 = vmatpush2.msra.mxu0 0.0
    %7450 = vmatprep.subr.mxu0 0.0
    %7451 = vmatpush2.msra.mxu0 0.0
    %7452 = vmatprep.subr.mxu0 0.0
    %7453 = vmatpush2.msra.mxu0 0.0
    %7454 = vmatprep.subr.mxu0 0.0
    %7455 = vmatpush2.msra.mxu0 0.0
    %7456 = vmatprep.subr.mxu0 0.0
    %7457 = vmatpush2.msra.mxu0 0.0
    %7458 = vmatprep.subr.mxu0 0.0
    %7459 = vmatpush2.msra.mxu0 0.0
    %7460 = vmatprep.mubr.f32.mxu0 0.0
    %7461 = vmatmul.mubr.f32.gmra.mxu0 %v7394
    %v7462 = vpop.f32.mrf.mxu0
    %v7463 = vadd.f32 %v7391, %v7462
    %v7464 = vpop.f32.mrf.mxu0
    %7465 = vdwg.mxu0
    %v7466 = vld [vmem:[#allocation28] sm:$0xff]
    %v7467 = vld [vmem:[#allocation31] sm:$0x1]
    %v7468 = vmax.f32 %v7466, 0.0
    %v7469 = vand.u32 2147483647, %v7466
    %v7470 = vsub.f32 0.0, %v7469
    %v7471 = vmul.f32 %v7470, 1.442695
    %v7472 = vpow.pop %v7471
    %v7473 = vadd.f32 %v7472, 1.0
    %v7474 = vlog2.pop %v7473
    %v7475 = vmul.f32 %v7474, 0.6931472
    %v7476 = vmul.f32 -0.5, %v7472
    %v7477 = vadd.f32 %v7476, 1.0
    %v7478 = vmul.f32 %v7477, %v7472
    %v7479 = vand.u32 2147483647, %v7472
    %vm7480 = vcmp.lt.f32.partialorder %v7479, 0.0004427343
    %v7481 = vsel %vm7480, %v7478, %v7475
    %v7482 = vadd.f32 %v7468, %v7481
    %v7483 = vmax.f32 %v7467, 0.0
    %v7484 = vand.u32 2147483647, %v7467
    %v7485 = vsub.f32 0.0, %v7484
    %v7486 = vmul.f32 %v7485, 1.442695
    %v7487 = vpow.pop %v7486
    %v7488 = vadd.f32 %v7487, 1.0
    %v7489 = vlog2.pop %v7488
    %v7490 = vmul.f32 %v7489, 0.6931472
    %v7491 = vmul.f32 -0.5, %v7487
    %v7492 = vadd.f32 %v7491, 1.0
    %v7493 = vmul.f32 %v7492, %v7487
    %v7494 = vand.u32 2147483647, %v7487
    %vm7495 = vcmp.lt.f32.partialorder %v7494, 0.0004427343
    %v7496 = vsel %vm7495, %v7493, %v7490
    %v7497 = vadd.f32 %v7483, %v7496
    %v7498 = vld [vmem:[#allocation26] sm:$0xff]
    %v7499 = vld [vmem:[#allocation32] sm:$0xff]
    %v7500 = vmul.f32 %v7482, %v7499
    %v7501 = vadd.f32 %v7498, %v7500
    %v7502 = vld [vmem:[#allocation29] sm:$0x1]
    %v7503 = vld [vmem:[#allocation34] sm:$0x1]
    %v7504 = vmul.f32 %v7497, %v7503
    %v7505 = vadd.f32 %v7502, %v7504
    %v7507 = vlaneseq
    %v7508 = vshrl.u32 %v7507, 7
    %v7509 = vsub.s32 0, %v7508
    %v7510 = vrot.slane %v7505, %v7509
    %v7513 = vsel %vm2341, %v7463, 0
    %7515 = vmatprep.subr.mxu0 0.0
    %7516 = vmatpush1.msra.mxu0 0.0
    %7517 = vmatprep.subr.mxu0 0.0
    %7518 = vmatpush1.msra.mxu0 0.0
    %7519 = vmatprep.subr.mxu0 0.0
    %7520 = vmatpush1.msra.mxu0 0.0
    %7521 = vmatprep.subr.mxu0 0.0
    %7522 = vmatpush1.msra.mxu0 0.0
    %7523 = vmatprep.subr.mxu0 0.0
    %7524 = vmatpush1.msra.mxu0 0.0
    %7525 = vmatprep.subr.mxu0 0.0
    %7526 = vmatpush1.msra.mxu0 0.0
    %7527 = vmatprep.subr.mxu0 0.0
    %7528 = vmatpush1.msra.mxu0 0.0
    %7529 = vmatprep.subr.mxu0 0.0
    %7530 = vmatpush1.msra.mxu0 0.0
    %7531 = vmatprep.subr.mxu0 0.0
    %7532 = vmatpush1.msra.mxu0 0.0
    %7533 = vmatprep.subr.mxu0 0.0
    %7534 = vmatpush1.msra.mxu0 0.0
    %7535 = vmatprep.subr.mxu0 0.0
    %7536 = vmatpush1.msra.mxu0 0.0
    %7537 = vmatprep.subr.mxu0 0.0
    %7538 = vmatpush1.msra.mxu0 0.0
    %7539 = vmatprep.subr.mxu0 0.0
    %7540 = vmatpush1.msra.mxu0 0.0
    %7541 = vmatprep.subr.mxu0 0.0
    %7542 = vmatpush1.msra.mxu0 0.0
    %7543 = vmatprep.subr.mxu0 0.0
    %7544 = vmatpush1.msra.mxu0 0.0
    %7545 = vmatprep.subr.mxu0 0.0
    %7546 = vmatpush1.msra.mxu0 %v7501
    %7547 = vmatprep.subr.mxu0 0.0
    %7548 = vmatpush2.msra.mxu0 0.0
    %7549 = vmatprep.subr.mxu0 0.0
    %7550 = vmatpush2.msra.mxu0 0.0
    %7551 = vmatprep.subr.mxu0 0.0
    %7552 = vmatpush2.msra.mxu0 0.0
    %7553 = vmatprep.subr.mxu0 0.0
    %7554 = vmatpush2.msra.mxu0 0.0
    %7555 = vmatprep.subr.mxu0 0.0
    %7556 = vmatpush2.msra.mxu0 0.0
    %7557 = vmatprep.subr.mxu0 0.0
    %7558 = vmatpush2.msra.mxu0 0.0
    %7559 = vmatprep.subr.mxu0 0.0
    %7560 = vmatpush2.msra.mxu0 0.0
    %7561 = vmatprep.subr.mxu0 0.0
    %7562 = vmatpush2.msra.mxu0 0.0
    %7563 = vmatprep.subr.mxu0 0.0
    %7564 = vmatpush2.msra.mxu0 0.0
    %7565 = vmatprep.subr.mxu0 0.0
    %7566 = vmatpush2.msra.mxu0 0.0
    %7567 = vmatprep.subr.mxu0 0.0
    %7568 = vmatpush2.msra.mxu0 0.0
    %7569 = vmatprep.subr.mxu0 0.0
    %7570 = vmatpush2.msra.mxu0 0.0
    %7571 = vmatprep.subr.mxu0 0.0
    %7572 = vmatpush2.msra.mxu0 0.0
    %7573 = vmatprep.subr.mxu0 0.0
    %7574 = vmatpush2.msra.mxu0 0.0
    %7575 = vmatprep.subr.mxu0 0.0
    %7576 = vmatpush2.msra.mxu0 0.0
    %7577 = vmatprep.subr.mxu0 0.0
    %7578 = vmatpush2.msra.mxu0 0.0
    %7579 = vmatprep.mubr.f32.mxu0 0.0
    %7580 = vmatmul.mubr.f32.gmra.mxu0 %v7513
    %v7581 = vpop.f32.mrf.mxu0
    %v7582 = vadd.f32 %v7510, %v7581
    %v7583 = vpop.f32.mrf.mxu0
    %7584 = vdwg.mxu0
    %vm7585 = vcmask 33792
    %7586 = vst.msk [vmem:[#allocation35] sm:$0x3] %vm7585, %v7582
    %v7587 = vld [vmem:[#allocation26] sm:$0xff]
    %v7588 = vrcp.pop %v7482
    %v7589 = vmul.f32 1.0, %v7588
    %v7590 = vlog2.pop %v7589
    %v7591 = vmul.f32 %v7590, 0.6931472
    %v7592 = vmul.f32 %v7482, %v7482
    %v7593 = vmul.f32 %v7587, %v7587
    %v7594 = vadd.f32 %v7592, %v7593
    %v7595 = vrcp.pop 2.0
    %v7596 = vmul.f32 %v7594, %v7595
    %v7597 = vadd.f32 %v7591, %v7596
    %v7598 = vsub.f32 %v7597, 0.5
    %vm7599 = vcmask 39936
    %v7600 = vsel %vm7599, %v7598, 0.0
    %7601 = vadd.xlane.f32.xlu0 %v7600
    %v7602 = vpop.xlane.xlu0 %7601
    %v7603 = vrot.slane %v7602, 4
    %v7604 = vadd.f32 %v7602, %v7603
    %v7605 = vrot.slane %v7604, 2
    %v7606 = vadd.f32 %v7604, %v7605
    %v7607 = vrot.slane %v7606, 1
    %v7608 = vadd.f32 %v7606, %v7607
    %s7609 = vtos %v7608
    %v7610 = vstv %s7609
    %v7611 = vld [vmem:[#allocation29] sm:$0x1]
    %v7612 = vrcp.pop %v7497
    %v7613 = vmul.f32 1.0, %v7612
    %v7614 = vlog2.pop %v7613
    %v7615 = vmul.f32 %v7614, 0.6931472
    %v7616 = vmul.f32 %v7497, %v7497
    %v7617 = vmul.f32 %v7611, %v7611
    %v7618 = vadd.f32 %v7616, %v7617
    %v7619 = vmul.f32 %v7618, %v7595
    %v7620 = vadd.f32 %v7615, %v7619
    %v7621 = vsub.f32 %v7620, 0.5
    %vm7622 = vcmask 32768
    %v7623 = vsel %vm7622, %v7621, 0.0
    %7624 = vadd.xlane.f32.xlu0 %v7623
    %v7625 = vpop.xlane.xlu0 %7624
    %v7626 = vrot.slane %v7625, 4
    %v7627 = vadd.f32 %v7625, %v7626
    %v7628 = vrot.slane %v7627, 2
    %v7629 = vadd.f32 %v7627, %v7628
    %v7630 = vrot.slane %v7629, 1
    %v7631 = vadd.f32 %v7629, %v7630
    %s7632 = vtos %v7631
    %v7633 = vstv %s7632
    %v7634 = vadd.f32 %v7610, %v7633
    %vm7635 = vcmask 0
    %7636 = vst.msk [vmem:[#allocation36] sm:$0x1] %vm7635, %v7634
    // Predicated region
    $region190: #{forward.1} parent=1 // pred_check
      _
    $region191: #{forward.1} parent=1 // pred_check_branch
      %7638 = sbr.rel (0) target = $region193
    $region192: #{forward.1} parent=1 // pred_region
      %s7640 = ssub.s32 32, 32
      %7641 = vsyncadd [#allocation4], %s7640
      %s7643 = sshll.u32 [#allocation35], 4
      %s7644 = int_to_ptr.vmem [resolvable:$true] %s7643
      %7646 = dma.vmem_to_hbm [thread:$0]  %s7644, 32, %s26, [#allocation4]
    $region193: #{forward.1} parent=1 // pred_fallthru
      _
    // Predicated region
    $region194: #{forward.1} parent=1 // pred_check
      _
    $region195: #{forward.1} parent=1 // pred_check_branch
      %7648 = sbr.rel (0) target = $region197
    $region196: #{forward.1} parent=1 // pred_region
      %s7650 = ssub.s32 16, 16
      %7651 = vsyncadd [#allocation37], %s7650
      %s7653 = sshll.u32 [#allocation36], 4
      %s7654 = int_to_ptr.vmem [resolvable:$true] %s7653
      %7656 = dma.vmem_to_hbm [thread:$0]  %s7654, 16, %s27, [#allocation37]
    $region197: #{forward.1} parent=1 // pred_fallthru
      _
    // Predicated region
    $region198: #{forward.1} parent=1 // pred_check
      _
    $region199: #{forward.1} parent=1 // pred_check_branch
      %7658 = sbr.rel (0) target = $region201
    $region200: #{forward.1} parent=1 // pred_region
      %7659 = dma.done [#allocation4], 32
    $region201: #{forward.1} parent=1 // pred_fallthru
      _
    // Predicated region
    $region202: #{forward.1} parent=1 // pred_check
      _
    $region203: #{forward.1} parent=1 // pred_check_branch
      %7661 = sbr.rel (0) target = $region205
    $region204: #{forward.1} parent=1 // pred_region
      %7662 = dma.done [#allocation37], 16
    $region205: #{forward.1} parent=1 // pred_fallthru
      _
    %7663 = vsyncpa [#allocation3], 1
    %7664 = vsyncpa [#allocation6], 1
    %7665 = vsyncpa [#allocation9], 1
    %7666 = vsyncpa [#allocation12], 1
    %7667 = vsyncpa [#allocation15], 1
    %7668 = vsyncpa [#allocation18], 1
    %7669 = vsyncpa [#allocation21], 1
    %7670 = vsyncpa [#allocation24], 1
    %7671 = vsyncpa [#allocation27], 1
    %7672 = vsyncpa [#allocation30], 1
    %7673 = vsyncpa [#allocation33], 1
    %7674 = vsyncpa [#allocation4], 1
    %7675 = vsyncpa [#allocation37], 1

</llo_original>
